<compile_context>
chip_gen: v7x
topology: tpu7x:2x2x1
jax: 0.10.0
libtpu: 0.0.40
codegen_flags: <defaults>
</compile_context>

<pallas_src>
import math
import jax
import jax.numpy as jnp
from jax.experimental import pallas as pl
from jax.experimental.pallas import tpu as pltpu

INPUT_LAYER = 512
CRITIC_HIDDEN = 1024


def _round_up(x, m):
    return ((x + m - 1) // m) * m


def _critic_kernel(x_ref,
                   w1_ref, b1_ref,
                   w2_ref, b2_ref,
                   w3_ref, b3_ref,
                   w4_ref, b4_ref,
                   out_ref):
    bf16 = jnp.bfloat16
    f32 = jnp.float32

    # fc1 + relu: bf16 MXU inputs, f32 accumulation.  Epilogue (bias + ReLU) in
    # bf16 (native VALU rate on v6e/v7x); the bf16 result feeds the next dot
    # directly, so no extra pre-dot cast.
    h = jnp.dot(x_ref[...], w1_ref[...], preferred_element_type=f32)
    h = jnp.maximum(h.astype(bf16) + b1_ref[...], 0)
    # fc2 + relu
    h = jnp.dot(h, w2_ref[...], preferred_element_type=f32)
    h = jnp.maximum(h.astype(bf16) + b2_ref[...], 0)
    # fc3 + relu
    h = jnp.dot(h, w3_ref[...], preferred_element_type=f32)
    h = jnp.maximum(h.astype(bf16) + b3_ref[...], 0)

    # Value head (no activation).  w4 is (A, 1024) bf16, b4 is (1, A) f32.
    A = w4_ref.shape[0]
    if A == 1:
        # VPU multiply + XLU lane reduce in f32: avoids a lane-padded (1024, 1)
        # N=1 MXU matmul and keeps the MXU slot free.
        v = jnp.sum(h * w4_ref[...].astype(f32), axis=-1, keepdims=True)
    else:
        v = jax.lax.dot_general(
            h, w4_ref[...],
            dimension_numbers=(((1,), (1,)), ((), ())),
            preferred_element_type=f32)
    out_ref[...] = (v + b4_ref[...]).astype(out_ref.dtype)


def _choose_tile_b(batch, tile_b_max):
    """Pick the batch tile.

    * Small batches: pad only to the sublane multiple of 8 (no wasted MXU rows).
    * Large batches: at least 2 tiles (so v7x's two TensorCores both get work),
      each as close to tile_b_max as possible with minimal padding.
    """
    b8 = _round_up(max(batch, 1), 8)
    if b8 <= tile_b_max and b8 < 256:
        return b8
    n_tiles = max(2, -(-b8 // tile_b_max))
    return _round_up(-(-b8 // n_tiles), 8)


def pt_critic_forward(x, prepared_params, *, tile_b_max=512,
                      vmem_limit_bytes=48 * 1024 * 1024):
    """x: (B, D_in) float32.  prepared_params: output of prepare_params().
    Returns (B, action_size) float32.

    tile_b_max: upper bound on rows per grid step.  512 is a good portable
    default (v5e is already MXU-bound at 256; v6e/v7x benefit from the larger
    tile; v7x still gets >= 2 grid steps for its 2 TensorCores and stays well
    inside its 64 MiB VMEM at the 48 MiB limit below).
    """
    (w1, b1), (w2, b2), (w3, b3), (w4, b4) = prepared_params
    B, D_in = x.shape
    D_pad = w1.shape[0]
    A = w4.shape[0]
    assert D_in <= D_pad
    assert tile_b_max % 8 == 0

    tile_b = _choose_tile_b(B, tile_b_max)
    B_pad = _round_up(max(B, 1), tile_b)
    # Stream x as bf16: halves the only per-step HBM->VMEM traffic and drops
    # the in-kernel full-tile cast.  Zero-padded columns contribute exactly 0.
    xp = jnp.pad(x, ((0, B_pad - B), (0, D_pad - D_in))).astype(jnp.bfloat16)

    def build(single_buffer_weights):
        # Weights/biases are grid-invariant: single-buffering them avoids
        # doubling their VMEM footprint.
        wmode = ({"pipeline_mode": pl.Buffered(1)}
                 if single_buffer_weights else {})
        const = lambda a: pl.BlockSpec(a.shape, lambda i: (0, 0), **wmode)
        return pl.pallas_call(
            _critic_kernel,
            out_shape=jax.ShapeDtypeStruct((B_pad, A), jnp.float32),
            grid_spec=pltpu.PrefetchScalarGridSpec(
                num_scalar_prefetch=0,
                grid=(B_pad // tile_b,),
                in_specs=[
                    pl.BlockSpec((tile_b, D_pad), lambda i: (i, 0)),  # x tile
                    const(w1), const(b1),
                    const(w2), const(b2),
                    const(w3), const(b3),
                    const(w4), const(b4),
                ],
                out_specs=pl.BlockSpec((tile_b, A), lambda i: (i, 0)),
            ),
            compiler_params=pltpu.CompilerParams(
                dimension_semantics=("parallel",),   # megacore shards the batch grid
                vmem_limit_bytes=vmem_limit_bytes,
            ),
        )

    args = (xp, w1, b1, w2, b2, w3, b3, w4, b4)
    try:
        out = build(True)(*args)
    except Exception as first_err:
        # Targeted fallback: only if the double-buffered build succeeds is the
        # failure attributed to Buffered(1); otherwise re-raise the real error.
        try:
            out = build(False)(*args)
        except Exception:
            raise first_err
    return out[:B]


def prepare_params(params):
    """Convert logical f32 params ((in,out) weights, (1,out) biases) into the
    kernel layout: bf16 weights, w1 rows zero-padded to a multiple of 128,
    bf16 hidden biases, value-head weight stored (A, 1024) bf16, f32 b4."""
    (w1, b1), (w2, b2), (w3, b3), (w4, b4) = params
    bf16 = jnp.bfloat16
    d_in = w1.shape[0]
    d_pad = _round_up(d_in, 128)
    w1k = jnp.pad(w1, ((0, d_pad - d_in), (0, 0))).astype(bf16)   # (D_pad, 512)
    w2k = w2.astype(bf16)                                         # (512, 1024)
    w3k = w3.astype(bf16)                                         # (1024, 1024)
    w4k = jnp.asarray(w4.T, dtype=bf16)                           # (A, 1024)
    return ((w1k, b1.astype(bf16)), (w2k, b2.astype(bf16)),
            (w3k, b3.astype(bf16)), (w4k, b4.astype(jnp.float32)))


def init_params(key, state_dim, action_dim=1):
    """Deterministic init mirroring the module shapes.
    Weights: Xavier-normal (as the module's apply() does).
    Biases:  PyTorch Linear default U(-1/sqrt(fan_in), 1/sqrt(fan_in))."""
    dims = [(state_dim, INPUT_LAYER),
            (INPUT_LAYER, CRITIC_HIDDEN),
            (CRITIC_HIDDEN, CRITIC_HIDDEN),
            (CRITIC_HIDDEN, action_dim)]
    params = []
    for (fan_in, fan_out) in dims:
        key, kw, kb = jax.random.split(key, 3)
        std = math.sqrt(2.0 / (fan_in + fan_out))
        w = std * jax.random.normal(kw, (fan_in, fan_out), dtype=jnp.float32)
        bound = 1.0 / math.sqrt(fan_in)
        b = jax.random.uniform(kb, (1, fan_out), dtype=jnp.float32,
                               minval=-bound, maxval=bound)
        params.append((w, b))
    return params


def pt_critic_ref(x, params):
    """Pure-JAX reference mirroring the kernel arithmetic (bf16 weights and
    activations into each dot, f32 accumulation, bf16 bias+ReLU epilogue,
    f32 value head)."""
    bf16 = jnp.bfloat16
    f32 = jnp.float32
    (w1, b1), (w2, b2), (w3, b3), (w4, b4) = params

    def layer(h, w, b):
        acc = jnp.dot(h.astype(bf16), w.astype(bf16), preferred_element_type=f32)
        return jnp.maximum(acc.astype(bf16) + b.astype(bf16), 0)

    h = layer(x, w1, b1)
    h = layer(h, w2, b2)
    h = layer(h, w3, b3)
    w4q = w4.astype(bf16).astype(f32)
    return jnp.dot(h.astype(f32), w4q, preferred_element_type=f32) + b4


if __name__ == "__main__":
    key = jax.random.PRNGKey(0)
    key, kx = jax.random.split(key)

    # state_size = [32] (MLP branch), action_size = [1]
    B, D_in = 8, 32
    x = jax.random.normal(kx, (B, D_in), dtype=jnp.float32)
    params = init_params(key, D_in, action_dim=1)
    prepared = prepare_params(params)

    # Small batch: padded only to 8 rows, single grid step.
    out = jax.block_until_ready(pt_critic_forward(x, prepared))
    ref = pt_critic_ref(x, params)
    assert out.shape == (B, 1)
    assert jnp.allclose(out, ref, atol=2e-2, rtol=2e-2), \
        f"mismatch vs reference, max abs err {jnp.max(jnp.abs(out - ref))}"

    # Multi-tile path: force a tiny tile so the batch grid has 3 steps.
    key, kx2 = jax.random.split(key)
    B2 = 20
    x2 = jax.random.normal(kx2, (B2, D_in), dtype=jnp.float32)
    out2 = jax.block_until_ready(pt_critic_forward(x2, prepared, tile_b_max=8))
    ref2 = pt_critic_ref(x2, params)
    assert out2.shape == (B2, 1)
    assert jnp.allclose(out2, ref2, atol=2e-2, rtol=2e-2), \
        f"multi-tile mismatch, max abs err {jnp.max(jnp.abs(out2 - ref2))}"

    # TODO(synk): Conv branch (len(state_size)==3) of PTCritic is not
    # implemented; this covers the MLP path only.
    # TODO(synk): chip-gated quantization of w2/w3 (int8 on v5e/v6e, fp8 e4m3
    # on v7x, via pltpu.get_tpu_info()) would cut the dominant MXU time ~2x;
    # left as bf16 for portability/precision.
    # TODO(synk): padding D_in to a multiple of 256 (v6e/v7x MXU depth) is a
    # ~1% fc1-only win; skipped.
    print("KERNEL_OK")
</pallas_src>

<mosaic_0001>
module attributes {stable_mosaic.version = 11 : i64} {
  func.func @_critic_kernel(%arg0: i32, %arg1: memref<8x128xbf16, #tpu.memory_space<vmem>>, %arg2: memref<128x512xbf16, #tpu.memory_space<vmem>>, %arg3: memref<1x512xbf16, #tpu.memory_space<vmem>>, %arg4: memref<512x1024xbf16, #tpu.memory_space<vmem>>, %arg5: memref<1x1024xbf16, #tpu.memory_space<vmem>>, %arg6: memref<1024x1024xbf16, #tpu.memory_space<vmem>>, %arg7: memref<1x1024xbf16, #tpu.memory_space<vmem>>, %arg8: memref<1x1024xbf16, #tpu.memory_space<vmem>>, %arg9: memref<1x1xf32, #tpu.memory_space<vmem>>, %arg10: memref<8x1xf32, #tpu.memory_space<vmem>>) attributes {dimension_semantics = [#tpu.dimension_semantics<parallel>], iteration_bounds = array<i64: 1>, scalar_prefetch = 0 : i64, scratch_operands = 0 : i64, tpu.core_type = #tpu.core_type<tc>, window_params = [{transform_indices = @transform_0, window_bounds = array<i64: 8, 128>}, {pipeline_mode = #tpu.pipeline_mode<synchronous>, transform_indices = @transform_1, window_bounds = array<i64: 128, 512>}, {pipeline_mode = #tpu.pipeline_mode<synchronous>, transform_indices = @transform_2, window_bounds = array<i64: 1, 512>}, {pipeline_mode = #tpu.pipeline_mode<synchronous>, transform_indices = @transform_3, window_bounds = array<i64: 512, 1024>}, {pipeline_mode = #tpu.pipeline_mode<synchronous>, transform_indices = @transform_4, window_bounds = array<i64: 1, 1024>}, {pipeline_mode = #tpu.pipeline_mode<synchronous>, transform_indices = @transform_5, window_bounds = array<i64: 1024, 1024>}, {pipeline_mode = #tpu.pipeline_mode<synchronous>, transform_indices = @transform_6, window_bounds = array<i64: 1, 1024>}, {pipeline_mode = #tpu.pipeline_mode<synchronous>, transform_indices = @transform_7, window_bounds = array<i64: 1, 1024>}, {pipeline_mode = #tpu.pipeline_mode<synchronous>, transform_indices = @transform_8, window_bounds = array<i64: 1, 1>}, {transform_indices = @transform_9, window_bounds = array<i64: 8, 1>}]} {
    %c0 = arith.constant 0 : index
    %c0_0 = arith.constant 0 : index
    %0 = vector.load %arg1[%c0, %c0_0] : memref<8x128xbf16, #tpu.memory_space<vmem>>, vector<8x128xbf16>
    %c0_1 = arith.constant 0 : index
    %c0_2 = arith.constant 0 : index
    %1 = vector.load %arg2[%c0_1, %c0_2] : memref<128x512xbf16, #tpu.memory_space<vmem>>, vector<128x512xbf16>
    %cst = arith.constant dense<0.000000e+00> : vector<8x512xf32>
    %2 = tpu.matmul %0, %1, %cst {dimension_numbers = #tpu.dot_dimension_numbers<[1], [0], [0], [1], [0, 0, 1, 1], [], []>} : vector<8x128xbf16>, vector<128x512xbf16>, vector<8x512xf32> -> vector<8x512xf32>
    %3 = arith.truncf %2 : vector<8x512xf32> to vector<8x512xbf16>
    %c0_3 = arith.constant 0 : index
    %c0_4 = arith.constant 0 : index
    %4 = vector.load %arg3[%c0_3, %c0_4] : memref<1x512xbf16, #tpu.memory_space<vmem>>, vector<1x512xbf16>
    %5 = vector.broadcast %4 : vector<1x512xbf16> to vector<8x512xbf16>
    %6 = arith.addf %3, %5 : vector<8x512xbf16>
    %cst_5 = arith.constant 0.000000e+00 : bf16
    %7 = vector.broadcast %cst_5 : bf16 to vector<8x512xbf16>
    %8 = arith.maximumf %6, %7 : vector<8x512xbf16>
    %c0_6 = arith.constant 0 : index
    %c0_7 = arith.constant 0 : index
    %9 = vector.load %arg4[%c0_6, %c0_7] : memref<512x1024xbf16, #tpu.memory_space<vmem>>, vector<512x1024xbf16>
    %cst_8 = arith.constant dense<0.000000e+00> : vector<8x1024xf32>
    %10 = tpu.matmul %8, %9, %cst_8 {dimension_numbers = #tpu.dot_dimension_numbers<[1], [0], [0], [1], [0, 0, 1, 1], [], []>} : vector<8x512xbf16>, vector<512x1024xbf16>, vector<8x1024xf32> -> vector<8x1024xf32>
    %11 = arith.truncf %10 : vector<8x1024xf32> to vector<8x1024xbf16>
    %c0_9 = arith.constant 0 : index
    %c0_10 = arith.constant 0 : index
    %12 = vector.load %arg5[%c0_9, %c0_10] : memref<1x1024xbf16, #tpu.memory_space<vmem>>, vector<1x1024xbf16>
    %13 = vector.broadcast %12 : vector<1x1024xbf16> to vector<8x1024xbf16>
    %14 = arith.addf %11, %13 : vector<8x1024xbf16>
    %cst_11 = arith.constant 0.000000e+00 : bf16
    %15 = vector.broadcast %cst_11 : bf16 to vector<8x1024xbf16>
    %16 = arith.maximumf %14, %15 : vector<8x1024xbf16>
    %c0_12 = arith.constant 0 : index
    %c0_13 = arith.constant 0 : index
    %17 = vector.load %arg6[%c0_12, %c0_13] : memref<1024x1024xbf16, #tpu.memory_space<vmem>>, vector<1024x1024xbf16>
    %cst_14 = arith.constant dense<0.000000e+00> : vector<8x1024xf32>
    %18 = tpu.matmul %16, %17, %cst_14 {dimension_numbers = #tpu.dot_dimension_numbers<[1], [0], [0], [1], [0, 0, 1, 1], [], []>} : vector<8x1024xbf16>, vector<1024x1024xbf16>, vector<8x1024xf32> -> vector<8x1024xf32>
    %19 = arith.truncf %18 : vector<8x1024xf32> to vector<8x1024xbf16>
    %c0_15 = arith.constant 0 : index
    %c0_16 = arith.constant 0 : index
    %20 = vector.load %arg7[%c0_15, %c0_16] : memref<1x1024xbf16, #tpu.memory_space<vmem>>, vector<1x1024xbf16>
    %21 = vector.broadcast %20 : vector<1x1024xbf16> to vector<8x1024xbf16>
    %22 = arith.addf %19, %21 : vector<8x1024xbf16>
    %cst_17 = arith.constant 0.000000e+00 : bf16
    %23 = vector.broadcast %cst_17 : bf16 to vector<8x1024xbf16>
    %24 = arith.maximumf %22, %23 : vector<8x1024xbf16>
    %c0_18 = arith.constant 0 : index
    %c0_19 = arith.constant 0 : index
    %25 = vector.load %arg8[%c0_18, %c0_19] : memref<1x1024xbf16, #tpu.memory_space<vmem>>, vector<1x1024xbf16>
    %26 = arith.extf %25 : vector<1x1024xbf16> to vector<1x1024xf32>
    %27 = arith.extf %24 : vector<8x1024xbf16> to vector<8x1024xf32>
    %28 = vector.broadcast %26 : vector<1x1024xf32> to vector<8x1024xf32>
    %29 = arith.mulf %27, %28 : vector<8x1024xf32>
    %cst_20 = arith.constant dense<0.000000e+00> : vector<8xf32>
    %30 = vector.multi_reduction <add>, %29, %cst_20 [1] : vector<8x1024xf32> to vector<8xf32>
    %31 = vector.shape_cast %30 : vector<8xf32> to vector<8x1xf32>
    %c0_21 = arith.constant 0 : index
    %c0_22 = arith.constant 0 : index
    %32 = vector.load %arg9[%c0_21, %c0_22] : memref<1x1xf32, #tpu.memory_space<vmem>>, vector<1x1xf32>
    %33 = vector.broadcast %32 : vector<1x1xf32> to vector<8x1xf32>
    %34 = arith.addf %31, %33 : vector<8x1xf32>
    %c0_23 = arith.constant 0 : index
    %c0_24 = arith.constant 0 : index
    %35 = vector.load %arg10[%c0_23, %c0_24] : memref<8x1xf32, #tpu.memory_space<vmem>>, vector<8x1xf32>
    tpu.vector_store %arg10[%c0_23, %c0_24], %34 {strides = array<i32>} : memref<8x1xf32, #tpu.memory_space<vmem>>, vector<8x1xf32>,
    return
  }
  func.func @transform_0(%arg0: i32) -> (i32, i32) {
    %c0_i32 = arith.constant 0 : i32
    %c0_i32_0 = arith.constant 0 : i32
    return %arg0, %c0_i32 : i32, i32
  }
  func.func @transform_1(%arg0: i32) -> (i32, i32) {
    %c0_i32 = arith.constant 0 : i32
    %c0_i32_0 = arith.constant 0 : i32
    %c0_i32_1 = arith.constant 0 : i32
    return %c0_i32, %c0_i32_0 : i32, i32
  }
  func.func @transform_2(%arg0: i32) -> (i32, i32) {
    %c0_i32 = arith.constant 0 : i32
    %c0_i32_0 = arith.constant 0 : i32
    %c0_i32_1 = arith.constant 0 : i32
    return %c0_i32, %c0_i32_0 : i32, i32
  }
  func.func @transform_3(%arg0: i32) -> (i32, i32) {
    %c0_i32 = arith.constant 0 : i32
    %c0_i32_0 = arith.constant 0 : i32
    %c0_i32_1 = arith.constant 0 : i32
    return %c0_i32, %c0_i32_0 : i32, i32
  }
  func.func @transform_4(%arg0: i32) -> (i32, i32) {
    %c0_i32 = arith.constant 0 : i32
    %c0_i32_0 = arith.constant 0 : i32
    %c0_i32_1 = arith.constant 0 : i32
    return %c0_i32, %c0_i32_0 : i32, i32
  }
  func.func @transform_5(%arg0: i32) -> (i32, i32) {
    %c0_i32 = arith.constant 0 : i32
    %c0_i32_0 = arith.constant 0 : i32
    %c0_i32_1 = arith.constant 0 : i32
    return %c0_i32, %c0_i32_0 : i32, i32
  }
  func.func @transform_6(%arg0: i32) -> (i32, i32) {
    %c0_i32 = arith.constant 0 : i32
    %c0_i32_0 = arith.constant 0 : i32
    %c0_i32_1 = arith.constant 0 : i32
    return %c0_i32, %c0_i32_0 : i32, i32
  }
  func.func @transform_7(%arg0: i32) -> (i32, i32) {
    %c0_i32 = arith.constant 0 : i32
    %c0_i32_0 = arith.constant 0 : i32
    %c0_i32_1 = arith.constant 0 : i32
    return %c0_i32, %c0_i32_0 : i32, i32
  }
  func.func @transform_8(%arg0: i32) -> (i32, i32) {
    %c0_i32 = arith.constant 0 : i32
    %c0_i32_0 = arith.constant 0 : i32
    %c0_i32_1 = arith.constant 0 : i32
    return %c0_i32, %c0_i32_0 : i32, i32
  }
  func.func @transform_9(%arg0: i32) -> (i32, i32) {
    %c0_i32 = arith.constant 0 : i32
    %c0_i32_0 = arith.constant 0 : i32
    return %arg0, %c0_i32 : i32, i32
  }
}

module attributes {stable_mosaic.version = 11 : i64} {
  func.func @_critic_kernel(%arg0: i32, %arg1: memref<8x128xbf16, #tpu.memory_space<vmem>>, %arg2: memref<128x512xbf16, #tpu.memory_space<vmem>>, %arg3: memref<1x512xbf16, #tpu.memory_space<vmem>>, %arg4: memref<512x1024xbf16, #tpu.memory_space<vmem>>, %arg5: memref<1x1024xbf16, #tpu.memory_space<vmem>>, %arg6: memref<1024x1024xbf16, #tpu.memory_space<vmem>>, %arg7: memref<1x1024xbf16, #tpu.memory_space<vmem>>, %arg8: memref<1x1024xbf16, #tpu.memory_space<vmem>>, %arg9: memref<1x1xf32, #tpu.memory_space<vmem>>, %arg10: memref<8x1xf32, #tpu.memory_space<vmem>>) attributes {dimension_semantics = [#tpu.dimension_semantics<parallel>], iteration_bounds = array<i64: 1>, scalar_prefetch = 0 : i64, scratch_operands = 0 : i64, tpu.core_type = #tpu.core_type<tc>, window_params = [{transform_indices = @transform_0, window_bounds = array<i64: 8, 128>}, {pipeline_mode = #tpu.pipeline_mode<synchronous>, transform_indices = @transform_1, window_bounds = array<i64: 128, 512>}, {pipeline_mode = #tpu.pipeline_mode<synchronous>, transform_indices = @transform_2, window_bounds = array<i64: 1, 512>}, {pipeline_mode = #tpu.pipeline_mode<synchronous>, transform_indices = @transform_3, window_bounds = array<i64: 512, 1024>}, {pipeline_mode = #tpu.pipeline_mode<synchronous>, transform_indices = @transform_4, window_bounds = array<i64: 1, 1024>}, {pipeline_mode = #tpu.pipeline_mode<synchronous>, transform_indices = @transform_5, window_bounds = array<i64: 1024, 1024>}, {pipeline_mode = #tpu.pipeline_mode<synchronous>, transform_indices = @transform_6, window_bounds = array<i64: 1, 1024>}, {pipeline_mode = #tpu.pipeline_mode<synchronous>, transform_indices = @transform_7, window_bounds = array<i64: 1, 1024>}, {pipeline_mode = #tpu.pipeline_mode<synchronous>, transform_indices = @transform_8, window_bounds = array<i64: 1, 1>}, {transform_indices = @transform_9, window_bounds = array<i64: 8, 1>}]} {
    %c0 = arith.constant 0 : index
    %c0_0 = arith.constant 0 : index
    %0 = vector.load %arg1[%c0, %c0_0] : memref<8x128xbf16, #tpu.memory_space<vmem>>, vector<8x128xbf16>
    %c0_1 = arith.constant 0 : index
    %c0_2 = arith.constant 0 : index
    %1 = vector.load %arg2[%c0_1, %c0_2] : memref<128x512xbf16, #tpu.memory_space<vmem>>, vector<128x512xbf16>
    %cst = arith.constant dense<0.000000e+00> : vector<8x512xf32>
    %2 = tpu.matmul %0, %1, %cst {dimension_numbers = #tpu.dot_dimension_numbers<[1], [0], [0], [1], [0, 0, 1, 1], [], []>} : vector<8x128xbf16>, vector<128x512xbf16>, vector<8x512xf32> -> vector<8x512xf32>
    %3 = arith.truncf %2 : vector<8x512xf32> to vector<8x512xbf16>
    %c0_3 = arith.constant 0 : index
    %c0_4 = arith.constant 0 : index
    %4 = vector.load %arg3[%c0_3, %c0_4] : memref<1x512xbf16, #tpu.memory_space<vmem>>, vector<1x512xbf16>
    %5 = vector.broadcast %4 : vector<1x512xbf16> to vector<8x512xbf16>
    %6 = arith.addf %3, %5 : vector<8x512xbf16>
    %cst_5 = arith.constant 0.000000e+00 : bf16
    %7 = vector.broadcast %cst_5 : bf16 to vector<8x512xbf16>
    %8 = arith.maximumf %6, %7 : vector<8x512xbf16>
    %c0_6 = arith.constant 0 : index
    %c0_7 = arith.constant 0 : index
    %9 = vector.load %arg4[%c0_6, %c0_7] : memref<512x1024xbf16, #tpu.memory_space<vmem>>, vector<512x1024xbf16>
    %cst_8 = arith.constant dense<0.000000e+00> : vector<8x1024xf32>
    %10 = tpu.matmul %8, %9, %cst_8 {dimension_numbers = #tpu.dot_dimension_numbers<[1], [0], [0], [1], [0, 0, 1, 1], [], []>} : vector<8x512xbf16>, vector<512x1024xbf16>, vector<8x1024xf32> -> vector<8x1024xf32>
    %11 = arith.truncf %10 : vector<8x1024xf32> to vector<8x1024xbf16>
    %c0_9 = arith.constant 0 : index
    %c0_10 = arith.constant 0 : index
    %12 = vector.load %arg5[%c0_9, %c0_10] : memref<1x1024xbf16, #tpu.memory_space<vmem>>, vector<1x1024xbf16>
    %13 = vector.broadcast %12 : vector<1x1024xbf16> to vector<8x1024xbf16>
    %14 = arith.addf %11, %13 : vector<8x1024xbf16>
    %cst_11 = arith.constant 0.000000e+00 : bf16
    %15 = vector.broadcast %cst_11 : bf16 to vector<8x1024xbf16>
    %16 = arith.maximumf %14, %15 : vector<8x1024xbf16>
    %c0_12 = arith.constant 0 : index
    %c0_13 = arith.constant 0 : index
    %17 = vector.load %arg6[%c0_12, %c0_13] : memref<1024x1024xbf16, #tpu.memory_space<vmem>>, vector<1024x1024xbf16>
    %cst_14 = arith.constant dense<0.000000e+00> : vector<8x1024xf32>
    %18 = tpu.matmul %16, %17, %cst_14 {dimension_numbers = #tpu.dot_dimension_numbers<[1], [0], [0], [1], [0, 0, 1, 1], [], []>} : vector<8x1024xbf16>, vector<1024x1024xbf16>, vector<8x1024xf32> -> vector<8x1024xf32>
    %19 = arith.truncf %18 : vector<8x1024xf32> to vector<8x1024xbf16>
    %c0_15 = arith.constant 0 : index
    %c0_16 = arith.constant 0 : index
    %20 = vector.load %arg7[%c0_15, %c0_16] : memref<1x1024xbf16, #tpu.memory_space<vmem>>, vector<1x1024xbf16>
    %21 = vector.broadcast %20 : vector<1x1024xbf16> to vector<8x1024xbf16>
    %22 = arith.addf %19, %21 : vector<8x1024xbf16>
    %cst_17 = arith.constant 0.000000e+00 : bf16
    %23 = vector.broadcast %cst_17 : bf16 to vector<8x1024xbf16>
    %24 = arith.maximumf %22, %23 : vector<8x1024xbf16>
    %c0_18 = arith.constant 0 : index
    %c0_19 = arith.constant 0 : index
    %25 = vector.load %arg8[%c0_18, %c0_19] : memref<1x1024xbf16, #tpu.memory_space<vmem>>, vector<1x1024xbf16>
    %26 = arith.extf %25 : vector<1x1024xbf16> to vector<1x1024xf32>
    %27 = arith.extf %24 : vector<8x1024xbf16> to vector<8x1024xf32>
    %28 = vector.broadcast %26 : vector<1x1024xf32> to vector<8x1024xf32>
    %29 = arith.mulf %27, %28 : vector<8x1024xf32>
    %cst_20 = arith.constant dense<0.000000e+00> : vector<8xf32>
    %30 = vector.multi_reduction <add>, %29, %cst_20 [1] : vector<8x1024xf32> to vector<8xf32>
    %31 = vector.shape_cast %30 : vector<8xf32> to vector<8x1xf32>
    %c0_21 = arith.constant 0 : index
    %c0_22 = arith.constant 0 : index
    %32 = vector.load %arg9[%c0_21, %c0_22] : memref<1x1xf32, #tpu.memory_space<vmem>>, vector<1x1xf32>
    %33 = vector.broadcast %32 : vector<1x1xf32> to vector<8x1xf32>
    %34 = arith.addf %31, %33 : vector<8x1xf32>
    %c0_23 = arith.constant 0 : index
    %c0_24 = arith.constant 0 : index
    %35 = vector.load %arg10[%c0_23, %c0_24] : memref<8x1xf32, #tpu.memory_space<vmem>>, vector<8x1xf32>
    tpu.vector_store %arg10[%c0_23, %c0_24], %34 {strides = array<i32>} : memref<8x1xf32, #tpu.memory_space<vmem>>, vector<8x1xf32>,
    return
  }
  func.func @transform_0(%arg0: i32) -> (i32, i32) {
    %c0_i32 = arith.constant 0 : i32
    %c0_i32_0 = arith.constant 0 : i32
    return %arg0, %c0_i32 : i32, i32
  }
  func.func @transform_1(%arg0: i32) -> (i32, i32) {
    %c0_i32 = arith.constant 0 : i32
    %c0_i32_0 = arith.constant 0 : i32
    %c0_i32_1 = arith.constant 0 : i32
    return %c0_i32, %c0_i32_0 : i32, i32
  }
  func.func @transform_2(%arg0: i32) -> (i32, i32) {
    %c0_i32 = arith.constant 0 : i32
    %c0_i32_0 = arith.constant 0 : i32
    %c0_i32_1 = arith.constant 0 : i32
    return %c0_i32, %c0_i32_0 : i32, i32
  }
  func.func @transform_3(%arg0: i32) -> (i32, i32) {
    %c0_i32 = arith.constant 0 : i32
    %c0_i32_0 = arith.constant 0 : i32
    %c0_i32_1 = arith.constant 0 : i32
    return %c0_i32, %c0_i32_0 : i32, i32
  }
  func.func @transform_4(%arg0: i32) -> (i32, i32) {
    %c0_i32 = arith.constant 0 : i32
    %c0_i32_0 = arith.constant 0 : i32
    %c0_i32_1 = arith.constant 0 : i32
    return %c0_i32, %c0_i32_0 : i32, i32
  }
  func.func @transform_5(%arg0: i32) -> (i32, i32) {
    %c0_i32 = arith.constant 0 : i32
    %c0_i32_0 = arith.constant 0 : i32
    %c0_i32_1 = arith.constant 0 : i32
    return %c0_i32, %c0_i32_0 : i32, i32
  }
  func.func @transform_6(%arg0: i32) -> (i32, i32) {
    %c0_i32 = arith.constant 0 : i32
    %c0_i32_0 = arith.constant 0 : i32
    %c0_i32_1 = arith.constant 0 : i32
    return %c0_i32, %c0_i32_0 : i32, i32
  }
  func.func @transform_7(%arg0: i32) -> (i32, i32) {
    %c0_i32 = arith.constant 0 : i32
    %c0_i32_0 = arith.constant 0 : i32
    %c0_i32_1 = arith.constant 0 : i32
    return %c0_i32, %c0_i32_0 : i32, i32
  }
  func.func @transform_8(%arg0: i32) -> (i32, i32) {
    %c0_i32 = arith.constant 0 : i32
    %c0_i32_0 = arith.constant 0 : i32
    %c0_i32_1 = arith.constant 0 : i32
    return %c0_i32, %c0_i32_0 : i32, i32
  }
  func.func @transform_9(%arg0: i32) -> (i32, i32) {
    %c0_i32 = arith.constant 0 : i32
    %c0_i32_0 = arith.constant 0 : i32
    return %arg0, %c0_i32 : i32, i32
  }
}

</mosaic_0001>

<llo_original>
// kernel: tpu_custom_call.1
$region0: #{tpu_custom_call.1}
  #allocation0 [shape = 'u32[]', space=smem, size = 0x4, offset = 0x4, fixed_abs, tag = 'smem constant byte address 0x4 - core index']
  #allocation1 [shape = 'u32[144,128]{1,0:T(1,128)}', space=vmem, size = 0x12000, scoped, tag = 'internal scratch']
  #allocation2 [shape = 'f32[1,1]{1,0:T(1,128)S(1)}', space=vmem, size = 0x200, scoped, tag = 'scoped memory for tpu_custom_call.1']
  %s0 = inlined_call_operand.hbm [shape: bf16[8,128], index: 0, kind: input, shape index: {}]
  %s1 = inlined_call_operand.hbm [shape: bf16[128,512], index: 1, kind: input, shape index: {}]
  %s2 = inlined_call_operand.hbm [shape: bf16[1,512], index: 2, kind: input, shape index: {}]
  %s3 = inlined_call_operand.hbm [shape: bf16[512,1024], index: 3, kind: input, shape index: {}]
  %s4 = inlined_call_operand.hbm [shape: bf16[1,1024], index: 4, kind: input, shape index: {}]
  %s5 = inlined_call_operand.hbm [shape: bf16[1024,1024], index: 5, kind: input, shape index: {}]
  %s6 = inlined_call_operand.hbm [shape: bf16[1,1024], index: 6, kind: input, shape index: {}]
  %s7 = inlined_call_operand.hbm [shape: bf16[1,1024], index: 7, kind: input, shape index: {}]
  %s8 = inlined_call_operand.<no memory space> [shape: f32[1,1], index: 8, kind: input, shape index: {}]
  %s9 = inlined_call_operand.vmem [shape: f32[8,1], index: 9, kind: output, shape index: {}]
  %s10 = sld [smem:[#allocation0]]
  $region78: #{tpu_custom_call.1} parent=0
    _
  %s12 = ssub.s32 1, %s10
  %s13 = scalar_select 0, %s12, %s10
  %v14 = vstv %s8
  %15 = vst [vmem:[#allocation2] sm:$0x1] %v14
  $region1: #{tpu_custom_call.1} parent=0
    #allocation3 [shape = 'u8[2048]{0}', space=vmem, size = 0x800, scoped, tag = 'input window, operand 0, single buffered']
    #allocation4 [shape = 's32[1]{0}', space=sflag, size = 0x4, scoped, tag = 'scoped memory for tpu_custom_call.1']
    #allocation5 [shape = 'u8[131072]{0}', space=vmem, size = 0x20000, scoped, tag = 'input window, operand 1, single buffered']
    #allocation6 [shape = 's32[1]{0}', space=sflag, size = 0x4, scoped, tag = 'scoped memory for tpu_custom_call.1']
    #allocation7 [shape = 'u8[2048]{0}', space=vmem, size = 0x800, scoped, tag = 'input window, operand 2, single buffered']
    #allocation8 [shape = 'u8[1048576]{0}', space=vmem, size = 0x100000, scoped, tag = 'input window, operand 3, single buffered']
    #allocation9 [shape = 's32[1]{0}', space=sflag, size = 0x4, scoped, tag = 'scoped memory for tpu_custom_call.1']
    #allocation10 [shape = 'u8[4096]{0}', space=vmem, size = 0x1000, scoped, tag = 'input window, operand 4, single buffered']
    #allocation11 [shape = 'u8[2097152]{0}', space=vmem, size = 0x200000, scoped, tag = 'input window, operand 5, single buffered']
    #allocation12 [shape = 's32[1]{0}', space=sflag, size = 0x4, scoped, tag = 'scoped memory for tpu_custom_call.1']
    #allocation13 [shape = 'u8[4096]{0}', space=vmem, size = 0x1000, scoped, tag = 'input window, operand 6, single buffered']
    #allocation14 [shape = 'u8[4096]{0}', space=vmem, size = 0x1000, scoped, tag = 'input window, operand 7, single buffered']
    #allocation15 [shape = 's32[1]{0}', space=sflag, size = 0x4, scoped, tag = 'scoped memory for tpu_custom_call.1']
    %16 = vsyncpa [#allocation4], 0
    %17 = vsyncpa [#allocation6], 0
    %18 = vsyncpa [#allocation9], 0
    %19 = vsyncpa [#allocation12], 0
    %20 = vsyncpa [#allocation15], 0
    // Predicated region
    $region2: #{tpu_custom_call.1} parent=1 // pred_check
      _
    $region3: #{tpu_custom_call.1} parent=1 // pred_check_branch
      %22 = sbr.rel (0) target = $region5
    $region4: #{tpu_custom_call.1} parent=1 // pred_region
      %s24 = ssub.s32 64, 64
      %25 = vsyncadd [#allocation4], %s24
      %s27 = sshll.u32 [#allocation3], 4
      %s28 = int_to_ptr.vmem [resolvable:$true] %s27
      %30 = dma.hbm_to_vmem [thread:$0]  %s0, 64, %s28, [#allocation4]
    $region5: #{tpu_custom_call.1} parent=1 // pred_fallthru
      _
    // Predicated region
    $region6: #{tpu_custom_call.1} parent=1 // pred_check
      _
    $region7: #{tpu_custom_call.1} parent=1 // pred_check_branch
      %32 = sbr.rel (0) target = $region9
    $region8: #{tpu_custom_call.1} parent=1 // pred_region
      %s34 = ssub.s32 4096, 4096
      %35 = vsyncadd [#allocation6], %s34
      %s36 = sshll.u32 [#allocation5], 4
      %s37 = int_to_ptr.vmem [resolvable:$true] %s36
      %42 = dma.hbm_to_vmem [thread:$0]  %s1, 4096, %s37, [#allocation6], 256, 256, 16
    $region9: #{tpu_custom_call.1} parent=1 // pred_fallthru
      _
    // Predicated region
    $region10: #{tpu_custom_call.1} parent=1 // pred_check
      _
    $region11: #{tpu_custom_call.1} parent=1 // pred_check_branch
      %44 = sbr.rel (0) target = $region13
    $region12: #{tpu_custom_call.1} parent=1 // pred_region
      %s46 = ssub.s32 64, 64
      %47 = vsyncadd [#allocation6], %s46
      %s49 = sshll.u32 [#allocation7], 4
      %s50 = int_to_ptr.vmem [resolvable:$true] %s49
      %52 = dma.hbm_to_vmem [thread:$0]  %s2, 64, %s50, [#allocation6]
    $region13: #{tpu_custom_call.1} parent=1 // pred_fallthru
      _
    // Predicated region
    $region14: #{tpu_custom_call.1} parent=1 // pred_check
      _
    $region15: #{tpu_custom_call.1} parent=1 // pred_check_branch
      %54 = sbr.rel (0) target = $region17
    $region16: #{tpu_custom_call.1} parent=1 // pred_region
      %s56 = ssub.s32 32768, 32768
      %57 = vsyncadd [#allocation9], %s56
      %s58 = sshll.u32 [#allocation8], 4
      %s59 = int_to_ptr.vmem [resolvable:$true] %s58
      %64 = dma.hbm_to_vmem [thread:$0]  %s3, 32768, %s59, [#allocation9], 512, 512, 32
    $region17: #{tpu_custom_call.1} parent=1 // pred_fallthru
      _
    // Predicated region
    $region18: #{tpu_custom_call.1} parent=1 // pred_check
      _
    $region19: #{tpu_custom_call.1} parent=1 // pred_check_branch
      %66 = sbr.rel (0) target = $region21
    $region20: #{tpu_custom_call.1} parent=1 // pred_region
      %s68 = ssub.s32 128, 128
      %69 = vsyncadd [#allocation9], %s68
      %s71 = sshll.u32 [#allocation10], 4
      %s72 = int_to_ptr.vmem [resolvable:$true] %s71
      %74 = dma.hbm_to_vmem [thread:$0]  %s4, 128, %s72, [#allocation9]
    $region21: #{tpu_custom_call.1} parent=1 // pred_fallthru
      _
    // Predicated region
    $region22: #{tpu_custom_call.1} parent=1 // pred_check
      _
    $region23: #{tpu_custom_call.1} parent=1 // pred_check_branch
      %76 = sbr.rel (0) target = $region25
    $region24: #{tpu_custom_call.1} parent=1 // pred_region
      %s78 = ssub.s32 65536, 65536
      %79 = vsyncadd [#allocation12], %s78
      %s80 = sshll.u32 [#allocation11], 4
      %s81 = int_to_ptr.vmem [resolvable:$true] %s80
      %86 = dma.hbm_to_vmem [thread:$0]  %s5, 65536, %s81, [#allocation12], 512, 512, 32
    $region25: #{tpu_custom_call.1} parent=1 // pred_fallthru
      _
    // Predicated region
    $region26: #{tpu_custom_call.1} parent=1 // pred_check
      _
    $region27: #{tpu_custom_call.1} parent=1 // pred_check_branch
      %88 = sbr.rel (0) target = $region29
    $region28: #{tpu_custom_call.1} parent=1 // pred_region
      %s90 = ssub.s32 128, 128
      %91 = vsyncadd [#allocation12], %s90
      %s93 = sshll.u32 [#allocation13], 4
      %s94 = int_to_ptr.vmem [resolvable:$true] %s93
      %96 = dma.hbm_to_vmem [thread:$0]  %s6, 128, %s94, [#allocation12]
    $region29: #{tpu_custom_call.1} parent=1 // pred_fallthru
      _
    // Predicated region
    $region30: #{tpu_custom_call.1} parent=1 // pred_check
      _
    $region31: #{tpu_custom_call.1} parent=1 // pred_check_branch
      %98 = sbr.rel (0) target = $region33
    $region32: #{tpu_custom_call.1} parent=1 // pred_region
      %s100 = ssub.s32 128, 128
      %101 = vsyncadd [#allocation15], %s100
      %s103 = sshll.u32 [#allocation14], 4
      %s104 = int_to_ptr.vmem [resolvable:$true] %s103
      %106 = dma.hbm_to_vmem [thread:$0]  %s7, 128, %s104, [#allocation15]
    $region33: #{tpu_custom_call.1} parent=1 // pred_fallthru
      _
    // Predicated region
    $region34: #{tpu_custom_call.1} parent=1 // pred_check
      _
    $region35: #{tpu_custom_call.1} parent=1 // pred_check_branch
      %108 = sbr.rel (0) target = $region37
    $region36: #{tpu_custom_call.1} parent=1 // pred_region
      _
    $region37: #{tpu_custom_call.1} parent=1 // pred_fallthru
      _
    // Predicated region
    $region38: #{tpu_custom_call.1} parent=1 // pred_check
      _
    $region39: #{tpu_custom_call.1} parent=1 // pred_check_branch
      %110 = sbr.rel (0) target = $region41
    $region40: #{tpu_custom_call.1} parent=1 // pred_region
      %111 = dma.done [#allocation4], 64
    $region41: #{tpu_custom_call.1} parent=1 // pred_fallthru
      _
    // Predicated region
    $region42: #{tpu_custom_call.1} parent=1 // pred_check
      _
    $region43: #{tpu_custom_call.1} parent=1 // pred_check_branch
      %113 = sbr.rel (0) target = $region45
    $region44: #{tpu_custom_call.1} parent=1 // pred_region
      %114 = dma.done [#allocation6], 4096
    $region45: #{tpu_custom_call.1} parent=1 // pred_fallthru
      _
    // Predicated region
    $region46: #{tpu_custom_call.1} parent=1 // pred_check
      _
    $region47: #{tpu_custom_call.1} parent=1 // pred_check_branch
      %116 = sbr.rel (0) target = $region49
    $region48: #{tpu_custom_call.1} parent=1 // pred_region
      %117 = dma.done [#allocation6], 64
    $region49: #{tpu_custom_call.1} parent=1 // pred_fallthru
      _
    // Predicated region
    $region50: #{tpu_custom_call.1} parent=1 // pred_check
      _
    $region51: #{tpu_custom_call.1} parent=1 // pred_check_branch
      %119 = sbr.rel (0) target = $region53
    $region52: #{tpu_custom_call.1} parent=1 // pred_region
      %120 = dma.done [#allocation9], 32768
    $region53: #{tpu_custom_call.1} parent=1 // pred_fallthru
      _
    // Predicated region
    $region54: #{tpu_custom_call.1} parent=1 // pred_check
      _
    $region55: #{tpu_custom_call.1} parent=1 // pred_check_branch
      %122 = sbr.rel (0) target = $region57
    $region56: #{tpu_custom_call.1} parent=1 // pred_region
      %123 = dma.done [#allocation9], 128
    $region57: #{tpu_custom_call.1} parent=1 // pred_fallthru
      _
    // Predicated region
    $region58: #{tpu_custom_call.1} parent=1 // pred_check
      _
    $region59: #{tpu_custom_call.1} parent=1 // pred_check_branch
      %125 = sbr.rel (0) target = $region61
    $region60: #{tpu_custom_call.1} parent=1 // pred_region
      %126 = dma.done [#allocation12], 65536
    $region61: #{tpu_custom_call.1} parent=1 // pred_fallthru
      _
    // Predicated region
    $region62: #{tpu_custom_call.1} parent=1 // pred_check
      _
    $region63: #{tpu_custom_call.1} parent=1 // pred_check_branch
      %128 = sbr.rel (0) target = $region65
    $region64: #{tpu_custom_call.1} parent=1 // pred_region
      %129 = dma.done [#allocation12], 128
    $region65: #{tpu_custom_call.1} parent=1 // pred_fallthru
      _
    // Predicated region
    $region66: #{tpu_custom_call.1} parent=1 // pred_check
      _
    $region67: #{tpu_custom_call.1} parent=1 // pred_check_branch
      %131 = sbr.rel (0) target = $region69
    $region68: #{tpu_custom_call.1} parent=1 // pred_region
      %132 = dma.done [#allocation15], 128
    $region69: #{tpu_custom_call.1} parent=1 // pred_fallthru
      _
    %v134 = vld [vmem:[#allocation3] sm:$0xf]
    %v135 = vld [vmem:[#allocation5] sm:$0xff]
    %v136 = vld [vmem:[#allocation5 + $0x8] sm:$0xff]
    %v137 = vld [vmem:[#allocation5 + $0x10] sm:$0xff]
    %v138 = vld [vmem:[#allocation5 + $0x18] sm:$0xff]
    %v139 = vld [vmem:[#allocation5 + $0x20] sm:$0xff]
    %v140 = vld [vmem:[#allocation5 + $0x28] sm:$0xff]
    %v141 = vld [vmem:[#allocation5 + $0x30] sm:$0xff]
    %v142 = vld [vmem:[#allocation5 + $0x38] sm:$0xff]
    %v143 = vld [vmem:[#allocation5 + $0x40] sm:$0xff]
    %v144 = vld [vmem:[#allocation5 + $0x48] sm:$0xff]
    %v145 = vld [vmem:[#allocation5 + $0x50] sm:$0xff]
    %v146 = vld [vmem:[#allocation5 + $0x58] sm:$0xff]
    %v147 = vld [vmem:[#allocation5 + $0x60] sm:$0xff]
    %v148 = vld [vmem:[#allocation5 + $0x68] sm:$0xff]
    %v149 = vld [vmem:[#allocation5 + $0x70] sm:$0xff]
    %v150 = vld [vmem:[#allocation5 + $0x78] sm:$0xff]
    %v151 = vld [vmem:[#allocation5 + $0x80] sm:$0xff]
    %v152 = vld [vmem:[#allocation5 + $0x88] sm:$0xff]
    %v153 = vld [vmem:[#allocation5 + $0x90] sm:$0xff]
    %v154 = vld [vmem:[#allocation5 + $0x98] sm:$0xff]
    %v155 = vld [vmem:[#allocation5 + $0xa0] sm:$0xff]
    %v156 = vld [vmem:[#allocation5 + $0xa8] sm:$0xff]
    %v157 = vld [vmem:[#allocation5 + $0xb0] sm:$0xff]
    %v158 = vld [vmem:[#allocation5 + $0xb8] sm:$0xff]
    %v159 = vld [vmem:[#allocation5 + $0xc0] sm:$0xff]
    %v160 = vld [vmem:[#allocation5 + $0xc8] sm:$0xff]
    %v161 = vld [vmem:[#allocation5 + $0xd0] sm:$0xff]
    %v162 = vld [vmem:[#allocation5 + $0xd8] sm:$0xff]
    %v163 = vld [vmem:[#allocation5 + $0xe0] sm:$0xff]
    %v164 = vld [vmem:[#allocation5 + $0xe8] sm:$0xff]
    %v165 = vld [vmem:[#allocation5 + $0xf0] sm:$0xff]
    %v166 = vld [vmem:[#allocation5 + $0xf8] sm:$0xff]
    %v199 = vunpack.c.l.b16 %v135
    %v200 = vunpack.c.h.b16 %v135
    %v201 = vunpack.c.l.b16 %v136
    %v202 = vunpack.c.h.b16 %v136
    %v203 = vunpack.c.l.b16 %v137
    %v204 = vunpack.c.h.b16 %v137
    %v205 = vunpack.c.l.b16 %v138
    %v206 = vunpack.c.h.b16 %v138
    %v207 = vunpack.c.l.b16 %v139
    %v208 = vunpack.c.h.b16 %v139
    %v209 = vunpack.c.l.b16 %v140
    %v210 = vunpack.c.h.b16 %v140
    %v211 = vunpack.c.l.b16 %v141
    %v212 = vunpack.c.h.b16 %v141
    %v213 = vunpack.c.l.b16 %v142
    %v214 = vunpack.c.h.b16 %v142
    %v215 = vunpack.c.l.b16 %v143
    %v216 = vunpack.c.h.b16 %v143
    %v217 = vunpack.c.l.b16 %v144
    %v218 = vunpack.c.h.b16 %v144
    %v219 = vunpack.c.l.b16 %v145
    %v220 = vunpack.c.h.b16 %v145
    %v221 = vunpack.c.l.b16 %v146
    %v222 = vunpack.c.h.b16 %v146
    %v223 = vunpack.c.l.b16 %v147
    %v224 = vunpack.c.h.b16 %v147
    %v225 = vunpack.c.l.b16 %v148
    %v226 = vunpack.c.h.b16 %v148
    %v227 = vunpack.c.l.b16 %v149
    %v228 = vunpack.c.h.b16 %v149
    %v229 = vunpack.c.l.b16 %v150
    %v230 = vunpack.c.h.b16 %v150
    %v231 = vunpack.c.l.b16 %v151
    %v232 = vunpack.c.h.b16 %v151
    %v233 = vunpack.c.l.b16 %v152
    %v234 = vunpack.c.h.b16 %v152
    %v235 = vunpack.c.l.b16 %v153
    %v236 = vunpack.c.h.b16 %v153
    %v237 = vunpack.c.l.b16 %v154
    %v238 = vunpack.c.h.b16 %v154
    %v239 = vunpack.c.l.b16 %v155
    %v240 = vunpack.c.h.b16 %v155
    %v241 = vunpack.c.l.b16 %v156
    %v242 = vunpack.c.h.b16 %v156
    %v243 = vunpack.c.l.b16 %v157
    %v244 = vunpack.c.h.b16 %v157
    %v245 = vunpack.c.l.b16 %v158
    %v246 = vunpack.c.h.b16 %v158
    %v247 = vunpack.c.l.b16 %v159
    %v248 = vunpack.c.h.b16 %v159
    %v249 = vunpack.c.l.b16 %v160
    %v250 = vunpack.c.h.b16 %v160
    %v251 = vunpack.c.l.b16 %v161
    %v252 = vunpack.c.h.b16 %v161
    %v253 = vunpack.c.l.b16 %v162
    %v254 = vunpack.c.h.b16 %v162
    %v255 = vunpack.c.l.b16 %v163
    %v256 = vunpack.c.h.b16 %v163
    %v257 = vunpack.c.l.b16 %v164
    %v258 = vunpack.c.h.b16 %v164
    %v259 = vunpack.c.l.b16 %v165
    %v260 = vunpack.c.h.b16 %v165
    %v261 = vunpack.c.l.b16 %v166
    %v262 = vunpack.c.h.b16 %v166
    %v263 = vpack.c.b16 %v203, %v199
    %v264 = vpack.c.b16 %v204, %v200
    %v265 = vpack.c.b16 %v205, %v201
    %v266 = vpack.c.b16 %v206, %v202
    %v267 = vpack.c.b16 %v211, %v207
    %v268 = vpack.c.b16 %v212, %v208
    %v269 = vpack.c.b16 %v213, %v209
    %v270 = vpack.c.b16 %v214, %v210
    %v271 = vpack.c.b16 %v219, %v215
    %v272 = vpack.c.b16 %v220, %v216
    %v273 = vpack.c.b16 %v221, %v217
    %v274 = vpack.c.b16 %v222, %v218
    %v275 = vpack.c.b16 %v227, %v223
    %v276 = vpack.c.b16 %v228, %v224
    %v277 = vpack.c.b16 %v229, %v225
    %v278 = vpack.c.b16 %v230, %v226
    %v279 = vpack.c.b16 %v235, %v231
    %v280 = vpack.c.b16 %v236, %v232
    %v281 = vpack.c.b16 %v237, %v233
    %v282 = vpack.c.b16 %v238, %v234
    %v283 = vpack.c.b16 %v243, %v239
    %v284 = vpack.c.b16 %v244, %v240
    %v285 = vpack.c.b16 %v245, %v241
    %v286 = vpack.c.b16 %v246, %v242
    %v287 = vpack.c.b16 %v251, %v247
    %v288 = vpack.c.b16 %v252, %v248
    %v289 = vpack.c.b16 %v253, %v249
    %v290 = vpack.c.b16 %v254, %v250
    %v291 = vpack.c.b16 %v259, %v255
    %v292 = vpack.c.b16 %v260, %v256
    %v293 = vpack.c.b16 %v261, %v257
    %v294 = vpack.c.b16 %v262, %v258
    %327 = vmatprep.subr.bf16.mxu0 %v264
    %328 = vmatpush1.bf16.msra.mxu0 %v263
    %329 = vmatprep.subr.bf16.mxu0 %v268
    %330 = vmatpush1.bf16.msra.mxu0 %v267
    %331 = vmatprep.subr.bf16.mxu0 %v272
    %332 = vmatpush1.bf16.msra.mxu0 %v271
    %333 = vmatprep.subr.bf16.mxu0 %v276
    %334 = vmatpush1.bf16.msra.mxu0 %v275
    %335 = vmatprep.subr.bf16.mxu0 %v280
    %336 = vmatpush1.bf16.msra.mxu0 %v279
    %337 = vmatprep.subr.bf16.mxu0 %v284
    %338 = vmatpush1.bf16.msra.mxu0 %v283
    %339 = vmatprep.subr.bf16.mxu0 %v288
    %340 = vmatpush1.bf16.msra.mxu0 %v287
    %341 = vmatprep.subr.bf16.mxu0 %v292
    %342 = vmatpush1.bf16.msra.mxu0 %v291
    %343 = vmatprep.subr.bf16.mxu0 0
    %344 = vmatpush1.bf16.msra.mxu0 0
    %345 = vmatprep.subr.bf16.mxu0 0
    %346 = vmatpush1.bf16.msra.mxu0 0
    %347 = vmatprep.subr.bf16.mxu0 0
    %348 = vmatpush1.bf16.msra.mxu0 0
    %349 = vmatprep.subr.bf16.mxu0 0
    %350 = vmatpush1.bf16.msra.mxu0 0
    %351 = vmatprep.subr.bf16.mxu0 0
    %352 = vmatpush1.bf16.msra.mxu0 0
    %353 = vmatprep.subr.bf16.mxu0 0
    %354 = vmatpush1.bf16.msra.mxu0 0
    %355 = vmatprep.subr.bf16.mxu0 0
    %356 = vmatpush1.bf16.msra.mxu0 0
    %357 = vmatprep.subr.bf16.mxu0 0
    %358 = vmatpush1.bf16.msra.mxu0 0
    %359 = vmatprep.mubr.bf16.mxu0 0
    %360 = vmatmul.mubr.bf16.gmra.mrb[0].mxu0 %v134
    %v361 = vpop.f32.mrb[0].mxu0
    %v362 = vadd.f32 0.0, %v361
    %v363 = vpop.f32.mrb[0].mxu0
    %v364 = vadd.f32 0.0, %v363
    %v365 = vpop.f32.mrb[0].mxu0
    %v366 = vpop.f32.mrb[0].mxu0
    %367 = vdwg.mxu0
    %368 = vmatprep.subr.bf16.mxu0 %v266
    %369 = vmatpush1.bf16.msra.mxu0 %v265
    %370 = vmatprep.subr.bf16.mxu0 %v270
    %371 = vmatpush1.bf16.msra.mxu0 %v269
    %372 = vmatprep.subr.bf16.mxu0 %v274
    %373 = vmatpush1.bf16.msra.mxu0 %v273
    %374 = vmatprep.subr.bf16.mxu0 %v278
    %375 = vmatpush1.bf16.msra.mxu0 %v277
    %376 = vmatprep.subr.bf16.mxu0 %v282
    %377 = vmatpush1.bf16.msra.mxu0 %v281
    %378 = vmatprep.subr.bf16.mxu0 %v286
    %379 = vmatpush1.bf16.msra.mxu0 %v285
    %380 = vmatprep.subr.bf16.mxu0 %v290
    %381 = vmatpush1.bf16.msra.mxu0 %v289
    %382 = vmatprep.subr.bf16.mxu0 %v294
    %383 = vmatpush1.bf16.msra.mxu0 %v293
    %384 = vmatprep.subr.bf16.mxu0 0
    %385 = vmatpush1.bf16.msra.mxu0 0
    %386 = vmatprep.subr.bf16.mxu0 0
    %387 = vmatpush1.bf16.msra.mxu0 0
    %388 = vmatprep.subr.bf16.mxu0 0
    %389 = vmatpush1.bf16.msra.mxu0 0
    %390 = vmatprep.subr.bf16.mxu0 0
    %391 = vmatpush1.bf16.msra.mxu0 0
    %392 = vmatprep.subr.bf16.mxu0 0
    %393 = vmatpush1.bf16.msra.mxu0 0
    %394 = vmatprep.subr.bf16.mxu0 0
    %395 = vmatpush1.bf16.msra.mxu0 0
    %396 = vmatprep.subr.bf16.mxu0 0
    %397 = vmatpush1.bf16.msra.mxu0 0
    %398 = vmatprep.subr.bf16.mxu0 0
    %399 = vmatpush1.bf16.msra.mxu0 0
    %400 = vmatprep.mubr.bf16.mxu0 0
    %401 = vmatmul.mubr.bf16.gmra.mrb[0].mxu0 %v134
    %v402 = vpop.f32.mrb[0].mxu0
    %v403 = vadd.f32 0.0, %v402
    %v404 = vpop.f32.mrb[0].mxu0
    %v405 = vadd.f32 0.0, %v404
    %v406 = vpop.f32.mrb[0].mxu0
    %v407 = vpop.f32.mrb[0].mxu0
    %408 = vdwg.mxu0
    %v409 = vpack.c.bf16 %v362, %v362
    %v410 = vpack.c.bf16 %v364, %v364
    %v411 = vpack.c.bf16 %v403, %v403
    %v412 = vpack.c.bf16 %v405, %v405
    %v413 = vld [vmem:[#allocation7] sm:$0xf]
    %v416 = vunpack.c.l.s4 1966171168
    %v417 = vunpack.c.0.s8 %v416
    %v418 = vlaneseq
    %v419 = vshrl.u32 %v418, 7
    %v420 = vsub.s32 %v417, %v419
    %v421 = vrot.slane %v413, %v420
    %v422 = vcombine.high %v421, %v421
    %v424 = vunpack.c.l.s4 1966171168
    %v425 = vunpack.c.0.s8 %v424
    %v426 = vlaneseq
    %v427 = vshrl.u32 %v426, 7
    %v428 = vsub.s32 %v425, %v427
    %v429 = vrot.slane %v421, %v428
    %v431 = vunpack.c.l.s4 1966171168
    %v432 = vunpack.c.0.s8 %v431
    %v433 = vlaneseq
    %v434 = vshrl.u32 %v433, 7
    %v435 = vsub.s32 %v432, %v434
    %v436 = vrot.slane %v422, %v435
    %v437 = vcombine.high %v429, %v429
    %v438 = vcombine.high %v436, %v436
    %v440 = vpack.i.b16 %v429, %v429
    %v442 = vlaneseq
    %v443 = vshrl.u32 %v442, 7
    %v444 = vsub.s32 0, %v443
    %v445 = vrot.slane %v440, %v444
    %v447 = vpack.i.b16 %v436, %v436
    %v449 = vlaneseq
    %v450 = vshrl.u32 %v449, 7
    %v451 = vsub.s32 0, %v450
    %v452 = vrot.slane %v447, %v451
    %v454 = vpack.i.b16 %v437, %v437
    %v456 = vlaneseq
    %v457 = vshrl.u32 %v456, 7
    %v458 = vsub.s32 0, %v457
    %v459 = vrot.slane %v454, %v458
    %v461 = vpack.i.b16 %v438, %v438
    %v463 = vlaneseq
    %v464 = vshrl.u32 %v463, 7
    %v465 = vsub.s32 0, %v464
    %v466 = vrot.slane %v461, %v465
    %v467 = vadd.bf16 %v409, %v445
    %v468 = vadd.bf16 %v410, %v452
    %v469 = vadd.bf16 %v411, %v459
    %v470 = vadd.bf16 %v412, %v466
    %v471 = vmax.bf16 %v467, 0
    %v472 = vmax.bf16 %v468, 0
    %v473 = vmax.bf16 %v469, 0
    %v474 = vmax.bf16 %v470, 0
    %v475 = vld [vmem:[#allocation8] sm:$0xff]
    %v476 = vld [vmem:[#allocation8 + $0x8] sm:$0xff]
    %v477 = vld [vmem:[#allocation8 + $0x10] sm:$0xff]
    %v478 = vld [vmem:[#allocation8 + $0x18] sm:$0xff]
    %v479 = vld [vmem:[#allocation8 + $0x20] sm:$0xff]
    %v480 = vld [vmem:[#allocation8 + $0x28] sm:$0xff]
    %v481 = vld [vmem:[#allocation8 + $0x30] sm:$0xff]
    %v482 = vld [vmem:[#allocation8 + $0x38] sm:$0xff]
    %v483 = vld [vmem:[#allocation8 + $0x40] sm:$0xff]
    %v484 = vld [vmem:[#allocation8 + $0x48] sm:$0xff]
    %v485 = vld [vmem:[#allocation8 + $0x50] sm:$0xff]
    %v486 = vld [vmem:[#allocation8 + $0x58] sm:$0xff]
    %v487 = vld [vmem:[#allocation8 + $0x60] sm:$0xff]
    %v488 = vld [vmem:[#allocation8 + $0x68] sm:$0xff]
    %v489 = vld [vmem:[#allocation8 + $0x70] sm:$0xff]
    %v490 = vld [vmem:[#allocation8 + $0x78] sm:$0xff]
    %v491 = vld [vmem:[#allocation8 + $0x80] sm:$0xff]
    %v492 = vld [vmem:[#allocation8 + $0x88] sm:$0xff]
    %v493 = vld [vmem:[#allocation8 + $0x90] sm:$0xff]
    %v494 = vld [vmem:[#allocation8 + $0x98] sm:$0xff]
    %v495 = vld [vmem:[#allocation8 + $0xa0] sm:$0xff]
    %v496 = vld [vmem:[#allocation8 + $0xa8] sm:$0xff]
    %v497 = vld [vmem:[#allocation8 + $0xb0] sm:$0xff]
    %v498 = vld [vmem:[#allocation8 + $0xb8] sm:$0xff]
    %v499 = vld [vmem:[#allocation8 + $0xc0] sm:$0xff]
    %v500 = vld [vmem:[#allocation8 + $0xc8] sm:$0xff]
    %v501 = vld [vmem:[#allocation8 + $0xd0] sm:$0xff]
    %v502 = vld [vmem:[#allocation8 + $0xd8] sm:$0xff]
    %v503 = vld [vmem:[#allocation8 + $0xe0] sm:$0xff]
    %v504 = vld [vmem:[#allocation8 + $0xe8] sm:$0xff]
    %v505 = vld [vmem:[#allocation8 + $0xf0] sm:$0xff]
    %v506 = vld [vmem:[#allocation8 + $0xf8] sm:$0xff]
    %v507 = vld [vmem:[#allocation8 + $0x100] sm:$0xff]
    %v508 = vld [vmem:[#allocation8 + $0x108] sm:$0xff]
    %v509 = vld [vmem:[#allocation8 + $0x110] sm:$0xff]
    %v510 = vld [vmem:[#allocation8 + $0x118] sm:$0xff]
    %v511 = vld [vmem:[#allocation8 + $0x120] sm:$0xff]
    %v512 = vld [vmem:[#allocation8 + $0x128] sm:$0xff]
    %v513 = vld [vmem:[#allocation8 + $0x130] sm:$0xff]
    %v514 = vld [vmem:[#allocation8 + $0x138] sm:$0xff]
    %v515 = vld [vmem:[#allocation8 + $0x140] sm:$0xff]
    %v516 = vld [vmem:[#allocation8 + $0x148] sm:$0xff]
    %v517 = vld [vmem:[#allocation8 + $0x150] sm:$0xff]
    %v518 = vld [vmem:[#allocation8 + $0x158] sm:$0xff]
    %v519 = vld [vmem:[#allocation8 + $0x160] sm:$0xff]
    %v520 = vld [vmem:[#allocation8 + $0x168] sm:$0xff]
    %v521 = vld [vmem:[#allocation8 + $0x170] sm:$0xff]
    %v522 = vld [vmem:[#allocation8 + $0x178] sm:$0xff]
    %v523 = vld [vmem:[#allocation8 + $0x180] sm:$0xff]
    %v524 = vld [vmem:[#allocation8 + $0x188] sm:$0xff]
    %v525 = vld [vmem:[#allocation8 + $0x190] sm:$0xff]
    %v526 = vld [vmem:[#allocation8 + $0x198] sm:$0xff]
    %v527 = vld [vmem:[#allocation8 + $0x1a0] sm:$0xff]
    %v528 = vld [vmem:[#allocation8 + $0x1a8] sm:$0xff]
    %v529 = vld [vmem:[#allocation8 + $0x1b0] sm:$0xff]
    %v530 = vld [vmem:[#allocation8 + $0x1b8] sm:$0xff]
    %v531 = vld [vmem:[#allocation8 + $0x1c0] sm:$0xff]
    %v532 = vld [vmem:[#allocation8 + $0x1c8] sm:$0xff]
    %v533 = vld [vmem:[#allocation8 + $0x1d0] sm:$0xff]
    %v534 = vld [vmem:[#allocation8 + $0x1d8] sm:$0xff]
    %v535 = vld [vmem:[#allocation8 + $0x1e0] sm:$0xff]
    %v536 = vld [vmem:[#allocation8 + $0x1e8] sm:$0xff]
    %v537 = vld [vmem:[#allocation8 + $0x1f0] sm:$0xff]
    %v538 = vld [vmem:[#allocation8 + $0x1f8] sm:$0xff]
    %v539 = vld [vmem:[#allocation8 + $0x200] sm:$0xff]
    %v540 = vld [vmem:[#allocation8 + $0x208] sm:$0xff]
    %v541 = vld [vmem:[#allocation8 + $0x210] sm:$0xff]
    %v542 = vld [vmem:[#allocation8 + $0x218] sm:$0xff]
    %v543 = vld [vmem:[#allocation8 + $0x220] sm:$0xff]
    %v544 = vld [vmem:[#allocation8 + $0x228] sm:$0xff]
    %v545 = vld [vmem:[#allocation8 + $0x230] sm:$0xff]
    %v546 = vld [vmem:[#allocation8 + $0x238] sm:$0xff]
    %v547 = vld [vmem:[#allocation8 + $0x240] sm:$0xff]
    %v548 = vld [vmem:[#allocation8 + $0x248] sm:$0xff]
    %v549 = vld [vmem:[#allocation8 + $0x250] sm:$0xff]
    %v550 = vld [vmem:[#allocation8 + $0x258] sm:$0xff]
    %v551 = vld [vmem:[#allocation8 + $0x260] sm:$0xff]
    %v552 = vld [vmem:[#allocation8 + $0x268] sm:$0xff]
    %v553 = vld [vmem:[#allocation8 + $0x270] sm:$0xff]
    %v554 = vld [vmem:[#allocation8 + $0x278] sm:$0xff]
    %v555 = vld [vmem:[#allocation8 + $0x280] sm:$0xff]
    %v556 = vld [vmem:[#allocation8 + $0x288] sm:$0xff]
    %v557 = vld [vmem:[#allocation8 + $0x290] sm:$0xff]
    %v558 = vld [vmem:[#allocation8 + $0x298] sm:$0xff]
    %v559 = vld [vmem:[#allocation8 + $0x2a0] sm:$0xff]
    %v560 = vld [vmem:[#allocation8 + $0x2a8] sm:$0xff]
    %v561 = vld [vmem:[#allocation8 + $0x2b0] sm:$0xff]
    %v562 = vld [vmem:[#allocation8 + $0x2b8] sm:$0xff]
    %v563 = vld [vmem:[#allocation8 + $0x2c0] sm:$0xff]
    %v564 = vld [vmem:[#allocation8 + $0x2c8] sm:$0xff]
    %v565 = vld [vmem:[#allocation8 + $0x2d0] sm:$0xff]
    %v566 = vld [vmem:[#allocation8 + $0x2d8] sm:$0xff]
    %v567 = vld [vmem:[#allocation8 + $0x2e0] sm:$0xff]
    %v568 = vld [vmem:[#allocation8 + $0x2e8] sm:$0xff]
    %v569 = vld [vmem:[#allocation8 + $0x2f0] sm:$0xff]
    %v570 = vld [vmem:[#allocation8 + $0x2f8] sm:$0xff]
    %v571 = vld [vmem:[#allocation8 + $0x300] sm:$0xff]
    %v572 = vld [vmem:[#allocation8 + $0x308] sm:$0xff]
    %v573 = vld [vmem:[#allocation8 + $0x310] sm:$0xff]
    %v574 = vld [vmem:[#allocation8 + $0x318] sm:$0xff]
    %v575 = vld [vmem:[#allocation8 + $0x320] sm:$0xff]
    %v576 = vld [vmem:[#allocation8 + $0x328] sm:$0xff]
    %v577 = vld [vmem:[#allocation8 + $0x330] sm:$0xff]
    %v578 = vld [vmem:[#allocation8 + $0x338] sm:$0xff]
    %v579 = vld [vmem:[#allocation8 + $0x340] sm:$0xff]
    %v580 = vld [vmem:[#allocation8 + $0x348] sm:$0xff]
    %v581 = vld [vmem:[#allocation8 + $0x350] sm:$0xff]
    %v582 = vld [vmem:[#allocation8 + $0x358] sm:$0xff]
    %v583 = vld [vmem:[#allocation8 + $0x360] sm:$0xff]
    %v584 = vld [vmem:[#allocation8 + $0x368] sm:$0xff]
    %v585 = vld [vmem:[#allocation8 + $0x370] sm:$0xff]
    %v586 = vld [vmem:[#allocation8 + $0x378] sm:$0xff]
    %v587 = vld [vmem:[#allocation8 + $0x380] sm:$0xff]
    %v588 = vld [vmem:[#allocation8 + $0x388] sm:$0xff]
    %v589 = vld [vmem:[#allocation8 + $0x390] sm:$0xff]
    %v590 = vld [vmem:[#allocation8 + $0x398] sm:$0xff]
    %v591 = vld [vmem:[#allocation8 + $0x3a0] sm:$0xff]
    %v592 = vld [vmem:[#allocation8 + $0x3a8] sm:$0xff]
    %v593 = vld [vmem:[#allocation8 + $0x3b0] sm:$0xff]
    %v594 = vld [vmem:[#allocation8 + $0x3b8] sm:$0xff]
    %v595 = vld [vmem:[#allocation8 + $0x3c0] sm:$0xff]
    %v596 = vld [vmem:[#allocation8 + $0x3c8] sm:$0xff]
    %v597 = vld [vmem:[#allocation8 + $0x3d0] sm:$0xff]
    %v598 = vld [vmem:[#allocation8 + $0x3d8] sm:$0xff]
    %v599 = vld [vmem:[#allocation8 + $0x3e0] sm:$0xff]
    %v600 = vld [vmem:[#allocation8 + $0x3e8] sm:$0xff]
    %v601 = vld [vmem:[#allocation8 + $0x3f0] sm:$0xff]
    %v602 = vld [vmem:[#allocation8 + $0x3f8] sm:$0xff]
    %v603 = vld [vmem:[#allocation8 + $0x400] sm:$0xff]
    %v604 = vld [vmem:[#allocation8 + $0x408] sm:$0xff]
    %v605 = vld [vmem:[#allocation8 + $0x410] sm:$0xff]
    %v606 = vld [vmem:[#allocation8 + $0x418] sm:$0xff]
    %v607 = vld [vmem:[#allocation8 + $0x420] sm:$0xff]
    %v608 = vld [vmem:[#allocation8 + $0x428] sm:$0xff]
    %v609 = vld [vmem:[#allocation8 + $0x430] sm:$0xff]
    %v610 = vld [vmem:[#allocation8 + $0x438] sm:$0xff]
    %v611 = vld [vmem:[#allocation8 + $0x440] sm:$0xff]
    %v612 = vld [vmem:[#allocation8 + $0x448] sm:$0xff]
    %v613 = vld [vmem:[#allocation8 + $0x450] sm:$0xff]
    %v614 = vld [vmem:[#allocation8 + $0x458] sm:$0xff]
    %v615 = vld [vmem:[#allocation8 + $0x460] sm:$0xff]
    %v616 = vld [vmem:[#allocation8 + $0x468] sm:$0xff]
    %v617 = vld [vmem:[#allocation8 + $0x470] sm:$0xff]
    %v618 = vld [vmem:[#allocation8 + $0x478] sm:$0xff]
    %v619 = vld [vmem:[#allocation8 + $0x480] sm:$0xff]
    %v620 = vld [vmem:[#allocation8 + $0x488] sm:$0xff]
    %v621 = vld [vmem:[#allocation8 + $0x490] sm:$0xff]
    %v622 = vld [vmem:[#allocation8 + $0x498] sm:$0xff]
    %v623 = vld [vmem:[#allocation8 + $0x4a0] sm:$0xff]
    %v624 = vld [vmem:[#allocation8 + $0x4a8] sm:$0xff]
    %v625 = vld [vmem:[#allocation8 + $0x4b0] sm:$0xff]
    %v626 = vld [vmem:[#allocation8 + $0x4b8] sm:$0xff]
    %v627 = vld [vmem:[#allocation8 + $0x4c0] sm:$0xff]
    %v628 = vld [vmem:[#allocation8 + $0x4c8] sm:$0xff]
    %v629 = vld [vmem:[#allocation8 + $0x4d0] sm:$0xff]
    %v630 = vld [vmem:[#allocation8 + $0x4d8] sm:$0xff]
    %v631 = vld [vmem:[#allocation8 + $0x4e0] sm:$0xff]
    %v632 = vld [vmem:[#allocation8 + $0x4e8] sm:$0xff]
    %v633 = vld [vmem:[#allocation8 + $0x4f0] sm:$0xff]
    %v634 = vld [vmem:[#allocation8 + $0x4f8] sm:$0xff]
    %v635 = vld [vmem:[#allocation8 + $0x500] sm:$0xff]
    %v636 = vld [vmem:[#allocation8 + $0x508] sm:$0xff]
    %v637 = vld [vmem:[#allocation8 + $0x510] sm:$0xff]
    %v638 = vld [vmem:[#allocation8 + $0x518] sm:$0xff]
    %v639 = vld [vmem:[#allocation8 + $0x520] sm:$0xff]
    %v640 = vld [vmem:[#allocation8 + $0x528] sm:$0xff]
    %v641 = vld [vmem:[#allocation8 + $0x530] sm:$0xff]
    %v642 = vld [vmem:[#allocation8 + $0x538] sm:$0xff]
    %v643 = vld [vmem:[#allocation8 + $0x540] sm:$0xff]
    %v644 = vld [vmem:[#allocation8 + $0x548] sm:$0xff]
    %v645 = vld [vmem:[#allocation8 + $0x550] sm:$0xff]
    %v646 = vld [vmem:[#allocation8 + $0x558] sm:$0xff]
    %v647 = vld [vmem:[#allocation8 + $0x560] sm:$0xff]
    %v648 = vld [vmem:[#allocation8 + $0x568] sm:$0xff]
    %v649 = vld [vmem:[#allocation8 + $0x570] sm:$0xff]
    %v650 = vld [vmem:[#allocation8 + $0x578] sm:$0xff]
    %v651 = vld [vmem:[#allocation8 + $0x580] sm:$0xff]
    %v652 = vld [vmem:[#allocation8 + $0x588] sm:$0xff]
    %v653 = vld [vmem:[#allocation8 + $0x590] sm:$0xff]
    %v654 = vld [vmem:[#allocation8 + $0x598] sm:$0xff]
    %v655 = vld [vmem:[#allocation8 + $0x5a0] sm:$0xff]
    %v656 = vld [vmem:[#allocation8 + $0x5a8] sm:$0xff]
    %v657 = vld [vmem:[#allocation8 + $0x5b0] sm:$0xff]
    %v658 = vld [vmem:[#allocation8 + $0x5b8] sm:$0xff]
    %v659 = vld [vmem:[#allocation8 + $0x5c0] sm:$0xff]
    %v660 = vld [vmem:[#allocation8 + $0x5c8] sm:$0xff]
    %v661 = vld [vmem:[#allocation8 + $0x5d0] sm:$0xff]
    %v662 = vld [vmem:[#allocation8 + $0x5d8] sm:$0xff]
    %v663 = vld [vmem:[#allocation8 + $0x5e0] sm:$0xff]
    %v664 = vld [vmem:[#allocation8 + $0x5e8] sm:$0xff]
    %v665 = vld [vmem:[#allocation8 + $0x5f0] sm:$0xff]
    %v666 = vld [vmem:[#allocation8 + $0x5f8] sm:$0xff]
    %v667 = vld [vmem:[#allocation8 + $0x600] sm:$0xff]
    %v668 = vld [vmem:[#allocation8 + $0x608] sm:$0xff]
    %v669 = vld [vmem:[#allocation8 + $0x610] sm:$0xff]
    %v670 = vld [vmem:[#allocation8 + $0x618] sm:$0xff]
    %v671 = vld [vmem:[#allocation8 + $0x620] sm:$0xff]
    %v672 = vld [vmem:[#allocation8 + $0x628] sm:$0xff]
    %v673 = vld [vmem:[#allocation8 + $0x630] sm:$0xff]
    %v674 = vld [vmem:[#allocation8 + $0x638] sm:$0xff]
    %v675 = vld [vmem:[#allocation8 + $0x640] sm:$0xff]
    %v676 = vld [vmem:[#allocation8 + $0x648] sm:$0xff]
    %v677 = vld [vmem:[#allocation8 + $0x650] sm:$0xff]
    %v678 = vld [vmem:[#allocation8 + $0x658] sm:$0xff]
    %v679 = vld [vmem:[#allocation8 + $0x660] sm:$0xff]
    %v680 = vld [vmem:[#allocation8 + $0x668] sm:$0xff]
    %v681 = vld [vmem:[#allocation8 + $0x670] sm:$0xff]
    %v682 = vld [vmem:[#allocation8 + $0x678] sm:$0xff]
    %v683 = vld [vmem:[#allocation8 + $0x680] sm:$0xff]
    %v684 = vld [vmem:[#allocation8 + $0x688] sm:$0xff]
    %v685 = vld [vmem:[#allocation8 + $0x690] sm:$0xff]
    %v686 = vld [vmem:[#allocation8 + $0x698] sm:$0xff]
    %v687 = vld [vmem:[#allocation8 + $0x6a0] sm:$0xff]
    %v688 = vld [vmem:[#allocation8 + $0x6a8] sm:$0xff]
    %v689 = vld [vmem:[#allocation8 + $0x6b0] sm:$0xff]
    %v690 = vld [vmem:[#allocation8 + $0x6b8] sm:$0xff]
    %v691 = vld [vmem:[#allocation8 + $0x6c0] sm:$0xff]
    %v692 = vld [vmem:[#allocation8 + $0x6c8] sm:$0xff]
    %v693 = vld [vmem:[#allocation8 + $0x6d0] sm:$0xff]
    %v694 = vld [vmem:[#allocation8 + $0x6d8] sm:$0xff]
    %v695 = vld [vmem:[#allocation8 + $0x6e0] sm:$0xff]
    %v696 = vld [vmem:[#allocation8 + $0x6e8] sm:$0xff]
    %v697 = vld [vmem:[#allocation8 + $0x6f0] sm:$0xff]
    %v698 = vld [vmem:[#allocation8 + $0x6f8] sm:$0xff]
    %v699 = vld [vmem:[#allocation8 + $0x700] sm:$0xff]
    %v700 = vld [vmem:[#allocation8 + $0x708] sm:$0xff]
    %v701 = vld [vmem:[#allocation8 + $0x710] sm:$0xff]
    %v702 = vld [vmem:[#allocation8 + $0x718] sm:$0xff]
    %v703 = vld [vmem:[#allocation8 + $0x720] sm:$0xff]
    %v704 = vld [vmem:[#allocation8 + $0x728] sm:$0xff]
    %v705 = vld [vmem:[#allocation8 + $0x730] sm:$0xff]
    %v706 = vld [vmem:[#allocation8 + $0x738] sm:$0xff]
    %v707 = vld [vmem:[#allocation8 + $0x740] sm:$0xff]
    %v708 = vld [vmem:[#allocation8 + $0x748] sm:$0xff]
    %v709 = vld [vmem:[#allocation8 + $0x750] sm:$0xff]
    %v710 = vld [vmem:[#allocation8 + $0x758] sm:$0xff]
    %v711 = vld [vmem:[#allocation8 + $0x760] sm:$0xff]
    %v712 = vld [vmem:[#allocation8 + $0x768] sm:$0xff]
    %v713 = vld [vmem:[#allocation8 + $0x770] sm:$0xff]
    %v714 = vld [vmem:[#allocation8 + $0x778] sm:$0xff]
    %v715 = vld [vmem:[#allocation8 + $0x780] sm:$0xff]
    %v716 = vld [vmem:[#allocation8 + $0x788] sm:$0xff]
    %v717 = vld [vmem:[#allocation8 + $0x790] sm:$0xff]
    %v718 = vld [vmem:[#allocation8 + $0x798] sm:$0xff]
    %v719 = vld [vmem:[#allocation8 + $0x7a0] sm:$0xff]
    %v720 = vld [vmem:[#allocation8 + $0x7a8] sm:$0xff]
    %v721 = vld [vmem:[#allocation8 + $0x7b0] sm:$0xff]
    %v722 = vld [vmem:[#allocation8 + $0x7b8] sm:$0xff]
    %v723 = vld [vmem:[#allocation8 + $0x7c0] sm:$0xff]
    %v724 = vld [vmem:[#allocation8 + $0x7c8] sm:$0xff]
    %v725 = vld [vmem:[#allocation8 + $0x7d0] sm:$0xff]
    %v726 = vld [vmem:[#allocation8 + $0x7d8] sm:$0xff]
    %v727 = vld [vmem:[#allocation8 + $0x7e0] sm:$0xff]
    %v728 = vld [vmem:[#allocation8 + $0x7e8] sm:$0xff]
    %v729 = vld [vmem:[#allocation8 + $0x7f0] sm:$0xff]
    %v730 = vld [vmem:[#allocation8 + $0x7f8] sm:$0xff]
    %v987 = vunpack.c.l.b16 %v475
    %v988 = vunpack.c.h.b16 %v475
    %v989 = vunpack.c.l.b16 %v476
    %v990 = vunpack.c.h.b16 %v476
    %v991 = vunpack.c.l.b16 %v477
    %v992 = vunpack.c.h.b16 %v477
    %v993 = vunpack.c.l.b16 %v478
    %v994 = vunpack.c.h.b16 %v478
    %v995 = vunpack.c.l.b16 %v479
    %v996 = vunpack.c.h.b16 %v479
    %v997 = vunpack.c.l.b16 %v480
    %v998 = vunpack.c.h.b16 %v480
    %v999 = vunpack.c.l.b16 %v481
    %v1000 = vunpack.c.h.b16 %v481
    %v1001 = vunpack.c.l.b16 %v482
    %v1002 = vunpack.c.h.b16 %v482
    %v1003 = vunpack.c.l.b16 %v483
    %v1004 = vunpack.c.h.b16 %v483
    %v1005 = vunpack.c.l.b16 %v484
    %v1006 = vunpack.c.h.b16 %v484
    %v1007 = vunpack.c.l.b16 %v485
    %v1008 = vunpack.c.h.b16 %v485
    %v1009 = vunpack.c.l.b16 %v486
    %v1010 = vunpack.c.h.b16 %v486
    %v1011 = vunpack.c.l.b16 %v487
    %v1012 = vunpack.c.h.b16 %v487
    %v1013 = vunpack.c.l.b16 %v488
    %v1014 = vunpack.c.h.b16 %v488
    %v1015 = vunpack.c.l.b16 %v489
    %v1016 = vunpack.c.h.b16 %v489
    %v1017 = vunpack.c.l.b16 %v490
    %v1018 = vunpack.c.h.b16 %v490
    %v1019 = vunpack.c.l.b16 %v491
    %v1020 = vunpack.c.h.b16 %v491
    %v1021 = vunpack.c.l.b16 %v492
    %v1022 = vunpack.c.h.b16 %v492
    %v1023 = vunpack.c.l.b16 %v493
    %v1024 = vunpack.c.h.b16 %v493
    %v1025 = vunpack.c.l.b16 %v494
    %v1026 = vunpack.c.h.b16 %v494
    %v1027 = vunpack.c.l.b16 %v495
    %v1028 = vunpack.c.h.b16 %v495
    %v1029 = vunpack.c.l.b16 %v496
    %v1030 = vunpack.c.h.b16 %v496
    %v1031 = vunpack.c.l.b16 %v497
    %v1032 = vunpack.c.h.b16 %v497
    %v1033 = vunpack.c.l.b16 %v498
    %v1034 = vunpack.c.h.b16 %v498
    %v1035 = vunpack.c.l.b16 %v499
    %v1036 = vunpack.c.h.b16 %v499
    %v1037 = vunpack.c.l.b16 %v500
    %v1038 = vunpack.c.h.b16 %v500
    %v1039 = vunpack.c.l.b16 %v501
    %v1040 = vunpack.c.h.b16 %v501
    %v1041 = vunpack.c.l.b16 %v502
    %v1042 = vunpack.c.h.b16 %v502
    %v1043 = vunpack.c.l.b16 %v503
    %v1044 = vunpack.c.h.b16 %v503
    %v1045 = vunpack.c.l.b16 %v504
    %v1046 = vunpack.c.h.b16 %v504
    %v1047 = vunpack.c.l.b16 %v505
    %v1048 = vunpack.c.h.b16 %v505
    %v1049 = vunpack.c.l.b16 %v506
    %v1050 = vunpack.c.h.b16 %v506
    %v1051 = vunpack.c.l.b16 %v507
    %v1052 = vunpack.c.h.b16 %v507
    %v1053 = vunpack.c.l.b16 %v508
    %v1054 = vunpack.c.h.b16 %v508
    %v1055 = vunpack.c.l.b16 %v509
    %v1056 = vunpack.c.h.b16 %v509
    %v1057 = vunpack.c.l.b16 %v510
    %v1058 = vunpack.c.h.b16 %v510
    %v1059 = vunpack.c.l.b16 %v511
    %v1060 = vunpack.c.h.b16 %v511
    %v1061 = vunpack.c.l.b16 %v512
    %v1062 = vunpack.c.h.b16 %v512
    %v1063 = vunpack.c.l.b16 %v513
    %v1064 = vunpack.c.h.b16 %v513
    %v1065 = vunpack.c.l.b16 %v514
    %v1066 = vunpack.c.h.b16 %v514
    %v1067 = vunpack.c.l.b16 %v515
    %v1068 = vunpack.c.h.b16 %v515
    %v1069 = vunpack.c.l.b16 %v516
    %v1070 = vunpack.c.h.b16 %v516
    %v1071 = vunpack.c.l.b16 %v517
    %v1072 = vunpack.c.h.b16 %v517
    %v1073 = vunpack.c.l.b16 %v518
    %v1074 = vunpack.c.h.b16 %v518
    %v1075 = vunpack.c.l.b16 %v519
    %v1076 = vunpack.c.h.b16 %v519
    %v1077 = vunpack.c.l.b16 %v520
    %v1078 = vunpack.c.h.b16 %v520
    %v1079 = vunpack.c.l.b16 %v521
    %v1080 = vunpack.c.h.b16 %v521
    %v1081 = vunpack.c.l.b16 %v522
    %v1082 = vunpack.c.h.b16 %v522
    %v1083 = vunpack.c.l.b16 %v523
    %v1084 = vunpack.c.h.b16 %v523
    %v1085 = vunpack.c.l.b16 %v524
    %v1086 = vunpack.c.h.b16 %v524
    %v1087 = vunpack.c.l.b16 %v525
    %v1088 = vunpack.c.h.b16 %v525
    %v1089 = vunpack.c.l.b16 %v526
    %v1090 = vunpack.c.h.b16 %v526
    %v1091 = vunpack.c.l.b16 %v527
    %v1092 = vunpack.c.h.b16 %v527
    %v1093 = vunpack.c.l.b16 %v528
    %v1094 = vunpack.c.h.b16 %v528
    %v1095 = vunpack.c.l.b16 %v529
    %v1096 = vunpack.c.h.b16 %v529
    %v1097 = vunpack.c.l.b16 %v530
    %v1098 = vunpack.c.h.b16 %v530
    %v1099 = vunpack.c.l.b16 %v531
    %v1100 = vunpack.c.h.b16 %v531
    %v1101 = vunpack.c.l.b16 %v532
    %v1102 = vunpack.c.h.b16 %v532
    %v1103 = vunpack.c.l.b16 %v533
    %v1104 = vunpack.c.h.b16 %v533
    %v1105 = vunpack.c.l.b16 %v534
    %v1106 = vunpack.c.h.b16 %v534
    %v1107 = vunpack.c.l.b16 %v535
    %v1108 = vunpack.c.h.b16 %v535
    %v1109 = vunpack.c.l.b16 %v536
    %v1110 = vunpack.c.h.b16 %v536
    %v1111 = vunpack.c.l.b16 %v537
    %v1112 = vunpack.c.h.b16 %v537
    %v1113 = vunpack.c.l.b16 %v538
    %v1114 = vunpack.c.h.b16 %v538
    %v1115 = vunpack.c.l.b16 %v539
    %v1116 = vunpack.c.h.b16 %v539
    %v1117 = vunpack.c.l.b16 %v540
    %v1118 = vunpack.c.h.b16 %v540
    %v1119 = vunpack.c.l.b16 %v541
    %v1120 = vunpack.c.h.b16 %v541
    %v1121 = vunpack.c.l.b16 %v542
    %v1122 = vunpack.c.h.b16 %v542
    %v1123 = vunpack.c.l.b16 %v543
    %v1124 = vunpack.c.h.b16 %v543
    %v1125 = vunpack.c.l.b16 %v544
    %v1126 = vunpack.c.h.b16 %v544
    %v1127 = vunpack.c.l.b16 %v545
    %v1128 = vunpack.c.h.b16 %v545
    %v1129 = vunpack.c.l.b16 %v546
    %v1130 = vunpack.c.h.b16 %v546
    %v1131 = vunpack.c.l.b16 %v547
    %v1132 = vunpack.c.h.b16 %v547
    %v1133 = vunpack.c.l.b16 %v548
    %v1134 = vunpack.c.h.b16 %v548
    %v1135 = vunpack.c.l.b16 %v549
    %v1136 = vunpack.c.h.b16 %v549
    %v1137 = vunpack.c.l.b16 %v550
    %v1138 = vunpack.c.h.b16 %v550
    %v1139 = vunpack.c.l.b16 %v551
    %v1140 = vunpack.c.h.b16 %v551
    %v1141 = vunpack.c.l.b16 %v552
    %v1142 = vunpack.c.h.b16 %v552
    %v1143 = vunpack.c.l.b16 %v553
    %v1144 = vunpack.c.h.b16 %v553
    %v1145 = vunpack.c.l.b16 %v554
    %v1146 = vunpack.c.h.b16 %v554
    %v1147 = vunpack.c.l.b16 %v555
    %v1148 = vunpack.c.h.b16 %v555
    %v1149 = vunpack.c.l.b16 %v556
    %v1150 = vunpack.c.h.b16 %v556
    %v1151 = vunpack.c.l.b16 %v557
    %v1152 = vunpack.c.h.b16 %v557
    %v1153 = vunpack.c.l.b16 %v558
    %v1154 = vunpack.c.h.b16 %v558
    %v1155 = vunpack.c.l.b16 %v559
    %v1156 = vunpack.c.h.b16 %v559
    %v1157 = vunpack.c.l.b16 %v560
    %v1158 = vunpack.c.h.b16 %v560
    %v1159 = vunpack.c.l.b16 %v561
    %v1160 = vunpack.c.h.b16 %v561
    %v1161 = vunpack.c.l.b16 %v562
    %v1162 = vunpack.c.h.b16 %v562
    %v1163 = vunpack.c.l.b16 %v563
    %v1164 = vunpack.c.h.b16 %v563
    %v1165 = vunpack.c.l.b16 %v564
    %v1166 = vunpack.c.h.b16 %v564
    %v1167 = vunpack.c.l.b16 %v565
    %v1168 = vunpack.c.h.b16 %v565
    %v1169 = vunpack.c.l.b16 %v566
    %v1170 = vunpack.c.h.b16 %v566
    %v1171 = vunpack.c.l.b16 %v567
    %v1172 = vunpack.c.h.b16 %v567
    %v1173 = vunpack.c.l.b16 %v568
    %v1174 = vunpack.c.h.b16 %v568
    %v1175 = vunpack.c.l.b16 %v569
    %v1176 = vunpack.c.h.b16 %v569
    %v1177 = vunpack.c.l.b16 %v570
    %v1178 = vunpack.c.h.b16 %v570
    %v1179 = vunpack.c.l.b16 %v571
    %v1180 = vunpack.c.h.b16 %v571
    %v1181 = vunpack.c.l.b16 %v572
    %v1182 = vunpack.c.h.b16 %v572
    %v1183 = vunpack.c.l.b16 %v573
    %v1184 = vunpack.c.h.b16 %v573
    %v1185 = vunpack.c.l.b16 %v574
    %v1186 = vunpack.c.h.b16 %v574
    %v1187 = vunpack.c.l.b16 %v575
    %v1188 = vunpack.c.h.b16 %v575
    %v1189 = vunpack.c.l.b16 %v576
    %v1190 = vunpack.c.h.b16 %v576
    %v1191 = vunpack.c.l.b16 %v577
    %v1192 = vunpack.c.h.b16 %v577
    %v1193 = vunpack.c.l.b16 %v578
    %v1194 = vunpack.c.h.b16 %v578
    %v1195 = vunpack.c.l.b16 %v579
    %v1196 = vunpack.c.h.b16 %v579
    %v1197 = vunpack.c.l.b16 %v580
    %v1198 = vunpack.c.h.b16 %v580
    %v1199 = vunpack.c.l.b16 %v581
    %v1200 = vunpack.c.h.b16 %v581
    %v1201 = vunpack.c.l.b16 %v582
    %v1202 = vunpack.c.h.b16 %v582
    %v1203 = vunpack.c.l.b16 %v583
    %v1204 = vunpack.c.h.b16 %v583
    %v1205 = vunpack.c.l.b16 %v584
    %v1206 = vunpack.c.h.b16 %v584
    %v1207 = vunpack.c.l.b16 %v585
    %v1208 = vunpack.c.h.b16 %v585
    %v1209 = vunpack.c.l.b16 %v586
    %v1210 = vunpack.c.h.b16 %v586
    %v1211 = vunpack.c.l.b16 %v587
    %v1212 = vunpack.c.h.b16 %v587
    %v1213 = vunpack.c.l.b16 %v588
    %v1214 = vunpack.c.h.b16 %v588
    %v1215 = vunpack.c.l.b16 %v589
    %v1216 = vunpack.c.h.b16 %v589
    %v1217 = vunpack.c.l.b16 %v590
    %v1218 = vunpack.c.h.b16 %v590
    %v1219 = vunpack.c.l.b16 %v591
    %v1220 = vunpack.c.h.b16 %v591
    %v1221 = vunpack.c.l.b16 %v592
    %v1222 = vunpack.c.h.b16 %v592
    %v1223 = vunpack.c.l.b16 %v593
    %v1224 = vunpack.c.h.b16 %v593
    %v1225 = vunpack.c.l.b16 %v594
    %v1226 = vunpack.c.h.b16 %v594
    %v1227 = vunpack.c.l.b16 %v595
    %v1228 = vunpack.c.h.b16 %v595
    %v1229 = vunpack.c.l.b16 %v596
    %v1230 = vunpack.c.h.b16 %v596
    %v1231 = vunpack.c.l.b16 %v597
    %v1232 = vunpack.c.h.b16 %v597
    %v1233 = vunpack.c.l.b16 %v598
    %v1234 = vunpack.c.h.b16 %v598
    %v1235 = vunpack.c.l.b16 %v599
    %v1236 = vunpack.c.h.b16 %v599
    %v1237 = vunpack.c.l.b16 %v600
    %v1238 = vunpack.c.h.b16 %v600
    %v1239 = vunpack.c.l.b16 %v601
    %v1240 = vunpack.c.h.b16 %v601
    %v1241 = vunpack.c.l.b16 %v602
    %v1242 = vunpack.c.h.b16 %v602
    %v1243 = vunpack.c.l.b16 %v603
    %v1244 = vunpack.c.h.b16 %v603
    %v1245 = vunpack.c.l.b16 %v604
    %v1246 = vunpack.c.h.b16 %v604
    %v1247 = vunpack.c.l.b16 %v605
    %v1248 = vunpack.c.h.b16 %v605
    %v1249 = vunpack.c.l.b16 %v606
    %v1250 = vunpack.c.h.b16 %v606
    %v1251 = vunpack.c.l.b16 %v607
    %v1252 = vunpack.c.h.b16 %v607
    %v1253 = vunpack.c.l.b16 %v608
    %v1254 = vunpack.c.h.b16 %v608
    %v1255 = vunpack.c.l.b16 %v609
    %v1256 = vunpack.c.h.b16 %v609
    %v1257 = vunpack.c.l.b16 %v610
    %v1258 = vunpack.c.h.b16 %v610
    %v1259 = vunpack.c.l.b16 %v611
    %v1260 = vunpack.c.h.b16 %v611
    %v1261 = vunpack.c.l.b16 %v612
    %v1262 = vunpack.c.h.b16 %v612
    %v1263 = vunpack.c.l.b16 %v613
    %v1264 = vunpack.c.h.b16 %v613
    %v1265 = vunpack.c.l.b16 %v614
    %v1266 = vunpack.c.h.b16 %v614
    %v1267 = vunpack.c.l.b16 %v615
    %v1268 = vunpack.c.h.b16 %v615
    %v1269 = vunpack.c.l.b16 %v616
    %v1270 = vunpack.c.h.b16 %v616
    %v1271 = vunpack.c.l.b16 %v617
    %v1272 = vunpack.c.h.b16 %v617
    %v1273 = vunpack.c.l.b16 %v618
    %v1274 = vunpack.c.h.b16 %v618
    %v1275 = vunpack.c.l.b16 %v619
    %v1276 = vunpack.c.h.b16 %v619
    %v1277 = vunpack.c.l.b16 %v620
    %v1278 = vunpack.c.h.b16 %v620
    %v1279 = vunpack.c.l.b16 %v621
    %v1280 = vunpack.c.h.b16 %v621
    %v1281 = vunpack.c.l.b16 %v622
    %v1282 = vunpack.c.h.b16 %v622
    %v1283 = vunpack.c.l.b16 %v623
    %v1284 = vunpack.c.h.b16 %v623
    %v1285 = vunpack.c.l.b16 %v624
    %v1286 = vunpack.c.h.b16 %v624
    %v1287 = vunpack.c.l.b16 %v625
    %v1288 = vunpack.c.h.b16 %v625
    %v1289 = vunpack.c.l.b16 %v626
    %v1290 = vunpack.c.h.b16 %v626
    %v1291 = vunpack.c.l.b16 %v627
    %v1292 = vunpack.c.h.b16 %v627
    %v1293 = vunpack.c.l.b16 %v628
    %v1294 = vunpack.c.h.b16 %v628
    %v1295 = vunpack.c.l.b16 %v629
    %v1296 = vunpack.c.h.b16 %v629
    %v1297 = vunpack.c.l.b16 %v630
    %v1298 = vunpack.c.h.b16 %v630
    %v1299 = vunpack.c.l.b16 %v631
    %v1300 = vunpack.c.h.b16 %v631
    %v1301 = vunpack.c.l.b16 %v632
    %v1302 = vunpack.c.h.b16 %v632
    %v1303 = vunpack.c.l.b16 %v633
    %v1304 = vunpack.c.h.b16 %v633
    %v1305 = vunpack.c.l.b16 %v634
    %v1306 = vunpack.c.h.b16 %v634
    %v1307 = vunpack.c.l.b16 %v635
    %v1308 = vunpack.c.h.b16 %v635
    %v1309 = vunpack.c.l.b16 %v636
    %v1310 = vunpack.c.h.b16 %v636
    %v1311 = vunpack.c.l.b16 %v637
    %v1312 = vunpack.c.h.b16 %v637
    %v1313 = vunpack.c.l.b16 %v638
    %v1314 = vunpack.c.h.b16 %v638
    %v1315 = vunpack.c.l.b16 %v639
    %v1316 = vunpack.c.h.b16 %v639
    %v1317 = vunpack.c.l.b16 %v640
    %v1318 = vunpack.c.h.b16 %v640
    %v1319 = vunpack.c.l.b16 %v641
    %v1320 = vunpack.c.h.b16 %v641
    %v1321 = vunpack.c.l.b16 %v642
    %v1322 = vunpack.c.h.b16 %v642
    %v1323 = vunpack.c.l.b16 %v643
    %v1324 = vunpack.c.h.b16 %v643
    %v1325 = vunpack.c.l.b16 %v644
    %v1326 = vunpack.c.h.b16 %v644
    %v1327 = vunpack.c.l.b16 %v645
    %v1328 = vunpack.c.h.b16 %v645
    %v1329 = vunpack.c.l.b16 %v646
    %v1330 = vunpack.c.h.b16 %v646
    %v1331 = vunpack.c.l.b16 %v647
    %v1332 = vunpack.c.h.b16 %v647
    %v1333 = vunpack.c.l.b16 %v648
    %v1334 = vunpack.c.h.b16 %v648
    %v1335 = vunpack.c.l.b16 %v649
    %v1336 = vunpack.c.h.b16 %v649
    %v1337 = vunpack.c.l.b16 %v650
    %v1338 = vunpack.c.h.b16 %v650
    %v1339 = vunpack.c.l.b16 %v651
    %v1340 = vunpack.c.h.b16 %v651
    %v1341 = vunpack.c.l.b16 %v652
    %v1342 = vunpack.c.h.b16 %v652
    %v1343 = vunpack.c.l.b16 %v653
    %v1344 = vunpack.c.h.b16 %v653
    %v1345 = vunpack.c.l.b16 %v654
    %v1346 = vunpack.c.h.b16 %v654
    %v1347 = vunpack.c.l.b16 %v655
    %v1348 = vunpack.c.h.b16 %v655
    %v1349 = vunpack.c.l.b16 %v656
    %v1350 = vunpack.c.h.b16 %v656
    %v1351 = vunpack.c.l.b16 %v657
    %v1352 = vunpack.c.h.b16 %v657
    %v1353 = vunpack.c.l.b16 %v658
    %v1354 = vunpack.c.h.b16 %v658
    %v1355 = vunpack.c.l.b16 %v659
    %v1356 = vunpack.c.h.b16 %v659
    %v1357 = vunpack.c.l.b16 %v660
    %v1358 = vunpack.c.h.b16 %v660
    %v1359 = vunpack.c.l.b16 %v661
    %v1360 = vunpack.c.h.b16 %v661
    %v1361 = vunpack.c.l.b16 %v662
    %v1362 = vunpack.c.h.b16 %v662
    %v1363 = vunpack.c.l.b16 %v663
    %v1364 = vunpack.c.h.b16 %v663
    %v1365 = vunpack.c.l.b16 %v664
    %v1366 = vunpack.c.h.b16 %v664
    %v1367 = vunpack.c.l.b16 %v665
    %v1368 = vunpack.c.h.b16 %v665
    %v1369 = vunpack.c.l.b16 %v666
    %v1370 = vunpack.c.h.b16 %v666
    %v1371 = vunpack.c.l.b16 %v667
    %v1372 = vunpack.c.h.b16 %v667
    %v1373 = vunpack.c.l.b16 %v668
    %v1374 = vunpack.c.h.b16 %v668
    %v1375 = vunpack.c.l.b16 %v669
    %v1376 = vunpack.c.h.b16 %v669
    %v1377 = vunpack.c.l.b16 %v670
    %v1378 = vunpack.c.h.b16 %v670
    %v1379 = vunpack.c.l.b16 %v671
    %v1380 = vunpack.c.h.b16 %v671
    %v1381 = vunpack.c.l.b16 %v672
    %v1382 = vunpack.c.h.b16 %v672
    %v1383 = vunpack.c.l.b16 %v673
    %v1384 = vunpack.c.h.b16 %v673
    %v1385 = vunpack.c.l.b16 %v674
    %v1386 = vunpack.c.h.b16 %v674
    %v1387 = vunpack.c.l.b16 %v675
    %v1388 = vunpack.c.h.b16 %v675
    %v1389 = vunpack.c.l.b16 %v676
    %v1390 = vunpack.c.h.b16 %v676
    %v1391 = vunpack.c.l.b16 %v677
    %v1392 = vunpack.c.h.b16 %v677
    %v1393 = vunpack.c.l.b16 %v678
    %v1394 = vunpack.c.h.b16 %v678
    %v1395 = vunpack.c.l.b16 %v679
    %v1396 = vunpack.c.h.b16 %v679
    %v1397 = vunpack.c.l.b16 %v680
    %v1398 = vunpack.c.h.b16 %v680
    %v1399 = vunpack.c.l.b16 %v681
    %v1400 = vunpack.c.h.b16 %v681
    %v1401 = vunpack.c.l.b16 %v682
    %v1402 = vunpack.c.h.b16 %v682
    %v1403 = vunpack.c.l.b16 %v683
    %v1404 = vunpack.c.h.b16 %v683
    %v1405 = vunpack.c.l.b16 %v684
    %v1406 = vunpack.c.h.b16 %v684
    %v1407 = vunpack.c.l.b16 %v685
    %v1408 = vunpack.c.h.b16 %v685
    %v1409 = vunpack.c.l.b16 %v686
    %v1410 = vunpack.c.h.b16 %v686
    %v1411 = vunpack.c.l.b16 %v687
    %v1412 = vunpack.c.h.b16 %v687
    %v1413 = vunpack.c.l.b16 %v688
    %v1414 = vunpack.c.h.b16 %v688
    %v1415 = vunpack.c.l.b16 %v689
    %v1416 = vunpack.c.h.b16 %v689
    %v1417 = vunpack.c.l.b16 %v690
    %v1418 = vunpack.c.h.b16 %v690
    %v1419 = vunpack.c.l.b16 %v691
    %v1420 = vunpack.c.h.b16 %v691
    %v1421 = vunpack.c.l.b16 %v692
    %v1422 = vunpack.c.h.b16 %v692
    %v1423 = vunpack.c.l.b16 %v693
    %v1424 = vunpack.c.h.b16 %v693
    %v1425 = vunpack.c.l.b16 %v694
    %v1426 = vunpack.c.h.b16 %v694
    %v1427 = vunpack.c.l.b16 %v695
    %v1428 = vunpack.c.h.b16 %v695
    %v1429 = vunpack.c.l.b16 %v696
    %v1430 = vunpack.c.h.b16 %v696
    %v1431 = vunpack.c.l.b16 %v697
    %v1432 = vunpack.c.h.b16 %v697
    %v1433 = vunpack.c.l.b16 %v698
    %v1434 = vunpack.c.h.b16 %v698
    %v1435 = vunpack.c.l.b16 %v699
    %v1436 = vunpack.c.h.b16 %v699
    %v1437 = vunpack.c.l.b16 %v700
    %v1438 = vunpack.c.h.b16 %v700
    %v1439 = vunpack.c.l.b16 %v701
    %v1440 = vunpack.c.h.b16 %v701
    %v1441 = vunpack.c.l.b16 %v702
    %v1442 = vunpack.c.h.b16 %v702
    %v1443 = vunpack.c.l.b16 %v703
    %v1444 = vunpack.c.h.b16 %v703
    %v1445 = vunpack.c.l.b16 %v704
    %v1446 = vunpack.c.h.b16 %v704
    %v1447 = vunpack.c.l.b16 %v705
    %v1448 = vunpack.c.h.b16 %v705
    %v1449 = vunpack.c.l.b16 %v706
    %v1450 = vunpack.c.h.b16 %v706
    %v1451 = vunpack.c.l.b16 %v707
    %v1452 = vunpack.c.h.b16 %v707
    %v1453 = vunpack.c.l.b16 %v708
    %v1454 = vunpack.c.h.b16 %v708
    %v1455 = vunpack.c.l.b16 %v709
    %v1456 = vunpack.c.h.b16 %v709
    %v1457 = vunpack.c.l.b16 %v710
    %v1458 = vunpack.c.h.b16 %v710
    %v1459 = vunpack.c.l.b16 %v711
    %v1460 = vunpack.c.h.b16 %v711
    %v1461 = vunpack.c.l.b16 %v712
    %v1462 = vunpack.c.h.b16 %v712
    %v1463 = vunpack.c.l.b16 %v713
    %v1464 = vunpack.c.h.b16 %v713
    %v1465 = vunpack.c.l.b16 %v714
    %v1466 = vunpack.c.h.b16 %v714
    %v1467 = vunpack.c.l.b16 %v715
    %v1468 = vunpack.c.h.b16 %v715
    %v1469 = vunpack.c.l.b16 %v716
    %v1470 = vunpack.c.h.b16 %v716
    %v1471 = vunpack.c.l.b16 %v717
    %v1472 = vunpack.c.h.b16 %v717
    %v1473 = vunpack.c.l.b16 %v718
    %v1474 = vunpack.c.h.b16 %v718
    %v1475 = vunpack.c.l.b16 %v719
    %v1476 = vunpack.c.h.b16 %v719
    %v1477 = vunpack.c.l.b16 %v720
    %v1478 = vunpack.c.h.b16 %v720
    %v1479 = vunpack.c.l.b16 %v721
    %v1480 = vunpack.c.h.b16 %v721
    %v1481 = vunpack.c.l.b16 %v722
    %v1482 = vunpack.c.h.b16 %v722
    %v1483 = vunpack.c.l.b16 %v723
    %v1484 = vunpack.c.h.b16 %v723
    %v1485 = vunpack.c.l.b16 %v724
    %v1486 = vunpack.c.h.b16 %v724
    %v1487 = vunpack.c.l.b16 %v725
    %v1488 = vunpack.c.h.b16 %v725
    %v1489 = vunpack.c.l.b16 %v726
    %v1490 = vunpack.c.h.b16 %v726
    %v1491 = vunpack.c.l.b16 %v727
    %v1492 = vunpack.c.h.b16 %v727
    %v1493 = vunpack.c.l.b16 %v728
    %v1494 = vunpack.c.h.b16 %v728
    %v1495 = vunpack.c.l.b16 %v729
    %v1496 = vunpack.c.h.b16 %v729
    %v1497 = vunpack.c.l.b16 %v730
    %v1498 = vunpack.c.h.b16 %v730
    %v1499 = vpack.c.b16 %v995, %v987
    %v1500 = vpack.c.b16 %v996, %v988
    %v1501 = vpack.c.b16 %v997, %v989
    %v1502 = vpack.c.b16 %v998, %v990
    %v1503 = vpack.c.b16 %v999, %v991
    %v1504 = vpack.c.b16 %v1000, %v992
    %v1505 = vpack.c.b16 %v1001, %v993
    %v1506 = vpack.c.b16 %v1002, %v994
    %v1507 = vpack.c.b16 %v1011, %v1003
    %v1508 = vpack.c.b16 %v1012, %v1004
    %v1509 = vpack.c.b16 %v1013, %v1005
    %v1510 = vpack.c.b16 %v1014, %v1006
    %v1511 = vpack.c.b16 %v1015, %v1007
    %v1512 = vpack.c.b16 %v1016, %v1008
    %v1513 = vpack.c.b16 %v1017, %v1009
    %v1514 = vpack.c.b16 %v1018, %v1010
    %v1515 = vpack.c.b16 %v1027, %v1019
    %v1516 = vpack.c.b16 %v1028, %v1020
    %v1517 = vpack.c.b16 %v1029, %v1021
    %v1518 = vpack.c.b16 %v1030, %v1022
    %v1519 = vpack.c.b16 %v1031, %v1023
    %v1520 = vpack.c.b16 %v1032, %v1024
    %v1521 = vpack.c.b16 %v1033, %v1025
    %v1522 = vpack.c.b16 %v1034, %v1026
    %v1523 = vpack.c.b16 %v1043, %v1035
    %v1524 = vpack.c.b16 %v1044, %v1036
    %v1525 = vpack.c.b16 %v1045, %v1037
    %v1526 = vpack.c.b16 %v1046, %v1038
    %v1527 = vpack.c.b16 %v1047, %v1039
    %v1528 = vpack.c.b16 %v1048, %v1040
    %v1529 = vpack.c.b16 %v1049, %v1041
    %v1530 = vpack.c.b16 %v1050, %v1042
    %v1531 = vpack.c.b16 %v1059, %v1051
    %v1532 = vpack.c.b16 %v1060, %v1052
    %v1533 = vpack.c.b16 %v1061, %v1053
    %v1534 = vpack.c.b16 %v1062, %v1054
    %v1535 = vpack.c.b16 %v1063, %v1055
    %v1536 = vpack.c.b16 %v1064, %v1056
    %v1537 = vpack.c.b16 %v1065, %v1057
    %v1538 = vpack.c.b16 %v1066, %v1058
    %v1539 = vpack.c.b16 %v1075, %v1067
    %v1540 = vpack.c.b16 %v1076, %v1068
    %v1541 = vpack.c.b16 %v1077, %v1069
    %v1542 = vpack.c.b16 %v1078, %v1070
    %v1543 = vpack.c.b16 %v1079, %v1071
    %v1544 = vpack.c.b16 %v1080, %v1072
    %v1545 = vpack.c.b16 %v1081, %v1073
    %v1546 = vpack.c.b16 %v1082, %v1074
    %v1547 = vpack.c.b16 %v1091, %v1083
    %v1548 = vpack.c.b16 %v1092, %v1084
    %v1549 = vpack.c.b16 %v1093, %v1085
    %v1550 = vpack.c.b16 %v1094, %v1086
    %v1551 = vpack.c.b16 %v1095, %v1087
    %v1552 = vpack.c.b16 %v1096, %v1088
    %v1553 = vpack.c.b16 %v1097, %v1089
    %v1554 = vpack.c.b16 %v1098, %v1090
    %v1555 = vpack.c.b16 %v1107, %v1099
    %v1556 = vpack.c.b16 %v1108, %v1100
    %v1557 = vpack.c.b16 %v1109, %v1101
    %v1558 = vpack.c.b16 %v1110, %v1102
    %v1559 = vpack.c.b16 %v1111, %v1103
    %v1560 = vpack.c.b16 %v1112, %v1104
    %v1561 = vpack.c.b16 %v1113, %v1105
    %v1562 = vpack.c.b16 %v1114, %v1106
    %v1563 = vpack.c.b16 %v1123, %v1115
    %v1564 = vpack.c.b16 %v1124, %v1116
    %v1565 = vpack.c.b16 %v1125, %v1117
    %v1566 = vpack.c.b16 %v1126, %v1118
    %v1567 = vpack.c.b16 %v1127, %v1119
    %v1568 = vpack.c.b16 %v1128, %v1120
    %v1569 = vpack.c.b16 %v1129, %v1121
    %v1570 = vpack.c.b16 %v1130, %v1122
    %v1571 = vpack.c.b16 %v1139, %v1131
    %v1572 = vpack.c.b16 %v1140, %v1132
    %v1573 = vpack.c.b16 %v1141, %v1133
    %v1574 = vpack.c.b16 %v1142, %v1134
    %v1575 = vpack.c.b16 %v1143, %v1135
    %v1576 = vpack.c.b16 %v1144, %v1136
    %v1577 = vpack.c.b16 %v1145, %v1137
    %v1578 = vpack.c.b16 %v1146, %v1138
    %v1579 = vpack.c.b16 %v1155, %v1147
    %v1580 = vpack.c.b16 %v1156, %v1148
    %v1581 = vpack.c.b16 %v1157, %v1149
    %v1582 = vpack.c.b16 %v1158, %v1150
    %v1583 = vpack.c.b16 %v1159, %v1151
    %v1584 = vpack.c.b16 %v1160, %v1152
    %v1585 = vpack.c.b16 %v1161, %v1153
    %v1586 = vpack.c.b16 %v1162, %v1154
    %v1587 = vpack.c.b16 %v1171, %v1163
    %v1588 = vpack.c.b16 %v1172, %v1164
    %v1589 = vpack.c.b16 %v1173, %v1165
    %v1590 = vpack.c.b16 %v1174, %v1166
    %v1591 = vpack.c.b16 %v1175, %v1167
    %v1592 = vpack.c.b16 %v1176, %v1168
    %v1593 = vpack.c.b16 %v1177, %v1169
    %v1594 = vpack.c.b16 %v1178, %v1170
    %v1595 = vpack.c.b16 %v1187, %v1179
    %v1596 = vpack.c.b16 %v1188, %v1180
    %v1597 = vpack.c.b16 %v1189, %v1181
    %v1598 = vpack.c.b16 %v1190, %v1182
    %v1599 = vpack.c.b16 %v1191, %v1183
    %v1600 = vpack.c.b16 %v1192, %v1184
    %v1601 = vpack.c.b16 %v1193, %v1185
    %v1602 = vpack.c.b16 %v1194, %v1186
    %v1603 = vpack.c.b16 %v1203, %v1195
    %v1604 = vpack.c.b16 %v1204, %v1196
    %v1605 = vpack.c.b16 %v1205, %v1197
    %v1606 = vpack.c.b16 %v1206, %v1198
    %v1607 = vpack.c.b16 %v1207, %v1199
    %v1608 = vpack.c.b16 %v1208, %v1200
    %v1609 = vpack.c.b16 %v1209, %v1201
    %v1610 = vpack.c.b16 %v1210, %v1202
    %v1611 = vpack.c.b16 %v1219, %v1211
    %v1612 = vpack.c.b16 %v1220, %v1212
    %v1613 = vpack.c.b16 %v1221, %v1213
    %v1614 = vpack.c.b16 %v1222, %v1214
    %v1615 = vpack.c.b16 %v1223, %v1215
    %v1616 = vpack.c.b16 %v1224, %v1216
    %v1617 = vpack.c.b16 %v1225, %v1217
    %v1618 = vpack.c.b16 %v1226, %v1218
    %v1619 = vpack.c.b16 %v1235, %v1227
    %v1620 = vpack.c.b16 %v1236, %v1228
    %v1621 = vpack.c.b16 %v1237, %v1229
    %v1622 = vpack.c.b16 %v1238, %v1230
    %v1623 = vpack.c.b16 %v1239, %v1231
    %v1624 = vpack.c.b16 %v1240, %v1232
    %v1625 = vpack.c.b16 %v1241, %v1233
    %v1626 = vpack.c.b16 %v1242, %v1234
    %v1627 = vpack.c.b16 %v1251, %v1243
    %v1628 = vpack.c.b16 %v1252, %v1244
    %v1629 = vpack.c.b16 %v1253, %v1245
    %v1630 = vpack.c.b16 %v1254, %v1246
    %v1631 = vpack.c.b16 %v1255, %v1247
    %v1632 = vpack.c.b16 %v1256, %v1248
    %v1633 = vpack.c.b16 %v1257, %v1249
    %v1634 = vpack.c.b16 %v1258, %v1250
    %v1635 = vpack.c.b16 %v1267, %v1259
    %v1636 = vpack.c.b16 %v1268, %v1260
    %v1637 = vpack.c.b16 %v1269, %v1261
    %v1638 = vpack.c.b16 %v1270, %v1262
    %v1639 = vpack.c.b16 %v1271, %v1263
    %v1640 = vpack.c.b16 %v1272, %v1264
    %v1641 = vpack.c.b16 %v1273, %v1265
    %v1642 = vpack.c.b16 %v1274, %v1266
    %v1643 = vpack.c.b16 %v1283, %v1275
    %v1644 = vpack.c.b16 %v1284, %v1276
    %v1645 = vpack.c.b16 %v1285, %v1277
    %v1646 = vpack.c.b16 %v1286, %v1278
    %v1647 = vpack.c.b16 %v1287, %v1279
    %v1648 = vpack.c.b16 %v1288, %v1280
    %v1649 = vpack.c.b16 %v1289, %v1281
    %v1650 = vpack.c.b16 %v1290, %v1282
    %v1651 = vpack.c.b16 %v1299, %v1291
    %v1652 = vpack.c.b16 %v1300, %v1292
    %v1653 = vpack.c.b16 %v1301, %v1293
    %v1654 = vpack.c.b16 %v1302, %v1294
    %v1655 = vpack.c.b16 %v1303, %v1295
    %v1656 = vpack.c.b16 %v1304, %v1296
    %v1657 = vpack.c.b16 %v1305, %v1297
    %v1658 = vpack.c.b16 %v1306, %v1298
    %v1659 = vpack.c.b16 %v1315, %v1307
    %v1660 = vpack.c.b16 %v1316, %v1308
    %v1661 = vpack.c.b16 %v1317, %v1309
    %v1662 = vpack.c.b16 %v1318, %v1310
    %v1663 = vpack.c.b16 %v1319, %v1311
    %v1664 = vpack.c.b16 %v1320, %v1312
    %v1665 = vpack.c.b16 %v1321, %v1313
    %v1666 = vpack.c.b16 %v1322, %v1314
    %v1667 = vpack.c.b16 %v1331, %v1323
    %v1668 = vpack.c.b16 %v1332, %v1324
    %v1669 = vpack.c.b16 %v1333, %v1325
    %v1670 = vpack.c.b16 %v1334, %v1326
    %v1671 = vpack.c.b16 %v1335, %v1327
    %v1672 = vpack.c.b16 %v1336, %v1328
    %v1673 = vpack.c.b16 %v1337, %v1329
    %v1674 = vpack.c.b16 %v1338, %v1330
    %v1675 = vpack.c.b16 %v1347, %v1339
    %v1676 = vpack.c.b16 %v1348, %v1340
    %v1677 = vpack.c.b16 %v1349, %v1341
    %v1678 = vpack.c.b16 %v1350, %v1342
    %v1679 = vpack.c.b16 %v1351, %v1343
    %v1680 = vpack.c.b16 %v1352, %v1344
    %v1681 = vpack.c.b16 %v1353, %v1345
    %v1682 = vpack.c.b16 %v1354, %v1346
    %v1683 = vpack.c.b16 %v1363, %v1355
    %v1684 = vpack.c.b16 %v1364, %v1356
    %v1685 = vpack.c.b16 %v1365, %v1357
    %v1686 = vpack.c.b16 %v1366, %v1358
    %v1687 = vpack.c.b16 %v1367, %v1359
    %v1688 = vpack.c.b16 %v1368, %v1360
    %v1689 = vpack.c.b16 %v1369, %v1361
    %v1690 = vpack.c.b16 %v1370, %v1362
    %v1691 = vpack.c.b16 %v1379, %v1371
    %v1692 = vpack.c.b16 %v1380, %v1372
    %v1693 = vpack.c.b16 %v1381, %v1373
    %v1694 = vpack.c.b16 %v1382, %v1374
    %v1695 = vpack.c.b16 %v1383, %v1375
    %v1696 = vpack.c.b16 %v1384, %v1376
    %v1697 = vpack.c.b16 %v1385, %v1377
    %v1698 = vpack.c.b16 %v1386, %v1378
    %v1699 = vpack.c.b16 %v1395, %v1387
    %v1700 = vpack.c.b16 %v1396, %v1388
    %v1701 = vpack.c.b16 %v1397, %v1389
    %v1702 = vpack.c.b16 %v1398, %v1390
    %v1703 = vpack.c.b16 %v1399, %v1391
    %v1704 = vpack.c.b16 %v1400, %v1392
    %v1705 = vpack.c.b16 %v1401, %v1393
    %v1706 = vpack.c.b16 %v1402, %v1394
    %v1707 = vpack.c.b16 %v1411, %v1403
    %v1708 = vpack.c.b16 %v1412, %v1404
    %v1709 = vpack.c.b16 %v1413, %v1405
    %v1710 = vpack.c.b16 %v1414, %v1406
    %v1711 = vpack.c.b16 %v1415, %v1407
    %v1712 = vpack.c.b16 %v1416, %v1408
    %v1713 = vpack.c.b16 %v1417, %v1409
    %v1714 = vpack.c.b16 %v1418, %v1410
    %v1715 = vpack.c.b16 %v1427, %v1419
    %v1716 = vpack.c.b16 %v1428, %v1420
    %v1717 = vpack.c.b16 %v1429, %v1421
    %v1718 = vpack.c.b16 %v1430, %v1422
    %v1719 = vpack.c.b16 %v1431, %v1423
    %v1720 = vpack.c.b16 %v1432, %v1424
    %v1721 = vpack.c.b16 %v1433, %v1425
    %v1722 = vpack.c.b16 %v1434, %v1426
    %v1723 = vpack.c.b16 %v1443, %v1435
    %v1724 = vpack.c.b16 %v1444, %v1436
    %v1725 = vpack.c.b16 %v1445, %v1437
    %v1726 = vpack.c.b16 %v1446, %v1438
    %v1727 = vpack.c.b16 %v1447, %v1439
    %v1728 = vpack.c.b16 %v1448, %v1440
    %v1729 = vpack.c.b16 %v1449, %v1441
    %v1730 = vpack.c.b16 %v1450, %v1442
    %v1731 = vpack.c.b16 %v1459, %v1451
    %v1732 = vpack.c.b16 %v1460, %v1452
    %v1733 = vpack.c.b16 %v1461, %v1453
    %v1734 = vpack.c.b16 %v1462, %v1454
    %v1735 = vpack.c.b16 %v1463, %v1455
    %v1736 = vpack.c.b16 %v1464, %v1456
    %v1737 = vpack.c.b16 %v1465, %v1457
    %v1738 = vpack.c.b16 %v1466, %v1458
    %v1739 = vpack.c.b16 %v1475, %v1467
    %v1740 = vpack.c.b16 %v1476, %v1468
    %v1741 = vpack.c.b16 %v1477, %v1469
    %v1742 = vpack.c.b16 %v1478, %v1470
    %v1743 = vpack.c.b16 %v1479, %v1471
    %v1744 = vpack.c.b16 %v1480, %v1472
    %v1745 = vpack.c.b16 %v1481, %v1473
    %v1746 = vpack.c.b16 %v1482, %v1474
    %v1747 = vpack.c.b16 %v1491, %v1483
    %v1748 = vpack.c.b16 %v1492, %v1484
    %v1749 = vpack.c.b16 %v1493, %v1485
    %v1750 = vpack.c.b16 %v1494, %v1486
    %v1751 = vpack.c.b16 %v1495, %v1487
    %v1752 = vpack.c.b16 %v1496, %v1488
    %v1753 = vpack.c.b16 %v1497, %v1489
    %v1754 = vpack.c.b16 %v1498, %v1490
    %2011 = vmatprep.subr.bf16.mxu0 %v1500
    %2012 = vmatpush1.bf16.msra.mxu0 %v1499
    %2013 = vmatprep.subr.bf16.mxu0 %v1508
    %2014 = vmatpush1.bf16.msra.mxu0 %v1507
    %2015 = vmatprep.subr.bf16.mxu0 %v1516
    %2016 = vmatpush1.bf16.msra.mxu0 %v1515
    %2017 = vmatprep.subr.bf16.mxu0 %v1524
    %2018 = vmatpush1.bf16.msra.mxu0 %v1523
    %2019 = vmatprep.subr.bf16.mxu0 %v1532
    %2020 = vmatpush1.bf16.msra.mxu0 %v1531
    %2021 = vmatprep.subr.bf16.mxu0 %v1540
    %2022 = vmatpush1.bf16.msra.mxu0 %v1539
    %2023 = vmatprep.subr.bf16.mxu0 %v1548
    %2024 = vmatpush1.bf16.msra.mxu0 %v1547
    %2025 = vmatprep.subr.bf16.mxu0 %v1556
    %2026 = vmatpush1.bf16.msra.mxu0 %v1555
    %2027 = vmatprep.subr.bf16.mxu0 %v1564
    %2028 = vmatpush1.bf16.msra.mxu0 %v1563
    %2029 = vmatprep.subr.bf16.mxu0 %v1572
    %2030 = vmatpush1.bf16.msra.mxu0 %v1571
    %2031 = vmatprep.subr.bf16.mxu0 %v1580
    %2032 = vmatpush1.bf16.msra.mxu0 %v1579
    %2033 = vmatprep.subr.bf16.mxu0 %v1588
    %2034 = vmatpush1.bf16.msra.mxu0 %v1587
    %2035 = vmatprep.subr.bf16.mxu0 %v1596
    %2036 = vmatpush1.bf16.msra.mxu0 %v1595
    %2037 = vmatprep.subr.bf16.mxu0 %v1604
    %2038 = vmatpush1.bf16.msra.mxu0 %v1603
    %2039 = vmatprep.subr.bf16.mxu0 %v1612
    %2040 = vmatpush1.bf16.msra.mxu0 %v1611
    %2041 = vmatprep.subr.bf16.mxu0 %v1620
    %2042 = vmatpush1.bf16.msra.mxu0 %v1619
    %2043 = vmatprep.mubr.bf16.mxu0 %v472
    %2044 = vmatmul.mubr.bf16.gmra.mrb[0].mxu0 %v471
    %v2045 = vpop.f32.mrb[0].mxu0
    %v2046 = vadd.f32 0.0, %v2045
    %v2047 = vpop.f32.mrb[0].mxu0
    %v2048 = vadd.f32 0.0, %v2047
    %v2049 = vpop.f32.mrb[0].mxu0
    %v2050 = vpop.f32.mrb[0].mxu0
    %2051 = vdwg.mxu0
    %2052 = vmatprep.subr.bf16.mxu0 %v1628
    %2053 = vmatpush1.bf16.msra.mxu0 %v1627
    %2054 = vmatprep.subr.bf16.mxu0 %v1636
    %2055 = vmatpush1.bf16.msra.mxu0 %v1635
    %2056 = vmatprep.subr.bf16.mxu0 %v1644
    %2057 = vmatpush1.bf16.msra.mxu0 %v1643
    %2058 = vmatprep.subr.bf16.mxu0 %v1652
    %2059 = vmatpush1.bf16.msra.mxu0 %v1651
    %2060 = vmatprep.subr.bf16.mxu0 %v1660
    %2061 = vmatpush1.bf16.msra.mxu0 %v1659
    %2062 = vmatprep.subr.bf16.mxu0 %v1668
    %2063 = vmatpush1.bf16.msra.mxu0 %v1667
    %2064 = vmatprep.subr.bf16.mxu0 %v1676
    %2065 = vmatpush1.bf16.msra.mxu0 %v1675
    %2066 = vmatprep.subr.bf16.mxu0 %v1684
    %2067 = vmatpush1.bf16.msra.mxu0 %v1683
    %2068 = vmatprep.subr.bf16.mxu0 %v1692
    %2069 = vmatpush1.bf16.msra.mxu0 %v1691
    %2070 = vmatprep.subr.bf16.mxu0 %v1700
    %2071 = vmatpush1.bf16.msra.mxu0 %v1699
    %2072 = vmatprep.subr.bf16.mxu0 %v1708
    %2073 = vmatpush1.bf16.msra.mxu0 %v1707
    %2074 = vmatprep.subr.bf16.mxu0 %v1716
    %2075 = vmatpush1.bf16.msra.mxu0 %v1715
    %2076 = vmatprep.subr.bf16.mxu0 %v1724
    %2077 = vmatpush1.bf16.msra.mxu0 %v1723
    %2078 = vmatprep.subr.bf16.mxu0 %v1732
    %2079 = vmatpush1.bf16.msra.mxu0 %v1731
    %2080 = vmatprep.subr.bf16.mxu0 %v1740
    %2081 = vmatpush1.bf16.msra.mxu0 %v1739
    %2082 = vmatprep.subr.bf16.mxu0 %v1748
    %2083 = vmatpush1.bf16.msra.mxu0 %v1747
    %2084 = vmatprep.mubr.bf16.mxu0 %v474
    %2085 = vmatmul.mubr.bf16.gmra.mrb[0].mxu0 %v473
    %v2086 = vpop.f32.mrb[0].mxu0
    %v2087 = vadd.f32 %v2046, %v2086
    %v2088 = vpop.f32.mrb[0].mxu0
    %v2089 = vadd.f32 %v2048, %v2088
    %v2090 = vpop.f32.mrb[0].mxu0
    %v2091 = vpop.f32.mrb[0].mxu0
    %2092 = vdwg.mxu0
    %2093 = vmatprep.subr.bf16.mxu0 %v1502
    %2094 = vmatpush1.bf16.msra.mxu0 %v1501
    %2095 = vmatprep.subr.bf16.mxu0 %v1510
    %2096 = vmatpush1.bf16.msra.mxu0 %v1509
    %2097 = vmatprep.subr.bf16.mxu0 %v1518
    %2098 = vmatpush1.bf16.msra.mxu0 %v1517
    %2099 = vmatprep.subr.bf16.mxu0 %v1526
    %2100 = vmatpush1.bf16.msra.mxu0 %v1525
    %2101 = vmatprep.subr.bf16.mxu0 %v1534
    %2102 = vmatpush1.bf16.msra.mxu0 %v1533
    %2103 = vmatprep.subr.bf16.mxu0 %v1542
    %2104 = vmatpush1.bf16.msra.mxu0 %v1541
    %2105 = vmatprep.subr.bf16.mxu0 %v1550
    %2106 = vmatpush1.bf16.msra.mxu0 %v1549
    %2107 = vmatprep.subr.bf16.mxu0 %v1558
    %2108 = vmatpush1.bf16.msra.mxu0 %v1557
    %2109 = vmatprep.subr.bf16.mxu0 %v1566
    %2110 = vmatpush1.bf16.msra.mxu0 %v1565
    %2111 = vmatprep.subr.bf16.mxu0 %v1574
    %2112 = vmatpush1.bf16.msra.mxu0 %v1573
    %2113 = vmatprep.subr.bf16.mxu0 %v1582
    %2114 = vmatpush1.bf16.msra.mxu0 %v1581
    %2115 = vmatprep.subr.bf16.mxu0 %v1590
    %2116 = vmatpush1.bf16.msra.mxu0 %v1589
    %2117 = vmatprep.subr.bf16.mxu0 %v1598
    %2118 = vmatpush1.bf16.msra.mxu0 %v1597
    %2119 = vmatprep.subr.bf16.mxu0 %v1606
    %2120 = vmatpush1.bf16.msra.mxu0 %v1605
    %2121 = vmatprep.subr.bf16.mxu0 %v1614
    %2122 = vmatpush1.bf16.msra.mxu0 %v1613
    %2123 = vmatprep.subr.bf16.mxu0 %v1622
    %2124 = vmatpush1.bf16.msra.mxu0 %v1621
    %2125 = vmatprep.mubr.bf16.mxu0 %v472
    %2126 = vmatmul.mubr.bf16.gmra.mrb[0].mxu0 %v471
    %v2127 = vpop.f32.mrb[0].mxu0
    %v2128 = vadd.f32 0.0, %v2127
    %v2129 = vpop.f32.mrb[0].mxu0
    %v2130 = vadd.f32 0.0, %v2129
    %v2131 = vpop.f32.mrb[0].mxu0
    %v2132 = vpop.f32.mrb[0].mxu0
    %2133 = vdwg.mxu0
    %2134 = vmatprep.subr.bf16.mxu0 %v1630
    %2135 = vmatpush1.bf16.msra.mxu0 %v1629
    %2136 = vmatprep.subr.bf16.mxu0 %v1638
    %2137 = vmatpush1.bf16.msra.mxu0 %v1637
    %2138 = vmatprep.subr.bf16.mxu0 %v1646
    %2139 = vmatpush1.bf16.msra.mxu0 %v1645
    %2140 = vmatprep.subr.bf16.mxu0 %v1654
    %2141 = vmatpush1.bf16.msra.mxu0 %v1653
    %2142 = vmatprep.subr.bf16.mxu0 %v1662
    %2143 = vmatpush1.bf16.msra.mxu0 %v1661
    %2144 = vmatprep.subr.bf16.mxu0 %v1670
    %2145 = vmatpush1.bf16.msra.mxu0 %v1669
    %2146 = vmatprep.subr.bf16.mxu0 %v1678
    %2147 = vmatpush1.bf16.msra.mxu0 %v1677
    %2148 = vmatprep.subr.bf16.mxu0 %v1686
    %2149 = vmatpush1.bf16.msra.mxu0 %v1685
    %2150 = vmatprep.subr.bf16.mxu0 %v1694
    %2151 = vmatpush1.bf16.msra.mxu0 %v1693
    %2152 = vmatprep.subr.bf16.mxu0 %v1702
    %2153 = vmatpush1.bf16.msra.mxu0 %v1701
    %2154 = vmatprep.subr.bf16.mxu0 %v1710
    %2155 = vmatpush1.bf16.msra.mxu0 %v1709
    %2156 = vmatprep.subr.bf16.mxu0 %v1718
    %2157 = vmatpush1.bf16.msra.mxu0 %v1717
    %2158 = vmatprep.subr.bf16.mxu0 %v1726
    %2159 = vmatpush1.bf16.msra.mxu0 %v1725
    %2160 = vmatprep.subr.bf16.mxu0 %v1734
    %2161 = vmatpush1.bf16.msra.mxu0 %v1733
    %2162 = vmatprep.subr.bf16.mxu0 %v1742
    %2163 = vmatpush1.bf16.msra.mxu0 %v1741
    %2164 = vmatprep.subr.bf16.mxu0 %v1750
    %2165 = vmatpush1.bf16.msra.mxu0 %v1749
    %2166 = vmatprep.mubr.bf16.mxu0 %v474
    %2167 = vmatmul.mubr.bf16.gmra.mrb[0].mxu0 %v473
    %v2168 = vpop.f32.mrb[0].mxu0
    %v2169 = vadd.f32 %v2128, %v2168
    %v2170 = vpop.f32.mrb[0].mxu0
    %v2171 = vadd.f32 %v2130, %v2170
    %v2172 = vpop.f32.mrb[0].mxu0
    %v2173 = vpop.f32.mrb[0].mxu0
    %2174 = vdwg.mxu0
    %2175 = vmatprep.subr.bf16.mxu0 %v1504
    %2176 = vmatpush1.bf16.msra.mxu0 %v1503
    %2177 = vmatprep.subr.bf16.mxu0 %v1512
    %2178 = vmatpush1.bf16.msra.mxu0 %v1511
    %2179 = vmatprep.subr.bf16.mxu0 %v1520
    %2180 = vmatpush1.bf16.msra.mxu0 %v1519
    %2181 = vmatprep.subr.bf16.mxu0 %v1528
    %2182 = vmatpush1.bf16.msra.mxu0 %v1527
    %2183 = vmatprep.subr.bf16.mxu0 %v1536
    %2184 = vmatpush1.bf16.msra.mxu0 %v1535
    %2185 = vmatprep.subr.bf16.mxu0 %v1544
    %2186 = vmatpush1.bf16.msra.mxu0 %v1543
    %2187 = vmatprep.subr.bf16.mxu0 %v1552
    %2188 = vmatpush1.bf16.msra.mxu0 %v1551
    %2189 = vmatprep.subr.bf16.mxu0 %v1560
    %2190 = vmatpush1.bf16.msra.mxu0 %v1559
    %2191 = vmatprep.subr.bf16.mxu0 %v1568
    %2192 = vmatpush1.bf16.msra.mxu0 %v1567
    %2193 = vmatprep.subr.bf16.mxu0 %v1576
    %2194 = vmatpush1.bf16.msra.mxu0 %v1575
    %2195 = vmatprep.subr.bf16.mxu0 %v1584
    %2196 = vmatpush1.bf16.msra.mxu0 %v1583
    %2197 = vmatprep.subr.bf16.mxu0 %v1592
    %2198 = vmatpush1.bf16.msra.mxu0 %v1591
    %2199 = vmatprep.subr.bf16.mxu0 %v1600
    %2200 = vmatpush1.bf16.msra.mxu0 %v1599
    %2201 = vmatprep.subr.bf16.mxu0 %v1608
    %2202 = vmatpush1.bf16.msra.mxu0 %v1607
    %2203 = vmatprep.subr.bf16.mxu0 %v1616
    %2204 = vmatpush1.bf16.msra.mxu0 %v1615
    %2205 = vmatprep.subr.bf16.mxu0 %v1624
    %2206 = vmatpush1.bf16.msra.mxu0 %v1623
    %2207 = vmatprep.mubr.bf16.mxu0 %v472
    %2208 = vmatmul.mubr.bf16.gmra.mrb[0].mxu0 %v471
    %v2209 = vpop.f32.mrb[0].mxu0
    %v2210 = vadd.f32 0.0, %v2209
    %v2211 = vpop.f32.mrb[0].mxu0
    %v2212 = vadd.f32 0.0, %v2211
    %v2213 = vpop.f32.mrb[0].mxu0
    %v2214 = vpop.f32.mrb[0].mxu0
    %2215 = vdwg.mxu0
    %2216 = vmatprep.subr.bf16.mxu0 %v1632
    %2217 = vmatpush1.bf16.msra.mxu0 %v1631
    %2218 = vmatprep.subr.bf16.mxu0 %v1640
    %2219 = vmatpush1.bf16.msra.mxu0 %v1639
    %2220 = vmatprep.subr.bf16.mxu0 %v1648
    %2221 = vmatpush1.bf16.msra.mxu0 %v1647
    %2222 = vmatprep.subr.bf16.mxu0 %v1656
    %2223 = vmatpush1.bf16.msra.mxu0 %v1655
    %2224 = vmatprep.subr.bf16.mxu0 %v1664
    %2225 = vmatpush1.bf16.msra.mxu0 %v1663
    %2226 = vmatprep.subr.bf16.mxu0 %v1672
    %2227 = vmatpush1.bf16.msra.mxu0 %v1671
    %2228 = vmatprep.subr.bf16.mxu0 %v1680
    %2229 = vmatpush1.bf16.msra.mxu0 %v1679
    %2230 = vmatprep.subr.bf16.mxu0 %v1688
    %2231 = vmatpush1.bf16.msra.mxu0 %v1687
    %2232 = vmatprep.subr.bf16.mxu0 %v1696
    %2233 = vmatpush1.bf16.msra.mxu0 %v1695
    %2234 = vmatprep.subr.bf16.mxu0 %v1704
    %2235 = vmatpush1.bf16.msra.mxu0 %v1703
    %2236 = vmatprep.subr.bf16.mxu0 %v1712
    %2237 = vmatpush1.bf16.msra.mxu0 %v1711
    %2238 = vmatprep.subr.bf16.mxu0 %v1720
    %2239 = vmatpush1.bf16.msra.mxu0 %v1719
    %2240 = vmatprep.subr.bf16.mxu0 %v1728
    %2241 = vmatpush1.bf16.msra.mxu0 %v1727
    %2242 = vmatprep.subr.bf16.mxu0 %v1736
    %2243 = vmatpush1.bf16.msra.mxu0 %v1735
    %2244 = vmatprep.subr.bf16.mxu0 %v1744
    %2245 = vmatpush1.bf16.msra.mxu0 %v1743
    %2246 = vmatprep.subr.bf16.mxu0 %v1752
    %2247 = vmatpush1.bf16.msra.mxu0 %v1751
    %2248 = vmatprep.mubr.bf16.mxu0 %v474
    %2249 = vmatmul.mubr.bf16.gmra.mrb[0].mxu0 %v473
    %v2250 = vpop.f32.mrb[0].mxu0
    %v2251 = vadd.f32 %v2210, %v2250
    %v2252 = vpop.f32.mrb[0].mxu0
    %v2253 = vadd.f32 %v2212, %v2252
    %v2254 = vpop.f32.mrb[0].mxu0
    %v2255 = vpop.f32.mrb[0].mxu0
    %2256 = vdwg.mxu0
    %2257 = vmatprep.subr.bf16.mxu0 %v1506
    %2258 = vmatpush1.bf16.msra.mxu0 %v1505
    %2259 = vmatprep.subr.bf16.mxu0 %v1514
    %2260 = vmatpush1.bf16.msra.mxu0 %v1513
    %2261 = vmatprep.subr.bf16.mxu0 %v1522
    %2262 = vmatpush1.bf16.msra.mxu0 %v1521
    %2263 = vmatprep.subr.bf16.mxu0 %v1530
    %2264 = vmatpush1.bf16.msra.mxu0 %v1529
    %2265 = vmatprep.subr.bf16.mxu0 %v1538
    %2266 = vmatpush1.bf16.msra.mxu0 %v1537
    %2267 = vmatprep.subr.bf16.mxu0 %v1546
    %2268 = vmatpush1.bf16.msra.mxu0 %v1545
    %2269 = vmatprep.subr.bf16.mxu0 %v1554
    %2270 = vmatpush1.bf16.msra.mxu0 %v1553
    %2271 = vmatprep.subr.bf16.mxu0 %v1562
    %2272 = vmatpush1.bf16.msra.mxu0 %v1561
    %2273 = vmatprep.subr.bf16.mxu0 %v1570
    %2274 = vmatpush1.bf16.msra.mxu0 %v1569
    %2275 = vmatprep.subr.bf16.mxu0 %v1578
    %2276 = vmatpush1.bf16.msra.mxu0 %v1577
    %2277 = vmatprep.subr.bf16.mxu0 %v1586
    %2278 = vmatpush1.bf16.msra.mxu0 %v1585
    %2279 = vmatprep.subr.bf16.mxu0 %v1594
    %2280 = vmatpush1.bf16.msra.mxu0 %v1593
    %2281 = vmatprep.subr.bf16.mxu0 %v1602
    %2282 = vmatpush1.bf16.msra.mxu0 %v1601
    %2283 = vmatprep.subr.bf16.mxu0 %v1610
    %2284 = vmatpush1.bf16.msra.mxu0 %v1609
    %2285 = vmatprep.subr.bf16.mxu0 %v1618
    %2286 = vmatpush1.bf16.msra.mxu0 %v1617
    %2287 = vmatprep.subr.bf16.mxu0 %v1626
    %2288 = vmatpush1.bf16.msra.mxu0 %v1625
    %2289 = vmatprep.mubr.bf16.mxu0 %v472
    %2290 = vmatmul.mubr.bf16.gmra.mrb[0].mxu0 %v471
    %v2291 = vpop.f32.mrb[0].mxu0
    %v2292 = vadd.f32 0.0, %v2291
    %v2293 = vpop.f32.mrb[0].mxu0
    %v2294 = vadd.f32 0.0, %v2293
    %v2295 = vpop.f32.mrb[0].mxu0
    %v2296 = vpop.f32.mrb[0].mxu0
    %2297 = vdwg.mxu0
    %2298 = vmatprep.subr.bf16.mxu0 %v1634
    %2299 = vmatpush1.bf16.msra.mxu0 %v1633
    %2300 = vmatprep.subr.bf16.mxu0 %v1642
    %2301 = vmatpush1.bf16.msra.mxu0 %v1641
    %2302 = vmatprep.subr.bf16.mxu0 %v1650
    %2303 = vmatpush1.bf16.msra.mxu0 %v1649
    %2304 = vmatprep.subr.bf16.mxu0 %v1658
    %2305 = vmatpush1.bf16.msra.mxu0 %v1657
    %2306 = vmatprep.subr.bf16.mxu0 %v1666
    %2307 = vmatpush1.bf16.msra.mxu0 %v1665
    %2308 = vmatprep.subr.bf16.mxu0 %v1674
    %2309 = vmatpush1.bf16.msra.mxu0 %v1673
    %2310 = vmatprep.subr.bf16.mxu0 %v1682
    %2311 = vmatpush1.bf16.msra.mxu0 %v1681
    %2312 = vmatprep.subr.bf16.mxu0 %v1690
    %2313 = vmatpush1.bf16.msra.mxu0 %v1689
    %2314 = vmatprep.subr.bf16.mxu0 %v1698
    %2315 = vmatpush1.bf16.msra.mxu0 %v1697
    %2316 = vmatprep.subr.bf16.mxu0 %v1706
    %2317 = vmatpush1.bf16.msra.mxu0 %v1705
    %2318 = vmatprep.subr.bf16.mxu0 %v1714
    %2319 = vmatpush1.bf16.msra.mxu0 %v1713
    %2320 = vmatprep.subr.bf16.mxu0 %v1722
    %2321 = vmatpush1.bf16.msra.mxu0 %v1721
    %2322 = vmatprep.subr.bf16.mxu0 %v1730
    %2323 = vmatpush1.bf16.msra.mxu0 %v1729
    %2324 = vmatprep.subr.bf16.mxu0 %v1738
    %2325 = vmatpush1.bf16.msra.mxu0 %v1737
    %2326 = vmatprep.subr.bf16.mxu0 %v1746
    %2327 = vmatpush1.bf16.msra.mxu0 %v1745
    %2328 = vmatprep.subr.bf16.mxu0 %v1754
    %2329 = vmatpush1.bf16.msra.mxu0 %v1753
    %2330 = vmatprep.mubr.bf16.mxu0 %v474
    %2331 = vmatmul.mubr.bf16.gmra.mrb[0].mxu0 %v473
    %v2332 = vpop.f32.mrb[0].mxu0
    %v2333 = vadd.f32 %v2292, %v2332
    %v2334 = vpop.f32.mrb[0].mxu0
    %v2335 = vadd.f32 %v2294, %v2334
    %v2336 = vpop.f32.mrb[0].mxu0
    %v2337 = vpop.f32.mrb[0].mxu0
    %2338 = vdwg.mxu0
    %v2339 = vpack.c.bf16 %v2087, %v2087
    %v2340 = vpack.c.bf16 %v2089, %v2089
    %v2341 = vpack.c.bf16 %v2169, %v2169
    %v2342 = vpack.c.bf16 %v2171, %v2171
    %v2343 = vpack.c.bf16 %v2251, %v2251
    %v2344 = vpack.c.bf16 %v2253, %v2253
    %v2345 = vpack.c.bf16 %v2333, %v2333
    %v2346 = vpack.c.bf16 %v2335, %v2335
    %v2347 = vld [vmem:[#allocation10] sm:$0xff]
    %v2349 = vcombine.high %v2347, %v2347
    %v2351 = vunpack.c.l.s4 1966171168
    %v2352 = vunpack.c.0.s8 %v2351
    %v2353 = vlaneseq
    %v2354 = vshrl.u32 %v2353, 7
    %v2355 = vsub.s32 %v2352, %v2354
    %v2356 = vrot.slane %v2347, %v2355
    %v2358 = vunpack.c.l.s4 1966171168
    %v2359 = vunpack.c.0.s8 %v2358
    %v2360 = vlaneseq
    %v2361 = vshrl.u32 %v2360, 7
    %v2362 = vsub.s32 %v2359, %v2361
    %v2363 = vrot.slane %v2349, %v2362
    %v2364 = vcombine.high %v2356, %v2356
    %v2365 = vcombine.high %v2363, %v2363
    %v2367 = vunpack.c.l.s4 1966171168
    %v2368 = vunpack.c.0.s8 %v2367
    %v2369 = vlaneseq
    %v2370 = vshrl.u32 %v2369, 7
    %v2371 = vsub.s32 %v2368, %v2370
    %v2372 = vrot.slane %v2356, %v2371
    %v2374 = vunpack.c.l.s4 1966171168
    %v2375 = vunpack.c.0.s8 %v2374
    %v2376 = vlaneseq
    %v2377 = vshrl.u32 %v2376, 7
    %v2378 = vsub.s32 %v2375, %v2377
    %v2379 = vrot.slane %v2363, %v2378
    %v2381 = vunpack.c.l.s4 1966171168
    %v2382 = vunpack.c.0.s8 %v2381
    %v2383 = vlaneseq
    %v2384 = vshrl.u32 %v2383, 7
    %v2385 = vsub.s32 %v2382, %v2384
    %v2386 = vrot.slane %v2364, %v2385
    %v2388 = vunpack.c.l.s4 1966171168
    %v2389 = vunpack.c.0.s8 %v2388
    %v2390 = vlaneseq
    %v2391 = vshrl.u32 %v2390, 7
    %v2392 = vsub.s32 %v2389, %v2391
    %v2393 = vrot.slane %v2365, %v2392
    %v2394 = vcombine.high %v2372, %v2372
    %v2395 = vcombine.high %v2379, %v2379
    %v2396 = vcombine.high %v2386, %v2386
    %v2397 = vcombine.high %v2393, %v2393
    %v2399 = vpack.i.b16 %v2372, %v2372
    %v2401 = vlaneseq
    %v2402 = vshrl.u32 %v2401, 7
    %v2403 = vsub.s32 0, %v2402
    %v2404 = vrot.slane %v2399, %v2403
    %v2406 = vpack.i.b16 %v2386, %v2386
    %v2408 = vlaneseq
    %v2409 = vshrl.u32 %v2408, 7
    %v2410 = vsub.s32 0, %v2409
    %v2411 = vrot.slane %v2406, %v2410
    %v2413 = vpack.i.b16 %v2394, %v2394
    %v2415 = vlaneseq
    %v2416 = vshrl.u32 %v2415, 7
    %v2417 = vsub.s32 0, %v2416
    %v2418 = vrot.slane %v2413, %v2417
    %v2420 = vpack.i.b16 %v2396, %v2396
    %v2422 = vlaneseq
    %v2423 = vshrl.u32 %v2422, 7
    %v2424 = vsub.s32 0, %v2423
    %v2425 = vrot.slane %v2420, %v2424
    %v2427 = vpack.i.b16 %v2379, %v2379
    %v2429 = vlaneseq
    %v2430 = vshrl.u32 %v2429, 7
    %v2431 = vsub.s32 0, %v2430
    %v2432 = vrot.slane %v2427, %v2431
    %v2434 = vpack.i.b16 %v2393, %v2393
    %v2436 = vlaneseq
    %v2437 = vshrl.u32 %v2436, 7
    %v2438 = vsub.s32 0, %v2437
    %v2439 = vrot.slane %v2434, %v2438
    %v2441 = vpack.i.b16 %v2395, %v2395
    %v2443 = vlaneseq
    %v2444 = vshrl.u32 %v2443, 7
    %v2445 = vsub.s32 0, %v2444
    %v2446 = vrot.slane %v2441, %v2445
    %v2448 = vpack.i.b16 %v2397, %v2397
    %v2450 = vlaneseq
    %v2451 = vshrl.u32 %v2450, 7
    %v2452 = vsub.s32 0, %v2451
    %v2453 = vrot.slane %v2448, %v2452
    %v2454 = vadd.bf16 %v2339, %v2404
    %v2455 = vadd.bf16 %v2340, %v2411
    %v2456 = vadd.bf16 %v2341, %v2418
    %v2457 = vadd.bf16 %v2342, %v2425
    %v2458 = vadd.bf16 %v2343, %v2432
    %v2459 = vadd.bf16 %v2344, %v2439
    %v2460 = vadd.bf16 %v2345, %v2446
    %v2461 = vadd.bf16 %v2346, %v2453
    %v2462 = vmax.bf16 %v2454, 0
    %v2463 = vmax.bf16 %v2455, 0
    %v2464 = vmax.bf16 %v2456, 0
    %v2465 = vmax.bf16 %v2457, 0
    %v2466 = vmax.bf16 %v2458, 0
    %v2467 = vmax.bf16 %v2459, 0
    %v2468 = vmax.bf16 %v2460, 0
    %v2469 = vmax.bf16 %v2461, 0
    %v2470 = vld [vmem:[#allocation11] sm:$0xff]
    %v2471 = vld [vmem:[#allocation11 + $0x8] sm:$0xff]
    %v2472 = vld [vmem:[#allocation11 + $0x10] sm:$0xff]
    %v2473 = vld [vmem:[#allocation11 + $0x18] sm:$0xff]
    %v2474 = vld [vmem:[#allocation11 + $0x20] sm:$0xff]
    %v2475 = vld [vmem:[#allocation11 + $0x28] sm:$0xff]
    %v2476 = vld [vmem:[#allocation11 + $0x30] sm:$0xff]
    %v2477 = vld [vmem:[#allocation11 + $0x38] sm:$0xff]
    %v2478 = vld [vmem:[#allocation11 + $0x40] sm:$0xff]
    %v2479 = vld [vmem:[#allocation11 + $0x48] sm:$0xff]
    %v2480 = vld [vmem:[#allocation11 + $0x50] sm:$0xff]
    %v2481 = vld [vmem:[#allocation11 + $0x58] sm:$0xff]
    %v2482 = vld [vmem:[#allocation11 + $0x60] sm:$0xff]
    %v2483 = vld [vmem:[#allocation11 + $0x68] sm:$0xff]
    %v2484 = vld [vmem:[#allocation11 + $0x70] sm:$0xff]
    %v2485 = vld [vmem:[#allocation11 + $0x78] sm:$0xff]
    %v2486 = vld [vmem:[#allocation11 + $0x80] sm:$0xff]
    %v2487 = vld [vmem:[#allocation11 + $0x88] sm:$0xff]
    %v2488 = vld [vmem:[#allocation11 + $0x90] sm:$0xff]
    %v2489 = vld [vmem:[#allocation11 + $0x98] sm:$0xff]
    %v2490 = vld [vmem:[#allocation11 + $0xa0] sm:$0xff]
    %v2491 = vld [vmem:[#allocation11 + $0xa8] sm:$0xff]
    %v2492 = vld [vmem:[#allocation11 + $0xb0] sm:$0xff]
    %v2493 = vld [vmem:[#allocation11 + $0xb8] sm:$0xff]
    %v2494 = vld [vmem:[#allocation11 + $0xc0] sm:$0xff]
    %v2495 = vld [vmem:[#allocation11 + $0xc8] sm:$0xff]
    %v2496 = vld [vmem:[#allocation11 + $0xd0] sm:$0xff]
    %v2497 = vld [vmem:[#allocation11 + $0xd8] sm:$0xff]
    %v2498 = vld [vmem:[#allocation11 + $0xe0] sm:$0xff]
    %v2499 = vld [vmem:[#allocation11 + $0xe8] sm:$0xff]
    %v2500 = vld [vmem:[#allocation11 + $0xf0] sm:$0xff]
    %v2501 = vld [vmem:[#allocation11 + $0xf8] sm:$0xff]
    %v2502 = vld [vmem:[#allocation11 + $0x100] sm:$0xff]
    %v2503 = vld [vmem:[#allocation11 + $0x108] sm:$0xff]
    %v2504 = vld [vmem:[#allocation11 + $0x110] sm:$0xff]
    %v2505 = vld [vmem:[#allocation11 + $0x118] sm:$0xff]
    %v2506 = vld [vmem:[#allocation11 + $0x120] sm:$0xff]
    %v2507 = vld [vmem:[#allocation11 + $0x128] sm:$0xff]
    %v2508 = vld [vmem:[#allocation11 + $0x130] sm:$0xff]
    %v2509 = vld [vmem:[#allocation11 + $0x138] sm:$0xff]
    %v2510 = vld [vmem:[#allocation11 + $0x140] sm:$0xff]
    %v2511 = vld [vmem:[#allocation11 + $0x148] sm:$0xff]
    %v2512 = vld [vmem:[#allocation11 + $0x150] sm:$0xff]
    %v2513 = vld [vmem:[#allocation11 + $0x158] sm:$0xff]
    %v2514 = vld [vmem:[#allocation11 + $0x160] sm:$0xff]
    %v2515 = vld [vmem:[#allocation11 + $0x168] sm:$0xff]
    %v2516 = vld [vmem:[#allocation11 + $0x170] sm:$0xff]
    %v2517 = vld [vmem:[#allocation11 + $0x178] sm:$0xff]
    %v2518 = vld [vmem:[#allocation11 + $0x180] sm:$0xff]
    %v2519 = vld [vmem:[#allocation11 + $0x188] sm:$0xff]
    %v2520 = vld [vmem:[#allocation11 + $0x190] sm:$0xff]
    %v2521 = vld [vmem:[#allocation11 + $0x198] sm:$0xff]
    %v2522 = vld [vmem:[#allocation11 + $0x1a0] sm:$0xff]
    %v2523 = vld [vmem:[#allocation11 + $0x1a8] sm:$0xff]
    %v2524 = vld [vmem:[#allocation11 + $0x1b0] sm:$0xff]
    %v2525 = vld [vmem:[#allocation11 + $0x1b8] sm:$0xff]
    %v2526 = vld [vmem:[#allocation11 + $0x1c0] sm:$0xff]
    %v2527 = vld [vmem:[#allocation11 + $0x1c8] sm:$0xff]
    %v2528 = vld [vmem:[#allocation11 + $0x1d0] sm:$0xff]
    %v2529 = vld [vmem:[#allocation11 + $0x1d8] sm:$0xff]
    %v2530 = vld [vmem:[#allocation11 + $0x1e0] sm:$0xff]
    %v2531 = vld [vmem:[#allocation11 + $0x1e8] sm:$0xff]
    %v2532 = vld [vmem:[#allocation11 + $0x1f0] sm:$0xff]
    %v2533 = vld [vmem:[#allocation11 + $0x1f8] sm:$0xff]
    %v2534 = vld [vmem:[#allocation11 + $0x200] sm:$0xff]
    %v2535 = vld [vmem:[#allocation11 + $0x208] sm:$0xff]
    %v2536 = vld [vmem:[#allocation11 + $0x210] sm:$0xff]
    %v2537 = vld [vmem:[#allocation11 + $0x218] sm:$0xff]
    %v2538 = vld [vmem:[#allocation11 + $0x220] sm:$0xff]
    %v2539 = vld [vmem:[#allocation11 + $0x228] sm:$0xff]
    %v2540 = vld [vmem:[#allocation11 + $0x230] sm:$0xff]
    %v2541 = vld [vmem:[#allocation11 + $0x238] sm:$0xff]
    %v2542 = vld [vmem:[#allocation11 + $0x240] sm:$0xff]
    %v2543 = vld [vmem:[#allocation11 + $0x248] sm:$0xff]
    %v2544 = vld [vmem:[#allocation11 + $0x250] sm:$0xff]
    %v2545 = vld [vmem:[#allocation11 + $0x258] sm:$0xff]
    %v2546 = vld [vmem:[#allocation11 + $0x260] sm:$0xff]
    %v2547 = vld [vmem:[#allocation11 + $0x268] sm:$0xff]
    %v2548 = vld [vmem:[#allocation11 + $0x270] sm:$0xff]
    %v2549 = vld [vmem:[#allocation11 + $0x278] sm:$0xff]
    %v2550 = vld [vmem:[#allocation11 + $0x280] sm:$0xff]
    %v2551 = vld [vmem:[#allocation11 + $0x288] sm:$0xff]
    %v2552 = vld [vmem:[#allocation11 + $0x290] sm:$0xff]
    %v2553 = vld [vmem:[#allocation11 + $0x298] sm:$0xff]
    %v2554 = vld [vmem:[#allocation11 + $0x2a0] sm:$0xff]
    %v2555 = vld [vmem:[#allocation11 + $0x2a8] sm:$0xff]
    %v2556 = vld [vmem:[#allocation11 + $0x2b0] sm:$0xff]
    %v2557 = vld [vmem:[#allocation11 + $0x2b8] sm:$0xff]
    %v2558 = vld [vmem:[#allocation11 + $0x2c0] sm:$0xff]
    %v2559 = vld [vmem:[#allocation11 + $0x2c8] sm:$0xff]
    %v2560 = vld [vmem:[#allocation11 + $0x2d0] sm:$0xff]
    %v2561 = vld [vmem:[#allocation11 + $0x2d8] sm:$0xff]
    %v2562 = vld [vmem:[#allocation11 + $0x2e0] sm:$0xff]
    %v2563 = vld [vmem:[#allocation11 + $0x2e8] sm:$0xff]
    %v2564 = vld [vmem:[#allocation11 + $0x2f0] sm:$0xff]
    %v2565 = vld [vmem:[#allocation11 + $0x2f8] sm:$0xff]
    %v2566 = vld [vmem:[#allocation11 + $0x300] sm:$0xff]
    %v2567 = vld [vmem:[#allocation11 + $0x308] sm:$0xff]
    %v2568 = vld [vmem:[#allocation11 + $0x310] sm:$0xff]
    %v2569 = vld [vmem:[#allocation11 + $0x318] sm:$0xff]
    %v2570 = vld [vmem:[#allocation11 + $0x320] sm:$0xff]
    %v2571 = vld [vmem:[#allocation11 + $0x328] sm:$0xff]
    %v2572 = vld [vmem:[#allocation11 + $0x330] sm:$0xff]
    %v2573 = vld [vmem:[#allocation11 + $0x338] sm:$0xff]
    %v2574 = vld [vmem:[#allocation11 + $0x340] sm:$0xff]
    %v2575 = vld [vmem:[#allocation11 + $0x348] sm:$0xff]
    %v2576 = vld [vmem:[#allocation11 + $0x350] sm:$0xff]
    %v2577 = vld [vmem:[#allocation11 + $0x358] sm:$0xff]
    %v2578 = vld [vmem:[#allocation11 + $0x360] sm:$0xff]
    %v2579 = vld [vmem:[#allocation11 + $0x368] sm:$0xff]
    %v2580 = vld [vmem:[#allocation11 + $0x370] sm:$0xff]
    %v2581 = vld [vmem:[#allocation11 + $0x378] sm:$0xff]
    %v2582 = vld [vmem:[#allocation11 + $0x380] sm:$0xff]
    %v2583 = vld [vmem:[#allocation11 + $0x388] sm:$0xff]
    %v2584 = vld [vmem:[#allocation11 + $0x390] sm:$0xff]
    %v2585 = vld [vmem:[#allocation11 + $0x398] sm:$0xff]
    %v2586 = vld [vmem:[#allocation11 + $0x3a0] sm:$0xff]
    %v2587 = vld [vmem:[#allocation11 + $0x3a8] sm:$0xff]
    %v2588 = vld [vmem:[#allocation11 + $0x3b0] sm:$0xff]
    %v2589 = vld [vmem:[#allocation11 + $0x3b8] sm:$0xff]
    %v2590 = vld [vmem:[#allocation11 + $0x3c0] sm:$0xff]
    %v2591 = vld [vmem:[#allocation11 + $0x3c8] sm:$0xff]
    %v2592 = vld [vmem:[#allocation11 + $0x3d0] sm:$0xff]
    %v2593 = vld [vmem:[#allocation11 + $0x3d8] sm:$0xff]
    %v2594 = vld [vmem:[#allocation11 + $0x3e0] sm:$0xff]
    %v2595 = vld [vmem:[#allocation11 + $0x3e8] sm:$0xff]
    %v2596 = vld [vmem:[#allocation11 + $0x3f0] sm:$0xff]
    %v2597 = vld [vmem:[#allocation11 + $0x3f8] sm:$0xff]
    %v2598 = vld [vmem:[#allocation11 + $0x400] sm:$0xff]
    %v2599 = vld [vmem:[#allocation11 + $0x408] sm:$0xff]
    %v2600 = vld [vmem:[#allocation11 + $0x410] sm:$0xff]
    %v2601 = vld [vmem:[#allocation11 + $0x418] sm:$0xff]
    %v2602 = vld [vmem:[#allocation11 + $0x420] sm:$0xff]
    %v2603 = vld [vmem:[#allocation11 + $0x428] sm:$0xff]
    %v2604 = vld [vmem:[#allocation11 + $0x430] sm:$0xff]
    %v2605 = vld [vmem:[#allocation11 + $0x438] sm:$0xff]
    %v2606 = vld [vmem:[#allocation11 + $0x440] sm:$0xff]
    %v2607 = vld [vmem:[#allocation11 + $0x448] sm:$0xff]
    %v2608 = vld [vmem:[#allocation11 + $0x450] sm:$0xff]
    %v2609 = vld [vmem:[#allocation11 + $0x458] sm:$0xff]
    %v2610 = vld [vmem:[#allocation11 + $0x460] sm:$0xff]
    %v2611 = vld [vmem:[#allocation11 + $0x468] sm:$0xff]
    %v2612 = vld [vmem:[#allocation11 + $0x470] sm:$0xff]
    %v2613 = vld [vmem:[#allocation11 + $0x478] sm:$0xff]
    %v2614 = vld [vmem:[#allocation11 + $0x480] sm:$0xff]
    %v2615 = vld [vmem:[#allocation11 + $0x488] sm:$0xff]
    %v2616 = vld [vmem:[#allocation11 + $0x490] sm:$0xff]
    %v2617 = vld [vmem:[#allocation11 + $0x498] sm:$0xff]
    %v2618 = vld [vmem:[#allocation11 + $0x4a0] sm:$0xff]
    %v2619 = vld [vmem:[#allocation11 + $0x4a8] sm:$0xff]
    %v2620 = vld [vmem:[#allocation11 + $0x4b0] sm:$0xff]
    %v2621 = vld [vmem:[#allocation11 + $0x4b8] sm:$0xff]
    %v2622 = vld [vmem:[#allocation11 + $0x4c0] sm:$0xff]
    %v2623 = vld [vmem:[#allocation11 + $0x4c8] sm:$0xff]
    %v2624 = vld [vmem:[#allocation11 + $0x4d0] sm:$0xff]
    %v2625 = vld [vmem:[#allocation11 + $0x4d8] sm:$0xff]
    %v2626 = vld [vmem:[#allocation11 + $0x4e0] sm:$0xff]
    %v2627 = vld [vmem:[#allocation11 + $0x4e8] sm:$0xff]
    %v2628 = vld [vmem:[#allocation11 + $0x4f0] sm:$0xff]
    %v2629 = vld [vmem:[#allocation11 + $0x4f8] sm:$0xff]
    %v2630 = vld [vmem:[#allocation11 + $0x500] sm:$0xff]
    %v2631 = vld [vmem:[#allocation11 + $0x508] sm:$0xff]
    %v2632 = vld [vmem:[#allocation11 + $0x510] sm:$0xff]
    %v2633 = vld [vmem:[#allocation11 + $0x518] sm:$0xff]
    %v2634 = vld [vmem:[#allocation11 + $0x520] sm:$0xff]
    %v2635 = vld [vmem:[#allocation11 + $0x528] sm:$0xff]
    %v2636 = vld [vmem:[#allocation11 + $0x530] sm:$0xff]
    %v2637 = vld [vmem:[#allocation11 + $0x538] sm:$0xff]
    %v2638 = vld [vmem:[#allocation11 + $0x540] sm:$0xff]
    %v2639 = vld [vmem:[#allocation11 + $0x548] sm:$0xff]
    %v2640 = vld [vmem:[#allocation11 + $0x550] sm:$0xff]
    %v2641 = vld [vmem:[#allocation11 + $0x558] sm:$0xff]
    %v2642 = vld [vmem:[#allocation11 + $0x560] sm:$0xff]
    %v2643 = vld [vmem:[#allocation11 + $0x568] sm:$0xff]
    %v2644 = vld [vmem:[#allocation11 + $0x570] sm:$0xff]
    %v2645 = vld [vmem:[#allocation11 + $0x578] sm:$0xff]
    %v2646 = vld [vmem:[#allocation11 + $0x580] sm:$0xff]
    %v2647 = vld [vmem:[#allocation11 + $0x588] sm:$0xff]
    %v2648 = vld [vmem:[#allocation11 + $0x590] sm:$0xff]
    %v2649 = vld [vmem:[#allocation11 + $0x598] sm:$0xff]
    %v2650 = vld [vmem:[#allocation11 + $0x5a0] sm:$0xff]
    %v2651 = vld [vmem:[#allocation11 + $0x5a8] sm:$0xff]
    %v2652 = vld [vmem:[#allocation11 + $0x5b0] sm:$0xff]
    %v2653 = vld [vmem:[#allocation11 + $0x5b8] sm:$0xff]
    %v2654 = vld [vmem:[#allocation11 + $0x5c0] sm:$0xff]
    %v2655 = vld [vmem:[#allocation11 + $0x5c8] sm:$0xff]
    %v2656 = vld [vmem:[#allocation11 + $0x5d0] sm:$0xff]
    %v2657 = vld [vmem:[#allocation11 + $0x5d8] sm:$0xff]
    %v2658 = vld [vmem:[#allocation11 + $0x5e0] sm:$0xff]
    %v2659 = vld [vmem:[#allocation11 + $0x5e8] sm:$0xff]
    %v2660 = vld [vmem:[#allocation11 + $0x5f0] sm:$0xff]
    %v2661 = vld [vmem:[#allocation11 + $0x5f8] sm:$0xff]
    %v2662 = vld [vmem:[#allocation11 + $0x600] sm:$0xff]
    %v2663 = vld [vmem:[#allocation11 + $0x608] sm:$0xff]
    %v2664 = vld [vmem:[#allocation11 + $0x610] sm:$0xff]
    %v2665 = vld [vmem:[#allocation11 + $0x618] sm:$0xff]
    %v2666 = vld [vmem:[#allocation11 + $0x620] sm:$0xff]
    %v2667 = vld [vmem:[#allocation11 + $0x628] sm:$0xff]
    %v2668 = vld [vmem:[#allocation11 + $0x630] sm:$0xff]
    %v2669 = vld [vmem:[#allocation11 + $0x638] sm:$0xff]
    %v2670 = vld [vmem:[#allocation11 + $0x640] sm:$0xff]
    %v2671 = vld [vmem:[#allocation11 + $0x648] sm:$0xff]
    %v2672 = vld [vmem:[#allocation11 + $0x650] sm:$0xff]
    %v2673 = vld [vmem:[#allocation11 + $0x658] sm:$0xff]
    %v2674 = vld [vmem:[#allocation11 + $0x660] sm:$0xff]
    %v2675 = vld [vmem:[#allocation11 + $0x668] sm:$0xff]
    %v2676 = vld [vmem:[#allocation11 + $0x670] sm:$0xff]
    %v2677 = vld [vmem:[#allocation11 + $0x678] sm:$0xff]
    %v2678 = vld [vmem:[#allocation11 + $0x680] sm:$0xff]
    %v2679 = vld [vmem:[#allocation11 + $0x688] sm:$0xff]
    %v2680 = vld [vmem:[#allocation11 + $0x690] sm:$0xff]
    %v2681 = vld [vmem:[#allocation11 + $0x698] sm:$0xff]
    %v2682 = vld [vmem:[#allocation11 + $0x6a0] sm:$0xff]
    %v2683 = vld [vmem:[#allocation11 + $0x6a8] sm:$0xff]
    %v2684 = vld [vmem:[#allocation11 + $0x6b0] sm:$0xff]
    %v2685 = vld [vmem:[#allocation11 + $0x6b8] sm:$0xff]
    %v2686 = vld [vmem:[#allocation11 + $0x6c0] sm:$0xff]
    %v2687 = vld [vmem:[#allocation11 + $0x6c8] sm:$0xff]
    %v2688 = vld [vmem:[#allocation11 + $0x6d0] sm:$0xff]
    %v2689 = vld [vmem:[#allocation11 + $0x6d8] sm:$0xff]
    %v2690 = vld [vmem:[#allocation11 + $0x6e0] sm:$0xff]
    %v2691 = vld [vmem:[#allocation11 + $0x6e8] sm:$0xff]
    %v2692 = vld [vmem:[#allocation11 + $0x6f0] sm:$0xff]
    %v2693 = vld [vmem:[#allocation11 + $0x6f8] sm:$0xff]
    %v2694 = vld [vmem:[#allocation11 + $0x700] sm:$0xff]
    %v2695 = vld [vmem:[#allocation11 + $0x708] sm:$0xff]
    %v2696 = vld [vmem:[#allocation11 + $0x710] sm:$0xff]
    %v2697 = vld [vmem:[#allocation11 + $0x718] sm:$0xff]
    %v2698 = vld [vmem:[#allocation11 + $0x720] sm:$0xff]
    %v2699 = vld [vmem:[#allocation11 + $0x728] sm:$0xff]
    %v2700 = vld [vmem:[#allocation11 + $0x730] sm:$0xff]
    %v2701 = vld [vmem:[#allocation11 + $0x738] sm:$0xff]
    %v2702 = vld [vmem:[#allocation11 + $0x740] sm:$0xff]
    %v2703 = vld [vmem:[#allocation11 + $0x748] sm:$0xff]
    %v2704 = vld [vmem:[#allocation11 + $0x750] sm:$0xff]
    %v2705 = vld [vmem:[#allocation11 + $0x758] sm:$0xff]
    %v2706 = vld [vmem:[#allocation11 + $0x760] sm:$0xff]
    %v2707 = vld [vmem:[#allocation11 + $0x768] sm:$0xff]
    %v2708 = vld [vmem:[#allocation11 + $0x770] sm:$0xff]
    %v2709 = vld [vmem:[#allocation11 + $0x778] sm:$0xff]
    %v2710 = vld [vmem:[#allocation11 + $0x780] sm:$0xff]
    %v2711 = vld [vmem:[#allocation11 + $0x788] sm:$0xff]
    %v2712 = vld [vmem:[#allocation11 + $0x790] sm:$0xff]
    %v2713 = vld [vmem:[#allocation11 + $0x798] sm:$0xff]
    %v2714 = vld [vmem:[#allocation11 + $0x7a0] sm:$0xff]
    %v2715 = vld [vmem:[#allocation11 + $0x7a8] sm:$0xff]
    %v2716 = vld [vmem:[#allocation11 + $0x7b0] sm:$0xff]
    %v2717 = vld [vmem:[#allocation11 + $0x7b8] sm:$0xff]
    %v2718 = vld [vmem:[#allocation11 + $0x7c0] sm:$0xff]
    %v2719 = vld [vmem:[#allocation11 + $0x7c8] sm:$0xff]
    %v2720 = vld [vmem:[#allocation11 + $0x7d0] sm:$0xff]
    %v2721 = vld [vmem:[#allocation11 + $0x7d8] sm:$0xff]
    %v2722 = vld [vmem:[#allocation11 + $0x7e0] sm:$0xff]
    %v2723 = vld [vmem:[#allocation11 + $0x7e8] sm:$0xff]
    %v2724 = vld [vmem:[#allocation11 + $0x7f0] sm:$0xff]
    %v2725 = vld [vmem:[#allocation11 + $0x7f8] sm:$0xff]
    %v2726 = vld [vmem:[#allocation11 + $0x800] sm:$0xff]
    %v2727 = vld [vmem:[#allocation11 + $0x808] sm:$0xff]
    %v2728 = vld [vmem:[#allocation11 + $0x810] sm:$0xff]
    %v2729 = vld [vmem:[#allocation11 + $0x818] sm:$0xff]
    %v2730 = vld [vmem:[#allocation11 + $0x820] sm:$0xff]
    %v2731 = vld [vmem:[#allocation11 + $0x828] sm:$0xff]
    %v2732 = vld [vmem:[#allocation11 + $0x830] sm:$0xff]
    %v2733 = vld [vmem:[#allocation11 + $0x838] sm:$0xff]
    %v2734 = vld [vmem:[#allocation11 + $0x840] sm:$0xff]
    %v2735 = vld [vmem:[#allocation11 + $0x848] sm:$0xff]
    %v2736 = vld [vmem:[#allocation11 + $0x850] sm:$0xff]
    %v2737 = vld [vmem:[#allocation11 + $0x858] sm:$0xff]
    %v2738 = vld [vmem:[#allocation11 + $0x860] sm:$0xff]
    %v2739 = vld [vmem:[#allocation11 + $0x868] sm:$0xff]
    %v2740 = vld [vmem:[#allocation11 + $0x870] sm:$0xff]
    %v2741 = vld [vmem:[#allocation11 + $0x878] sm:$0xff]
    %v2742 = vld [vmem:[#allocation11 + $0x880] sm:$0xff]
    %v2743 = vld [vmem:[#allocation11 + $0x888] sm:$0xff]
    %v2744 = vld [vmem:[#allocation11 + $0x890] sm:$0xff]
    %v2745 = vld [vmem:[#allocation11 + $0x898] sm:$0xff]
    %v2746 = vld [vmem:[#allocation11 + $0x8a0] sm:$0xff]
    %v2747 = vld [vmem:[#allocation11 + $0x8a8] sm:$0xff]
    %v2748 = vld [vmem:[#allocation11 + $0x8b0] sm:$0xff]
    %v2749 = vld [vmem:[#allocation11 + $0x8b8] sm:$0xff]
    %v2750 = vld [vmem:[#allocation11 + $0x8c0] sm:$0xff]
    %v2751 = vld [vmem:[#allocation11 + $0x8c8] sm:$0xff]
    %v2752 = vld [vmem:[#allocation11 + $0x8d0] sm:$0xff]
    %v2753 = vld [vmem:[#allocation11 + $0x8d8] sm:$0xff]
    %v2754 = vld [vmem:[#allocation11 + $0x8e0] sm:$0xff]
    %v2755 = vld [vmem:[#allocation11 + $0x8e8] sm:$0xff]
    %v2756 = vld [vmem:[#allocation11 + $0x8f0] sm:$0xff]
    %v2757 = vld [vmem:[#allocation11 + $0x8f8] sm:$0xff]
    %v2758 = vld [vmem:[#allocation11 + $0x900] sm:$0xff]
    %v2759 = vld [vmem:[#allocation11 + $0x908] sm:$0xff]
    %v2760 = vld [vmem:[#allocation11 + $0x910] sm:$0xff]
    %v2761 = vld [vmem:[#allocation11 + $0x918] sm:$0xff]
    %v2762 = vld [vmem:[#allocation11 + $0x920] sm:$0xff]
    %v2763 = vld [vmem:[#allocation11 + $0x928] sm:$0xff]
    %v2764 = vld [vmem:[#allocation11 + $0x930] sm:$0xff]
    %v2765 = vld [vmem:[#allocation11 + $0x938] sm:$0xff]
    %v2766 = vld [vmem:[#allocation11 + $0x940] sm:$0xff]
    %v2767 = vld [vmem:[#allocation11 + $0x948] sm:$0xff]
    %v2768 = vld [vmem:[#allocation11 + $0x950] sm:$0xff]
    %v2769 = vld [vmem:[#allocation11 + $0x958] sm:$0xff]
    %v2770 = vld [vmem:[#allocation11 + $0x960] sm:$0xff]
    %v2771 = vld [vmem:[#allocation11 + $0x968] sm:$0xff]
    %v2772 = vld [vmem:[#allocation11 + $0x970] sm:$0xff]
    %v2773 = vld [vmem:[#allocation11 + $0x978] sm:$0xff]
    %v2774 = vld [vmem:[#allocation11 + $0x980] sm:$0xff]
    %v2775 = vld [vmem:[#allocation11 + $0x988] sm:$0xff]
    %v2776 = vld [vmem:[#allocation11 + $0x990] sm:$0xff]
    %v2777 = vld [vmem:[#allocation11 + $0x998] sm:$0xff]
    %v2778 = vld [vmem:[#allocation11 + $0x9a0] sm:$0xff]
    %v2779 = vld [vmem:[#allocation11 + $0x9a8] sm:$0xff]
    %v2780 = vld [vmem:[#allocation11 + $0x9b0] sm:$0xff]
    %v2781 = vld [vmem:[#allocation11 + $0x9b8] sm:$0xff]
    %v2782 = vld [vmem:[#allocation11 + $0x9c0] sm:$0xff]
    %v2783 = vld [vmem:[#allocation11 + $0x9c8] sm:$0xff]
    %v2784 = vld [vmem:[#allocation11 + $0x9d0] sm:$0xff]
    %v2785 = vld [vmem:[#allocation11 + $0x9d8] sm:$0xff]
    %v2786 = vld [vmem:[#allocation11 + $0x9e0] sm:$0xff]
    %v2787 = vld [vmem:[#allocation11 + $0x9e8] sm:$0xff]
    %v2788 = vld [vmem:[#allocation11 + $0x9f0] sm:$0xff]
    %v2789 = vld [vmem:[#allocation11 + $0x9f8] sm:$0xff]
    %v2790 = vld [vmem:[#allocation11 + $0xa00] sm:$0xff]
    %v2791 = vld [vmem:[#allocation11 + $0xa08] sm:$0xff]
    %v2792 = vld [vmem:[#allocation11 + $0xa10] sm:$0xff]
    %v2793 = vld [vmem:[#allocation11 + $0xa18] sm:$0xff]
    %v2794 = vld [vmem:[#allocation11 + $0xa20] sm:$0xff]
    %v2795 = vld [vmem:[#allocation11 + $0xa28] sm:$0xff]
    %v2796 = vld [vmem:[#allocation11 + $0xa30] sm:$0xff]
    %v2797 = vld [vmem:[#allocation11 + $0xa38] sm:$0xff]
    %v2798 = vld [vmem:[#allocation11 + $0xa40] sm:$0xff]
    %v2799 = vld [vmem:[#allocation11 + $0xa48] sm:$0xff]
    %v2800 = vld [vmem:[#allocation11 + $0xa50] sm:$0xff]
    %v2801 = vld [vmem:[#allocation11 + $0xa58] sm:$0xff]
    %v2802 = vld [vmem:[#allocation11 + $0xa60] sm:$0xff]
    %v2803 = vld [vmem:[#allocation11 + $0xa68] sm:$0xff]
    %v2804 = vld [vmem:[#allocation11 + $0xa70] sm:$0xff]
    %v2805 = vld [vmem:[#allocation11 + $0xa78] sm:$0xff]
    %v2806 = vld [vmem:[#allocation11 + $0xa80] sm:$0xff]
    %v2807 = vld [vmem:[#allocation11 + $0xa88] sm:$0xff]
    %v2808 = vld [vmem:[#allocation11 + $0xa90] sm:$0xff]
    %v2809 = vld [vmem:[#allocation11 + $0xa98] sm:$0xff]
    %v2810 = vld [vmem:[#allocation11 + $0xaa0] sm:$0xff]
    %v2811 = vld [vmem:[#allocation11 + $0xaa8] sm:$0xff]
    %v2812 = vld [vmem:[#allocation11 + $0xab0] sm:$0xff]
    %v2813 = vld [vmem:[#allocation11 + $0xab8] sm:$0xff]
    %v2814 = vld [vmem:[#allocation11 + $0xac0] sm:$0xff]
    %v2815 = vld [vmem:[#allocation11 + $0xac8] sm:$0xff]
    %v2816 = vld [vmem:[#allocation11 + $0xad0] sm:$0xff]
    %v2817 = vld [vmem:[#allocation11 + $0xad8] sm:$0xff]
    %v2818 = vld [vmem:[#allocation11 + $0xae0] sm:$0xff]
    %v2819 = vld [vmem:[#allocation11 + $0xae8] sm:$0xff]
    %v2820 = vld [vmem:[#allocation11 + $0xaf0] sm:$0xff]
    %v2821 = vld [vmem:[#allocation11 + $0xaf8] sm:$0xff]
    %v2822 = vld [vmem:[#allocation11 + $0xb00] sm:$0xff]
    %v2823 = vld [vmem:[#allocation11 + $0xb08] sm:$0xff]
    %v2824 = vld [vmem:[#allocation11 + $0xb10] sm:$0xff]
    %v2825 = vld [vmem:[#allocation11 + $0xb18] sm:$0xff]
    %v2826 = vld [vmem:[#allocation11 + $0xb20] sm:$0xff]
    %v2827 = vld [vmem:[#allocation11 + $0xb28] sm:$0xff]
    %v2828 = vld [vmem:[#allocation11 + $0xb30] sm:$0xff]
    %v2829 = vld [vmem:[#allocation11 + $0xb38] sm:$0xff]
    %v2830 = vld [vmem:[#allocation11 + $0xb40] sm:$0xff]
    %v2831 = vld [vmem:[#allocation11 + $0xb48] sm:$0xff]
    %v2832 = vld [vmem:[#allocation11 + $0xb50] sm:$0xff]
    %v2833 = vld [vmem:[#allocation11 + $0xb58] sm:$0xff]
    %v2834 = vld [vmem:[#allocation11 + $0xb60] sm:$0xff]
    %v2835 = vld [vmem:[#allocation11 + $0xb68] sm:$0xff]
    %v2836 = vld [vmem:[#allocation11 + $0xb70] sm:$0xff]
    %v2837 = vld [vmem:[#allocation11 + $0xb78] sm:$0xff]
    %v2838 = vld [vmem:[#allocation11 + $0xb80] sm:$0xff]
    %v2839 = vld [vmem:[#allocation11 + $0xb88] sm:$0xff]
    %v2840 = vld [vmem:[#allocation11 + $0xb90] sm:$0xff]
    %v2841 = vld [vmem:[#allocation11 + $0xb98] sm:$0xff]
    %v2842 = vld [vmem:[#allocation11 + $0xba0] sm:$0xff]
    %v2843 = vld [vmem:[#allocation11 + $0xba8] sm:$0xff]
    %v2844 = vld [vmem:[#allocation11 + $0xbb0] sm:$0xff]
    %v2845 = vld [vmem:[#allocation11 + $0xbb8] sm:$0xff]
    %v2846 = vld [vmem:[#allocation11 + $0xbc0] sm:$0xff]
    %v2847 = vld [vmem:[#allocation11 + $0xbc8] sm:$0xff]
    %v2848 = vld [vmem:[#allocation11 + $0xbd0] sm:$0xff]
    %v2849 = vld [vmem:[#allocation11 + $0xbd8] sm:$0xff]
    %v2850 = vld [vmem:[#allocation11 + $0xbe0] sm:$0xff]
    %v2851 = vld [vmem:[#allocation11 + $0xbe8] sm:$0xff]
    %v2852 = vld [vmem:[#allocation11 + $0xbf0] sm:$0xff]
    %v2853 = vld [vmem:[#allocation11 + $0xbf8] sm:$0xff]
    %v2854 = vld [vmem:[#allocation11 + $0xc00] sm:$0xff]
    %v2855 = vld [vmem:[#allocation11 + $0xc08] sm:$0xff]
    %v2856 = vld [vmem:[#allocation11 + $0xc10] sm:$0xff]
    %v2857 = vld [vmem:[#allocation11 + $0xc18] sm:$0xff]
    %v2858 = vld [vmem:[#allocation11 + $0xc20] sm:$0xff]
    %v2859 = vld [vmem:[#allocation11 + $0xc28] sm:$0xff]
    %v2860 = vld [vmem:[#allocation11 + $0xc30] sm:$0xff]
    %v2861 = vld [vmem:[#allocation11 + $0xc38] sm:$0xff]
    %v2862 = vld [vmem:[#allocation11 + $0xc40] sm:$0xff]
    %v2863 = vld [vmem:[#allocation11 + $0xc48] sm:$0xff]
    %v2864 = vld [vmem:[#allocation11 + $0xc50] sm:$0xff]
    %v2865 = vld [vmem:[#allocation11 + $0xc58] sm:$0xff]
    %v2866 = vld [vmem:[#allocation11 + $0xc60] sm:$0xff]
    %v2867 = vld [vmem:[#allocation11 + $0xc68] sm:$0xff]
    %v2868 = vld [vmem:[#allocation11 + $0xc70] sm:$0xff]
    %v2869 = vld [vmem:[#allocation11 + $0xc78] sm:$0xff]
    %v2870 = vld [vmem:[#allocation11 + $0xc80] sm:$0xff]
    %v2871 = vld [vmem:[#allocation11 + $0xc88] sm:$0xff]
    %v2872 = vld [vmem:[#allocation11 + $0xc90] sm:$0xff]
    %v2873 = vld [vmem:[#allocation11 + $0xc98] sm:$0xff]
    %v2874 = vld [vmem:[#allocation11 + $0xca0] sm:$0xff]
    %v2875 = vld [vmem:[#allocation11 + $0xca8] sm:$0xff]
    %v2876 = vld [vmem:[#allocation11 + $0xcb0] sm:$0xff]
    %v2877 = vld [vmem:[#allocation11 + $0xcb8] sm:$0xff]
    %v2878 = vld [vmem:[#allocation11 + $0xcc0] sm:$0xff]
    %v2879 = vld [vmem:[#allocation11 + $0xcc8] sm:$0xff]
    %v2880 = vld [vmem:[#allocation11 + $0xcd0] sm:$0xff]
    %v2881 = vld [vmem:[#allocation11 + $0xcd8] sm:$0xff]
    %v2882 = vld [vmem:[#allocation11 + $0xce0] sm:$0xff]
    %v2883 = vld [vmem:[#allocation11 + $0xce8] sm:$0xff]
    %v2884 = vld [vmem:[#allocation11 + $0xcf0] sm:$0xff]
    %v2885 = vld [vmem:[#allocation11 + $0xcf8] sm:$0xff]
    %v2886 = vld [vmem:[#allocation11 + $0xd00] sm:$0xff]
    %v2887 = vld [vmem:[#allocation11 + $0xd08] sm:$0xff]
    %v2888 = vld [vmem:[#allocation11 + $0xd10] sm:$0xff]
    %v2889 = vld [vmem:[#allocation11 + $0xd18] sm:$0xff]
    %v2890 = vld [vmem:[#allocation11 + $0xd20] sm:$0xff]
    %v2891 = vld [vmem:[#allocation11 + $0xd28] sm:$0xff]
    %v2892 = vld [vmem:[#allocation11 + $0xd30] sm:$0xff]
    %v2893 = vld [vmem:[#allocation11 + $0xd38] sm:$0xff]
    %v2894 = vld [vmem:[#allocation11 + $0xd40] sm:$0xff]
    %v2895 = vld [vmem:[#allocation11 + $0xd48] sm:$0xff]
    %v2896 = vld [vmem:[#allocation11 + $0xd50] sm:$0xff]
    %v2897 = vld [vmem:[#allocation11 + $0xd58] sm:$0xff]
    %v2898 = vld [vmem:[#allocation11 + $0xd60] sm:$0xff]
    %v2899 = vld [vmem:[#allocation11 + $0xd68] sm:$0xff]
    %v2900 = vld [vmem:[#allocation11 + $0xd70] sm:$0xff]
    %v2901 = vld [vmem:[#allocation11 + $0xd78] sm:$0xff]
    %v2902 = vld [vmem:[#allocation11 + $0xd80] sm:$0xff]
    %v2903 = vld [vmem:[#allocation11 + $0xd88] sm:$0xff]
    %v2904 = vld [vmem:[#allocation11 + $0xd90] sm:$0xff]
    %v2905 = vld [vmem:[#allocation11 + $0xd98] sm:$0xff]
    %v2906 = vld [vmem:[#allocation11 + $0xda0] sm:$0xff]
    %v2907 = vld [vmem:[#allocation11 + $0xda8] sm:$0xff]
    %v2908 = vld [vmem:[#allocation11 + $0xdb0] sm:$0xff]
    %v2909 = vld [vmem:[#allocation11 + $0xdb8] sm:$0xff]
    %v2910 = vld [vmem:[#allocation11 + $0xdc0] sm:$0xff]
    %v2911 = vld [vmem:[#allocation11 + $0xdc8] sm:$0xff]
    %v2912 = vld [vmem:[#allocation11 + $0xdd0] sm:$0xff]
    %v2913 = vld [vmem:[#allocation11 + $0xdd8] sm:$0xff]
    %v2914 = vld [vmem:[#allocation11 + $0xde0] sm:$0xff]
    %v2915 = vld [vmem:[#allocation11 + $0xde8] sm:$0xff]
    %v2916 = vld [vmem:[#allocation11 + $0xdf0] sm:$0xff]
    %v2917 = vld [vmem:[#allocation11 + $0xdf8] sm:$0xff]
    %v2918 = vld [vmem:[#allocation11 + $0xe00] sm:$0xff]
    %v2919 = vld [vmem:[#allocation11 + $0xe08] sm:$0xff]
    %v2920 = vld [vmem:[#allocation11 + $0xe10] sm:$0xff]
    %v2921 = vld [vmem:[#allocation11 + $0xe18] sm:$0xff]
    %v2922 = vld [vmem:[#allocation11 + $0xe20] sm:$0xff]
    %v2923 = vld [vmem:[#allocation11 + $0xe28] sm:$0xff]
    %v2924 = vld [vmem:[#allocation11 + $0xe30] sm:$0xff]
    %v2925 = vld [vmem:[#allocation11 + $0xe38] sm:$0xff]
    %v2926 = vld [vmem:[#allocation11 + $0xe40] sm:$0xff]
    %v2927 = vld [vmem:[#allocation11 + $0xe48] sm:$0xff]
    %v2928 = vld [vmem:[#allocation11 + $0xe50] sm:$0xff]
    %v2929 = vld [vmem:[#allocation11 + $0xe58] sm:$0xff]
    %v2930 = vld [vmem:[#allocation11 + $0xe60] sm:$0xff]
    %v2931 = vld [vmem:[#allocation11 + $0xe68] sm:$0xff]
    %v2932 = vld [vmem:[#allocation11 + $0xe70] sm:$0xff]
    %v2933 = vld [vmem:[#allocation11 + $0xe78] sm:$0xff]
    %v2934 = vld [vmem:[#allocation11 + $0xe80] sm:$0xff]
    %v2935 = vld [vmem:[#allocation11 + $0xe88] sm:$0xff]
    %v2936 = vld [vmem:[#allocation11 + $0xe90] sm:$0xff]
    %v2937 = vld [vmem:[#allocation11 + $0xe98] sm:$0xff]
    %v2938 = vld [vmem:[#allocation11 + $0xea0] sm:$0xff]
    %v2939 = vld [vmem:[#allocation11 + $0xea8] sm:$0xff]
    %v2940 = vld [vmem:[#allocation11 + $0xeb0] sm:$0xff]
    %v2941 = vld [vmem:[#allocation11 + $0xeb8] sm:$0xff]
    %v2942 = vld [vmem:[#allocation11 + $0xec0] sm:$0xff]
    %v2943 = vld [vmem:[#allocation11 + $0xec8] sm:$0xff]
    %v2944 = vld [vmem:[#allocation11 + $0xed0] sm:$0xff]
    %v2945 = vld [vmem:[#allocation11 + $0xed8] sm:$0xff]
    %v2946 = vld [vmem:[#allocation11 + $0xee0] sm:$0xff]
    %v2947 = vld [vmem:[#allocation11 + $0xee8] sm:$0xff]
    %v2948 = vld [vmem:[#allocation11 + $0xef0] sm:$0xff]
    %v2949 = vld [vmem:[#allocation11 + $0xef8] sm:$0xff]
    %v2950 = vld [vmem:[#allocation11 + $0xf00] sm:$0xff]
    %v2951 = vld [vmem:[#allocation11 + $0xf08] sm:$0xff]
    %v2952 = vld [vmem:[#allocation11 + $0xf10] sm:$0xff]
    %v2953 = vld [vmem:[#allocation11 + $0xf18] sm:$0xff]
    %v2954 = vld [vmem:[#allocation11 + $0xf20] sm:$0xff]
    %v2955 = vld [vmem:[#allocation11 + $0xf28] sm:$0xff]
    %v2956 = vld [vmem:[#allocation11 + $0xf30] sm:$0xff]
    %v2957 = vld [vmem:[#allocation11 + $0xf38] sm:$0xff]
    %v2958 = vld [vmem:[#allocation11 + $0xf40] sm:$0xff]
    %v2959 = vld [vmem:[#allocation11 + $0xf48] sm:$0xff]
    %v2960 = vld [vmem:[#allocation11 + $0xf50] sm:$0xff]
    %v2961 = vld [vmem:[#allocation11 + $0xf58] sm:$0xff]
    %v2962 = vld [vmem:[#allocation11 + $0xf60] sm:$0xff]
    %v2963 = vld [vmem:[#allocation11 + $0xf68] sm:$0xff]
    %v2964 = vld [vmem:[#allocation11 + $0xf70] sm:$0xff]
    %v2965 = vld [vmem:[#allocation11 + $0xf78] sm:$0xff]
    %v2966 = vld [vmem:[#allocation11 + $0xf80] sm:$0xff]
    %v2967 = vld [vmem:[#allocation11 + $0xf88] sm:$0xff]
    %v2968 = vld [vmem:[#allocation11 + $0xf90] sm:$0xff]
    %v2969 = vld [vmem:[#allocation11 + $0xf98] sm:$0xff]
    %v2970 = vld [vmem:[#allocation11 + $0xfa0] sm:$0xff]
    %v2971 = vld [vmem:[#allocation11 + $0xfa8] sm:$0xff]
    %v2972 = vld [vmem:[#allocation11 + $0xfb0] sm:$0xff]
    %v2973 = vld [vmem:[#allocation11 + $0xfb8] sm:$0xff]
    %v2974 = vld [vmem:[#allocation11 + $0xfc0] sm:$0xff]
    %v2975 = vld [vmem:[#allocation11 + $0xfc8] sm:$0xff]
    %v2976 = vld [vmem:[#allocation11 + $0xfd0] sm:$0xff]
    %v2977 = vld [vmem:[#allocation11 + $0xfd8] sm:$0xff]
    %v2978 = vld [vmem:[#allocation11 + $0xfe0] sm:$0xff]
    %v2979 = vld [vmem:[#allocation11 + $0xfe8] sm:$0xff]
    %v2980 = vld [vmem:[#allocation11 + $0xff0] sm:$0xff]
    %v2981 = vld [vmem:[#allocation11 + $0xff8] sm:$0xff]
    %v3494 = vunpack.c.l.b16 %v2470
    %v3495 = vunpack.c.h.b16 %v2470
    %v3496 = vunpack.c.l.b16 %v2471
    %v3497 = vunpack.c.h.b16 %v2471
    %v3498 = vunpack.c.l.b16 %v2472
    %v3499 = vunpack.c.h.b16 %v2472
    %v3500 = vunpack.c.l.b16 %v2473
    %v3501 = vunpack.c.h.b16 %v2473
    %v3502 = vunpack.c.l.b16 %v2474
    %v3503 = vunpack.c.h.b16 %v2474
    %v3504 = vunpack.c.l.b16 %v2475
    %v3505 = vunpack.c.h.b16 %v2475
    %v3506 = vunpack.c.l.b16 %v2476
    %v3507 = vunpack.c.h.b16 %v2476
    %v3508 = vunpack.c.l.b16 %v2477
    %v3509 = vunpack.c.h.b16 %v2477
    %v3510 = vunpack.c.l.b16 %v2478
    %v3511 = vunpack.c.h.b16 %v2478
    %v3512 = vunpack.c.l.b16 %v2479
    %v3513 = vunpack.c.h.b16 %v2479
    %v3514 = vunpack.c.l.b16 %v2480
    %v3515 = vunpack.c.h.b16 %v2480
    %v3516 = vunpack.c.l.b16 %v2481
    %v3517 = vunpack.c.h.b16 %v2481
    %v3518 = vunpack.c.l.b16 %v2482
    %v3519 = vunpack.c.h.b16 %v2482
    %v3520 = vunpack.c.l.b16 %v2483
    %v3521 = vunpack.c.h.b16 %v2483
    %v3522 = vunpack.c.l.b16 %v2484
    %v3523 = vunpack.c.h.b16 %v2484
    %v3524 = vunpack.c.l.b16 %v2485
    %v3525 = vunpack.c.h.b16 %v2485
    %v3526 = vunpack.c.l.b16 %v2486
    %v3527 = vunpack.c.h.b16 %v2486
    %v3528 = vunpack.c.l.b16 %v2487
    %v3529 = vunpack.c.h.b16 %v2487
    %v3530 = vunpack.c.l.b16 %v2488
    %v3531 = vunpack.c.h.b16 %v2488
    %v3532 = vunpack.c.l.b16 %v2489
    %v3533 = vunpack.c.h.b16 %v2489
    %v3534 = vunpack.c.l.b16 %v2490
    %v3535 = vunpack.c.h.b16 %v2490
    %v3536 = vunpack.c.l.b16 %v2491
    %v3537 = vunpack.c.h.b16 %v2491
    %v3538 = vunpack.c.l.b16 %v2492
    %v3539 = vunpack.c.h.b16 %v2492
    %v3540 = vunpack.c.l.b16 %v2493
    %v3541 = vunpack.c.h.b16 %v2493
    %v3542 = vunpack.c.l.b16 %v2494
    %v3543 = vunpack.c.h.b16 %v2494
    %v3544 = vunpack.c.l.b16 %v2495
    %v3545 = vunpack.c.h.b16 %v2495
    %v3546 = vunpack.c.l.b16 %v2496
    %v3547 = vunpack.c.h.b16 %v2496
    %v3548 = vunpack.c.l.b16 %v2497
    %v3549 = vunpack.c.h.b16 %v2497
    %v3550 = vunpack.c.l.b16 %v2498
    %v3551 = vunpack.c.h.b16 %v2498
    %v3552 = vunpack.c.l.b16 %v2499
    %v3553 = vunpack.c.h.b16 %v2499
    %v3554 = vunpack.c.l.b16 %v2500
    %v3555 = vunpack.c.h.b16 %v2500
    %v3556 = vunpack.c.l.b16 %v2501
    %v3557 = vunpack.c.h.b16 %v2501
    %v3558 = vunpack.c.l.b16 %v2502
    %v3559 = vunpack.c.h.b16 %v2502
    %v3560 = vunpack.c.l.b16 %v2503
    %v3561 = vunpack.c.h.b16 %v2503
    %v3562 = vunpack.c.l.b16 %v2504
    %v3563 = vunpack.c.h.b16 %v2504
    %v3564 = vunpack.c.l.b16 %v2505
    %v3565 = vunpack.c.h.b16 %v2505
    %v3566 = vunpack.c.l.b16 %v2506
    %v3567 = vunpack.c.h.b16 %v2506
    %v3568 = vunpack.c.l.b16 %v2507
    %v3569 = vunpack.c.h.b16 %v2507
    %v3570 = vunpack.c.l.b16 %v2508
    %v3571 = vunpack.c.h.b16 %v2508
    %v3572 = vunpack.c.l.b16 %v2509
    %v3573 = vunpack.c.h.b16 %v2509
    %v3574 = vunpack.c.l.b16 %v2510
    %v3575 = vunpack.c.h.b16 %v2510
    %v3576 = vunpack.c.l.b16 %v2511
    %v3577 = vunpack.c.h.b16 %v2511
    %v3578 = vunpack.c.l.b16 %v2512
    %v3579 = vunpack.c.h.b16 %v2512
    %v3580 = vunpack.c.l.b16 %v2513
    %v3581 = vunpack.c.h.b16 %v2513
    %v3582 = vunpack.c.l.b16 %v2514
    %v3583 = vunpack.c.h.b16 %v2514
    %v3584 = vunpack.c.l.b16 %v2515
    %v3585 = vunpack.c.h.b16 %v2515
    %v3586 = vunpack.c.l.b16 %v2516
    %v3587 = vunpack.c.h.b16 %v2516
    %v3588 = vunpack.c.l.b16 %v2517
    %v3589 = vunpack.c.h.b16 %v2517
    %v3590 = vunpack.c.l.b16 %v2518
    %v3591 = vunpack.c.h.b16 %v2518
    %v3592 = vunpack.c.l.b16 %v2519
    %v3593 = vunpack.c.h.b16 %v2519
    %v3594 = vunpack.c.l.b16 %v2520
    %v3595 = vunpack.c.h.b16 %v2520
    %v3596 = vunpack.c.l.b16 %v2521
    %v3597 = vunpack.c.h.b16 %v2521
    %v3598 = vunpack.c.l.b16 %v2522
    %v3599 = vunpack.c.h.b16 %v2522
    %v3600 = vunpack.c.l.b16 %v2523
    %v3601 = vunpack.c.h.b16 %v2523
    %v3602 = vunpack.c.l.b16 %v2524
    %v3603 = vunpack.c.h.b16 %v2524
    %v3604 = vunpack.c.l.b16 %v2525
    %v3605 = vunpack.c.h.b16 %v2525
    %v3606 = vunpack.c.l.b16 %v2526
    %v3607 = vunpack.c.h.b16 %v2526
    %v3608 = vunpack.c.l.b16 %v2527
    %v3609 = vunpack.c.h.b16 %v2527
    %v3610 = vunpack.c.l.b16 %v2528
    %v3611 = vunpack.c.h.b16 %v2528
    %v3612 = vunpack.c.l.b16 %v2529
    %v3613 = vunpack.c.h.b16 %v2529
    %v3614 = vunpack.c.l.b16 %v2530
    %v3615 = vunpack.c.h.b16 %v2530
    %v3616 = vunpack.c.l.b16 %v2531
    %v3617 = vunpack.c.h.b16 %v2531
    %v3618 = vunpack.c.l.b16 %v2532
    %v3619 = vunpack.c.h.b16 %v2532
    %v3620 = vunpack.c.l.b16 %v2533
    %v3621 = vunpack.c.h.b16 %v2533
    %v3622 = vunpack.c.l.b16 %v2534
    %v3623 = vunpack.c.h.b16 %v2534
    %v3624 = vunpack.c.l.b16 %v2535
    %v3625 = vunpack.c.h.b16 %v2535
    %v3626 = vunpack.c.l.b16 %v2536
    %v3627 = vunpack.c.h.b16 %v2536
    %v3628 = vunpack.c.l.b16 %v2537
    %v3629 = vunpack.c.h.b16 %v2537
    %v3630 = vunpack.c.l.b16 %v2538
    %v3631 = vunpack.c.h.b16 %v2538
    %v3632 = vunpack.c.l.b16 %v2539
    %v3633 = vunpack.c.h.b16 %v2539
    %v3634 = vunpack.c.l.b16 %v2540
    %v3635 = vunpack.c.h.b16 %v2540
    %v3636 = vunpack.c.l.b16 %v2541
    %v3637 = vunpack.c.h.b16 %v2541
    %v3638 = vunpack.c.l.b16 %v2542
    %v3639 = vunpack.c.h.b16 %v2542
    %v3640 = vunpack.c.l.b16 %v2543
    %v3641 = vunpack.c.h.b16 %v2543
    %v3642 = vunpack.c.l.b16 %v2544
    %v3643 = vunpack.c.h.b16 %v2544
    %v3644 = vunpack.c.l.b16 %v2545
    %v3645 = vunpack.c.h.b16 %v2545
    %v3646 = vunpack.c.l.b16 %v2546
    %v3647 = vunpack.c.h.b16 %v2546
    %v3648 = vunpack.c.l.b16 %v2547
    %v3649 = vunpack.c.h.b16 %v2547
    %v3650 = vunpack.c.l.b16 %v2548
    %v3651 = vunpack.c.h.b16 %v2548
    %v3652 = vunpack.c.l.b16 %v2549
    %v3653 = vunpack.c.h.b16 %v2549
    %v3654 = vunpack.c.l.b16 %v2550
    %v3655 = vunpack.c.h.b16 %v2550
    %v3656 = vunpack.c.l.b16 %v2551
    %v3657 = vunpack.c.h.b16 %v2551
    %v3658 = vunpack.c.l.b16 %v2552
    %v3659 = vunpack.c.h.b16 %v2552
    %v3660 = vunpack.c.l.b16 %v2553
    %v3661 = vunpack.c.h.b16 %v2553
    %v3662 = vunpack.c.l.b16 %v2554
    %v3663 = vunpack.c.h.b16 %v2554
    %v3664 = vunpack.c.l.b16 %v2555
    %v3665 = vunpack.c.h.b16 %v2555
    %v3666 = vunpack.c.l.b16 %v2556
    %v3667 = vunpack.c.h.b16 %v2556
    %v3668 = vunpack.c.l.b16 %v2557
    %v3669 = vunpack.c.h.b16 %v2557
    %v3670 = vunpack.c.l.b16 %v2558
    %v3671 = vunpack.c.h.b16 %v2558
    %v3672 = vunpack.c.l.b16 %v2559
    %v3673 = vunpack.c.h.b16 %v2559
    %v3674 = vunpack.c.l.b16 %v2560
    %v3675 = vunpack.c.h.b16 %v2560
    %v3676 = vunpack.c.l.b16 %v2561
    %v3677 = vunpack.c.h.b16 %v2561
    %v3678 = vunpack.c.l.b16 %v2562
    %v3679 = vunpack.c.h.b16 %v2562
    %v3680 = vunpack.c.l.b16 %v2563
    %v3681 = vunpack.c.h.b16 %v2563
    %v3682 = vunpack.c.l.b16 %v2564
    %v3683 = vunpack.c.h.b16 %v2564
    %v3684 = vunpack.c.l.b16 %v2565
    %v3685 = vunpack.c.h.b16 %v2565
    %v3686 = vunpack.c.l.b16 %v2566
    %v3687 = vunpack.c.h.b16 %v2566
    %v3688 = vunpack.c.l.b16 %v2567
    %v3689 = vunpack.c.h.b16 %v2567
    %v3690 = vunpack.c.l.b16 %v2568
    %v3691 = vunpack.c.h.b16 %v2568
    %v3692 = vunpack.c.l.b16 %v2569
    %v3693 = vunpack.c.h.b16 %v2569
    %v3694 = vunpack.c.l.b16 %v2570
    %v3695 = vunpack.c.h.b16 %v2570
    %v3696 = vunpack.c.l.b16 %v2571
    %v3697 = vunpack.c.h.b16 %v2571
    %v3698 = vunpack.c.l.b16 %v2572
    %v3699 = vunpack.c.h.b16 %v2572
    %v3700 = vunpack.c.l.b16 %v2573
    %v3701 = vunpack.c.h.b16 %v2573
    %v3702 = vunpack.c.l.b16 %v2574
    %v3703 = vunpack.c.h.b16 %v2574
    %v3704 = vunpack.c.l.b16 %v2575
    %v3705 = vunpack.c.h.b16 %v2575
    %v3706 = vunpack.c.l.b16 %v2576
    %v3707 = vunpack.c.h.b16 %v2576
    %v3708 = vunpack.c.l.b16 %v2577
    %v3709 = vunpack.c.h.b16 %v2577
    %v3710 = vunpack.c.l.b16 %v2578
    %v3711 = vunpack.c.h.b16 %v2578
    %v3712 = vunpack.c.l.b16 %v2579
    %v3713 = vunpack.c.h.b16 %v2579
    %v3714 = vunpack.c.l.b16 %v2580
    %v3715 = vunpack.c.h.b16 %v2580
    %v3716 = vunpack.c.l.b16 %v2581
    %v3717 = vunpack.c.h.b16 %v2581
    %v3718 = vunpack.c.l.b16 %v2582
    %v3719 = vunpack.c.h.b16 %v2582
    %v3720 = vunpack.c.l.b16 %v2583
    %v3721 = vunpack.c.h.b16 %v2583
    %v3722 = vunpack.c.l.b16 %v2584
    %v3723 = vunpack.c.h.b16 %v2584
    %v3724 = vunpack.c.l.b16 %v2585
    %v3725 = vunpack.c.h.b16 %v2585
    %v3726 = vunpack.c.l.b16 %v2586
    %v3727 = vunpack.c.h.b16 %v2586
    %v3728 = vunpack.c.l.b16 %v2587
    %v3729 = vunpack.c.h.b16 %v2587
    %v3730 = vunpack.c.l.b16 %v2588
    %v3731 = vunpack.c.h.b16 %v2588
    %v3732 = vunpack.c.l.b16 %v2589
    %v3733 = vunpack.c.h.b16 %v2589
    %v3734 = vunpack.c.l.b16 %v2590
    %v3735 = vunpack.c.h.b16 %v2590
    %v3736 = vunpack.c.l.b16 %v2591
    %v3737 = vunpack.c.h.b16 %v2591
    %v3738 = vunpack.c.l.b16 %v2592
    %v3739 = vunpack.c.h.b16 %v2592
    %v3740 = vunpack.c.l.b16 %v2593
    %v3741 = vunpack.c.h.b16 %v2593
    %v3742 = vunpack.c.l.b16 %v2594
    %v3743 = vunpack.c.h.b16 %v2594
    %v3744 = vunpack.c.l.b16 %v2595
    %v3745 = vunpack.c.h.b16 %v2595
    %v3746 = vunpack.c.l.b16 %v2596
    %v3747 = vunpack.c.h.b16 %v2596
    %v3748 = vunpack.c.l.b16 %v2597
    %v3749 = vunpack.c.h.b16 %v2597
    %v3750 = vunpack.c.l.b16 %v2598
    %v3751 = vunpack.c.h.b16 %v2598
    %v3752 = vunpack.c.l.b16 %v2599
    %v3753 = vunpack.c.h.b16 %v2599
    %v3754 = vunpack.c.l.b16 %v2600
    %v3755 = vunpack.c.h.b16 %v2600
    %v3756 = vunpack.c.l.b16 %v2601
    %v3757 = vunpack.c.h.b16 %v2601
    %v3758 = vunpack.c.l.b16 %v2602
    %v3759 = vunpack.c.h.b16 %v2602
    %v3760 = vunpack.c.l.b16 %v2603
    %v3761 = vunpack.c.h.b16 %v2603
    %v3762 = vunpack.c.l.b16 %v2604
    %v3763 = vunpack.c.h.b16 %v2604
    %v3764 = vunpack.c.l.b16 %v2605
    %v3765 = vunpack.c.h.b16 %v2605
    %v3766 = vunpack.c.l.b16 %v2606
    %v3767 = vunpack.c.h.b16 %v2606
    %v3768 = vunpack.c.l.b16 %v2607
    %v3769 = vunpack.c.h.b16 %v2607
    %v3770 = vunpack.c.l.b16 %v2608
    %v3771 = vunpack.c.h.b16 %v2608
    %v3772 = vunpack.c.l.b16 %v2609
    %v3773 = vunpack.c.h.b16 %v2609
    %v3774 = vunpack.c.l.b16 %v2610
    %v3775 = vunpack.c.h.b16 %v2610
    %v3776 = vunpack.c.l.b16 %v2611
    %v3777 = vunpack.c.h.b16 %v2611
    %v3778 = vunpack.c.l.b16 %v2612
    %v3779 = vunpack.c.h.b16 %v2612
    %v3780 = vunpack.c.l.b16 %v2613
    %v3781 = vunpack.c.h.b16 %v2613
    %v3782 = vunpack.c.l.b16 %v2614
    %v3783 = vunpack.c.h.b16 %v2614
    %v3784 = vunpack.c.l.b16 %v2615
    %v3785 = vunpack.c.h.b16 %v2615
    %v3786 = vunpack.c.l.b16 %v2616
    %v3787 = vunpack.c.h.b16 %v2616
    %v3788 = vunpack.c.l.b16 %v2617
    %v3789 = vunpack.c.h.b16 %v2617
    %v3790 = vunpack.c.l.b16 %v2618
    %v3791 = vunpack.c.h.b16 %v2618
    %v3792 = vunpack.c.l.b16 %v2619
    %v3793 = vunpack.c.h.b16 %v2619
    %v3794 = vunpack.c.l.b16 %v2620
    %v3795 = vunpack.c.h.b16 %v2620
    %v3796 = vunpack.c.l.b16 %v2621
    %v3797 = vunpack.c.h.b16 %v2621
    %v3798 = vunpack.c.l.b16 %v2622
    %v3799 = vunpack.c.h.b16 %v2622
    %v3800 = vunpack.c.l.b16 %v2623
    %v3801 = vunpack.c.h.b16 %v2623
    %v3802 = vunpack.c.l.b16 %v2624
    %v3803 = vunpack.c.h.b16 %v2624
    %v3804 = vunpack.c.l.b16 %v2625
    %v3805 = vunpack.c.h.b16 %v2625
    %v3806 = vunpack.c.l.b16 %v2626
    %v3807 = vunpack.c.h.b16 %v2626
    %v3808 = vunpack.c.l.b16 %v2627
    %v3809 = vunpack.c.h.b16 %v2627
    %v3810 = vunpack.c.l.b16 %v2628
    %v3811 = vunpack.c.h.b16 %v2628
    %v3812 = vunpack.c.l.b16 %v2629
    %v3813 = vunpack.c.h.b16 %v2629
    %v3814 = vunpack.c.l.b16 %v2630
    %v3815 = vunpack.c.h.b16 %v2630
    %v3816 = vunpack.c.l.b16 %v2631
    %v3817 = vunpack.c.h.b16 %v2631
    %v3818 = vunpack.c.l.b16 %v2632
    %v3819 = vunpack.c.h.b16 %v2632
    %v3820 = vunpack.c.l.b16 %v2633
    %v3821 = vunpack.c.h.b16 %v2633
    %v3822 = vunpack.c.l.b16 %v2634
    %v3823 = vunpack.c.h.b16 %v2634
    %v3824 = vunpack.c.l.b16 %v2635
    %v3825 = vunpack.c.h.b16 %v2635
    %v3826 = vunpack.c.l.b16 %v2636
    %v3827 = vunpack.c.h.b16 %v2636
    %v3828 = vunpack.c.l.b16 %v2637
    %v3829 = vunpack.c.h.b16 %v2637
    %v3830 = vunpack.c.l.b16 %v2638
    %v3831 = vunpack.c.h.b16 %v2638
    %v3832 = vunpack.c.l.b16 %v2639
    %v3833 = vunpack.c.h.b16 %v2639
    %v3834 = vunpack.c.l.b16 %v2640
    %v3835 = vunpack.c.h.b16 %v2640
    %v3836 = vunpack.c.l.b16 %v2641
    %v3837 = vunpack.c.h.b16 %v2641
    %v3838 = vunpack.c.l.b16 %v2642
    %v3839 = vunpack.c.h.b16 %v2642
    %v3840 = vunpack.c.l.b16 %v2643
    %v3841 = vunpack.c.h.b16 %v2643
    %v3842 = vunpack.c.l.b16 %v2644
    %v3843 = vunpack.c.h.b16 %v2644
    %v3844 = vunpack.c.l.b16 %v2645
    %v3845 = vunpack.c.h.b16 %v2645
    %v3846 = vunpack.c.l.b16 %v2646
    %v3847 = vunpack.c.h.b16 %v2646
    %v3848 = vunpack.c.l.b16 %v2647
    %v3849 = vunpack.c.h.b16 %v2647
    %v3850 = vunpack.c.l.b16 %v2648
    %v3851 = vunpack.c.h.b16 %v2648
    %v3852 = vunpack.c.l.b16 %v2649
    %v3853 = vunpack.c.h.b16 %v2649
    %v3854 = vunpack.c.l.b16 %v2650
    %v3855 = vunpack.c.h.b16 %v2650
    %v3856 = vunpack.c.l.b16 %v2651
    %v3857 = vunpack.c.h.b16 %v2651
    %v3858 = vunpack.c.l.b16 %v2652
    %v3859 = vunpack.c.h.b16 %v2652
    %v3860 = vunpack.c.l.b16 %v2653
    %v3861 = vunpack.c.h.b16 %v2653
    %v3862 = vunpack.c.l.b16 %v2654
    %v3863 = vunpack.c.h.b16 %v2654
    %v3864 = vunpack.c.l.b16 %v2655
    %v3865 = vunpack.c.h.b16 %v2655
    %v3866 = vunpack.c.l.b16 %v2656
    %v3867 = vunpack.c.h.b16 %v2656
    %v3868 = vunpack.c.l.b16 %v2657
    %v3869 = vunpack.c.h.b16 %v2657
    %v3870 = vunpack.c.l.b16 %v2658
    %v3871 = vunpack.c.h.b16 %v2658
    %v3872 = vunpack.c.l.b16 %v2659
    %v3873 = vunpack.c.h.b16 %v2659
    %v3874 = vunpack.c.l.b16 %v2660
    %v3875 = vunpack.c.h.b16 %v2660
    %v3876 = vunpack.c.l.b16 %v2661
    %v3877 = vunpack.c.h.b16 %v2661
    %v3878 = vunpack.c.l.b16 %v2662
    %v3879 = vunpack.c.h.b16 %v2662
    %v3880 = vunpack.c.l.b16 %v2663
    %v3881 = vunpack.c.h.b16 %v2663
    %v3882 = vunpack.c.l.b16 %v2664
    %v3883 = vunpack.c.h.b16 %v2664
    %v3884 = vunpack.c.l.b16 %v2665
    %v3885 = vunpack.c.h.b16 %v2665
    %v3886 = vunpack.c.l.b16 %v2666
    %v3887 = vunpack.c.h.b16 %v2666
    %v3888 = vunpack.c.l.b16 %v2667
    %v3889 = vunpack.c.h.b16 %v2667
    %v3890 = vunpack.c.l.b16 %v2668
    %v3891 = vunpack.c.h.b16 %v2668
    %v3892 = vunpack.c.l.b16 %v2669
    %v3893 = vunpack.c.h.b16 %v2669
    %v3894 = vunpack.c.l.b16 %v2670
    %v3895 = vunpack.c.h.b16 %v2670
    %v3896 = vunpack.c.l.b16 %v2671
    %v3897 = vunpack.c.h.b16 %v2671
    %v3898 = vunpack.c.l.b16 %v2672
    %v3899 = vunpack.c.h.b16 %v2672
    %v3900 = vunpack.c.l.b16 %v2673
    %v3901 = vunpack.c.h.b16 %v2673
    %v3902 = vunpack.c.l.b16 %v2674
    %v3903 = vunpack.c.h.b16 %v2674
    %v3904 = vunpack.c.l.b16 %v2675
    %v3905 = vunpack.c.h.b16 %v2675
    %v3906 = vunpack.c.l.b16 %v2676
    %v3907 = vunpack.c.h.b16 %v2676
    %v3908 = vunpack.c.l.b16 %v2677
    %v3909 = vunpack.c.h.b16 %v2677
    %v3910 = vunpack.c.l.b16 %v2678
    %v3911 = vunpack.c.h.b16 %v2678
    %v3912 = vunpack.c.l.b16 %v2679
    %v3913 = vunpack.c.h.b16 %v2679
    %v3914 = vunpack.c.l.b16 %v2680
    %v3915 = vunpack.c.h.b16 %v2680
    %v3916 = vunpack.c.l.b16 %v2681
    %v3917 = vunpack.c.h.b16 %v2681
    %v3918 = vunpack.c.l.b16 %v2682
    %v3919 = vunpack.c.h.b16 %v2682
    %v3920 = vunpack.c.l.b16 %v2683
    %v3921 = vunpack.c.h.b16 %v2683
    %v3922 = vunpack.c.l.b16 %v2684
    %v3923 = vunpack.c.h.b16 %v2684
    %v3924 = vunpack.c.l.b16 %v2685
    %v3925 = vunpack.c.h.b16 %v2685
    %v3926 = vunpack.c.l.b16 %v2686
    %v3927 = vunpack.c.h.b16 %v2686
    %v3928 = vunpack.c.l.b16 %v2687
    %v3929 = vunpack.c.h.b16 %v2687
    %v3930 = vunpack.c.l.b16 %v2688
    %v3931 = vunpack.c.h.b16 %v2688
    %v3932 = vunpack.c.l.b16 %v2689
    %v3933 = vunpack.c.h.b16 %v2689
    %v3934 = vunpack.c.l.b16 %v2690
    %v3935 = vunpack.c.h.b16 %v2690
    %v3936 = vunpack.c.l.b16 %v2691
    %v3937 = vunpack.c.h.b16 %v2691
    %v3938 = vunpack.c.l.b16 %v2692
    %v3939 = vunpack.c.h.b16 %v2692
    %v3940 = vunpack.c.l.b16 %v2693
    %v3941 = vunpack.c.h.b16 %v2693
    %v3942 = vunpack.c.l.b16 %v2694
    %v3943 = vunpack.c.h.b16 %v2694
    %v3944 = vunpack.c.l.b16 %v2695
    %v3945 = vunpack.c.h.b16 %v2695
    %v3946 = vunpack.c.l.b16 %v2696
    %v3947 = vunpack.c.h.b16 %v2696
    %v3948 = vunpack.c.l.b16 %v2697
    %v3949 = vunpack.c.h.b16 %v2697
    %v3950 = vunpack.c.l.b16 %v2698
    %v3951 = vunpack.c.h.b16 %v2698
    %v3952 = vunpack.c.l.b16 %v2699
    %v3953 = vunpack.c.h.b16 %v2699
    %v3954 = vunpack.c.l.b16 %v2700
    %v3955 = vunpack.c.h.b16 %v2700
    %v3956 = vunpack.c.l.b16 %v2701
    %v3957 = vunpack.c.h.b16 %v2701
    %v3958 = vunpack.c.l.b16 %v2702
    %v3959 = vunpack.c.h.b16 %v2702
    %v3960 = vunpack.c.l.b16 %v2703
    %v3961 = vunpack.c.h.b16 %v2703
    %v3962 = vunpack.c.l.b16 %v2704
    %v3963 = vunpack.c.h.b16 %v2704
    %v3964 = vunpack.c.l.b16 %v2705
    %v3965 = vunpack.c.h.b16 %v2705
    %v3966 = vunpack.c.l.b16 %v2706
    %v3967 = vunpack.c.h.b16 %v2706
    %v3968 = vunpack.c.l.b16 %v2707
    %v3969 = vunpack.c.h.b16 %v2707
    %v3970 = vunpack.c.l.b16 %v2708
    %v3971 = vunpack.c.h.b16 %v2708
    %v3972 = vunpack.c.l.b16 %v2709
    %v3973 = vunpack.c.h.b16 %v2709
    %v3974 = vunpack.c.l.b16 %v2710
    %v3975 = vunpack.c.h.b16 %v2710
    %v3976 = vunpack.c.l.b16 %v2711
    %v3977 = vunpack.c.h.b16 %v2711
    %v3978 = vunpack.c.l.b16 %v2712
    %v3979 = vunpack.c.h.b16 %v2712
    %v3980 = vunpack.c.l.b16 %v2713
    %v3981 = vunpack.c.h.b16 %v2713
    %v3982 = vunpack.c.l.b16 %v2714
    %v3983 = vunpack.c.h.b16 %v2714
    %v3984 = vunpack.c.l.b16 %v2715
    %v3985 = vunpack.c.h.b16 %v2715
    %v3986 = vunpack.c.l.b16 %v2716
    %v3987 = vunpack.c.h.b16 %v2716
    %v3988 = vunpack.c.l.b16 %v2717
    %v3989 = vunpack.c.h.b16 %v2717
    %v3990 = vunpack.c.l.b16 %v2718
    %v3991 = vunpack.c.h.b16 %v2718
    %v3992 = vunpack.c.l.b16 %v2719
    %v3993 = vunpack.c.h.b16 %v2719
    %v3994 = vunpack.c.l.b16 %v2720
    %v3995 = vunpack.c.h.b16 %v2720
    %v3996 = vunpack.c.l.b16 %v2721
    %v3997 = vunpack.c.h.b16 %v2721
    %v3998 = vunpack.c.l.b16 %v2722
    %v3999 = vunpack.c.h.b16 %v2722
    %v4000 = vunpack.c.l.b16 %v2723
    %v4001 = vunpack.c.h.b16 %v2723
    %v4002 = vunpack.c.l.b16 %v2724
    %v4003 = vunpack.c.h.b16 %v2724
    %v4004 = vunpack.c.l.b16 %v2725
    %v4005 = vunpack.c.h.b16 %v2725
    %v4006 = vunpack.c.l.b16 %v2726
    %v4007 = vunpack.c.h.b16 %v2726
    %v4008 = vunpack.c.l.b16 %v2727
    %v4009 = vunpack.c.h.b16 %v2727
    %v4010 = vunpack.c.l.b16 %v2728
    %v4011 = vunpack.c.h.b16 %v2728
    %v4012 = vunpack.c.l.b16 %v2729
    %v4013 = vunpack.c.h.b16 %v2729
    %v4014 = vunpack.c.l.b16 %v2730
    %v4015 = vunpack.c.h.b16 %v2730
    %v4016 = vunpack.c.l.b16 %v2731
    %v4017 = vunpack.c.h.b16 %v2731
    %v4018 = vunpack.c.l.b16 %v2732
    %v4019 = vunpack.c.h.b16 %v2732
    %v4020 = vunpack.c.l.b16 %v2733
    %v4021 = vunpack.c.h.b16 %v2733
    %v4022 = vunpack.c.l.b16 %v2734
    %v4023 = vunpack.c.h.b16 %v2734
    %v4024 = vunpack.c.l.b16 %v2735
    %v4025 = vunpack.c.h.b16 %v2735
    %v4026 = vunpack.c.l.b16 %v2736
    %v4027 = vunpack.c.h.b16 %v2736
    %v4028 = vunpack.c.l.b16 %v2737
    %v4029 = vunpack.c.h.b16 %v2737
    %v4030 = vunpack.c.l.b16 %v2738
    %v4031 = vunpack.c.h.b16 %v2738
    %v4032 = vunpack.c.l.b16 %v2739
    %v4033 = vunpack.c.h.b16 %v2739
    %v4034 = vunpack.c.l.b16 %v2740
    %v4035 = vunpack.c.h.b16 %v2740
    %v4036 = vunpack.c.l.b16 %v2741
    %v4037 = vunpack.c.h.b16 %v2741
    %v4038 = vunpack.c.l.b16 %v2742
    %v4039 = vunpack.c.h.b16 %v2742
    %v4040 = vunpack.c.l.b16 %v2743
    %v4041 = vunpack.c.h.b16 %v2743
    %v4042 = vunpack.c.l.b16 %v2744
    %v4043 = vunpack.c.h.b16 %v2744
    %v4044 = vunpack.c.l.b16 %v2745
    %v4045 = vunpack.c.h.b16 %v2745
    %v4046 = vunpack.c.l.b16 %v2746
    %v4047 = vunpack.c.h.b16 %v2746
    %v4048 = vunpack.c.l.b16 %v2747
    %v4049 = vunpack.c.h.b16 %v2747
    %v4050 = vunpack.c.l.b16 %v2748
    %v4051 = vunpack.c.h.b16 %v2748
    %v4052 = vunpack.c.l.b16 %v2749
    %v4053 = vunpack.c.h.b16 %v2749
    %v4054 = vunpack.c.l.b16 %v2750
    %v4055 = vunpack.c.h.b16 %v2750
    %v4056 = vunpack.c.l.b16 %v2751
    %v4057 = vunpack.c.h.b16 %v2751
    %v4058 = vunpack.c.l.b16 %v2752
    %v4059 = vunpack.c.h.b16 %v2752
    %v4060 = vunpack.c.l.b16 %v2753
    %v4061 = vunpack.c.h.b16 %v2753
    %v4062 = vunpack.c.l.b16 %v2754
    %v4063 = vunpack.c.h.b16 %v2754
    %v4064 = vunpack.c.l.b16 %v2755
    %v4065 = vunpack.c.h.b16 %v2755
    %v4066 = vunpack.c.l.b16 %v2756
    %v4067 = vunpack.c.h.b16 %v2756
    %v4068 = vunpack.c.l.b16 %v2757
    %v4069 = vunpack.c.h.b16 %v2757
    %v4070 = vunpack.c.l.b16 %v2758
    %v4071 = vunpack.c.h.b16 %v2758
    %v4072 = vunpack.c.l.b16 %v2759
    %v4073 = vunpack.c.h.b16 %v2759
    %v4074 = vunpack.c.l.b16 %v2760
    %v4075 = vunpack.c.h.b16 %v2760
    %v4076 = vunpack.c.l.b16 %v2761
    %v4077 = vunpack.c.h.b16 %v2761
    %v4078 = vunpack.c.l.b16 %v2762
    %v4079 = vunpack.c.h.b16 %v2762
    %v4080 = vunpack.c.l.b16 %v2763
    %v4081 = vunpack.c.h.b16 %v2763
    %v4082 = vunpack.c.l.b16 %v2764
    %v4083 = vunpack.c.h.b16 %v2764
    %v4084 = vunpack.c.l.b16 %v2765
    %v4085 = vunpack.c.h.b16 %v2765
    %v4086 = vunpack.c.l.b16 %v2766
    %v4087 = vunpack.c.h.b16 %v2766
    %v4088 = vunpack.c.l.b16 %v2767
    %v4089 = vunpack.c.h.b16 %v2767
    %v4090 = vunpack.c.l.b16 %v2768
    %v4091 = vunpack.c.h.b16 %v2768
    %v4092 = vunpack.c.l.b16 %v2769
    %v4093 = vunpack.c.h.b16 %v2769
    %v4094 = vunpack.c.l.b16 %v2770
    %v4095 = vunpack.c.h.b16 %v2770
    %v4096 = vunpack.c.l.b16 %v2771
    %v4097 = vunpack.c.h.b16 %v2771
    %v4098 = vunpack.c.l.b16 %v2772
    %v4099 = vunpack.c.h.b16 %v2772
    %v4100 = vunpack.c.l.b16 %v2773
    %v4101 = vunpack.c.h.b16 %v2773
    %v4102 = vunpack.c.l.b16 %v2774
    %v4103 = vunpack.c.h.b16 %v2774
    %v4104 = vunpack.c.l.b16 %v2775
    %v4105 = vunpack.c.h.b16 %v2775
    %v4106 = vunpack.c.l.b16 %v2776
    %v4107 = vunpack.c.h.b16 %v2776
    %v4108 = vunpack.c.l.b16 %v2777
    %v4109 = vunpack.c.h.b16 %v2777
    %v4110 = vunpack.c.l.b16 %v2778
    %v4111 = vunpack.c.h.b16 %v2778
    %v4112 = vunpack.c.l.b16 %v2779
    %v4113 = vunpack.c.h.b16 %v2779
    %v4114 = vunpack.c.l.b16 %v2780
    %v4115 = vunpack.c.h.b16 %v2780
    %v4116 = vunpack.c.l.b16 %v2781
    %v4117 = vunpack.c.h.b16 %v2781
    %v4118 = vunpack.c.l.b16 %v2782
    %v4119 = vunpack.c.h.b16 %v2782
    %v4120 = vunpack.c.l.b16 %v2783
    %v4121 = vunpack.c.h.b16 %v2783
    %v4122 = vunpack.c.l.b16 %v2784
    %v4123 = vunpack.c.h.b16 %v2784
    %v4124 = vunpack.c.l.b16 %v2785
    %v4125 = vunpack.c.h.b16 %v2785
    %v4126 = vunpack.c.l.b16 %v2786
    %v4127 = vunpack.c.h.b16 %v2786
    %v4128 = vunpack.c.l.b16 %v2787
    %v4129 = vunpack.c.h.b16 %v2787
    %v4130 = vunpack.c.l.b16 %v2788
    %v4131 = vunpack.c.h.b16 %v2788
    %v4132 = vunpack.c.l.b16 %v2789
    %v4133 = vunpack.c.h.b16 %v2789
    %v4134 = vunpack.c.l.b16 %v2790
    %v4135 = vunpack.c.h.b16 %v2790
    %v4136 = vunpack.c.l.b16 %v2791
    %v4137 = vunpack.c.h.b16 %v2791
    %v4138 = vunpack.c.l.b16 %v2792
    %v4139 = vunpack.c.h.b16 %v2792
    %v4140 = vunpack.c.l.b16 %v2793
    %v4141 = vunpack.c.h.b16 %v2793
    %v4142 = vunpack.c.l.b16 %v2794
    %v4143 = vunpack.c.h.b16 %v2794
    %v4144 = vunpack.c.l.b16 %v2795
    %v4145 = vunpack.c.h.b16 %v2795
    %v4146 = vunpack.c.l.b16 %v2796
    %v4147 = vunpack.c.h.b16 %v2796
    %v4148 = vunpack.c.l.b16 %v2797
    %v4149 = vunpack.c.h.b16 %v2797
    %v4150 = vunpack.c.l.b16 %v2798
    %v4151 = vunpack.c.h.b16 %v2798
    %v4152 = vunpack.c.l.b16 %v2799
    %v4153 = vunpack.c.h.b16 %v2799
    %v4154 = vunpack.c.l.b16 %v2800
    %v4155 = vunpack.c.h.b16 %v2800
    %v4156 = vunpack.c.l.b16 %v2801
    %v4157 = vunpack.c.h.b16 %v2801
    %v4158 = vunpack.c.l.b16 %v2802
    %v4159 = vunpack.c.h.b16 %v2802
    %v4160 = vunpack.c.l.b16 %v2803
    %v4161 = vunpack.c.h.b16 %v2803
    %v4162 = vunpack.c.l.b16 %v2804
    %v4163 = vunpack.c.h.b16 %v2804
    %v4164 = vunpack.c.l.b16 %v2805
    %v4165 = vunpack.c.h.b16 %v2805
    %v4166 = vunpack.c.l.b16 %v2806
    %v4167 = vunpack.c.h.b16 %v2806
    %v4168 = vunpack.c.l.b16 %v2807
    %v4169 = vunpack.c.h.b16 %v2807
    %v4170 = vunpack.c.l.b16 %v2808
    %v4171 = vunpack.c.h.b16 %v2808
    %v4172 = vunpack.c.l.b16 %v2809
    %v4173 = vunpack.c.h.b16 %v2809
    %v4174 = vunpack.c.l.b16 %v2810
    %v4175 = vunpack.c.h.b16 %v2810
    %v4176 = vunpack.c.l.b16 %v2811
    %v4177 = vunpack.c.h.b16 %v2811
    %v4178 = vunpack.c.l.b16 %v2812
    %v4179 = vunpack.c.h.b16 %v2812
    %v4180 = vunpack.c.l.b16 %v2813
    %v4181 = vunpack.c.h.b16 %v2813
    %v4182 = vunpack.c.l.b16 %v2814
    %v4183 = vunpack.c.h.b16 %v2814
    %v4184 = vunpack.c.l.b16 %v2815
    %v4185 = vunpack.c.h.b16 %v2815
    %v4186 = vunpack.c.l.b16 %v2816
    %v4187 = vunpack.c.h.b16 %v2816
    %v4188 = vunpack.c.l.b16 %v2817
    %v4189 = vunpack.c.h.b16 %v2817
    %v4190 = vunpack.c.l.b16 %v2818
    %v4191 = vunpack.c.h.b16 %v2818
    %v4192 = vunpack.c.l.b16 %v2819
    %v4193 = vunpack.c.h.b16 %v2819
    %v4194 = vunpack.c.l.b16 %v2820
    %v4195 = vunpack.c.h.b16 %v2820
    %v4196 = vunpack.c.l.b16 %v2821
    %v4197 = vunpack.c.h.b16 %v2821
    %v4198 = vunpack.c.l.b16 %v2822
    %v4199 = vunpack.c.h.b16 %v2822
    %v4200 = vunpack.c.l.b16 %v2823
    %v4201 = vunpack.c.h.b16 %v2823
    %v4202 = vunpack.c.l.b16 %v2824
    %v4203 = vunpack.c.h.b16 %v2824
    %v4204 = vunpack.c.l.b16 %v2825
    %v4205 = vunpack.c.h.b16 %v2825
    %v4206 = vunpack.c.l.b16 %v2826
    %v4207 = vunpack.c.h.b16 %v2826
    %v4208 = vunpack.c.l.b16 %v2827
    %v4209 = vunpack.c.h.b16 %v2827
    %v4210 = vunpack.c.l.b16 %v2828
    %v4211 = vunpack.c.h.b16 %v2828
    %v4212 = vunpack.c.l.b16 %v2829
    %v4213 = vunpack.c.h.b16 %v2829
    %v4214 = vunpack.c.l.b16 %v2830
    %v4215 = vunpack.c.h.b16 %v2830
    %v4216 = vunpack.c.l.b16 %v2831
    %v4217 = vunpack.c.h.b16 %v2831
    %v4218 = vunpack.c.l.b16 %v2832
    %v4219 = vunpack.c.h.b16 %v2832
    %v4220 = vunpack.c.l.b16 %v2833
    %v4221 = vunpack.c.h.b16 %v2833
    %v4222 = vunpack.c.l.b16 %v2834
    %v4223 = vunpack.c.h.b16 %v2834
    %v4224 = vunpack.c.l.b16 %v2835
    %v4225 = vunpack.c.h.b16 %v2835
    %v4226 = vunpack.c.l.b16 %v2836
    %v4227 = vunpack.c.h.b16 %v2836
    %v4228 = vunpack.c.l.b16 %v2837
    %v4229 = vunpack.c.h.b16 %v2837
    %v4230 = vunpack.c.l.b16 %v2838
    %v4231 = vunpack.c.h.b16 %v2838
    %v4232 = vunpack.c.l.b16 %v2839
    %v4233 = vunpack.c.h.b16 %v2839
    %v4234 = vunpack.c.l.b16 %v2840
    %v4235 = vunpack.c.h.b16 %v2840
    %v4236 = vunpack.c.l.b16 %v2841
    %v4237 = vunpack.c.h.b16 %v2841
    %v4238 = vunpack.c.l.b16 %v2842
    %v4239 = vunpack.c.h.b16 %v2842
    %v4240 = vunpack.c.l.b16 %v2843
    %v4241 = vunpack.c.h.b16 %v2843
    %v4242 = vunpack.c.l.b16 %v2844
    %v4243 = vunpack.c.h.b16 %v2844
    %v4244 = vunpack.c.l.b16 %v2845
    %v4245 = vunpack.c.h.b16 %v2845
    %v4246 = vunpack.c.l.b16 %v2846
    %v4247 = vunpack.c.h.b16 %v2846
    %v4248 = vunpack.c.l.b16 %v2847
    %v4249 = vunpack.c.h.b16 %v2847
    %v4250 = vunpack.c.l.b16 %v2848
    %v4251 = vunpack.c.h.b16 %v2848
    %v4252 = vunpack.c.l.b16 %v2849
    %v4253 = vunpack.c.h.b16 %v2849
    %v4254 = vunpack.c.l.b16 %v2850
    %v4255 = vunpack.c.h.b16 %v2850
    %v4256 = vunpack.c.l.b16 %v2851
    %v4257 = vunpack.c.h.b16 %v2851
    %v4258 = vunpack.c.l.b16 %v2852
    %v4259 = vunpack.c.h.b16 %v2852
    %v4260 = vunpack.c.l.b16 %v2853
    %v4261 = vunpack.c.h.b16 %v2853
    %v4262 = vunpack.c.l.b16 %v2854
    %v4263 = vunpack.c.h.b16 %v2854
    %v4264 = vunpack.c.l.b16 %v2855
    %v4265 = vunpack.c.h.b16 %v2855
    %v4266 = vunpack.c.l.b16 %v2856
    %v4267 = vunpack.c.h.b16 %v2856
    %v4268 = vunpack.c.l.b16 %v2857
    %v4269 = vunpack.c.h.b16 %v2857
    %v4270 = vunpack.c.l.b16 %v2858
    %v4271 = vunpack.c.h.b16 %v2858
    %v4272 = vunpack.c.l.b16 %v2859
    %v4273 = vunpack.c.h.b16 %v2859
    %v4274 = vunpack.c.l.b16 %v2860
    %v4275 = vunpack.c.h.b16 %v2860
    %v4276 = vunpack.c.l.b16 %v2861
    %v4277 = vunpack.c.h.b16 %v2861
    %v4278 = vunpack.c.l.b16 %v2862
    %v4279 = vunpack.c.h.b16 %v2862
    %v4280 = vunpack.c.l.b16 %v2863
    %v4281 = vunpack.c.h.b16 %v2863
    %v4282 = vunpack.c.l.b16 %v2864
    %v4283 = vunpack.c.h.b16 %v2864
    %v4284 = vunpack.c.l.b16 %v2865
    %v4285 = vunpack.c.h.b16 %v2865
    %v4286 = vunpack.c.l.b16 %v2866
    %v4287 = vunpack.c.h.b16 %v2866
    %v4288 = vunpack.c.l.b16 %v2867
    %v4289 = vunpack.c.h.b16 %v2867
    %v4290 = vunpack.c.l.b16 %v2868
    %v4291 = vunpack.c.h.b16 %v2868
    %v4292 = vunpack.c.l.b16 %v2869
    %v4293 = vunpack.c.h.b16 %v2869
    %v4294 = vunpack.c.l.b16 %v2870
    %v4295 = vunpack.c.h.b16 %v2870
    %v4296 = vunpack.c.l.b16 %v2871
    %v4297 = vunpack.c.h.b16 %v2871
    %v4298 = vunpack.c.l.b16 %v2872
    %v4299 = vunpack.c.h.b16 %v2872
    %v4300 = vunpack.c.l.b16 %v2873
    %v4301 = vunpack.c.h.b16 %v2873
    %v4302 = vunpack.c.l.b16 %v2874
    %v4303 = vunpack.c.h.b16 %v2874
    %v4304 = vunpack.c.l.b16 %v2875
    %v4305 = vunpack.c.h.b16 %v2875
    %v4306 = vunpack.c.l.b16 %v2876
    %v4307 = vunpack.c.h.b16 %v2876
    %v4308 = vunpack.c.l.b16 %v2877
    %v4309 = vunpack.c.h.b16 %v2877
    %v4310 = vunpack.c.l.b16 %v2878
    %v4311 = vunpack.c.h.b16 %v2878
    %v4312 = vunpack.c.l.b16 %v2879
    %v4313 = vunpack.c.h.b16 %v2879
    %v4314 = vunpack.c.l.b16 %v2880
    %v4315 = vunpack.c.h.b16 %v2880
    %v4316 = vunpack.c.l.b16 %v2881
    %v4317 = vunpack.c.h.b16 %v2881
    %v4318 = vunpack.c.l.b16 %v2882
    %v4319 = vunpack.c.h.b16 %v2882
    %v4320 = vunpack.c.l.b16 %v2883
    %v4321 = vunpack.c.h.b16 %v2883
    %v4322 = vunpack.c.l.b16 %v2884
    %v4323 = vunpack.c.h.b16 %v2884
    %v4324 = vunpack.c.l.b16 %v2885
    %v4325 = vunpack.c.h.b16 %v2885
    %v4326 = vunpack.c.l.b16 %v2886
    %v4327 = vunpack.c.h.b16 %v2886
    %v4328 = vunpack.c.l.b16 %v2887
    %v4329 = vunpack.c.h.b16 %v2887
    %v4330 = vunpack.c.l.b16 %v2888
    %v4331 = vunpack.c.h.b16 %v2888
    %v4332 = vunpack.c.l.b16 %v2889
    %v4333 = vunpack.c.h.b16 %v2889
    %v4334 = vunpack.c.l.b16 %v2890
    %v4335 = vunpack.c.h.b16 %v2890
    %v4336 = vunpack.c.l.b16 %v2891
    %v4337 = vunpack.c.h.b16 %v2891
    %v4338 = vunpack.c.l.b16 %v2892
    %v4339 = vunpack.c.h.b16 %v2892
    %v4340 = vunpack.c.l.b16 %v2893
    %v4341 = vunpack.c.h.b16 %v2893
    %v4342 = vunpack.c.l.b16 %v2894
    %v4343 = vunpack.c.h.b16 %v2894
    %v4344 = vunpack.c.l.b16 %v2895
    %v4345 = vunpack.c.h.b16 %v2895
    %v4346 = vunpack.c.l.b16 %v2896
    %v4347 = vunpack.c.h.b16 %v2896
    %v4348 = vunpack.c.l.b16 %v2897
    %v4349 = vunpack.c.h.b16 %v2897
    %v4350 = vunpack.c.l.b16 %v2898
    %v4351 = vunpack.c.h.b16 %v2898
    %v4352 = vunpack.c.l.b16 %v2899
    %v4353 = vunpack.c.h.b16 %v2899
    %v4354 = vunpack.c.l.b16 %v2900
    %v4355 = vunpack.c.h.b16 %v2900
    %v4356 = vunpack.c.l.b16 %v2901
    %v4357 = vunpack.c.h.b16 %v2901
    %v4358 = vunpack.c.l.b16 %v2902
    %v4359 = vunpack.c.h.b16 %v2902
    %v4360 = vunpack.c.l.b16 %v2903
    %v4361 = vunpack.c.h.b16 %v2903
    %v4362 = vunpack.c.l.b16 %v2904
    %v4363 = vunpack.c.h.b16 %v2904
    %v4364 = vunpack.c.l.b16 %v2905
    %v4365 = vunpack.c.h.b16 %v2905
    %v4366 = vunpack.c.l.b16 %v2906
    %v4367 = vunpack.c.h.b16 %v2906
    %v4368 = vunpack.c.l.b16 %v2907
    %v4369 = vunpack.c.h.b16 %v2907
    %v4370 = vunpack.c.l.b16 %v2908
    %v4371 = vunpack.c.h.b16 %v2908
    %v4372 = vunpack.c.l.b16 %v2909
    %v4373 = vunpack.c.h.b16 %v2909
    %v4374 = vunpack.c.l.b16 %v2910
    %v4375 = vunpack.c.h.b16 %v2910
    %v4376 = vunpack.c.l.b16 %v2911
    %v4377 = vunpack.c.h.b16 %v2911
    %v4378 = vunpack.c.l.b16 %v2912
    %v4379 = vunpack.c.h.b16 %v2912
    %v4380 = vunpack.c.l.b16 %v2913
    %v4381 = vunpack.c.h.b16 %v2913
    %v4382 = vunpack.c.l.b16 %v2914
    %v4383 = vunpack.c.h.b16 %v2914
    %v4384 = vunpack.c.l.b16 %v2915
    %v4385 = vunpack.c.h.b16 %v2915
    %v4386 = vunpack.c.l.b16 %v2916
    %v4387 = vunpack.c.h.b16 %v2916
    %v4388 = vunpack.c.l.b16 %v2917
    %v4389 = vunpack.c.h.b16 %v2917
    %v4390 = vunpack.c.l.b16 %v2918
    %v4391 = vunpack.c.h.b16 %v2918
    %v4392 = vunpack.c.l.b16 %v2919
    %v4393 = vunpack.c.h.b16 %v2919
    %v4394 = vunpack.c.l.b16 %v2920
    %v4395 = vunpack.c.h.b16 %v2920
    %v4396 = vunpack.c.l.b16 %v2921
    %v4397 = vunpack.c.h.b16 %v2921
    %v4398 = vunpack.c.l.b16 %v2922
    %v4399 = vunpack.c.h.b16 %v2922
    %v4400 = vunpack.c.l.b16 %v2923
    %v4401 = vunpack.c.h.b16 %v2923
    %v4402 = vunpack.c.l.b16 %v2924
    %v4403 = vunpack.c.h.b16 %v2924
    %v4404 = vunpack.c.l.b16 %v2925
    %v4405 = vunpack.c.h.b16 %v2925
    %v4406 = vunpack.c.l.b16 %v2926
    %v4407 = vunpack.c.h.b16 %v2926
    %v4408 = vunpack.c.l.b16 %v2927
    %v4409 = vunpack.c.h.b16 %v2927
    %v4410 = vunpack.c.l.b16 %v2928
    %v4411 = vunpack.c.h.b16 %v2928
    %v4412 = vunpack.c.l.b16 %v2929
    %v4413 = vunpack.c.h.b16 %v2929
    %v4414 = vunpack.c.l.b16 %v2930
    %v4415 = vunpack.c.h.b16 %v2930
    %v4416 = vunpack.c.l.b16 %v2931
    %v4417 = vunpack.c.h.b16 %v2931
    %v4418 = vunpack.c.l.b16 %v2932
    %v4419 = vunpack.c.h.b16 %v2932
    %v4420 = vunpack.c.l.b16 %v2933
    %v4421 = vunpack.c.h.b16 %v2933
    %v4422 = vunpack.c.l.b16 %v2934
    %v4423 = vunpack.c.h.b16 %v2934
    %v4424 = vunpack.c.l.b16 %v2935
    %v4425 = vunpack.c.h.b16 %v2935
    %v4426 = vunpack.c.l.b16 %v2936
    %v4427 = vunpack.c.h.b16 %v2936
    %v4428 = vunpack.c.l.b16 %v2937
    %v4429 = vunpack.c.h.b16 %v2937
    %v4430 = vunpack.c.l.b16 %v2938
    %v4431 = vunpack.c.h.b16 %v2938
    %v4432 = vunpack.c.l.b16 %v2939
    %v4433 = vunpack.c.h.b16 %v2939
    %v4434 = vunpack.c.l.b16 %v2940
    %v4435 = vunpack.c.h.b16 %v2940
    %v4436 = vunpack.c.l.b16 %v2941
    %v4437 = vunpack.c.h.b16 %v2941
    %v4438 = vunpack.c.l.b16 %v2942
    %v4439 = vunpack.c.h.b16 %v2942
    %v4440 = vunpack.c.l.b16 %v2943
    %v4441 = vunpack.c.h.b16 %v2943
    %v4442 = vunpack.c.l.b16 %v2944
    %v4443 = vunpack.c.h.b16 %v2944
    %v4444 = vunpack.c.l.b16 %v2945
    %v4445 = vunpack.c.h.b16 %v2945
    %v4446 = vunpack.c.l.b16 %v2946
    %v4447 = vunpack.c.h.b16 %v2946
    %v4448 = vunpack.c.l.b16 %v2947
    %v4449 = vunpack.c.h.b16 %v2947
    %v4450 = vunpack.c.l.b16 %v2948
    %v4451 = vunpack.c.h.b16 %v2948
    %v4452 = vunpack.c.l.b16 %v2949
    %v4453 = vunpack.c.h.b16 %v2949
    %v4454 = vunpack.c.l.b16 %v2950
    %v4455 = vunpack.c.h.b16 %v2950
    %v4456 = vunpack.c.l.b16 %v2951
    %v4457 = vunpack.c.h.b16 %v2951
    %v4458 = vunpack.c.l.b16 %v2952
    %v4459 = vunpack.c.h.b16 %v2952
    %v4460 = vunpack.c.l.b16 %v2953
    %v4461 = vunpack.c.h.b16 %v2953
    %v4462 = vunpack.c.l.b16 %v2954
    %v4463 = vunpack.c.h.b16 %v2954
    %v4464 = vunpack.c.l.b16 %v2955
    %v4465 = vunpack.c.h.b16 %v2955
    %v4466 = vunpack.c.l.b16 %v2956
    %v4467 = vunpack.c.h.b16 %v2956
    %v4468 = vunpack.c.l.b16 %v2957
    %v4469 = vunpack.c.h.b16 %v2957
    %v4470 = vunpack.c.l.b16 %v2958
    %v4471 = vunpack.c.h.b16 %v2958
    %v4472 = vunpack.c.l.b16 %v2959
    %v4473 = vunpack.c.h.b16 %v2959
    %v4474 = vunpack.c.l.b16 %v2960
    %v4475 = vunpack.c.h.b16 %v2960
    %v4476 = vunpack.c.l.b16 %v2961
    %v4477 = vunpack.c.h.b16 %v2961
    %v4478 = vunpack.c.l.b16 %v2962
    %v4479 = vunpack.c.h.b16 %v2962
    %v4480 = vunpack.c.l.b16 %v2963
    %v4481 = vunpack.c.h.b16 %v2963
    %v4482 = vunpack.c.l.b16 %v2964
    %v4483 = vunpack.c.h.b16 %v2964
    %v4484 = vunpack.c.l.b16 %v2965
    %v4485 = vunpack.c.h.b16 %v2965
    %v4486 = vunpack.c.l.b16 %v2966
    %v4487 = vunpack.c.h.b16 %v2966
    %v4488 = vunpack.c.l.b16 %v2967
    %v4489 = vunpack.c.h.b16 %v2967
    %v4490 = vunpack.c.l.b16 %v2968
    %v4491 = vunpack.c.h.b16 %v2968
    %v4492 = vunpack.c.l.b16 %v2969
    %v4493 = vunpack.c.h.b16 %v2969
    %v4494 = vunpack.c.l.b16 %v2970
    %v4495 = vunpack.c.h.b16 %v2970
    %v4496 = vunpack.c.l.b16 %v2971
    %v4497 = vunpack.c.h.b16 %v2971
    %v4498 = vunpack.c.l.b16 %v2972
    %v4499 = vunpack.c.h.b16 %v2972
    %v4500 = vunpack.c.l.b16 %v2973
    %v4501 = vunpack.c.h.b16 %v2973
    %v4502 = vunpack.c.l.b16 %v2974
    %v4503 = vunpack.c.h.b16 %v2974
    %v4504 = vunpack.c.l.b16 %v2975
    %v4505 = vunpack.c.h.b16 %v2975
    %v4506 = vunpack.c.l.b16 %v2976
    %v4507 = vunpack.c.h.b16 %v2976
    %v4508 = vunpack.c.l.b16 %v2977
    %v4509 = vunpack.c.h.b16 %v2977
    %v4510 = vunpack.c.l.b16 %v2978
    %v4511 = vunpack.c.h.b16 %v2978
    %v4512 = vunpack.c.l.b16 %v2979
    %v4513 = vunpack.c.h.b16 %v2979
    %v4514 = vunpack.c.l.b16 %v2980
    %v4515 = vunpack.c.h.b16 %v2980
    %v4516 = vunpack.c.l.b16 %v2981
    %v4517 = vunpack.c.h.b16 %v2981
    %v4518 = vpack.c.b16 %v3502, %v3494
    %v4519 = vpack.c.b16 %v3503, %v3495
    %v4520 = vpack.c.b16 %v3504, %v3496
    %v4521 = vpack.c.b16 %v3505, %v3497
    %v4522 = vpack.c.b16 %v3506, %v3498
    %v4523 = vpack.c.b16 %v3507, %v3499
    %v4524 = vpack.c.b16 %v3508, %v3500
    %v4525 = vpack.c.b16 %v3509, %v3501
    %v4526 = vpack.c.b16 %v3518, %v3510
    %v4527 = vpack.c.b16 %v3519, %v3511
    %v4528 = vpack.c.b16 %v3520, %v3512
    %v4529 = vpack.c.b16 %v3521, %v3513
    %v4530 = vpack.c.b16 %v3522, %v3514
    %v4531 = vpack.c.b16 %v3523, %v3515
    %v4532 = vpack.c.b16 %v3524, %v3516
    %v4533 = vpack.c.b16 %v3525, %v3517
    %v4534 = vpack.c.b16 %v3534, %v3526
    %v4535 = vpack.c.b16 %v3535, %v3527
    %v4536 = vpack.c.b16 %v3536, %v3528
    %v4537 = vpack.c.b16 %v3537, %v3529
    %v4538 = vpack.c.b16 %v3538, %v3530
    %v4539 = vpack.c.b16 %v3539, %v3531
    %v4540 = vpack.c.b16 %v3540, %v3532
    %v4541 = vpack.c.b16 %v3541, %v3533
    %v4542 = vpack.c.b16 %v3550, %v3542
    %v4543 = vpack.c.b16 %v3551, %v3543
    %v4544 = vpack.c.b16 %v3552, %v3544
    %v4545 = vpack.c.b16 %v3553, %v3545
    %v4546 = vpack.c.b16 %v3554, %v3546
    %v4547 = vpack.c.b16 %v3555, %v3547
    %v4548 = vpack.c.b16 %v3556, %v3548
    %v4549 = vpack.c.b16 %v3557, %v3549
    %v4550 = vpack.c.b16 %v3566, %v3558
    %v4551 = vpack.c.b16 %v3567, %v3559
    %v4552 = vpack.c.b16 %v3568, %v3560
    %v4553 = vpack.c.b16 %v3569, %v3561
    %v4554 = vpack.c.b16 %v3570, %v3562
    %v4555 = vpack.c.b16 %v3571, %v3563
    %v4556 = vpack.c.b16 %v3572, %v3564
    %v4557 = vpack.c.b16 %v3573, %v3565
    %v4558 = vpack.c.b16 %v3582, %v3574
    %v4559 = vpack.c.b16 %v3583, %v3575
    %v4560 = vpack.c.b16 %v3584, %v3576
    %v4561 = vpack.c.b16 %v3585, %v3577
    %v4562 = vpack.c.b16 %v3586, %v3578
    %v4563 = vpack.c.b16 %v3587, %v3579
    %v4564 = vpack.c.b16 %v3588, %v3580
    %v4565 = vpack.c.b16 %v3589, %v3581
    %v4566 = vpack.c.b16 %v3598, %v3590
    %v4567 = vpack.c.b16 %v3599, %v3591
    %v4568 = vpack.c.b16 %v3600, %v3592
    %v4569 = vpack.c.b16 %v3601, %v3593
    %v4570 = vpack.c.b16 %v3602, %v3594
    %v4571 = vpack.c.b16 %v3603, %v3595
    %v4572 = vpack.c.b16 %v3604, %v3596
    %v4573 = vpack.c.b16 %v3605, %v3597
    %v4574 = vpack.c.b16 %v3614, %v3606
    %v4575 = vpack.c.b16 %v3615, %v3607
    %v4576 = vpack.c.b16 %v3616, %v3608
    %v4577 = vpack.c.b16 %v3617, %v3609
    %v4578 = vpack.c.b16 %v3618, %v3610
    %v4579 = vpack.c.b16 %v3619, %v3611
    %v4580 = vpack.c.b16 %v3620, %v3612
    %v4581 = vpack.c.b16 %v3621, %v3613
    %v4582 = vpack.c.b16 %v3630, %v3622
    %v4583 = vpack.c.b16 %v3631, %v3623
    %v4584 = vpack.c.b16 %v3632, %v3624
    %v4585 = vpack.c.b16 %v3633, %v3625
    %v4586 = vpack.c.b16 %v3634, %v3626
    %v4587 = vpack.c.b16 %v3635, %v3627
    %v4588 = vpack.c.b16 %v3636, %v3628
    %v4589 = vpack.c.b16 %v3637, %v3629
    %v4590 = vpack.c.b16 %v3646, %v3638
    %v4591 = vpack.c.b16 %v3647, %v3639
    %v4592 = vpack.c.b16 %v3648, %v3640
    %v4593 = vpack.c.b16 %v3649, %v3641
    %v4594 = vpack.c.b16 %v3650, %v3642
    %v4595 = vpack.c.b16 %v3651, %v3643
    %v4596 = vpack.c.b16 %v3652, %v3644
    %v4597 = vpack.c.b16 %v3653, %v3645
    %v4598 = vpack.c.b16 %v3662, %v3654
    %v4599 = vpack.c.b16 %v3663, %v3655
    %v4600 = vpack.c.b16 %v3664, %v3656
    %v4601 = vpack.c.b16 %v3665, %v3657
    %v4602 = vpack.c.b16 %v3666, %v3658
    %v4603 = vpack.c.b16 %v3667, %v3659
    %v4604 = vpack.c.b16 %v3668, %v3660
    %v4605 = vpack.c.b16 %v3669, %v3661
    %v4606 = vpack.c.b16 %v3678, %v3670
    %v4607 = vpack.c.b16 %v3679, %v3671
    %v4608 = vpack.c.b16 %v3680, %v3672
    %v4609 = vpack.c.b16 %v3681, %v3673
    %v4610 = vpack.c.b16 %v3682, %v3674
    %v4611 = vpack.c.b16 %v3683, %v3675
    %v4612 = vpack.c.b16 %v3684, %v3676
    %v4613 = vpack.c.b16 %v3685, %v3677
    %v4614 = vpack.c.b16 %v3694, %v3686
    %v4615 = vpack.c.b16 %v3695, %v3687
    %v4616 = vpack.c.b16 %v3696, %v3688
    %v4617 = vpack.c.b16 %v3697, %v3689
    %v4618 = vpack.c.b16 %v3698, %v3690
    %v4619 = vpack.c.b16 %v3699, %v3691
    %v4620 = vpack.c.b16 %v3700, %v3692
    %v4621 = vpack.c.b16 %v3701, %v3693
    %v4622 = vpack.c.b16 %v3710, %v3702
    %v4623 = vpack.c.b16 %v3711, %v3703
    %v4624 = vpack.c.b16 %v3712, %v3704
    %v4625 = vpack.c.b16 %v3713, %v3705
    %v4626 = vpack.c.b16 %v3714, %v3706
    %v4627 = vpack.c.b16 %v3715, %v3707
    %v4628 = vpack.c.b16 %v3716, %v3708
    %v4629 = vpack.c.b16 %v3717, %v3709
    %v4630 = vpack.c.b16 %v3726, %v3718
    %v4631 = vpack.c.b16 %v3727, %v3719
    %v4632 = vpack.c.b16 %v3728, %v3720
    %v4633 = vpack.c.b16 %v3729, %v3721
    %v4634 = vpack.c.b16 %v3730, %v3722
    %v4635 = vpack.c.b16 %v3731, %v3723
    %v4636 = vpack.c.b16 %v3732, %v3724
    %v4637 = vpack.c.b16 %v3733, %v3725
    %v4638 = vpack.c.b16 %v3742, %v3734
    %v4639 = vpack.c.b16 %v3743, %v3735
    %v4640 = vpack.c.b16 %v3744, %v3736
    %v4641 = vpack.c.b16 %v3745, %v3737
    %v4642 = vpack.c.b16 %v3746, %v3738
    %v4643 = vpack.c.b16 %v3747, %v3739
    %v4644 = vpack.c.b16 %v3748, %v3740
    %v4645 = vpack.c.b16 %v3749, %v3741
    %v4646 = vpack.c.b16 %v3758, %v3750
    %v4647 = vpack.c.b16 %v3759, %v3751
    %v4648 = vpack.c.b16 %v3760, %v3752
    %v4649 = vpack.c.b16 %v3761, %v3753
    %v4650 = vpack.c.b16 %v3762, %v3754
    %v4651 = vpack.c.b16 %v3763, %v3755
    %v4652 = vpack.c.b16 %v3764, %v3756
    %v4653 = vpack.c.b16 %v3765, %v3757
    %v4654 = vpack.c.b16 %v3774, %v3766
    %v4655 = vpack.c.b16 %v3775, %v3767
    %v4656 = vpack.c.b16 %v3776, %v3768
    %v4657 = vpack.c.b16 %v3777, %v3769
    %v4658 = vpack.c.b16 %v3778, %v3770
    %v4659 = vpack.c.b16 %v3779, %v3771
    %v4660 = vpack.c.b16 %v3780, %v3772
    %v4661 = vpack.c.b16 %v3781, %v3773
    %v4662 = vpack.c.b16 %v3790, %v3782
    %v4663 = vpack.c.b16 %v3791, %v3783
    %v4664 = vpack.c.b16 %v3792, %v3784
    %v4665 = vpack.c.b16 %v3793, %v3785
    %v4666 = vpack.c.b16 %v3794, %v3786
    %v4667 = vpack.c.b16 %v3795, %v3787
    %v4668 = vpack.c.b16 %v3796, %v3788
    %v4669 = vpack.c.b16 %v3797, %v3789
    %v4670 = vpack.c.b16 %v3806, %v3798
    %v4671 = vpack.c.b16 %v3807, %v3799
    %v4672 = vpack.c.b16 %v3808, %v3800
    %v4673 = vpack.c.b16 %v3809, %v3801
    %v4674 = vpack.c.b16 %v3810, %v3802
    %v4675 = vpack.c.b16 %v3811, %v3803
    %v4676 = vpack.c.b16 %v3812, %v3804
    %v4677 = vpack.c.b16 %v3813, %v3805
    %v4678 = vpack.c.b16 %v3822, %v3814
    %v4679 = vpack.c.b16 %v3823, %v3815
    %v4680 = vpack.c.b16 %v3824, %v3816
    %v4681 = vpack.c.b16 %v3825, %v3817
    %v4682 = vpack.c.b16 %v3826, %v3818
    %v4683 = vpack.c.b16 %v3827, %v3819
    %v4684 = vpack.c.b16 %v3828, %v3820
    %v4685 = vpack.c.b16 %v3829, %v3821
    %v4686 = vpack.c.b16 %v3838, %v3830
    %v4687 = vpack.c.b16 %v3839, %v3831
    %v4688 = vpack.c.b16 %v3840, %v3832
    %v4689 = vpack.c.b16 %v3841, %v3833
    %v4690 = vpack.c.b16 %v3842, %v3834
    %v4691 = vpack.c.b16 %v3843, %v3835
    %v4692 = vpack.c.b16 %v3844, %v3836
    %v4693 = vpack.c.b16 %v3845, %v3837
    %v4694 = vpack.c.b16 %v3854, %v3846
    %v4695 = vpack.c.b16 %v3855, %v3847
    %v4696 = vpack.c.b16 %v3856, %v3848
    %v4697 = vpack.c.b16 %v3857, %v3849
    %v4698 = vpack.c.b16 %v3858, %v3850
    %v4699 = vpack.c.b16 %v3859, %v3851
    %v4700 = vpack.c.b16 %v3860, %v3852
    %v4701 = vpack.c.b16 %v3861, %v3853
    %v4702 = vpack.c.b16 %v3870, %v3862
    %v4703 = vpack.c.b16 %v3871, %v3863
    %v4704 = vpack.c.b16 %v3872, %v3864
    %v4705 = vpack.c.b16 %v3873, %v3865
    %v4706 = vpack.c.b16 %v3874, %v3866
    %v4707 = vpack.c.b16 %v3875, %v3867
    %v4708 = vpack.c.b16 %v3876, %v3868
    %v4709 = vpack.c.b16 %v3877, %v3869
    %v4710 = vpack.c.b16 %v3886, %v3878
    %v4711 = vpack.c.b16 %v3887, %v3879
    %v4712 = vpack.c.b16 %v3888, %v3880
    %v4713 = vpack.c.b16 %v3889, %v3881
    %v4714 = vpack.c.b16 %v3890, %v3882
    %v4715 = vpack.c.b16 %v3891, %v3883
    %v4716 = vpack.c.b16 %v3892, %v3884
    %v4717 = vpack.c.b16 %v3893, %v3885
    %v4718 = vpack.c.b16 %v3902, %v3894
    %v4719 = vpack.c.b16 %v3903, %v3895
    %v4720 = vpack.c.b16 %v3904, %v3896
    %v4721 = vpack.c.b16 %v3905, %v3897
    %v4722 = vpack.c.b16 %v3906, %v3898
    %v4723 = vpack.c.b16 %v3907, %v3899
    %v4724 = vpack.c.b16 %v3908, %v3900
    %v4725 = vpack.c.b16 %v3909, %v3901
    %v4726 = vpack.c.b16 %v3918, %v3910
    %v4727 = vpack.c.b16 %v3919, %v3911
    %v4728 = vpack.c.b16 %v3920, %v3912
    %v4729 = vpack.c.b16 %v3921, %v3913
    %v4730 = vpack.c.b16 %v3922, %v3914
    %v4731 = vpack.c.b16 %v3923, %v3915
    %v4732 = vpack.c.b16 %v3924, %v3916
    %v4733 = vpack.c.b16 %v3925, %v3917
    %v4734 = vpack.c.b16 %v3934, %v3926
    %v4735 = vpack.c.b16 %v3935, %v3927
    %v4736 = vpack.c.b16 %v3936, %v3928
    %v4737 = vpack.c.b16 %v3937, %v3929
    %v4738 = vpack.c.b16 %v3938, %v3930
    %v4739 = vpack.c.b16 %v3939, %v3931
    %v4740 = vpack.c.b16 %v3940, %v3932
    %v4741 = vpack.c.b16 %v3941, %v3933
    %v4742 = vpack.c.b16 %v3950, %v3942
    %v4743 = vpack.c.b16 %v3951, %v3943
    %v4744 = vpack.c.b16 %v3952, %v3944
    %v4745 = vpack.c.b16 %v3953, %v3945
    %v4746 = vpack.c.b16 %v3954, %v3946
    %v4747 = vpack.c.b16 %v3955, %v3947
    %v4748 = vpack.c.b16 %v3956, %v3948
    %v4749 = vpack.c.b16 %v3957, %v3949
    %v4750 = vpack.c.b16 %v3966, %v3958
    %v4751 = vpack.c.b16 %v3967, %v3959
    %v4752 = vpack.c.b16 %v3968, %v3960
    %v4753 = vpack.c.b16 %v3969, %v3961
    %v4754 = vpack.c.b16 %v3970, %v3962
    %v4755 = vpack.c.b16 %v3971, %v3963
    %v4756 = vpack.c.b16 %v3972, %v3964
    %v4757 = vpack.c.b16 %v3973, %v3965
    %v4758 = vpack.c.b16 %v3982, %v3974
    %v4759 = vpack.c.b16 %v3983, %v3975
    %v4760 = vpack.c.b16 %v3984, %v3976
    %v4761 = vpack.c.b16 %v3985, %v3977
    %v4762 = vpack.c.b16 %v3986, %v3978
    %v4763 = vpack.c.b16 %v3987, %v3979
    %v4764 = vpack.c.b16 %v3988, %v3980
    %v4765 = vpack.c.b16 %v3989, %v3981
    %v4766 = vpack.c.b16 %v3998, %v3990
    %v4767 = vpack.c.b16 %v3999, %v3991
    %v4768 = vpack.c.b16 %v4000, %v3992
    %v4769 = vpack.c.b16 %v4001, %v3993
    %v4770 = vpack.c.b16 %v4002, %v3994
    %v4771 = vpack.c.b16 %v4003, %v3995
    %v4772 = vpack.c.b16 %v4004, %v3996
    %v4773 = vpack.c.b16 %v4005, %v3997
    %v4774 = vpack.c.b16 %v4014, %v4006
    %v4775 = vpack.c.b16 %v4015, %v4007
    %v4776 = vpack.c.b16 %v4016, %v4008
    %v4777 = vpack.c.b16 %v4017, %v4009
    %v4778 = vpack.c.b16 %v4018, %v4010
    %v4779 = vpack.c.b16 %v4019, %v4011
    %v4780 = vpack.c.b16 %v4020, %v4012
    %v4781 = vpack.c.b16 %v4021, %v4013
    %v4782 = vpack.c.b16 %v4030, %v4022
    %v4783 = vpack.c.b16 %v4031, %v4023
    %v4784 = vpack.c.b16 %v4032, %v4024
    %v4785 = vpack.c.b16 %v4033, %v4025
    %v4786 = vpack.c.b16 %v4034, %v4026
    %v4787 = vpack.c.b16 %v4035, %v4027
    %v4788 = vpack.c.b16 %v4036, %v4028
    %v4789 = vpack.c.b16 %v4037, %v4029
    %v4790 = vpack.c.b16 %v4046, %v4038
    %v4791 = vpack.c.b16 %v4047, %v4039
    %v4792 = vpack.c.b16 %v4048, %v4040
    %v4793 = vpack.c.b16 %v4049, %v4041
    %v4794 = vpack.c.b16 %v4050, %v4042
    %v4795 = vpack.c.b16 %v4051, %v4043
    %v4796 = vpack.c.b16 %v4052, %v4044
    %v4797 = vpack.c.b16 %v4053, %v4045
    %v4798 = vpack.c.b16 %v4062, %v4054
    %v4799 = vpack.c.b16 %v4063, %v4055
    %v4800 = vpack.c.b16 %v4064, %v4056
    %v4801 = vpack.c.b16 %v4065, %v4057
    %v4802 = vpack.c.b16 %v4066, %v4058
    %v4803 = vpack.c.b16 %v4067, %v4059
    %v4804 = vpack.c.b16 %v4068, %v4060
    %v4805 = vpack.c.b16 %v4069, %v4061
    %v4806 = vpack.c.b16 %v4078, %v4070
    %v4807 = vpack.c.b16 %v4079, %v4071
    %v4808 = vpack.c.b16 %v4080, %v4072
    %v4809 = vpack.c.b16 %v4081, %v4073
    %v4810 = vpack.c.b16 %v4082, %v4074
    %v4811 = vpack.c.b16 %v4083, %v4075
    %v4812 = vpack.c.b16 %v4084, %v4076
    %v4813 = vpack.c.b16 %v4085, %v4077
    %v4814 = vpack.c.b16 %v4094, %v4086
    %v4815 = vpack.c.b16 %v4095, %v4087
    %v4816 = vpack.c.b16 %v4096, %v4088
    %v4817 = vpack.c.b16 %v4097, %v4089
    %v4818 = vpack.c.b16 %v4098, %v4090
    %v4819 = vpack.c.b16 %v4099, %v4091
    %v4820 = vpack.c.b16 %v4100, %v4092
    %v4821 = vpack.c.b16 %v4101, %v4093
    %v4822 = vpack.c.b16 %v4110, %v4102
    %v4823 = vpack.c.b16 %v4111, %v4103
    %v4824 = vpack.c.b16 %v4112, %v4104
    %v4825 = vpack.c.b16 %v4113, %v4105
    %v4826 = vpack.c.b16 %v4114, %v4106
    %v4827 = vpack.c.b16 %v4115, %v4107
    %v4828 = vpack.c.b16 %v4116, %v4108
    %v4829 = vpack.c.b16 %v4117, %v4109
    %v4830 = vpack.c.b16 %v4126, %v4118
    %v4831 = vpack.c.b16 %v4127, %v4119
    %v4832 = vpack.c.b16 %v4128, %v4120
    %v4833 = vpack.c.b16 %v4129, %v4121
    %v4834 = vpack.c.b16 %v4130, %v4122
    %v4835 = vpack.c.b16 %v4131, %v4123
    %v4836 = vpack.c.b16 %v4132, %v4124
    %v4837 = vpack.c.b16 %v4133, %v4125
    %v4838 = vpack.c.b16 %v4142, %v4134
    %v4839 = vpack.c.b16 %v4143, %v4135
    %v4840 = vpack.c.b16 %v4144, %v4136
    %v4841 = vpack.c.b16 %v4145, %v4137
    %v4842 = vpack.c.b16 %v4146, %v4138
    %v4843 = vpack.c.b16 %v4147, %v4139
    %v4844 = vpack.c.b16 %v4148, %v4140
    %v4845 = vpack.c.b16 %v4149, %v4141
    %v4846 = vpack.c.b16 %v4158, %v4150
    %v4847 = vpack.c.b16 %v4159, %v4151
    %v4848 = vpack.c.b16 %v4160, %v4152
    %v4849 = vpack.c.b16 %v4161, %v4153
    %v4850 = vpack.c.b16 %v4162, %v4154
    %v4851 = vpack.c.b16 %v4163, %v4155
    %v4852 = vpack.c.b16 %v4164, %v4156
    %v4853 = vpack.c.b16 %v4165, %v4157
    %v4854 = vpack.c.b16 %v4174, %v4166
    %v4855 = vpack.c.b16 %v4175, %v4167
    %v4856 = vpack.c.b16 %v4176, %v4168
    %v4857 = vpack.c.b16 %v4177, %v4169
    %v4858 = vpack.c.b16 %v4178, %v4170
    %v4859 = vpack.c.b16 %v4179, %v4171
    %v4860 = vpack.c.b16 %v4180, %v4172
    %v4861 = vpack.c.b16 %v4181, %v4173
    %v4862 = vpack.c.b16 %v4190, %v4182
    %v4863 = vpack.c.b16 %v4191, %v4183
    %v4864 = vpack.c.b16 %v4192, %v4184
    %v4865 = vpack.c.b16 %v4193, %v4185
    %v4866 = vpack.c.b16 %v4194, %v4186
    %v4867 = vpack.c.b16 %v4195, %v4187
    %v4868 = vpack.c.b16 %v4196, %v4188
    %v4869 = vpack.c.b16 %v4197, %v4189
    %v4870 = vpack.c.b16 %v4206, %v4198
    %v4871 = vpack.c.b16 %v4207, %v4199
    %v4872 = vpack.c.b16 %v4208, %v4200
    %v4873 = vpack.c.b16 %v4209, %v4201
    %v4874 = vpack.c.b16 %v4210, %v4202
    %v4875 = vpack.c.b16 %v4211, %v4203
    %v4876 = vpack.c.b16 %v4212, %v4204
    %v4877 = vpack.c.b16 %v4213, %v4205
    %v4878 = vpack.c.b16 %v4222, %v4214
    %v4879 = vpack.c.b16 %v4223, %v4215
    %v4880 = vpack.c.b16 %v4224, %v4216
    %v4881 = vpack.c.b16 %v4225, %v4217
    %v4882 = vpack.c.b16 %v4226, %v4218
    %v4883 = vpack.c.b16 %v4227, %v4219
    %v4884 = vpack.c.b16 %v4228, %v4220
    %v4885 = vpack.c.b16 %v4229, %v4221
    %v4886 = vpack.c.b16 %v4238, %v4230
    %v4887 = vpack.c.b16 %v4239, %v4231
    %v4888 = vpack.c.b16 %v4240, %v4232
    %v4889 = vpack.c.b16 %v4241, %v4233
    %v4890 = vpack.c.b16 %v4242, %v4234
    %v4891 = vpack.c.b16 %v4243, %v4235
    %v4892 = vpack.c.b16 %v4244, %v4236
    %v4893 = vpack.c.b16 %v4245, %v4237
    %v4894 = vpack.c.b16 %v4254, %v4246
    %v4895 = vpack.c.b16 %v4255, %v4247
    %v4896 = vpack.c.b16 %v4256, %v4248
    %v4897 = vpack.c.b16 %v4257, %v4249
    %v4898 = vpack.c.b16 %v4258, %v4250
    %v4899 = vpack.c.b16 %v4259, %v4251
    %v4900 = vpack.c.b16 %v4260, %v4252
    %v4901 = vpack.c.b16 %v4261, %v4253
    %v4902 = vpack.c.b16 %v4270, %v4262
    %v4903 = vpack.c.b16 %v4271, %v4263
    %v4904 = vpack.c.b16 %v4272, %v4264
    %v4905 = vpack.c.b16 %v4273, %v4265
    %v4906 = vpack.c.b16 %v4274, %v4266
    %v4907 = vpack.c.b16 %v4275, %v4267
    %v4908 = vpack.c.b16 %v4276, %v4268
    %v4909 = vpack.c.b16 %v4277, %v4269
    %v4910 = vpack.c.b16 %v4286, %v4278
    %v4911 = vpack.c.b16 %v4287, %v4279
    %v4912 = vpack.c.b16 %v4288, %v4280
    %v4913 = vpack.c.b16 %v4289, %v4281
    %v4914 = vpack.c.b16 %v4290, %v4282
    %v4915 = vpack.c.b16 %v4291, %v4283
    %v4916 = vpack.c.b16 %v4292, %v4284
    %v4917 = vpack.c.b16 %v4293, %v4285
    %v4918 = vpack.c.b16 %v4302, %v4294
    %v4919 = vpack.c.b16 %v4303, %v4295
    %v4920 = vpack.c.b16 %v4304, %v4296
    %v4921 = vpack.c.b16 %v4305, %v4297
    %v4922 = vpack.c.b16 %v4306, %v4298
    %v4923 = vpack.c.b16 %v4307, %v4299
    %v4924 = vpack.c.b16 %v4308, %v4300
    %v4925 = vpack.c.b16 %v4309, %v4301
    %v4926 = vpack.c.b16 %v4318, %v4310
    %v4927 = vpack.c.b16 %v4319, %v4311
    %v4928 = vpack.c.b16 %v4320, %v4312
    %v4929 = vpack.c.b16 %v4321, %v4313
    %v4930 = vpack.c.b16 %v4322, %v4314
    %v4931 = vpack.c.b16 %v4323, %v4315
    %v4932 = vpack.c.b16 %v4324, %v4316
    %v4933 = vpack.c.b16 %v4325, %v4317
    %v4934 = vpack.c.b16 %v4334, %v4326
    %v4935 = vpack.c.b16 %v4335, %v4327
    %v4936 = vpack.c.b16 %v4336, %v4328
    %v4937 = vpack.c.b16 %v4337, %v4329
    %v4938 = vpack.c.b16 %v4338, %v4330
    %v4939 = vpack.c.b16 %v4339, %v4331
    %v4940 = vpack.c.b16 %v4340, %v4332
    %v4941 = vpack.c.b16 %v4341, %v4333
    %v4942 = vpack.c.b16 %v4350, %v4342
    %v4943 = vpack.c.b16 %v4351, %v4343
    %v4944 = vpack.c.b16 %v4352, %v4344
    %v4945 = vpack.c.b16 %v4353, %v4345
    %v4946 = vpack.c.b16 %v4354, %v4346
    %v4947 = vpack.c.b16 %v4355, %v4347
    %v4948 = vpack.c.b16 %v4356, %v4348
    %v4949 = vpack.c.b16 %v4357, %v4349
    %v4950 = vpack.c.b16 %v4366, %v4358
    %v4951 = vpack.c.b16 %v4367, %v4359
    %v4952 = vpack.c.b16 %v4368, %v4360
    %v4953 = vpack.c.b16 %v4369, %v4361
    %v4954 = vpack.c.b16 %v4370, %v4362
    %v4955 = vpack.c.b16 %v4371, %v4363
    %v4956 = vpack.c.b16 %v4372, %v4364
    %v4957 = vpack.c.b16 %v4373, %v4365
    %v4958 = vpack.c.b16 %v4382, %v4374
    %v4959 = vpack.c.b16 %v4383, %v4375
    %v4960 = vpack.c.b16 %v4384, %v4376
    %v4961 = vpack.c.b16 %v4385, %v4377
    %v4962 = vpack.c.b16 %v4386, %v4378
    %v4963 = vpack.c.b16 %v4387, %v4379
    %v4964 = vpack.c.b16 %v4388, %v4380
    %v4965 = vpack.c.b16 %v4389, %v4381
    %v4966 = vpack.c.b16 %v4398, %v4390
    %v4967 = vpack.c.b16 %v4399, %v4391
    %v4968 = vpack.c.b16 %v4400, %v4392
    %v4969 = vpack.c.b16 %v4401, %v4393
    %v4970 = vpack.c.b16 %v4402, %v4394
    %v4971 = vpack.c.b16 %v4403, %v4395
    %v4972 = vpack.c.b16 %v4404, %v4396
    %v4973 = vpack.c.b16 %v4405, %v4397
    %v4974 = vpack.c.b16 %v4414, %v4406
    %v4975 = vpack.c.b16 %v4415, %v4407
    %v4976 = vpack.c.b16 %v4416, %v4408
    %v4977 = vpack.c.b16 %v4417, %v4409
    %v4978 = vpack.c.b16 %v4418, %v4410
    %v4979 = vpack.c.b16 %v4419, %v4411
    %v4980 = vpack.c.b16 %v4420, %v4412
    %v4981 = vpack.c.b16 %v4421, %v4413
    %v4982 = vpack.c.b16 %v4430, %v4422
    %v4983 = vpack.c.b16 %v4431, %v4423
    %v4984 = vpack.c.b16 %v4432, %v4424
    %v4985 = vpack.c.b16 %v4433, %v4425
    %v4986 = vpack.c.b16 %v4434, %v4426
    %v4987 = vpack.c.b16 %v4435, %v4427
    %v4988 = vpack.c.b16 %v4436, %v4428
    %v4989 = vpack.c.b16 %v4437, %v4429
    %v4990 = vpack.c.b16 %v4446, %v4438
    %v4991 = vpack.c.b16 %v4447, %v4439
    %v4992 = vpack.c.b16 %v4448, %v4440
    %v4993 = vpack.c.b16 %v4449, %v4441
    %v4994 = vpack.c.b16 %v4450, %v4442
    %v4995 = vpack.c.b16 %v4451, %v4443
    %v4996 = vpack.c.b16 %v4452, %v4444
    %v4997 = vpack.c.b16 %v4453, %v4445
    %v4998 = vpack.c.b16 %v4462, %v4454
    %v4999 = vpack.c.b16 %v4463, %v4455
    %v5000 = vpack.c.b16 %v4464, %v4456
    %v5001 = vpack.c.b16 %v4465, %v4457
    %v5002 = vpack.c.b16 %v4466, %v4458
    %v5003 = vpack.c.b16 %v4467, %v4459
    %v5004 = vpack.c.b16 %v4468, %v4460
    %v5005 = vpack.c.b16 %v4469, %v4461
    %v5006 = vpack.c.b16 %v4478, %v4470
    %v5007 = vpack.c.b16 %v4479, %v4471
    %v5008 = vpack.c.b16 %v4480, %v4472
    %v5009 = vpack.c.b16 %v4481, %v4473
    %v5010 = vpack.c.b16 %v4482, %v4474
    %v5011 = vpack.c.b16 %v4483, %v4475
    %v5012 = vpack.c.b16 %v4484, %v4476
    %v5013 = vpack.c.b16 %v4485, %v4477
    %v5014 = vpack.c.b16 %v4494, %v4486
    %v5015 = vpack.c.b16 %v4495, %v4487
    %v5016 = vpack.c.b16 %v4496, %v4488
    %v5017 = vpack.c.b16 %v4497, %v4489
    %v5018 = vpack.c.b16 %v4498, %v4490
    %v5019 = vpack.c.b16 %v4499, %v4491
    %v5020 = vpack.c.b16 %v4500, %v4492
    %v5021 = vpack.c.b16 %v4501, %v4493
    %v5022 = vpack.c.b16 %v4510, %v4502
    %v5023 = vpack.c.b16 %v4511, %v4503
    %v5024 = vpack.c.b16 %v4512, %v4504
    %v5025 = vpack.c.b16 %v4513, %v4505
    %v5026 = vpack.c.b16 %v4514, %v4506
    %v5027 = vpack.c.b16 %v4515, %v4507
    %v5028 = vpack.c.b16 %v4516, %v4508
    %v5029 = vpack.c.b16 %v4517, %v4509
    %5542 = vmatprep.subr.bf16.mxu0 %v4519
    %5543 = vmatpush1.bf16.msra.mxu0 %v4518
    %5544 = vmatprep.subr.bf16.mxu0 %v4527
    %5545 = vmatpush1.bf16.msra.mxu0 %v4526
    %5546 = vmatprep.subr.bf16.mxu0 %v4535
    %5547 = vmatpush1.bf16.msra.mxu0 %v4534
    %5548 = vmatprep.subr.bf16.mxu0 %v4543
    %5549 = vmatpush1.bf16.msra.mxu0 %v4542
    %5550 = vmatprep.subr.bf16.mxu0 %v4551
    %5551 = vmatpush1.bf16.msra.mxu0 %v4550
    %5552 = vmatprep.subr.bf16.mxu0 %v4559
    %5553 = vmatpush1.bf16.msra.mxu0 %v4558
    %5554 = vmatprep.subr.bf16.mxu0 %v4567
    %5555 = vmatpush1.bf16.msra.mxu0 %v4566
    %5556 = vmatprep.subr.bf16.mxu0 %v4575
    %5557 = vmatpush1.bf16.msra.mxu0 %v4574
    %5558 = vmatprep.subr.bf16.mxu0 %v4583
    %5559 = vmatpush1.bf16.msra.mxu0 %v4582
    %5560 = vmatprep.subr.bf16.mxu0 %v4591
    %5561 = vmatpush1.bf16.msra.mxu0 %v4590
    %5562 = vmatprep.subr.bf16.mxu0 %v4599
    %5563 = vmatpush1.bf16.msra.mxu0 %v4598
    %5564 = vmatprep.subr.bf16.mxu0 %v4607
    %5565 = vmatpush1.bf16.msra.mxu0 %v4606
    %5566 = vmatprep.subr.bf16.mxu0 %v4615
    %5567 = vmatpush1.bf16.msra.mxu0 %v4614
    %5568 = vmatprep.subr.bf16.mxu0 %v4623
    %5569 = vmatpush1.bf16.msra.mxu0 %v4622
    %5570 = vmatprep.subr.bf16.mxu0 %v4631
    %5571 = vmatpush1.bf16.msra.mxu0 %v4630
    %5572 = vmatprep.subr.bf16.mxu0 %v4639
    %5573 = vmatpush1.bf16.msra.mxu0 %v4638
    %5574 = vmatprep.mubr.bf16.mxu0 %v2463
    %5575 = vmatmul.mubr.bf16.gmra.mrb[0].mxu0 %v2462
    %v5576 = vpop.f32.mrb[0].mxu0
    %v5577 = vadd.f32 0.0, %v5576
    %v5578 = vpop.f32.mrb[0].mxu0
    %v5579 = vadd.f32 0.0, %v5578
    %v5580 = vpop.f32.mrb[0].mxu0
    %v5581 = vpop.f32.mrb[0].mxu0
    %5582 = vdwg.mxu0
    %5583 = vmatprep.subr.bf16.mxu0 %v4647
    %5584 = vmatpush1.bf16.msra.mxu0 %v4646
    %5585 = vmatprep.subr.bf16.mxu0 %v4655
    %5586 = vmatpush1.bf16.msra.mxu0 %v4654
    %5587 = vmatprep.subr.bf16.mxu0 %v4663
    %5588 = vmatpush1.bf16.msra.mxu0 %v4662
    %5589 = vmatprep.subr.bf16.mxu0 %v4671
    %5590 = vmatpush1.bf16.msra.mxu0 %v4670
    %5591 = vmatprep.subr.bf16.mxu0 %v4679
    %5592 = vmatpush1.bf16.msra.mxu0 %v4678
    %5593 = vmatprep.subr.bf16.mxu0 %v4687
    %5594 = vmatpush1.bf16.msra.mxu0 %v4686
    %5595 = vmatprep.subr.bf16.mxu0 %v4695
    %5596 = vmatpush1.bf16.msra.mxu0 %v4694
    %5597 = vmatprep.subr.bf16.mxu0 %v4703
    %5598 = vmatpush1.bf16.msra.mxu0 %v4702
    %5599 = vmatprep.subr.bf16.mxu0 %v4711
    %5600 = vmatpush1.bf16.msra.mxu0 %v4710
    %5601 = vmatprep.subr.bf16.mxu0 %v4719
    %5602 = vmatpush1.bf16.msra.mxu0 %v4718
    %5603 = vmatprep.subr.bf16.mxu0 %v4727
    %5604 = vmatpush1.bf16.msra.mxu0 %v4726
    %5605 = vmatprep.subr.bf16.mxu0 %v4735
    %5606 = vmatpush1.bf16.msra.mxu0 %v4734
    %5607 = vmatprep.subr.bf16.mxu0 %v4743
    %5608 = vmatpush1.bf16.msra.mxu0 %v4742
    %5609 = vmatprep.subr.bf16.mxu0 %v4751
    %5610 = vmatpush1.bf16.msra.mxu0 %v4750
    %5611 = vmatprep.subr.bf16.mxu0 %v4759
    %5612 = vmatpush1.bf16.msra.mxu0 %v4758
    %5613 = vmatprep.subr.bf16.mxu0 %v4767
    %5614 = vmatpush1.bf16.msra.mxu0 %v4766
    %5615 = vmatprep.mubr.bf16.mxu0 %v2465
    %5616 = vmatmul.mubr.bf16.gmra.mrb[0].mxu0 %v2464
    %v5617 = vpop.f32.mrb[0].mxu0
    %v5618 = vadd.f32 %v5577, %v5617
    %v5619 = vpop.f32.mrb[0].mxu0
    %v5620 = vadd.f32 %v5579, %v5619
    %v5621 = vpop.f32.mrb[0].mxu0
    %v5622 = vpop.f32.mrb[0].mxu0
    %5623 = vdwg.mxu0
    %5624 = vmatprep.subr.bf16.mxu0 %v4775
    %5625 = vmatpush1.bf16.msra.mxu0 %v4774
    %5626 = vmatprep.subr.bf16.mxu0 %v4783
    %5627 = vmatpush1.bf16.msra.mxu0 %v4782
    %5628 = vmatprep.subr.bf16.mxu0 %v4791
    %5629 = vmatpush1.bf16.msra.mxu0 %v4790
    %5630 = vmatprep.subr.bf16.mxu0 %v4799
    %5631 = vmatpush1.bf16.msra.mxu0 %v4798
    %5632 = vmatprep.subr.bf16.mxu0 %v4807
    %5633 = vmatpush1.bf16.msra.mxu0 %v4806
    %5634 = vmatprep.subr.bf16.mxu0 %v4815
    %5635 = vmatpush1.bf16.msra.mxu0 %v4814
    %5636 = vmatprep.subr.bf16.mxu0 %v4823
    %5637 = vmatpush1.bf16.msra.mxu0 %v4822
    %5638 = vmatprep.subr.bf16.mxu0 %v4831
    %5639 = vmatpush1.bf16.msra.mxu0 %v4830
    %5640 = vmatprep.subr.bf16.mxu0 %v4839
    %5641 = vmatpush1.bf16.msra.mxu0 %v4838
    %5642 = vmatprep.subr.bf16.mxu0 %v4847
    %5643 = vmatpush1.bf16.msra.mxu0 %v4846
    %5644 = vmatprep.subr.bf16.mxu0 %v4855
    %5645 = vmatpush1.bf16.msra.mxu0 %v4854
    %5646 = vmatprep.subr.bf16.mxu0 %v4863
    %5647 = vmatpush1.bf16.msra.mxu0 %v4862
    %5648 = vmatprep.subr.bf16.mxu0 %v4871
    %5649 = vmatpush1.bf16.msra.mxu0 %v4870
    %5650 = vmatprep.subr.bf16.mxu0 %v4879
    %5651 = vmatpush1.bf16.msra.mxu0 %v4878
    %5652 = vmatprep.subr.bf16.mxu0 %v4887
    %5653 = vmatpush1.bf16.msra.mxu0 %v4886
    %5654 = vmatprep.subr.bf16.mxu0 %v4895
    %5655 = vmatpush1.bf16.msra.mxu0 %v4894
    %5656 = vmatprep.mubr.bf16.mxu0 %v2467
    %5657 = vmatmul.mubr.bf16.gmra.mrb[0].mxu0 %v2466
    %v5658 = vpop.f32.mrb[0].mxu0
    %v5659 = vadd.f32 %v5618, %v5658
    %v5660 = vpop.f32.mrb[0].mxu0
    %v5661 = vadd.f32 %v5620, %v5660
    %v5662 = vpop.f32.mrb[0].mxu0
    %v5663 = vpop.f32.mrb[0].mxu0
    %5664 = vdwg.mxu0
    %5665 = vmatprep.subr.bf16.mxu0 %v4903
    %5666 = vmatpush1.bf16.msra.mxu0 %v4902
    %5667 = vmatprep.subr.bf16.mxu0 %v4911
    %5668 = vmatpush1.bf16.msra.mxu0 %v4910
    %5669 = vmatprep.subr.bf16.mxu0 %v4919
    %5670 = vmatpush1.bf16.msra.mxu0 %v4918
    %5671 = vmatprep.subr.bf16.mxu0 %v4927
    %5672 = vmatpush1.bf16.msra.mxu0 %v4926
    %5673 = vmatprep.subr.bf16.mxu0 %v4935
    %5674 = vmatpush1.bf16.msra.mxu0 %v4934
    %5675 = vmatprep.subr.bf16.mxu0 %v4943
    %5676 = vmatpush1.bf16.msra.mxu0 %v4942
    %5677 = vmatprep.subr.bf16.mxu0 %v4951
    %5678 = vmatpush1.bf16.msra.mxu0 %v4950
    %5679 = vmatprep.subr.bf16.mxu0 %v4959
    %5680 = vmatpush1.bf16.msra.mxu0 %v4958
    %5681 = vmatprep.subr.bf16.mxu0 %v4967
    %5682 = vmatpush1.bf16.msra.mxu0 %v4966
    %5683 = vmatprep.subr.bf16.mxu0 %v4975
    %5684 = vmatpush1.bf16.msra.mxu0 %v4974
    %5685 = vmatprep.subr.bf16.mxu0 %v4983
    %5686 = vmatpush1.bf16.msra.mxu0 %v4982
    %5687 = vmatprep.subr.bf16.mxu0 %v4991
    %5688 = vmatpush1.bf16.msra.mxu0 %v4990
    %5689 = vmatprep.subr.bf16.mxu0 %v4999
    %5690 = vmatpush1.bf16.msra.mxu0 %v4998
    %5691 = vmatprep.subr.bf16.mxu0 %v5007
    %5692 = vmatpush1.bf16.msra.mxu0 %v5006
    %5693 = vmatprep.subr.bf16.mxu0 %v5015
    %5694 = vmatpush1.bf16.msra.mxu0 %v5014
    %5695 = vmatprep.subr.bf16.mxu0 %v5023
    %5696 = vmatpush1.bf16.msra.mxu0 %v5022
    %5697 = vmatprep.mubr.bf16.mxu0 %v2469
    %5698 = vmatmul.mubr.bf16.gmra.mrb[0].mxu0 %v2468
    %v5699 = vpop.f32.mrb[0].mxu0
    %v5700 = vadd.f32 %v5659, %v5699
    %v5701 = vpop.f32.mrb[0].mxu0
    %v5702 = vadd.f32 %v5661, %v5701
    %v5703 = vpop.f32.mrb[0].mxu0
    %v5704 = vpop.f32.mrb[0].mxu0
    %5705 = vdwg.mxu0
    %5706 = vmatprep.subr.bf16.mxu0 %v4521
    %5707 = vmatpush1.bf16.msra.mxu0 %v4520
    %5708 = vmatprep.subr.bf16.mxu0 %v4529
    %5709 = vmatpush1.bf16.msra.mxu0 %v4528
    %5710 = vmatprep.subr.bf16.mxu0 %v4537
    %5711 = vmatpush1.bf16.msra.mxu0 %v4536
    %5712 = vmatprep.subr.bf16.mxu0 %v4545
    %5713 = vmatpush1.bf16.msra.mxu0 %v4544
    %5714 = vmatprep.subr.bf16.mxu0 %v4553
    %5715 = vmatpush1.bf16.msra.mxu0 %v4552
    %5716 = vmatprep.subr.bf16.mxu0 %v4561
    %5717 = vmatpush1.bf16.msra.mxu0 %v4560
    %5718 = vmatprep.subr.bf16.mxu0 %v4569
    %5719 = vmatpush1.bf16.msra.mxu0 %v4568
    %5720 = vmatprep.subr.bf16.mxu0 %v4577
    %5721 = vmatpush1.bf16.msra.mxu0 %v4576
    %5722 = vmatprep.subr.bf16.mxu0 %v4585
    %5723 = vmatpush1.bf16.msra.mxu0 %v4584
    %5724 = vmatprep.subr.bf16.mxu0 %v4593
    %5725 = vmatpush1.bf16.msra.mxu0 %v4592
    %5726 = vmatprep.subr.bf16.mxu0 %v4601
    %5727 = vmatpush1.bf16.msra.mxu0 %v4600
    %5728 = vmatprep.subr.bf16.mxu0 %v4609
    %5729 = vmatpush1.bf16.msra.mxu0 %v4608
    %5730 = vmatprep.subr.bf16.mxu0 %v4617
    %5731 = vmatpush1.bf16.msra.mxu0 %v4616
    %5732 = vmatprep.subr.bf16.mxu0 %v4625
    %5733 = vmatpush1.bf16.msra.mxu0 %v4624
    %5734 = vmatprep.subr.bf16.mxu0 %v4633
    %5735 = vmatpush1.bf16.msra.mxu0 %v4632
    %5736 = vmatprep.subr.bf16.mxu0 %v4641
    %5737 = vmatpush1.bf16.msra.mxu0 %v4640
    %5738 = vmatprep.mubr.bf16.mxu0 %v2463
    %5739 = vmatmul.mubr.bf16.gmra.mrb[0].mxu0 %v2462
    %v5740 = vpop.f32.mrb[0].mxu0
    %v5741 = vadd.f32 0.0, %v5740
    %v5742 = vpop.f32.mrb[0].mxu0
    %v5743 = vadd.f32 0.0, %v5742
    %v5744 = vpop.f32.mrb[0].mxu0
    %v5745 = vpop.f32.mrb[0].mxu0
    %5746 = vdwg.mxu0
    %5747 = vmatprep.subr.bf16.mxu0 %v4649
    %5748 = vmatpush1.bf16.msra.mxu0 %v4648
    %5749 = vmatprep.subr.bf16.mxu0 %v4657
    %5750 = vmatpush1.bf16.msra.mxu0 %v4656
    %5751 = vmatprep.subr.bf16.mxu0 %v4665
    %5752 = vmatpush1.bf16.msra.mxu0 %v4664
    %5753 = vmatprep.subr.bf16.mxu0 %v4673
    %5754 = vmatpush1.bf16.msra.mxu0 %v4672
    %5755 = vmatprep.subr.bf16.mxu0 %v4681
    %5756 = vmatpush1.bf16.msra.mxu0 %v4680
    %5757 = vmatprep.subr.bf16.mxu0 %v4689
    %5758 = vmatpush1.bf16.msra.mxu0 %v4688
    %5759 = vmatprep.subr.bf16.mxu0 %v4697
    %5760 = vmatpush1.bf16.msra.mxu0 %v4696
    %5761 = vmatprep.subr.bf16.mxu0 %v4705
    %5762 = vmatpush1.bf16.msra.mxu0 %v4704
    %5763 = vmatprep.subr.bf16.mxu0 %v4713
    %5764 = vmatpush1.bf16.msra.mxu0 %v4712
    %5765 = vmatprep.subr.bf16.mxu0 %v4721
    %5766 = vmatpush1.bf16.msra.mxu0 %v4720
    %5767 = vmatprep.subr.bf16.mxu0 %v4729
    %5768 = vmatpush1.bf16.msra.mxu0 %v4728
    %5769 = vmatprep.subr.bf16.mxu0 %v4737
    %5770 = vmatpush1.bf16.msra.mxu0 %v4736
    %5771 = vmatprep.subr.bf16.mxu0 %v4745
    %5772 = vmatpush1.bf16.msra.mxu0 %v4744
    %5773 = vmatprep.subr.bf16.mxu0 %v4753
    %5774 = vmatpush1.bf16.msra.mxu0 %v4752
    %5775 = vmatprep.subr.bf16.mxu0 %v4761
    %5776 = vmatpush1.bf16.msra.mxu0 %v4760
    %5777 = vmatprep.subr.bf16.mxu0 %v4769
    %5778 = vmatpush1.bf16.msra.mxu0 %v4768
    %5779 = vmatprep.mubr.bf16.mxu0 %v2465
    %5780 = vmatmul.mubr.bf16.gmra.mrb[0].mxu0 %v2464
    %v5781 = vpop.f32.mrb[0].mxu0
    %v5782 = vadd.f32 %v5741, %v5781
    %v5783 = vpop.f32.mrb[0].mxu0
    %v5784 = vadd.f32 %v5743, %v5783
    %v5785 = vpop.f32.mrb[0].mxu0
    %v5786 = vpop.f32.mrb[0].mxu0
    %5787 = vdwg.mxu0
    %5788 = vmatprep.subr.bf16.mxu0 %v4777
    %5789 = vmatpush1.bf16.msra.mxu0 %v4776
    %5790 = vmatprep.subr.bf16.mxu0 %v4785
    %5791 = vmatpush1.bf16.msra.mxu0 %v4784
    %5792 = vmatprep.subr.bf16.mxu0 %v4793
    %5793 = vmatpush1.bf16.msra.mxu0 %v4792
    %5794 = vmatprep.subr.bf16.mxu0 %v4801
    %5795 = vmatpush1.bf16.msra.mxu0 %v4800
    %5796 = vmatprep.subr.bf16.mxu0 %v4809
    %5797 = vmatpush1.bf16.msra.mxu0 %v4808
    %5798 = vmatprep.subr.bf16.mxu0 %v4817
    %5799 = vmatpush1.bf16.msra.mxu0 %v4816
    %5800 = vmatprep.subr.bf16.mxu0 %v4825
    %5801 = vmatpush1.bf16.msra.mxu0 %v4824
    %5802 = vmatprep.subr.bf16.mxu0 %v4833
    %5803 = vmatpush1.bf16.msra.mxu0 %v4832
    %5804 = vmatprep.subr.bf16.mxu0 %v4841
    %5805 = vmatpush1.bf16.msra.mxu0 %v4840
    %5806 = vmatprep.subr.bf16.mxu0 %v4849
    %5807 = vmatpush1.bf16.msra.mxu0 %v4848
    %5808 = vmatprep.subr.bf16.mxu0 %v4857
    %5809 = vmatpush1.bf16.msra.mxu0 %v4856
    %5810 = vmatprep.subr.bf16.mxu0 %v4865
    %5811 = vmatpush1.bf16.msra.mxu0 %v4864
    %5812 = vmatprep.subr.bf16.mxu0 %v4873
    %5813 = vmatpush1.bf16.msra.mxu0 %v4872
    %5814 = vmatprep.subr.bf16.mxu0 %v4881
    %5815 = vmatpush1.bf16.msra.mxu0 %v4880
    %5816 = vmatprep.subr.bf16.mxu0 %v4889
    %5817 = vmatpush1.bf16.msra.mxu0 %v4888
    %5818 = vmatprep.subr.bf16.mxu0 %v4897
    %5819 = vmatpush1.bf16.msra.mxu0 %v4896
    %5820 = vmatprep.mubr.bf16.mxu0 %v2467
    %5821 = vmatmul.mubr.bf16.gmra.mrb[0].mxu0 %v2466
    %v5822 = vpop.f32.mrb[0].mxu0
    %v5823 = vadd.f32 %v5782, %v5822
    %v5824 = vpop.f32.mrb[0].mxu0
    %v5825 = vadd.f32 %v5784, %v5824
    %v5826 = vpop.f32.mrb[0].mxu0
    %v5827 = vpop.f32.mrb[0].mxu0
    %5828 = vdwg.mxu0
    %5829 = vmatprep.subr.bf16.mxu0 %v4905
    %5830 = vmatpush1.bf16.msra.mxu0 %v4904
    %5831 = vmatprep.subr.bf16.mxu0 %v4913
    %5832 = vmatpush1.bf16.msra.mxu0 %v4912
    %5833 = vmatprep.subr.bf16.mxu0 %v4921
    %5834 = vmatpush1.bf16.msra.mxu0 %v4920
    %5835 = vmatprep.subr.bf16.mxu0 %v4929
    %5836 = vmatpush1.bf16.msra.mxu0 %v4928
    %5837 = vmatprep.subr.bf16.mxu0 %v4937
    %5838 = vmatpush1.bf16.msra.mxu0 %v4936
    %5839 = vmatprep.subr.bf16.mxu0 %v4945
    %5840 = vmatpush1.bf16.msra.mxu0 %v4944
    %5841 = vmatprep.subr.bf16.mxu0 %v4953
    %5842 = vmatpush1.bf16.msra.mxu0 %v4952
    %5843 = vmatprep.subr.bf16.mxu0 %v4961
    %5844 = vmatpush1.bf16.msra.mxu0 %v4960
    %5845 = vmatprep.subr.bf16.mxu0 %v4969
    %5846 = vmatpush1.bf16.msra.mxu0 %v4968
    %5847 = vmatprep.subr.bf16.mxu0 %v4977
    %5848 = vmatpush1.bf16.msra.mxu0 %v4976
    %5849 = vmatprep.subr.bf16.mxu0 %v4985
    %5850 = vmatpush1.bf16.msra.mxu0 %v4984
    %5851 = vmatprep.subr.bf16.mxu0 %v4993
    %5852 = vmatpush1.bf16.msra.mxu0 %v4992
    %5853 = vmatprep.subr.bf16.mxu0 %v5001
    %5854 = vmatpush1.bf16.msra.mxu0 %v5000
    %5855 = vmatprep.subr.bf16.mxu0 %v5009
    %5856 = vmatpush1.bf16.msra.mxu0 %v5008
    %5857 = vmatprep.subr.bf16.mxu0 %v5017
    %5858 = vmatpush1.bf16.msra.mxu0 %v5016
    %5859 = vmatprep.subr.bf16.mxu0 %v5025
    %5860 = vmatpush1.bf16.msra.mxu0 %v5024
    %5861 = vmatprep.mubr.bf16.mxu0 %v2469
    %5862 = vmatmul.mubr.bf16.gmra.mrb[0].mxu0 %v2468
    %v5863 = vpop.f32.mrb[0].mxu0
    %v5864 = vadd.f32 %v5823, %v5863
    %v5865 = vpop.f32.mrb[0].mxu0
    %v5866 = vadd.f32 %v5825, %v5865
    %v5867 = vpop.f32.mrb[0].mxu0
    %v5868 = vpop.f32.mrb[0].mxu0
    %5869 = vdwg.mxu0
    %5870 = vmatprep.subr.bf16.mxu0 %v4523
    %5871 = vmatpush1.bf16.msra.mxu0 %v4522
    %5872 = vmatprep.subr.bf16.mxu0 %v4531
    %5873 = vmatpush1.bf16.msra.mxu0 %v4530
    %5874 = vmatprep.subr.bf16.mxu0 %v4539
    %5875 = vmatpush1.bf16.msra.mxu0 %v4538
    %5876 = vmatprep.subr.bf16.mxu0 %v4547
    %5877 = vmatpush1.bf16.msra.mxu0 %v4546
    %5878 = vmatprep.subr.bf16.mxu0 %v4555
    %5879 = vmatpush1.bf16.msra.mxu0 %v4554
    %5880 = vmatprep.subr.bf16.mxu0 %v4563
    %5881 = vmatpush1.bf16.msra.mxu0 %v4562
    %5882 = vmatprep.subr.bf16.mxu0 %v4571
    %5883 = vmatpush1.bf16.msra.mxu0 %v4570
    %5884 = vmatprep.subr.bf16.mxu0 %v4579
    %5885 = vmatpush1.bf16.msra.mxu0 %v4578
    %5886 = vmatprep.subr.bf16.mxu0 %v4587
    %5887 = vmatpush1.bf16.msra.mxu0 %v4586
    %5888 = vmatprep.subr.bf16.mxu0 %v4595
    %5889 = vmatpush1.bf16.msra.mxu0 %v4594
    %5890 = vmatprep.subr.bf16.mxu0 %v4603
    %5891 = vmatpush1.bf16.msra.mxu0 %v4602
    %5892 = vmatprep.subr.bf16.mxu0 %v4611
    %5893 = vmatpush1.bf16.msra.mxu0 %v4610
    %5894 = vmatprep.subr.bf16.mxu0 %v4619
    %5895 = vmatpush1.bf16.msra.mxu0 %v4618
    %5896 = vmatprep.subr.bf16.mxu0 %v4627
    %5897 = vmatpush1.bf16.msra.mxu0 %v4626
    %5898 = vmatprep.subr.bf16.mxu0 %v4635
    %5899 = vmatpush1.bf16.msra.mxu0 %v4634
    %5900 = vmatprep.subr.bf16.mxu0 %v4643
    %5901 = vmatpush1.bf16.msra.mxu0 %v4642
    %5902 = vmatprep.mubr.bf16.mxu0 %v2463
    %5903 = vmatmul.mubr.bf16.gmra.mrb[0].mxu0 %v2462
    %v5904 = vpop.f32.mrb[0].mxu0
    %v5905 = vadd.f32 0.0, %v5904
    %v5906 = vpop.f32.mrb[0].mxu0
    %v5907 = vadd.f32 0.0, %v5906
    %v5908 = vpop.f32.mrb[0].mxu0
    %v5909 = vpop.f32.mrb[0].mxu0
    %5910 = vdwg.mxu0
    %5911 = vmatprep.subr.bf16.mxu0 %v4651
    %5912 = vmatpush1.bf16.msra.mxu0 %v4650
    %5913 = vmatprep.subr.bf16.mxu0 %v4659
    %5914 = vmatpush1.bf16.msra.mxu0 %v4658
    %5915 = vmatprep.subr.bf16.mxu0 %v4667
    %5916 = vmatpush1.bf16.msra.mxu0 %v4666
    %5917 = vmatprep.subr.bf16.mxu0 %v4675
    %5918 = vmatpush1.bf16.msra.mxu0 %v4674
    %5919 = vmatprep.subr.bf16.mxu0 %v4683
    %5920 = vmatpush1.bf16.msra.mxu0 %v4682
    %5921 = vmatprep.subr.bf16.mxu0 %v4691
    %5922 = vmatpush1.bf16.msra.mxu0 %v4690
    %5923 = vmatprep.subr.bf16.mxu0 %v4699
    %5924 = vmatpush1.bf16.msra.mxu0 %v4698
    %5925 = vmatprep.subr.bf16.mxu0 %v4707
    %5926 = vmatpush1.bf16.msra.mxu0 %v4706
    %5927 = vmatprep.subr.bf16.mxu0 %v4715
    %5928 = vmatpush1.bf16.msra.mxu0 %v4714
    %5929 = vmatprep.subr.bf16.mxu0 %v4723
    %5930 = vmatpush1.bf16.msra.mxu0 %v4722
    %5931 = vmatprep.subr.bf16.mxu0 %v4731
    %5932 = vmatpush1.bf16.msra.mxu0 %v4730
    %5933 = vmatprep.subr.bf16.mxu0 %v4739
    %5934 = vmatpush1.bf16.msra.mxu0 %v4738
    %5935 = vmatprep.subr.bf16.mxu0 %v4747
    %5936 = vmatpush1.bf16.msra.mxu0 %v4746
    %5937 = vmatprep.subr.bf16.mxu0 %v4755
    %5938 = vmatpush1.bf16.msra.mxu0 %v4754
    %5939 = vmatprep.subr.bf16.mxu0 %v4763
    %5940 = vmatpush1.bf16.msra.mxu0 %v4762
    %5941 = vmatprep.subr.bf16.mxu0 %v4771
    %5942 = vmatpush1.bf16.msra.mxu0 %v4770
    %5943 = vmatprep.mubr.bf16.mxu0 %v2465
    %5944 = vmatmul.mubr.bf16.gmra.mrb[0].mxu0 %v2464
    %v5945 = vpop.f32.mrb[0].mxu0
    %v5946 = vadd.f32 %v5905, %v5945
    %v5947 = vpop.f32.mrb[0].mxu0
    %v5948 = vadd.f32 %v5907, %v5947
    %v5949 = vpop.f32.mrb[0].mxu0
    %v5950 = vpop.f32.mrb[0].mxu0
    %5951 = vdwg.mxu0
    %5952 = vmatprep.subr.bf16.mxu0 %v4779
    %5953 = vmatpush1.bf16.msra.mxu0 %v4778
    %5954 = vmatprep.subr.bf16.mxu0 %v4787
    %5955 = vmatpush1.bf16.msra.mxu0 %v4786
    %5956 = vmatprep.subr.bf16.mxu0 %v4795
    %5957 = vmatpush1.bf16.msra.mxu0 %v4794
    %5958 = vmatprep.subr.bf16.mxu0 %v4803
    %5959 = vmatpush1.bf16.msra.mxu0 %v4802
    %5960 = vmatprep.subr.bf16.mxu0 %v4811
    %5961 = vmatpush1.bf16.msra.mxu0 %v4810
    %5962 = vmatprep.subr.bf16.mxu0 %v4819
    %5963 = vmatpush1.bf16.msra.mxu0 %v4818
    %5964 = vmatprep.subr.bf16.mxu0 %v4827
    %5965 = vmatpush1.bf16.msra.mxu0 %v4826
    %5966 = vmatprep.subr.bf16.mxu0 %v4835
    %5967 = vmatpush1.bf16.msra.mxu0 %v4834
    %5968 = vmatprep.subr.bf16.mxu0 %v4843
    %5969 = vmatpush1.bf16.msra.mxu0 %v4842
    %5970 = vmatprep.subr.bf16.mxu0 %v4851
    %5971 = vmatpush1.bf16.msra.mxu0 %v4850
    %5972 = vmatprep.subr.bf16.mxu0 %v4859
    %5973 = vmatpush1.bf16.msra.mxu0 %v4858
    %5974 = vmatprep.subr.bf16.mxu0 %v4867
    %5975 = vmatpush1.bf16.msra.mxu0 %v4866
    %5976 = vmatprep.subr.bf16.mxu0 %v4875
    %5977 = vmatpush1.bf16.msra.mxu0 %v4874
    %5978 = vmatprep.subr.bf16.mxu0 %v4883
    %5979 = vmatpush1.bf16.msra.mxu0 %v4882
    %5980 = vmatprep.subr.bf16.mxu0 %v4891
    %5981 = vmatpush1.bf16.msra.mxu0 %v4890
    %5982 = vmatprep.subr.bf16.mxu0 %v4899
    %5983 = vmatpush1.bf16.msra.mxu0 %v4898
    %5984 = vmatprep.mubr.bf16.mxu0 %v2467
    %5985 = vmatmul.mubr.bf16.gmra.mrb[0].mxu0 %v2466
    %v5986 = vpop.f32.mrb[0].mxu0
    %v5987 = vadd.f32 %v5946, %v5986
    %v5988 = vpop.f32.mrb[0].mxu0
    %v5989 = vadd.f32 %v5948, %v5988
    %v5990 = vpop.f32.mrb[0].mxu0
    %v5991 = vpop.f32.mrb[0].mxu0
    %5992 = vdwg.mxu0
    %5993 = vmatprep.subr.bf16.mxu0 %v4907
    %5994 = vmatpush1.bf16.msra.mxu0 %v4906
    %5995 = vmatprep.subr.bf16.mxu0 %v4915
    %5996 = vmatpush1.bf16.msra.mxu0 %v4914
    %5997 = vmatprep.subr.bf16.mxu0 %v4923
    %5998 = vmatpush1.bf16.msra.mxu0 %v4922
    %5999 = vmatprep.subr.bf16.mxu0 %v4931
    %6000 = vmatpush1.bf16.msra.mxu0 %v4930
    %6001 = vmatprep.subr.bf16.mxu0 %v4939
    %6002 = vmatpush1.bf16.msra.mxu0 %v4938
    %6003 = vmatprep.subr.bf16.mxu0 %v4947
    %6004 = vmatpush1.bf16.msra.mxu0 %v4946
    %6005 = vmatprep.subr.bf16.mxu0 %v4955
    %6006 = vmatpush1.bf16.msra.mxu0 %v4954
    %6007 = vmatprep.subr.bf16.mxu0 %v4963
    %6008 = vmatpush1.bf16.msra.mxu0 %v4962
    %6009 = vmatprep.subr.bf16.mxu0 %v4971
    %6010 = vmatpush1.bf16.msra.mxu0 %v4970
    %6011 = vmatprep.subr.bf16.mxu0 %v4979
    %6012 = vmatpush1.bf16.msra.mxu0 %v4978
    %6013 = vmatprep.subr.bf16.mxu0 %v4987
    %6014 = vmatpush1.bf16.msra.mxu0 %v4986
    %6015 = vmatprep.subr.bf16.mxu0 %v4995
    %6016 = vmatpush1.bf16.msra.mxu0 %v4994
    %6017 = vmatprep.subr.bf16.mxu0 %v5003
    %6018 = vmatpush1.bf16.msra.mxu0 %v5002
    %6019 = vmatprep.subr.bf16.mxu0 %v5011
    %6020 = vmatpush1.bf16.msra.mxu0 %v5010
    %6021 = vmatprep.subr.bf16.mxu0 %v5019
    %6022 = vmatpush1.bf16.msra.mxu0 %v5018
    %6023 = vmatprep.subr.bf16.mxu0 %v5027
    %6024 = vmatpush1.bf16.msra.mxu0 %v5026
    %6025 = vmatprep.mubr.bf16.mxu0 %v2469
    %6026 = vmatmul.mubr.bf16.gmra.mrb[0].mxu0 %v2468
    %v6027 = vpop.f32.mrb[0].mxu0
    %v6028 = vadd.f32 %v5987, %v6027
    %v6029 = vpop.f32.mrb[0].mxu0
    %v6030 = vadd.f32 %v5989, %v6029
    %v6031 = vpop.f32.mrb[0].mxu0
    %v6032 = vpop.f32.mrb[0].mxu0
    %6033 = vdwg.mxu0
    %6034 = vmatprep.subr.bf16.mxu0 %v4525
    %6035 = vmatpush1.bf16.msra.mxu0 %v4524
    %6036 = vmatprep.subr.bf16.mxu0 %v4533
    %6037 = vmatpush1.bf16.msra.mxu0 %v4532
    %6038 = vmatprep.subr.bf16.mxu0 %v4541
    %6039 = vmatpush1.bf16.msra.mxu0 %v4540
    %6040 = vmatprep.subr.bf16.mxu0 %v4549
    %6041 = vmatpush1.bf16.msra.mxu0 %v4548
    %6042 = vmatprep.subr.bf16.mxu0 %v4557
    %6043 = vmatpush1.bf16.msra.mxu0 %v4556
    %6044 = vmatprep.subr.bf16.mxu0 %v4565
    %6045 = vmatpush1.bf16.msra.mxu0 %v4564
    %6046 = vmatprep.subr.bf16.mxu0 %v4573
    %6047 = vmatpush1.bf16.msra.mxu0 %v4572
    %6048 = vmatprep.subr.bf16.mxu0 %v4581
    %6049 = vmatpush1.bf16.msra.mxu0 %v4580
    %6050 = vmatprep.subr.bf16.mxu0 %v4589
    %6051 = vmatpush1.bf16.msra.mxu0 %v4588
    %6052 = vmatprep.subr.bf16.mxu0 %v4597
    %6053 = vmatpush1.bf16.msra.mxu0 %v4596
    %6054 = vmatprep.subr.bf16.mxu0 %v4605
    %6055 = vmatpush1.bf16.msra.mxu0 %v4604
    %6056 = vmatprep.subr.bf16.mxu0 %v4613
    %6057 = vmatpush1.bf16.msra.mxu0 %v4612
    %6058 = vmatprep.subr.bf16.mxu0 %v4621
    %6059 = vmatpush1.bf16.msra.mxu0 %v4620
    %6060 = vmatprep.subr.bf16.mxu0 %v4629
    %6061 = vmatpush1.bf16.msra.mxu0 %v4628
    %6062 = vmatprep.subr.bf16.mxu0 %v4637
    %6063 = vmatpush1.bf16.msra.mxu0 %v4636
    %6064 = vmatprep.subr.bf16.mxu0 %v4645
    %6065 = vmatpush1.bf16.msra.mxu0 %v4644
    %6066 = vmatprep.mubr.bf16.mxu0 %v2463
    %6067 = vmatmul.mubr.bf16.gmra.mrb[0].mxu0 %v2462
    %v6068 = vpop.f32.mrb[0].mxu0
    %v6069 = vadd.f32 0.0, %v6068
    %v6070 = vpop.f32.mrb[0].mxu0
    %v6071 = vadd.f32 0.0, %v6070
    %v6072 = vpop.f32.mrb[0].mxu0
    %v6073 = vpop.f32.mrb[0].mxu0
    %6074 = vdwg.mxu0
    %6075 = vmatprep.subr.bf16.mxu0 %v4653
    %6076 = vmatpush1.bf16.msra.mxu0 %v4652
    %6077 = vmatprep.subr.bf16.mxu0 %v4661
    %6078 = vmatpush1.bf16.msra.mxu0 %v4660
    %6079 = vmatprep.subr.bf16.mxu0 %v4669
    %6080 = vmatpush1.bf16.msra.mxu0 %v4668
    %6081 = vmatprep.subr.bf16.mxu0 %v4677
    %6082 = vmatpush1.bf16.msra.mxu0 %v4676
    %6083 = vmatprep.subr.bf16.mxu0 %v4685
    %6084 = vmatpush1.bf16.msra.mxu0 %v4684
    %6085 = vmatprep.subr.bf16.mxu0 %v4693
    %6086 = vmatpush1.bf16.msra.mxu0 %v4692
    %6087 = vmatprep.subr.bf16.mxu0 %v4701
    %6088 = vmatpush1.bf16.msra.mxu0 %v4700
    %6089 = vmatprep.subr.bf16.mxu0 %v4709
    %6090 = vmatpush1.bf16.msra.mxu0 %v4708
    %6091 = vmatprep.subr.bf16.mxu0 %v4717
    %6092 = vmatpush1.bf16.msra.mxu0 %v4716
    %6093 = vmatprep.subr.bf16.mxu0 %v4725
    %6094 = vmatpush1.bf16.msra.mxu0 %v4724
    %6095 = vmatprep.subr.bf16.mxu0 %v4733
    %6096 = vmatpush1.bf16.msra.mxu0 %v4732
    %6097 = vmatprep.subr.bf16.mxu0 %v4741
    %6098 = vmatpush1.bf16.msra.mxu0 %v4740
    %6099 = vmatprep.subr.bf16.mxu0 %v4749
    %6100 = vmatpush1.bf16.msra.mxu0 %v4748
    %6101 = vmatprep.subr.bf16.mxu0 %v4757
    %6102 = vmatpush1.bf16.msra.mxu0 %v4756
    %6103 = vmatprep.subr.bf16.mxu0 %v4765
    %6104 = vmatpush1.bf16.msra.mxu0 %v4764
    %6105 = vmatprep.subr.bf16.mxu0 %v4773
    %6106 = vmatpush1.bf16.msra.mxu0 %v4772
    %6107 = vmatprep.mubr.bf16.mxu0 %v2465
    %6108 = vmatmul.mubr.bf16.gmra.mrb[0].mxu0 %v2464
    %v6109 = vpop.f32.mrb[0].mxu0
    %v6110 = vadd.f32 %v6069, %v6109
    %v6111 = vpop.f32.mrb[0].mxu0
    %v6112 = vadd.f32 %v6071, %v6111
    %v6113 = vpop.f32.mrb[0].mxu0
    %v6114 = vpop.f32.mrb[0].mxu0
    %6115 = vdwg.mxu0
    %6116 = vmatprep.subr.bf16.mxu0 %v4781
    %6117 = vmatpush1.bf16.msra.mxu0 %v4780
    %6118 = vmatprep.subr.bf16.mxu0 %v4789
    %6119 = vmatpush1.bf16.msra.mxu0 %v4788
    %6120 = vmatprep.subr.bf16.mxu0 %v4797
    %6121 = vmatpush1.bf16.msra.mxu0 %v4796
    %6122 = vmatprep.subr.bf16.mxu0 %v4805
    %6123 = vmatpush1.bf16.msra.mxu0 %v4804
    %6124 = vmatprep.subr.bf16.mxu0 %v4813
    %6125 = vmatpush1.bf16.msra.mxu0 %v4812
    %6126 = vmatprep.subr.bf16.mxu0 %v4821
    %6127 = vmatpush1.bf16.msra.mxu0 %v4820
    %6128 = vmatprep.subr.bf16.mxu0 %v4829
    %6129 = vmatpush1.bf16.msra.mxu0 %v4828
    %6130 = vmatprep.subr.bf16.mxu0 %v4837
    %6131 = vmatpush1.bf16.msra.mxu0 %v4836
    %6132 = vmatprep.subr.bf16.mxu0 %v4845
    %6133 = vmatpush1.bf16.msra.mxu0 %v4844
    %6134 = vmatprep.subr.bf16.mxu0 %v4853
    %6135 = vmatpush1.bf16.msra.mxu0 %v4852
    %6136 = vmatprep.subr.bf16.mxu0 %v4861
    %6137 = vmatpush1.bf16.msra.mxu0 %v4860
    %6138 = vmatprep.subr.bf16.mxu0 %v4869
    %6139 = vmatpush1.bf16.msra.mxu0 %v4868
    %6140 = vmatprep.subr.bf16.mxu0 %v4877
    %6141 = vmatpush1.bf16.msra.mxu0 %v4876
    %6142 = vmatprep.subr.bf16.mxu0 %v4885
    %6143 = vmatpush1.bf16.msra.mxu0 %v4884
    %6144 = vmatprep.subr.bf16.mxu0 %v4893
    %6145 = vmatpush1.bf16.msra.mxu0 %v4892
    %6146 = vmatprep.subr.bf16.mxu0 %v4901
    %6147 = vmatpush1.bf16.msra.mxu0 %v4900
    %6148 = vmatprep.mubr.bf16.mxu0 %v2467
    %6149 = vmatmul.mubr.bf16.gmra.mrb[0].mxu0 %v2466
    %v6150 = vpop.f32.mrb[0].mxu0
    %v6151 = vadd.f32 %v6110, %v6150
    %v6152 = vpop.f32.mrb[0].mxu0
    %v6153 = vadd.f32 %v6112, %v6152
    %v6154 = vpop.f32.mrb[0].mxu0
    %v6155 = vpop.f32.mrb[0].mxu0
    %6156 = vdwg.mxu0
    %6157 = vmatprep.subr.bf16.mxu0 %v4909
    %6158 = vmatpush1.bf16.msra.mxu0 %v4908
    %6159 = vmatprep.subr.bf16.mxu0 %v4917
    %6160 = vmatpush1.bf16.msra.mxu0 %v4916
    %6161 = vmatprep.subr.bf16.mxu0 %v4925
    %6162 = vmatpush1.bf16.msra.mxu0 %v4924
    %6163 = vmatprep.subr.bf16.mxu0 %v4933
    %6164 = vmatpush1.bf16.msra.mxu0 %v4932
    %6165 = vmatprep.subr.bf16.mxu0 %v4941
    %6166 = vmatpush1.bf16.msra.mxu0 %v4940
    %6167 = vmatprep.subr.bf16.mxu0 %v4949
    %6168 = vmatpush1.bf16.msra.mxu0 %v4948
    %6169 = vmatprep.subr.bf16.mxu0 %v4957
    %6170 = vmatpush1.bf16.msra.mxu0 %v4956
    %6171 = vmatprep.subr.bf16.mxu0 %v4965
    %6172 = vmatpush1.bf16.msra.mxu0 %v4964
    %6173 = vmatprep.subr.bf16.mxu0 %v4973
    %6174 = vmatpush1.bf16.msra.mxu0 %v4972
    %6175 = vmatprep.subr.bf16.mxu0 %v4981
    %6176 = vmatpush1.bf16.msra.mxu0 %v4980
    %6177 = vmatprep.subr.bf16.mxu0 %v4989
    %6178 = vmatpush1.bf16.msra.mxu0 %v4988
    %6179 = vmatprep.subr.bf16.mxu0 %v4997
    %6180 = vmatpush1.bf16.msra.mxu0 %v4996
    %6181 = vmatprep.subr.bf16.mxu0 %v5005
    %6182 = vmatpush1.bf16.msra.mxu0 %v5004
    %6183 = vmatprep.subr.bf16.mxu0 %v5013
    %6184 = vmatpush1.bf16.msra.mxu0 %v5012
    %6185 = vmatprep.subr.bf16.mxu0 %v5021
    %6186 = vmatpush1.bf16.msra.mxu0 %v5020
    %6187 = vmatprep.subr.bf16.mxu0 %v5029
    %6188 = vmatpush1.bf16.msra.mxu0 %v5028
    %6189 = vmatprep.mubr.bf16.mxu0 %v2469
    %6190 = vmatmul.mubr.bf16.gmra.mrb[0].mxu0 %v2468
    %v6191 = vpop.f32.mrb[0].mxu0
    %v6192 = vadd.f32 %v6151, %v6191
    %v6193 = vpop.f32.mrb[0].mxu0
    %v6194 = vadd.f32 %v6153, %v6193
    %v6195 = vpop.f32.mrb[0].mxu0
    %v6196 = vpop.f32.mrb[0].mxu0
    %6197 = vdwg.mxu0
    %v6198 = vpack.c.bf16 %v5700, %v5700
    %v6199 = vpack.c.bf16 %v5702, %v5702
    %v6200 = vpack.c.bf16 %v5864, %v5864
    %v6201 = vpack.c.bf16 %v5866, %v5866
    %v6202 = vpack.c.bf16 %v6028, %v6028
    %v6203 = vpack.c.bf16 %v6030, %v6030
    %v6204 = vpack.c.bf16 %v6192, %v6192
    %v6205 = vpack.c.bf16 %v6194, %v6194
    %v6206 = vld [vmem:[#allocation13] sm:$0xff]
    %v6208 = vcombine.high %v6206, %v6206
    %v6210 = vunpack.c.l.s4 1966171168
    %v6211 = vunpack.c.0.s8 %v6210
    %v6212 = vlaneseq
    %v6213 = vshrl.u32 %v6212, 7
    %v6214 = vsub.s32 %v6211, %v6213
    %v6215 = vrot.slane %v6206, %v6214
    %v6217 = vunpack.c.l.s4 1966171168
    %v6218 = vunpack.c.0.s8 %v6217
    %v6219 = vlaneseq
    %v6220 = vshrl.u32 %v6219, 7
    %v6221 = vsub.s32 %v6218, %v6220
    %v6222 = vrot.slane %v6208, %v6221
    %v6223 = vcombine.high %v6215, %v6215
    %v6224 = vcombine.high %v6222, %v6222
    %v6226 = vunpack.c.l.s4 1966171168
    %v6227 = vunpack.c.0.s8 %v6226
    %v6228 = vlaneseq
    %v6229 = vshrl.u32 %v6228, 7
    %v6230 = vsub.s32 %v6227, %v6229
    %v6231 = vrot.slane %v6215, %v6230
    %v6233 = vunpack.c.l.s4 1966171168
    %v6234 = vunpack.c.0.s8 %v6233
    %v6235 = vlaneseq
    %v6236 = vshrl.u32 %v6235, 7
    %v6237 = vsub.s32 %v6234, %v6236
    %v6238 = vrot.slane %v6222, %v6237
    %v6240 = vunpack.c.l.s4 1966171168
    %v6241 = vunpack.c.0.s8 %v6240
    %v6242 = vlaneseq
    %v6243 = vshrl.u32 %v6242, 7
    %v6244 = vsub.s32 %v6241, %v6243
    %v6245 = vrot.slane %v6223, %v6244
    %v6247 = vunpack.c.l.s4 1966171168
    %v6248 = vunpack.c.0.s8 %v6247
    %v6249 = vlaneseq
    %v6250 = vshrl.u32 %v6249, 7
    %v6251 = vsub.s32 %v6248, %v6250
    %v6252 = vrot.slane %v6224, %v6251
    %v6253 = vcombine.high %v6231, %v6231
    %v6254 = vcombine.high %v6238, %v6238
    %v6255 = vcombine.high %v6245, %v6245
    %v6256 = vcombine.high %v6252, %v6252
    %v6258 = vpack.i.b16 %v6231, %v6231
    %v6260 = vlaneseq
    %v6261 = vshrl.u32 %v6260, 7
    %v6262 = vsub.s32 0, %v6261
    %v6263 = vrot.slane %v6258, %v6262
    %v6265 = vpack.i.b16 %v6245, %v6245
    %v6267 = vlaneseq
    %v6268 = vshrl.u32 %v6267, 7
    %v6269 = vsub.s32 0, %v6268
    %v6270 = vrot.slane %v6265, %v6269
    %v6272 = vpack.i.b16 %v6253, %v6253
    %v6274 = vlaneseq
    %v6275 = vshrl.u32 %v6274, 7
    %v6276 = vsub.s32 0, %v6275
    %v6277 = vrot.slane %v6272, %v6276
    %v6279 = vpack.i.b16 %v6255, %v6255
    %v6281 = vlaneseq
    %v6282 = vshrl.u32 %v6281, 7
    %v6283 = vsub.s32 0, %v6282
    %v6284 = vrot.slane %v6279, %v6283
    %v6286 = vpack.i.b16 %v6238, %v6238
    %v6288 = vlaneseq
    %v6289 = vshrl.u32 %v6288, 7
    %v6290 = vsub.s32 0, %v6289
    %v6291 = vrot.slane %v6286, %v6290
    %v6293 = vpack.i.b16 %v6252, %v6252
    %v6295 = vlaneseq
    %v6296 = vshrl.u32 %v6295, 7
    %v6297 = vsub.s32 0, %v6296
    %v6298 = vrot.slane %v6293, %v6297
    %v6300 = vpack.i.b16 %v6254, %v6254
    %v6302 = vlaneseq
    %v6303 = vshrl.u32 %v6302, 7
    %v6304 = vsub.s32 0, %v6303
    %v6305 = vrot.slane %v6300, %v6304
    %v6307 = vpack.i.b16 %v6256, %v6256
    %v6309 = vlaneseq
    %v6310 = vshrl.u32 %v6309, 7
    %v6311 = vsub.s32 0, %v6310
    %v6312 = vrot.slane %v6307, %v6311
    %v6313 = vadd.bf16 %v6198, %v6263
    %v6314 = vadd.bf16 %v6199, %v6270
    %v6315 = vadd.bf16 %v6200, %v6277
    %v6316 = vadd.bf16 %v6201, %v6284
    %v6317 = vadd.bf16 %v6202, %v6291
    %v6318 = vadd.bf16 %v6203, %v6298
    %v6319 = vadd.bf16 %v6204, %v6305
    %v6320 = vadd.bf16 %v6205, %v6312
    %v6321 = vmax.bf16 %v6313, 0
    %v6322 = vmax.bf16 %v6314, 0
    %v6323 = vmax.bf16 %v6315, 0
    %v6324 = vmax.bf16 %v6316, 0
    %v6325 = vmax.bf16 %v6317, 0
    %v6326 = vmax.bf16 %v6318, 0
    %v6327 = vmax.bf16 %v6319, 0
    %v6328 = vmax.bf16 %v6320, 0
    %v6329 = vld [vmem:[#allocation14] sm:$0xff]
    %v6330 = vunpack.c.l.bf16 %v6329
    %v6331 = vunpack.c.h.bf16 %v6329
    %v6332 = vunpack.c.l.bf16 %v6321
    %v6333 = vunpack.c.l.bf16 %v6322
    %v6334 = vunpack.c.l.bf16 %v6323
    %v6335 = vunpack.c.l.bf16 %v6324
    %v6336 = vunpack.c.l.bf16 %v6325
    %v6337 = vunpack.c.l.bf16 %v6326
    %v6338 = vunpack.c.l.bf16 %v6327
    %v6339 = vunpack.c.l.bf16 %v6328
    %v6342 = vlaneseq
    %v6343 = vshrl.u32 %v6342, 7
    %v6344 = vsub.s32 0, %v6343
    %v6345 = vrot.slane %v6330, %v6344
    %v6346 = vlaneseq
    %v6347 = vshrl.u32 %v6346, 7
    %v6348 = vsub.s32 2, %v6347
    %v6349 = vrot.slane %v6330, %v6348
    %v6350 = vlaneseq
    %v6351 = vshrl.u32 %v6350, 7
    %v6352 = vsub.s32 4, %v6351
    %v6353 = vrot.slane %v6330, %v6352
    %v6354 = vlaneseq
    %v6355 = vshrl.u32 %v6354, 7
    %v6356 = vsub.s32 6, %v6355
    %v6357 = vrot.slane %v6330, %v6356
    %v6358 = vlaneseq
    %v6359 = vshrl.u32 %v6358, 7
    %v6360 = vsub.s32 0, %v6359
    %v6361 = vrot.slane %v6331, %v6360
    %v6362 = vlaneseq
    %v6363 = vshrl.u32 %v6362, 7
    %v6364 = vsub.s32 2, %v6363
    %v6365 = vrot.slane %v6331, %v6364
    %v6366 = vlaneseq
    %v6367 = vshrl.u32 %v6366, 7
    %v6368 = vsub.s32 4, %v6367
    %v6369 = vrot.slane %v6331, %v6368
    %v6370 = vlaneseq
    %v6371 = vshrl.u32 %v6370, 7
    %v6372 = vsub.s32 6, %v6371
    %v6373 = vrot.slane %v6331, %v6372
    %v6382 = vlaneseq
    %v6383 = vshrl.u32 %v6382, 7
    %v6384 = vsub.s32 0, %v6383
    %v6385 = vrot.slane %v6345, %v6384
    %v6386 = vlaneseq
    %v6387 = vshrl.u32 %v6386, 7
    %v6388 = vsub.s32 0, %v6387
    %v6389 = vrot.slane %v6349, %v6388
    %v6390 = vlaneseq
    %v6391 = vshrl.u32 %v6390, 7
    %v6392 = vsub.s32 0, %v6391
    %v6393 = vrot.slane %v6353, %v6392
    %v6394 = vlaneseq
    %v6395 = vshrl.u32 %v6394, 7
    %v6396 = vsub.s32 0, %v6395
    %v6397 = vrot.slane %v6357, %v6396
    %v6398 = vlaneseq
    %v6399 = vshrl.u32 %v6398, 7
    %v6400 = vsub.s32 0, %v6399
    %v6401 = vrot.slane %v6361, %v6400
    %v6402 = vlaneseq
    %v6403 = vshrl.u32 %v6402, 7
    %v6404 = vsub.s32 0, %v6403
    %v6405 = vrot.slane %v6365, %v6404
    %v6406 = vlaneseq
    %v6407 = vshrl.u32 %v6406, 7
    %v6408 = vsub.s32 0, %v6407
    %v6409 = vrot.slane %v6369, %v6408
    %v6410 = vlaneseq
    %v6411 = vshrl.u32 %v6410, 7
    %v6412 = vsub.s32 0, %v6411
    %v6413 = vrot.slane %v6373, %v6412
    %v6414 = vmul.f32 %v6332, %v6385
    %v6415 = vmul.f32 %v6333, %v6389
    %v6416 = vmul.f32 %v6334, %v6393
    %v6417 = vmul.f32 %v6335, %v6397
    %v6418 = vmul.f32 %v6336, %v6401
    %v6419 = vmul.f32 %v6337, %v6405
    %v6420 = vmul.f32 %v6338, %v6409
    %v6421 = vmul.f32 %v6339, %v6413
    %v6422 = vadd.f32 %v6414, %v6415
    %v6423 = vadd.f32 %v6422, %v6416
    %v6424 = vadd.f32 %v6423, %v6417
    %v6425 = vadd.f32 %v6424, %v6418
    %v6426 = vadd.f32 %v6425, %v6419
    %v6427 = vadd.f32 %v6426, %v6420
    %v6428 = vadd.f32 %v6427, %v6421
    %6429 = vadd.xlane.f32.xlu0 %v6428
    %v6430 = vpop.xlane.xlu0 %6429
    %v6431 = vld [vmem:[#allocation2] sm:$0x1]
    %v6433 = vlaneseq
    %v6434 = vshrl.u32 %v6433, 7
    %v6435 = vsub.s32 0, %v6434
    %v6436 = vrot.slane %v6431, %v6435
    %v6438 = vadd.f32 %v6430, %v6436
    %vm6439 = vcmask 7168
    %6440 = vst.msk [vmem:[%s9] sm:$0xff] %vm6439, %v6438
    // Predicated region
    $region70: #{tpu_custom_call.1} parent=1 // pred_check
      _
    $region71: #{tpu_custom_call.1} parent=1 // pred_check_branch
      %6442 = sbr.rel (0) target = $region73
    $region72: #{tpu_custom_call.1} parent=1 // pred_region
      _
    $region73: #{tpu_custom_call.1} parent=1 // pred_fallthru
      _
    // Predicated region
    $region74: #{tpu_custom_call.1} parent=1 // pred_check
      _
    $region75: #{tpu_custom_call.1} parent=1 // pred_check_branch
      %6444 = sbr.rel (0) target = $region77
    $region76: #{tpu_custom_call.1} parent=1 // pred_region
      _
    $region77: #{tpu_custom_call.1} parent=1 // pred_fallthru
      _
    %6445 = vsyncpa [#allocation4], 1
    %6446 = vsyncpa [#allocation6], 1
    %6447 = vsyncpa [#allocation9], 1
    %6448 = vsyncpa [#allocation12], 1
    %6449 = vsyncpa [#allocation15], 1

// kernel: tpu_custom_call.1
$region0: #{tpu_custom_call.1}
  #allocation0 [shape = 'u32[]', space=smem, size = 0x4, offset = 0x4, fixed_abs, tag = 'smem constant byte address 0x4 - core index']
  #allocation1 [shape = 'u32[144,128]{1,0:T(1,128)}', space=vmem, size = 0x12000, scoped, tag = 'internal scratch']
  #allocation2 [shape = 'f32[1,1]{1,0:T(1,128)S(1)}', space=vmem, size = 0x200, scoped, tag = 'scoped memory for tpu_custom_call.1']
  %s0 = inlined_call_operand.hbm [shape: bf16[8,128], index: 0, kind: input, shape index: {}]
  %s1 = inlined_call_operand.hbm [shape: bf16[128,512], index: 1, kind: input, shape index: {}]
  %s2 = inlined_call_operand.hbm [shape: bf16[1,512], index: 2, kind: input, shape index: {}]
  %s3 = inlined_call_operand.hbm [shape: bf16[512,1024], index: 3, kind: input, shape index: {}]
  %s4 = inlined_call_operand.hbm [shape: bf16[1,1024], index: 4, kind: input, shape index: {}]
  %s5 = inlined_call_operand.hbm [shape: bf16[1024,1024], index: 5, kind: input, shape index: {}]
  %s6 = inlined_call_operand.hbm [shape: bf16[1,1024], index: 6, kind: input, shape index: {}]
  %s7 = inlined_call_operand.hbm [shape: bf16[1,1024], index: 7, kind: input, shape index: {}]
  %s8 = inlined_call_operand.<no memory space> [shape: f32[1,1], index: 8, kind: input, shape index: {}]
  %s9 = inlined_call_operand.vmem [shape: f32[8,1], index: 9, kind: output, shape index: {}]
  %s10 = sld [smem:[#allocation0]]
  $region78: #{tpu_custom_call.1} parent=0
    _
  %s12 = ssub.s32 1, %s10
  %s13 = scalar_select 0, %s12, %s10
  %v14 = vstv %s8
  %15 = vst [vmem:[#allocation2] sm:$0x1] %v14
  $region1: #{tpu_custom_call.1} parent=0
    #allocation3 [shape = 'u8[2048]{0}', space=vmem, size = 0x800, scoped, tag = 'input window, operand 0, single buffered']
    #allocation4 [shape = 's32[1]{0}', space=sflag, size = 0x4, scoped, tag = 'scoped memory for tpu_custom_call.1']
    #allocation5 [shape = 'u8[131072]{0}', space=vmem, size = 0x20000, scoped, tag = 'input window, operand 1, single buffered']
    #allocation6 [shape = 's32[1]{0}', space=sflag, size = 0x4, scoped, tag = 'scoped memory for tpu_custom_call.1']
    #allocation7 [shape = 'u8[2048]{0}', space=vmem, size = 0x800, scoped, tag = 'input window, operand 2, single buffered']
    #allocation8 [shape = 'u8[1048576]{0}', space=vmem, size = 0x100000, scoped, tag = 'input window, operand 3, single buffered']
    #allocation9 [shape = 's32[1]{0}', space=sflag, size = 0x4, scoped, tag = 'scoped memory for tpu_custom_call.1']
    #allocation10 [shape = 'u8[4096]{0}', space=vmem, size = 0x1000, scoped, tag = 'input window, operand 4, single buffered']
    #allocation11 [shape = 'u8[2097152]{0}', space=vmem, size = 0x200000, scoped, tag = 'input window, operand 5, single buffered']
    #allocation12 [shape = 's32[1]{0}', space=sflag, size = 0x4, scoped, tag = 'scoped memory for tpu_custom_call.1']
    #allocation13 [shape = 'u8[4096]{0}', space=vmem, size = 0x1000, scoped, tag = 'input window, operand 6, single buffered']
    #allocation14 [shape = 'u8[4096]{0}', space=vmem, size = 0x1000, scoped, tag = 'input window, operand 7, single buffered']
    #allocation15 [shape = 's32[1]{0}', space=sflag, size = 0x4, scoped, tag = 'scoped memory for tpu_custom_call.1']
    %16 = vsyncpa [#allocation4], 0
    %17 = vsyncpa [#allocation6], 0
    %18 = vsyncpa [#allocation9], 0
    %19 = vsyncpa [#allocation12], 0
    %20 = vsyncpa [#allocation15], 0
    // Predicated region
    $region2: #{tpu_custom_call.1} parent=1 // pred_check
      _
    $region3: #{tpu_custom_call.1} parent=1 // pred_check_branch
      %22 = sbr.rel (0) target = $region5
    $region4: #{tpu_custom_call.1} parent=1 // pred_region
      %s24 = ssub.s32 64, 64
      %25 = vsyncadd [#allocation4], %s24
      %s27 = sshll.u32 [#allocation3], 4
      %s28 = int_to_ptr.vmem [resolvable:$true] %s27
      %30 = dma.hbm_to_vmem [thread:$0]  %s0, 64, %s28, [#allocation4]
    $region5: #{tpu_custom_call.1} parent=1 // pred_fallthru
      _
    // Predicated region
    $region6: #{tpu_custom_call.1} parent=1 // pred_check
      _
    $region7: #{tpu_custom_call.1} parent=1 // pred_check_branch
      %32 = sbr.rel (0) target = $region9
    $region8: #{tpu_custom_call.1} parent=1 // pred_region
      %s34 = ssub.s32 4096, 4096
      %35 = vsyncadd [#allocation6], %s34
      %s36 = sshll.u32 [#allocation5], 4
      %s37 = int_to_ptr.vmem [resolvable:$true] %s36
      %42 = dma.hbm_to_vmem [thread:$0]  %s1, 4096, %s37, [#allocation6], 256, 256, 16
    $region9: #{tpu_custom_call.1} parent=1 // pred_fallthru
      _
    // Predicated region
    $region10: #{tpu_custom_call.1} parent=1 // pred_check
      _
    $region11: #{tpu_custom_call.1} parent=1 // pred_check_branch
      %44 = sbr.rel (0) target = $region13
    $region12: #{tpu_custom_call.1} parent=1 // pred_region
      %s46 = ssub.s32 64, 64
      %47 = vsyncadd [#allocation6], %s46
      %s49 = sshll.u32 [#allocation7], 4
      %s50 = int_to_ptr.vmem [resolvable:$true] %s49
      %52 = dma.hbm_to_vmem [thread:$0]  %s2, 64, %s50, [#allocation6]
    $region13: #{tpu_custom_call.1} parent=1 // pred_fallthru
      _
    // Predicated region
    $region14: #{tpu_custom_call.1} parent=1 // pred_check
      _
    $region15: #{tpu_custom_call.1} parent=1 // pred_check_branch
      %54 = sbr.rel (0) target = $region17
    $region16: #{tpu_custom_call.1} parent=1 // pred_region
      %s56 = ssub.s32 32768, 32768
      %57 = vsyncadd [#allocation9], %s56
      %s58 = sshll.u32 [#allocation8], 4
      %s59 = int_to_ptr.vmem [resolvable:$true] %s58
      %64 = dma.hbm_to_vmem [thread:$0]  %s3, 32768, %s59, [#allocation9], 512, 512, 32
    $region17: #{tpu_custom_call.1} parent=1 // pred_fallthru
      _
    // Predicated region
    $region18: #{tpu_custom_call.1} parent=1 // pred_check
      _
    $region19: #{tpu_custom_call.1} parent=1 // pred_check_branch
      %66 = sbr.rel (0) target = $region21
    $region20: #{tpu_custom_call.1} parent=1 // pred_region
      %s68 = ssub.s32 128, 128
      %69 = vsyncadd [#allocation9], %s68
      %s71 = sshll.u32 [#allocation10], 4
      %s72 = int_to_ptr.vmem [resolvable:$true] %s71
      %74 = dma.hbm_to_vmem [thread:$0]  %s4, 128, %s72, [#allocation9]
    $region21: #{tpu_custom_call.1} parent=1 // pred_fallthru
      _
    // Predicated region
    $region22: #{tpu_custom_call.1} parent=1 // pred_check
      _
    $region23: #{tpu_custom_call.1} parent=1 // pred_check_branch
      %76 = sbr.rel (0) target = $region25
    $region24: #{tpu_custom_call.1} parent=1 // pred_region
      %s78 = ssub.s32 65536, 65536
      %79 = vsyncadd [#allocation12], %s78
      %s80 = sshll.u32 [#allocation11], 4
      %s81 = int_to_ptr.vmem [resolvable:$true] %s80
      %86 = dma.hbm_to_vmem [thread:$0]  %s5, 65536, %s81, [#allocation12], 512, 512, 32
    $region25: #{tpu_custom_call.1} parent=1 // pred_fallthru
      _
    // Predicated region
    $region26: #{tpu_custom_call.1} parent=1 // pred_check
      _
    $region27: #{tpu_custom_call.1} parent=1 // pred_check_branch
      %88 = sbr.rel (0) target = $region29
    $region28: #{tpu_custom_call.1} parent=1 // pred_region
      %s90 = ssub.s32 128, 128
      %91 = vsyncadd [#allocation12], %s90
      %s93 = sshll.u32 [#allocation13], 4
      %s94 = int_to_ptr.vmem [resolvable:$true] %s93
      %96 = dma.hbm_to_vmem [thread:$0]  %s6, 128, %s94, [#allocation12]
    $region29: #{tpu_custom_call.1} parent=1 // pred_fallthru
      _
    // Predicated region
    $region30: #{tpu_custom_call.1} parent=1 // pred_check
      _
    $region31: #{tpu_custom_call.1} parent=1 // pred_check_branch
      %98 = sbr.rel (0) target = $region33
    $region32: #{tpu_custom_call.1} parent=1 // pred_region
      %s100 = ssub.s32 128, 128
      %101 = vsyncadd [#allocation15], %s100
      %s103 = sshll.u32 [#allocation14], 4
      %s104 = int_to_ptr.vmem [resolvable:$true] %s103
      %106 = dma.hbm_to_vmem [thread:$0]  %s7, 128, %s104, [#allocation15]
    $region33: #{tpu_custom_call.1} parent=1 // pred_fallthru
      _
    // Predicated region
    $region34: #{tpu_custom_call.1} parent=1 // pred_check
      _
    $region35: #{tpu_custom_call.1} parent=1 // pred_check_branch
      %108 = sbr.rel (0) target = $region37
    $region36: #{tpu_custom_call.1} parent=1 // pred_region
      _
    $region37: #{tpu_custom_call.1} parent=1 // pred_fallthru
      _
    // Predicated region
    $region38: #{tpu_custom_call.1} parent=1 // pred_check
      _
    $region39: #{tpu_custom_call.1} parent=1 // pred_check_branch
      %110 = sbr.rel (0) target = $region41
    $region40: #{tpu_custom_call.1} parent=1 // pred_region
      %111 = dma.done [#allocation4], 64
    $region41: #{tpu_custom_call.1} parent=1 // pred_fallthru
      _
    // Predicated region
    $region42: #{tpu_custom_call.1} parent=1 // pred_check
      _
    $region43: #{tpu_custom_call.1} parent=1 // pred_check_branch
      %113 = sbr.rel (0) target = $region45
    $region44: #{tpu_custom_call.1} parent=1 // pred_region
      %114 = dma.done [#allocation6], 4096
    $region45: #{tpu_custom_call.1} parent=1 // pred_fallthru
      _
    // Predicated region
    $region46: #{tpu_custom_call.1} parent=1 // pred_check
      _
    $region47: #{tpu_custom_call.1} parent=1 // pred_check_branch
      %116 = sbr.rel (0) target = $region49
    $region48: #{tpu_custom_call.1} parent=1 // pred_region
      %117 = dma.done [#allocation6], 64
    $region49: #{tpu_custom_call.1} parent=1 // pred_fallthru
      _
    // Predicated region
    $region50: #{tpu_custom_call.1} parent=1 // pred_check
      _
    $region51: #{tpu_custom_call.1} parent=1 // pred_check_branch
      %119 = sbr.rel (0) target = $region53
    $region52: #{tpu_custom_call.1} parent=1 // pred_region
      %120 = dma.done [#allocation9], 32768
    $region53: #{tpu_custom_call.1} parent=1 // pred_fallthru
      _
    // Predicated region
    $region54: #{tpu_custom_call.1} parent=1 // pred_check
      _
    $region55: #{tpu_custom_call.1} parent=1 // pred_check_branch
      %122 = sbr.rel (0) target = $region57
    $region56: #{tpu_custom_call.1} parent=1 // pred_region
      %123 = dma.done [#allocation9], 128
    $region57: #{tpu_custom_call.1} parent=1 // pred_fallthru
      _
    // Predicated region
    $region58: #{tpu_custom_call.1} parent=1 // pred_check
      _
    $region59: #{tpu_custom_call.1} parent=1 // pred_check_branch
      %125 = sbr.rel (0) target = $region61
    $region60: #{tpu_custom_call.1} parent=1 // pred_region
      %126 = dma.done [#allocation12], 65536
    $region61: #{tpu_custom_call.1} parent=1 // pred_fallthru
      _
    // Predicated region
    $region62: #{tpu_custom_call.1} parent=1 // pred_check
      _
    $region63: #{tpu_custom_call.1} parent=1 // pred_check_branch
      %128 = sbr.rel (0) target = $region65
    $region64: #{tpu_custom_call.1} parent=1 // pred_region
      %129 = dma.done [#allocation12], 128
    $region65: #{tpu_custom_call.1} parent=1 // pred_fallthru
      _
    // Predicated region
    $region66: #{tpu_custom_call.1} parent=1 // pred_check
      _
    $region67: #{tpu_custom_call.1} parent=1 // pred_check_branch
      %131 = sbr.rel (0) target = $region69
    $region68: #{tpu_custom_call.1} parent=1 // pred_region
      %132 = dma.done [#allocation15], 128
    $region69: #{tpu_custom_call.1} parent=1 // pred_fallthru
      _
    %v134 = vld [vmem:[#allocation3] sm:$0xf]
    %v135 = vld [vmem:[#allocation5] sm:$0xff]
    %v136 = vld [vmem:[#allocation5 + $0x8] sm:$0xff]
    %v137 = vld [vmem:[#allocation5 + $0x10] sm:$0xff]
    %v138 = vld [vmem:[#allocation5 + $0x18] sm:$0xff]
    %v139 = vld [vmem:[#allocation5 + $0x20] sm:$0xff]
    %v140 = vld [vmem:[#allocation5 + $0x28] sm:$0xff]
    %v141 = vld [vmem:[#allocation5 + $0x30] sm:$0xff]
    %v142 = vld [vmem:[#allocation5 + $0x38] sm:$0xff]
    %v143 = vld [vmem:[#allocation5 + $0x40] sm:$0xff]
    %v144 = vld [vmem:[#allocation5 + $0x48] sm:$0xff]
    %v145 = vld [vmem:[#allocation5 + $0x50] sm:$0xff]
    %v146 = vld [vmem:[#allocation5 + $0x58] sm:$0xff]
    %v147 = vld [vmem:[#allocation5 + $0x60] sm:$0xff]
    %v148 = vld [vmem:[#allocation5 + $0x68] sm:$0xff]
    %v149 = vld [vmem:[#allocation5 + $0x70] sm:$0xff]
    %v150 = vld [vmem:[#allocation5 + $0x78] sm:$0xff]
    %v151 = vld [vmem:[#allocation5 + $0x80] sm:$0xff]
    %v152 = vld [vmem:[#allocation5 + $0x88] sm:$0xff]
    %v153 = vld [vmem:[#allocation5 + $0x90] sm:$0xff]
    %v154 = vld [vmem:[#allocation5 + $0x98] sm:$0xff]
    %v155 = vld [vmem:[#allocation5 + $0xa0] sm:$0xff]
    %v156 = vld [vmem:[#allocation5 + $0xa8] sm:$0xff]
    %v157 = vld [vmem:[#allocation5 + $0xb0] sm:$0xff]
    %v158 = vld [vmem:[#allocation5 + $0xb8] sm:$0xff]
    %v159 = vld [vmem:[#allocation5 + $0xc0] sm:$0xff]
    %v160 = vld [vmem:[#allocation5 + $0xc8] sm:$0xff]
    %v161 = vld [vmem:[#allocation5 + $0xd0] sm:$0xff]
    %v162 = vld [vmem:[#allocation5 + $0xd8] sm:$0xff]
    %v163 = vld [vmem:[#allocation5 + $0xe0] sm:$0xff]
    %v164 = vld [vmem:[#allocation5 + $0xe8] sm:$0xff]
    %v165 = vld [vmem:[#allocation5 + $0xf0] sm:$0xff]
    %v166 = vld [vmem:[#allocation5 + $0xf8] sm:$0xff]
    %v199 = vunpack.c.l.b16 %v135
    %v200 = vunpack.c.h.b16 %v135
    %v201 = vunpack.c.l.b16 %v136
    %v202 = vunpack.c.h.b16 %v136
    %v203 = vunpack.c.l.b16 %v137
    %v204 = vunpack.c.h.b16 %v137
    %v205 = vunpack.c.l.b16 %v138
    %v206 = vunpack.c.h.b16 %v138
    %v207 = vunpack.c.l.b16 %v139
    %v208 = vunpack.c.h.b16 %v139
    %v209 = vunpack.c.l.b16 %v140
    %v210 = vunpack.c.h.b16 %v140
    %v211 = vunpack.c.l.b16 %v141
    %v212 = vunpack.c.h.b16 %v141
    %v213 = vunpack.c.l.b16 %v142
    %v214 = vunpack.c.h.b16 %v142
    %v215 = vunpack.c.l.b16 %v143
    %v216 = vunpack.c.h.b16 %v143
    %v217 = vunpack.c.l.b16 %v144
    %v218 = vunpack.c.h.b16 %v144
    %v219 = vunpack.c.l.b16 %v145
    %v220 = vunpack.c.h.b16 %v145
    %v221 = vunpack.c.l.b16 %v146
    %v222 = vunpack.c.h.b16 %v146
    %v223 = vunpack.c.l.b16 %v147
    %v224 = vunpack.c.h.b16 %v147
    %v225 = vunpack.c.l.b16 %v148
    %v226 = vunpack.c.h.b16 %v148
    %v227 = vunpack.c.l.b16 %v149
    %v228 = vunpack.c.h.b16 %v149
    %v229 = vunpack.c.l.b16 %v150
    %v230 = vunpack.c.h.b16 %v150
    %v231 = vunpack.c.l.b16 %v151
    %v232 = vunpack.c.h.b16 %v151
    %v233 = vunpack.c.l.b16 %v152
    %v234 = vunpack.c.h.b16 %v152
    %v235 = vunpack.c.l.b16 %v153
    %v236 = vunpack.c.h.b16 %v153
    %v237 = vunpack.c.l.b16 %v154
    %v238 = vunpack.c.h.b16 %v154
    %v239 = vunpack.c.l.b16 %v155
    %v240 = vunpack.c.h.b16 %v155
    %v241 = vunpack.c.l.b16 %v156
    %v242 = vunpack.c.h.b16 %v156
    %v243 = vunpack.c.l.b16 %v157
    %v244 = vunpack.c.h.b16 %v157
    %v245 = vunpack.c.l.b16 %v158
    %v246 = vunpack.c.h.b16 %v158
    %v247 = vunpack.c.l.b16 %v159
    %v248 = vunpack.c.h.b16 %v159
    %v249 = vunpack.c.l.b16 %v160
    %v250 = vunpack.c.h.b16 %v160
    %v251 = vunpack.c.l.b16 %v161
    %v252 = vunpack.c.h.b16 %v161
    %v253 = vunpack.c.l.b16 %v162
    %v254 = vunpack.c.h.b16 %v162
    %v255 = vunpack.c.l.b16 %v163
    %v256 = vunpack.c.h.b16 %v163
    %v257 = vunpack.c.l.b16 %v164
    %v258 = vunpack.c.h.b16 %v164
    %v259 = vunpack.c.l.b16 %v165
    %v260 = vunpack.c.h.b16 %v165
    %v261 = vunpack.c.l.b16 %v166
    %v262 = vunpack.c.h.b16 %v166
    %v263 = vpack.c.b16 %v203, %v199
    %v264 = vpack.c.b16 %v204, %v200
    %v265 = vpack.c.b16 %v205, %v201
    %v266 = vpack.c.b16 %v206, %v202
    %v267 = vpack.c.b16 %v211, %v207
    %v268 = vpack.c.b16 %v212, %v208
    %v269 = vpack.c.b16 %v213, %v209
    %v270 = vpack.c.b16 %v214, %v210
    %v271 = vpack.c.b16 %v219, %v215
    %v272 = vpack.c.b16 %v220, %v216
    %v273 = vpack.c.b16 %v221, %v217
    %v274 = vpack.c.b16 %v222, %v218
    %v275 = vpack.c.b16 %v227, %v223
    %v276 = vpack.c.b16 %v228, %v224
    %v277 = vpack.c.b16 %v229, %v225
    %v278 = vpack.c.b16 %v230, %v226
    %v279 = vpack.c.b16 %v235, %v231
    %v280 = vpack.c.b16 %v236, %v232
    %v281 = vpack.c.b16 %v237, %v233
    %v282 = vpack.c.b16 %v238, %v234
    %v283 = vpack.c.b16 %v243, %v239
    %v284 = vpack.c.b16 %v244, %v240
    %v285 = vpack.c.b16 %v245, %v241
    %v286 = vpack.c.b16 %v246, %v242
    %v287 = vpack.c.b16 %v251, %v247
    %v288 = vpack.c.b16 %v252, %v248
    %v289 = vpack.c.b16 %v253, %v249
    %v290 = vpack.c.b16 %v254, %v250
    %v291 = vpack.c.b16 %v259, %v255
    %v292 = vpack.c.b16 %v260, %v256
    %v293 = vpack.c.b16 %v261, %v257
    %v294 = vpack.c.b16 %v262, %v258
    %327 = vmatprep.subr.bf16.mxu0 %v264
    %328 = vmatpush1.bf16.msra.mxu0 %v263
    %329 = vmatprep.subr.bf16.mxu0 %v268
    %330 = vmatpush1.bf16.msra.mxu0 %v267
    %331 = vmatprep.subr.bf16.mxu0 %v272
    %332 = vmatpush1.bf16.msra.mxu0 %v271
    %333 = vmatprep.subr.bf16.mxu0 %v276
    %334 = vmatpush1.bf16.msra.mxu0 %v275
    %335 = vmatprep.subr.bf16.mxu0 %v280
    %336 = vmatpush1.bf16.msra.mxu0 %v279
    %337 = vmatprep.subr.bf16.mxu0 %v284
    %338 = vmatpush1.bf16.msra.mxu0 %v283
    %339 = vmatprep.subr.bf16.mxu0 %v288
    %340 = vmatpush1.bf16.msra.mxu0 %v287
    %341 = vmatprep.subr.bf16.mxu0 %v292
    %342 = vmatpush1.bf16.msra.mxu0 %v291
    %343 = vmatprep.subr.bf16.mxu0 0
    %344 = vmatpush1.bf16.msra.mxu0 0
    %345 = vmatprep.subr.bf16.mxu0 0
    %346 = vmatpush1.bf16.msra.mxu0 0
    %347 = vmatprep.subr.bf16.mxu0 0
    %348 = vmatpush1.bf16.msra.mxu0 0
    %349 = vmatprep.subr.bf16.mxu0 0
    %350 = vmatpush1.bf16.msra.mxu0 0
    %351 = vmatprep.subr.bf16.mxu0 0
    %352 = vmatpush1.bf16.msra.mxu0 0
    %353 = vmatprep.subr.bf16.mxu0 0
    %354 = vmatpush1.bf16.msra.mxu0 0
    %355 = vmatprep.subr.bf16.mxu0 0
    %356 = vmatpush1.bf16.msra.mxu0 0
    %357 = vmatprep.subr.bf16.mxu0 0
    %358 = vmatpush1.bf16.msra.mxu0 0
    %359 = vmatprep.mubr.bf16.mxu0 0
    %360 = vmatmul.mubr.bf16.gmra.mrb[0].mxu0 %v134
    %v361 = vpop.f32.mrb[0].mxu0
    %v362 = vadd.f32 0.0, %v361
    %v363 = vpop.f32.mrb[0].mxu0
    %v364 = vadd.f32 0.0, %v363
    %v365 = vpop.f32.mrb[0].mxu0
    %v366 = vpop.f32.mrb[0].mxu0
    %367 = vdwg.mxu0
    %368 = vmatprep.subr.bf16.mxu0 %v266
    %369 = vmatpush1.bf16.msra.mxu0 %v265
    %370 = vmatprep.subr.bf16.mxu0 %v270
    %371 = vmatpush1.bf16.msra.mxu0 %v269
    %372 = vmatprep.subr.bf16.mxu0 %v274
    %373 = vmatpush1.bf16.msra.mxu0 %v273
    %374 = vmatprep.subr.bf16.mxu0 %v278
    %375 = vmatpush1.bf16.msra.mxu0 %v277
    %376 = vmatprep.subr.bf16.mxu0 %v282
    %377 = vmatpush1.bf16.msra.mxu0 %v281
    %378 = vmatprep.subr.bf16.mxu0 %v286
    %379 = vmatpush1.bf16.msra.mxu0 %v285
    %380 = vmatprep.subr.bf16.mxu0 %v290
    %381 = vmatpush1.bf16.msra.mxu0 %v289
    %382 = vmatprep.subr.bf16.mxu0 %v294
    %383 = vmatpush1.bf16.msra.mxu0 %v293
    %384 = vmatprep.subr.bf16.mxu0 0
    %385 = vmatpush1.bf16.msra.mxu0 0
    %386 = vmatprep.subr.bf16.mxu0 0
    %387 = vmatpush1.bf16.msra.mxu0 0
    %388 = vmatprep.subr.bf16.mxu0 0
    %389 = vmatpush1.bf16.msra.mxu0 0
    %390 = vmatprep.subr.bf16.mxu0 0
    %391 = vmatpush1.bf16.msra.mxu0 0
    %392 = vmatprep.subr.bf16.mxu0 0
    %393 = vmatpush1.bf16.msra.mxu0 0
    %394 = vmatprep.subr.bf16.mxu0 0
    %395 = vmatpush1.bf16.msra.mxu0 0
    %396 = vmatprep.subr.bf16.mxu0 0
    %397 = vmatpush1.bf16.msra.mxu0 0
    %398 = vmatprep.subr.bf16.mxu0 0
    %399 = vmatpush1.bf16.msra.mxu0 0
    %400 = vmatprep.mubr.bf16.mxu0 0
    %401 = vmatmul.mubr.bf16.gmra.mrb[0].mxu0 %v134
    %v402 = vpop.f32.mrb[0].mxu0
    %v403 = vadd.f32 0.0, %v402
    %v404 = vpop.f32.mrb[0].mxu0
    %v405 = vadd.f32 0.0, %v404
    %v406 = vpop.f32.mrb[0].mxu0
    %v407 = vpop.f32.mrb[0].mxu0
    %408 = vdwg.mxu0
    %v409 = vpack.c.bf16 %v362, %v362
    %v410 = vpack.c.bf16 %v364, %v364
    %v411 = vpack.c.bf16 %v403, %v403
    %v412 = vpack.c.bf16 %v405, %v405
    %v413 = vld [vmem:[#allocation7] sm:$0xf]
    %v416 = vunpack.c.l.s4 1966171168
    %v417 = vunpack.c.0.s8 %v416
    %v418 = vlaneseq
    %v419 = vshrl.u32 %v418, 7
    %v420 = vsub.s32 %v417, %v419
    %v421 = vrot.slane %v413, %v420
    %v422 = vcombine.high %v421, %v421
    %v424 = vunpack.c.l.s4 1966171168
    %v425 = vunpack.c.0.s8 %v424
    %v426 = vlaneseq
    %v427 = vshrl.u32 %v426, 7
    %v428 = vsub.s32 %v425, %v427
    %v429 = vrot.slane %v421, %v428
    %v431 = vunpack.c.l.s4 1966171168
    %v432 = vunpack.c.0.s8 %v431
    %v433 = vlaneseq
    %v434 = vshrl.u32 %v433, 7
    %v435 = vsub.s32 %v432, %v434
    %v436 = vrot.slane %v422, %v435
    %v437 = vcombine.high %v429, %v429
    %v438 = vcombine.high %v436, %v436
    %v440 = vpack.i.b16 %v429, %v429
    %v442 = vlaneseq
    %v443 = vshrl.u32 %v442, 7
    %v444 = vsub.s32 0, %v443
    %v445 = vrot.slane %v440, %v444
    %v447 = vpack.i.b16 %v436, %v436
    %v449 = vlaneseq
    %v450 = vshrl.u32 %v449, 7
    %v451 = vsub.s32 0, %v450
    %v452 = vrot.slane %v447, %v451
    %v454 = vpack.i.b16 %v437, %v437
    %v456 = vlaneseq
    %v457 = vshrl.u32 %v456, 7
    %v458 = vsub.s32 0, %v457
    %v459 = vrot.slane %v454, %v458
    %v461 = vpack.i.b16 %v438, %v438
    %v463 = vlaneseq
    %v464 = vshrl.u32 %v463, 7
    %v465 = vsub.s32 0, %v464
    %v466 = vrot.slane %v461, %v465
    %v467 = vadd.bf16 %v409, %v445
    %v468 = vadd.bf16 %v410, %v452
    %v469 = vadd.bf16 %v411, %v459
    %v470 = vadd.bf16 %v412, %v466
    %v471 = vmax.bf16 %v467, 0
    %v472 = vmax.bf16 %v468, 0
    %v473 = vmax.bf16 %v469, 0
    %v474 = vmax.bf16 %v470, 0
    %v475 = vld [vmem:[#allocation8] sm:$0xff]
    %v476 = vld [vmem:[#allocation8 + $0x8] sm:$0xff]
    %v477 = vld [vmem:[#allocation8 + $0x10] sm:$0xff]
    %v478 = vld [vmem:[#allocation8 + $0x18] sm:$0xff]
    %v479 = vld [vmem:[#allocation8 + $0x20] sm:$0xff]
    %v480 = vld [vmem:[#allocation8 + $0x28] sm:$0xff]
    %v481 = vld [vmem:[#allocation8 + $0x30] sm:$0xff]
    %v482 = vld [vmem:[#allocation8 + $0x38] sm:$0xff]
    %v483 = vld [vmem:[#allocation8 + $0x40] sm:$0xff]
    %v484 = vld [vmem:[#allocation8 + $0x48] sm:$0xff]
    %v485 = vld [vmem:[#allocation8 + $0x50] sm:$0xff]
    %v486 = vld [vmem:[#allocation8 + $0x58] sm:$0xff]
    %v487 = vld [vmem:[#allocation8 + $0x60] sm:$0xff]
    %v488 = vld [vmem:[#allocation8 + $0x68] sm:$0xff]
    %v489 = vld [vmem:[#allocation8 + $0x70] sm:$0xff]
    %v490 = vld [vmem:[#allocation8 + $0x78] sm:$0xff]
    %v491 = vld [vmem:[#allocation8 + $0x80] sm:$0xff]
    %v492 = vld [vmem:[#allocation8 + $0x88] sm:$0xff]
    %v493 = vld [vmem:[#allocation8 + $0x90] sm:$0xff]
    %v494 = vld [vmem:[#allocation8 + $0x98] sm:$0xff]
    %v495 = vld [vmem:[#allocation8 + $0xa0] sm:$0xff]
    %v496 = vld [vmem:[#allocation8 + $0xa8] sm:$0xff]
    %v497 = vld [vmem:[#allocation8 + $0xb0] sm:$0xff]
    %v498 = vld [vmem:[#allocation8 + $0xb8] sm:$0xff]
    %v499 = vld [vmem:[#allocation8 + $0xc0] sm:$0xff]
    %v500 = vld [vmem:[#allocation8 + $0xc8] sm:$0xff]
    %v501 = vld [vmem:[#allocation8 + $0xd0] sm:$0xff]
    %v502 = vld [vmem:[#allocation8 + $0xd8] sm:$0xff]
    %v503 = vld [vmem:[#allocation8 + $0xe0] sm:$0xff]
    %v504 = vld [vmem:[#allocation8 + $0xe8] sm:$0xff]
    %v505 = vld [vmem:[#allocation8 + $0xf0] sm:$0xff]
    %v506 = vld [vmem:[#allocation8 + $0xf8] sm:$0xff]
    %v507 = vld [vmem:[#allocation8 + $0x100] sm:$0xff]
    %v508 = vld [vmem:[#allocation8 + $0x108] sm:$0xff]
    %v509 = vld [vmem:[#allocation8 + $0x110] sm:$0xff]
    %v510 = vld [vmem:[#allocation8 + $0x118] sm:$0xff]
    %v511 = vld [vmem:[#allocation8 + $0x120] sm:$0xff]
    %v512 = vld [vmem:[#allocation8 + $0x128] sm:$0xff]
    %v513 = vld [vmem:[#allocation8 + $0x130] sm:$0xff]
    %v514 = vld [vmem:[#allocation8 + $0x138] sm:$0xff]
    %v515 = vld [vmem:[#allocation8 + $0x140] sm:$0xff]
    %v516 = vld [vmem:[#allocation8 + $0x148] sm:$0xff]
    %v517 = vld [vmem:[#allocation8 + $0x150] sm:$0xff]
    %v518 = vld [vmem:[#allocation8 + $0x158] sm:$0xff]
    %v519 = vld [vmem:[#allocation8 + $0x160] sm:$0xff]
    %v520 = vld [vmem:[#allocation8 + $0x168] sm:$0xff]
    %v521 = vld [vmem:[#allocation8 + $0x170] sm:$0xff]
    %v522 = vld [vmem:[#allocation8 + $0x178] sm:$0xff]
    %v523 = vld [vmem:[#allocation8 + $0x180] sm:$0xff]
    %v524 = vld [vmem:[#allocation8 + $0x188] sm:$0xff]
    %v525 = vld [vmem:[#allocation8 + $0x190] sm:$0xff]
    %v526 = vld [vmem:[#allocation8 + $0x198] sm:$0xff]
    %v527 = vld [vmem:[#allocation8 + $0x1a0] sm:$0xff]
    %v528 = vld [vmem:[#allocation8 + $0x1a8] sm:$0xff]
    %v529 = vld [vmem:[#allocation8 + $0x1b0] sm:$0xff]
    %v530 = vld [vmem:[#allocation8 + $0x1b8] sm:$0xff]
    %v531 = vld [vmem:[#allocation8 + $0x1c0] sm:$0xff]
    %v532 = vld [vmem:[#allocation8 + $0x1c8] sm:$0xff]
    %v533 = vld [vmem:[#allocation8 + $0x1d0] sm:$0xff]
    %v534 = vld [vmem:[#allocation8 + $0x1d8] sm:$0xff]
    %v535 = vld [vmem:[#allocation8 + $0x1e0] sm:$0xff]
    %v536 = vld [vmem:[#allocation8 + $0x1e8] sm:$0xff]
    %v537 = vld [vmem:[#allocation8 + $0x1f0] sm:$0xff]
    %v538 = vld [vmem:[#allocation8 + $0x1f8] sm:$0xff]
    %v539 = vld [vmem:[#allocation8 + $0x200] sm:$0xff]
    %v540 = vld [vmem:[#allocation8 + $0x208] sm:$0xff]
    %v541 = vld [vmem:[#allocation8 + $0x210] sm:$0xff]
    %v542 = vld [vmem:[#allocation8 + $0x218] sm:$0xff]
    %v543 = vld [vmem:[#allocation8 + $0x220] sm:$0xff]
    %v544 = vld [vmem:[#allocation8 + $0x228] sm:$0xff]
    %v545 = vld [vmem:[#allocation8 + $0x230] sm:$0xff]
    %v546 = vld [vmem:[#allocation8 + $0x238] sm:$0xff]
    %v547 = vld [vmem:[#allocation8 + $0x240] sm:$0xff]
    %v548 = vld [vmem:[#allocation8 + $0x248] sm:$0xff]
    %v549 = vld [vmem:[#allocation8 + $0x250] sm:$0xff]
    %v550 = vld [vmem:[#allocation8 + $0x258] sm:$0xff]
    %v551 = vld [vmem:[#allocation8 + $0x260] sm:$0xff]
    %v552 = vld [vmem:[#allocation8 + $0x268] sm:$0xff]
    %v553 = vld [vmem:[#allocation8 + $0x270] sm:$0xff]
    %v554 = vld [vmem:[#allocation8 + $0x278] sm:$0xff]
    %v555 = vld [vmem:[#allocation8 + $0x280] sm:$0xff]
    %v556 = vld [vmem:[#allocation8 + $0x288] sm:$0xff]
    %v557 = vld [vmem:[#allocation8 + $0x290] sm:$0xff]
    %v558 = vld [vmem:[#allocation8 + $0x298] sm:$0xff]
    %v559 = vld [vmem:[#allocation8 + $0x2a0] sm:$0xff]
    %v560 = vld [vmem:[#allocation8 + $0x2a8] sm:$0xff]
    %v561 = vld [vmem:[#allocation8 + $0x2b0] sm:$0xff]
    %v562 = vld [vmem:[#allocation8 + $0x2b8] sm:$0xff]
    %v563 = vld [vmem:[#allocation8 + $0x2c0] sm:$0xff]
    %v564 = vld [vmem:[#allocation8 + $0x2c8] sm:$0xff]
    %v565 = vld [vmem:[#allocation8 + $0x2d0] sm:$0xff]
    %v566 = vld [vmem:[#allocation8 + $0x2d8] sm:$0xff]
    %v567 = vld [vmem:[#allocation8 + $0x2e0] sm:$0xff]
    %v568 = vld [vmem:[#allocation8 + $0x2e8] sm:$0xff]
    %v569 = vld [vmem:[#allocation8 + $0x2f0] sm:$0xff]
    %v570 = vld [vmem:[#allocation8 + $0x2f8] sm:$0xff]
    %v571 = vld [vmem:[#allocation8 + $0x300] sm:$0xff]
    %v572 = vld [vmem:[#allocation8 + $0x308] sm:$0xff]
    %v573 = vld [vmem:[#allocation8 + $0x310] sm:$0xff]
    %v574 = vld [vmem:[#allocation8 + $0x318] sm:$0xff]
    %v575 = vld [vmem:[#allocation8 + $0x320] sm:$0xff]
    %v576 = vld [vmem:[#allocation8 + $0x328] sm:$0xff]
    %v577 = vld [vmem:[#allocation8 + $0x330] sm:$0xff]
    %v578 = vld [vmem:[#allocation8 + $0x338] sm:$0xff]
    %v579 = vld [vmem:[#allocation8 + $0x340] sm:$0xff]
    %v580 = vld [vmem:[#allocation8 + $0x348] sm:$0xff]
    %v581 = vld [vmem:[#allocation8 + $0x350] sm:$0xff]
    %v582 = vld [vmem:[#allocation8 + $0x358] sm:$0xff]
    %v583 = vld [vmem:[#allocation8 + $0x360] sm:$0xff]
    %v584 = vld [vmem:[#allocation8 + $0x368] sm:$0xff]
    %v585 = vld [vmem:[#allocation8 + $0x370] sm:$0xff]
    %v586 = vld [vmem:[#allocation8 + $0x378] sm:$0xff]
    %v587 = vld [vmem:[#allocation8 + $0x380] sm:$0xff]
    %v588 = vld [vmem:[#allocation8 + $0x388] sm:$0xff]
    %v589 = vld [vmem:[#allocation8 + $0x390] sm:$0xff]
    %v590 = vld [vmem:[#allocation8 + $0x398] sm:$0xff]
    %v591 = vld [vmem:[#allocation8 + $0x3a0] sm:$0xff]
    %v592 = vld [vmem:[#allocation8 + $0x3a8] sm:$0xff]
    %v593 = vld [vmem:[#allocation8 + $0x3b0] sm:$0xff]
    %v594 = vld [vmem:[#allocation8 + $0x3b8] sm:$0xff]
    %v595 = vld [vmem:[#allocation8 + $0x3c0] sm:$0xff]
    %v596 = vld [vmem:[#allocation8 + $0x3c8] sm:$0xff]
    %v597 = vld [vmem:[#allocation8 + $0x3d0] sm:$0xff]
    %v598 = vld [vmem:[#allocation8 + $0x3d8] sm:$0xff]
    %v599 = vld [vmem:[#allocation8 + $0x3e0] sm:$0xff]
    %v600 = vld [vmem:[#allocation8 + $0x3e8] sm:$0xff]
    %v601 = vld [vmem:[#allocation8 + $0x3f0] sm:$0xff]
    %v602 = vld [vmem:[#allocation8 + $0x3f8] sm:$0xff]
    %v603 = vld [vmem:[#allocation8 + $0x400] sm:$0xff]
    %v604 = vld [vmem:[#allocation8 + $0x408] sm:$0xff]
    %v605 = vld [vmem:[#allocation8 + $0x410] sm:$0xff]
    %v606 = vld [vmem:[#allocation8 + $0x418] sm:$0xff]
    %v607 = vld [vmem:[#allocation8 + $0x420] sm:$0xff]
    %v608 = vld [vmem:[#allocation8 + $0x428] sm:$0xff]
    %v609 = vld [vmem:[#allocation8 + $0x430] sm:$0xff]
    %v610 = vld [vmem:[#allocation8 + $0x438] sm:$0xff]
    %v611 = vld [vmem:[#allocation8 + $0x440] sm:$0xff]
    %v612 = vld [vmem:[#allocation8 + $0x448] sm:$0xff]
    %v613 = vld [vmem:[#allocation8 + $0x450] sm:$0xff]
    %v614 = vld [vmem:[#allocation8 + $0x458] sm:$0xff]
    %v615 = vld [vmem:[#allocation8 + $0x460] sm:$0xff]
    %v616 = vld [vmem:[#allocation8 + $0x468] sm:$0xff]
    %v617 = vld [vmem:[#allocation8 + $0x470] sm:$0xff]
    %v618 = vld [vmem:[#allocation8 + $0x478] sm:$0xff]
    %v619 = vld [vmem:[#allocation8 + $0x480] sm:$0xff]
    %v620 = vld [vmem:[#allocation8 + $0x488] sm:$0xff]
    %v621 = vld [vmem:[#allocation8 + $0x490] sm:$0xff]
    %v622 = vld [vmem:[#allocation8 + $0x498] sm:$0xff]
    %v623 = vld [vmem:[#allocation8 + $0x4a0] sm:$0xff]
    %v624 = vld [vmem:[#allocation8 + $0x4a8] sm:$0xff]
    %v625 = vld [vmem:[#allocation8 + $0x4b0] sm:$0xff]
    %v626 = vld [vmem:[#allocation8 + $0x4b8] sm:$0xff]
    %v627 = vld [vmem:[#allocation8 + $0x4c0] sm:$0xff]
    %v628 = vld [vmem:[#allocation8 + $0x4c8] sm:$0xff]
    %v629 = vld [vmem:[#allocation8 + $0x4d0] sm:$0xff]
    %v630 = vld [vmem:[#allocation8 + $0x4d8] sm:$0xff]
    %v631 = vld [vmem:[#allocation8 + $0x4e0] sm:$0xff]
    %v632 = vld [vmem:[#allocation8 + $0x4e8] sm:$0xff]
    %v633 = vld [vmem:[#allocation8 + $0x4f0] sm:$0xff]
    %v634 = vld [vmem:[#allocation8 + $0x4f8] sm:$0xff]
    %v635 = vld [vmem:[#allocation8 + $0x500] sm:$0xff]
    %v636 = vld [vmem:[#allocation8 + $0x508] sm:$0xff]
    %v637 = vld [vmem:[#allocation8 + $0x510] sm:$0xff]
    %v638 = vld [vmem:[#allocation8 + $0x518] sm:$0xff]
    %v639 = vld [vmem:[#allocation8 + $0x520] sm:$0xff]
    %v640 = vld [vmem:[#allocation8 + $0x528] sm:$0xff]
    %v641 = vld [vmem:[#allocation8 + $0x530] sm:$0xff]
    %v642 = vld [vmem:[#allocation8 + $0x538] sm:$0xff]
    %v643 = vld [vmem:[#allocation8 + $0x540] sm:$0xff]
    %v644 = vld [vmem:[#allocation8 + $0x548] sm:$0xff]
    %v645 = vld [vmem:[#allocation8 + $0x550] sm:$0xff]
    %v646 = vld [vmem:[#allocation8 + $0x558] sm:$0xff]
    %v647 = vld [vmem:[#allocation8 + $0x560] sm:$0xff]
    %v648 = vld [vmem:[#allocation8 + $0x568] sm:$0xff]
    %v649 = vld [vmem:[#allocation8 + $0x570] sm:$0xff]
    %v650 = vld [vmem:[#allocation8 + $0x578] sm:$0xff]
    %v651 = vld [vmem:[#allocation8 + $0x580] sm:$0xff]
    %v652 = vld [vmem:[#allocation8 + $0x588] sm:$0xff]
    %v653 = vld [vmem:[#allocation8 + $0x590] sm:$0xff]
    %v654 = vld [vmem:[#allocation8 + $0x598] sm:$0xff]
    %v655 = vld [vmem:[#allocation8 + $0x5a0] sm:$0xff]
    %v656 = vld [vmem:[#allocation8 + $0x5a8] sm:$0xff]
    %v657 = vld [vmem:[#allocation8 + $0x5b0] sm:$0xff]
    %v658 = vld [vmem:[#allocation8 + $0x5b8] sm:$0xff]
    %v659 = vld [vmem:[#allocation8 + $0x5c0] sm:$0xff]
    %v660 = vld [vmem:[#allocation8 + $0x5c8] sm:$0xff]
    %v661 = vld [vmem:[#allocation8 + $0x5d0] sm:$0xff]
    %v662 = vld [vmem:[#allocation8 + $0x5d8] sm:$0xff]
    %v663 = vld [vmem:[#allocation8 + $0x5e0] sm:$0xff]
    %v664 = vld [vmem:[#allocation8 + $0x5e8] sm:$0xff]
    %v665 = vld [vmem:[#allocation8 + $0x5f0] sm:$0xff]
    %v666 = vld [vmem:[#allocation8 + $0x5f8] sm:$0xff]
    %v667 = vld [vmem:[#allocation8 + $0x600] sm:$0xff]
    %v668 = vld [vmem:[#allocation8 + $0x608] sm:$0xff]
    %v669 = vld [vmem:[#allocation8 + $0x610] sm:$0xff]
    %v670 = vld [vmem:[#allocation8 + $0x618] sm:$0xff]
    %v671 = vld [vmem:[#allocation8 + $0x620] sm:$0xff]
    %v672 = vld [vmem:[#allocation8 + $0x628] sm:$0xff]
    %v673 = vld [vmem:[#allocation8 + $0x630] sm:$0xff]
    %v674 = vld [vmem:[#allocation8 + $0x638] sm:$0xff]
    %v675 = vld [vmem:[#allocation8 + $0x640] sm:$0xff]
    %v676 = vld [vmem:[#allocation8 + $0x648] sm:$0xff]
    %v677 = vld [vmem:[#allocation8 + $0x650] sm:$0xff]
    %v678 = vld [vmem:[#allocation8 + $0x658] sm:$0xff]
    %v679 = vld [vmem:[#allocation8 + $0x660] sm:$0xff]
    %v680 = vld [vmem:[#allocation8 + $0x668] sm:$0xff]
    %v681 = vld [vmem:[#allocation8 + $0x670] sm:$0xff]
    %v682 = vld [vmem:[#allocation8 + $0x678] sm:$0xff]
    %v683 = vld [vmem:[#allocation8 + $0x680] sm:$0xff]
    %v684 = vld [vmem:[#allocation8 + $0x688] sm:$0xff]
    %v685 = vld [vmem:[#allocation8 + $0x690] sm:$0xff]
    %v686 = vld [vmem:[#allocation8 + $0x698] sm:$0xff]
    %v687 = vld [vmem:[#allocation8 + $0x6a0] sm:$0xff]
    %v688 = vld [vmem:[#allocation8 + $0x6a8] sm:$0xff]
    %v689 = vld [vmem:[#allocation8 + $0x6b0] sm:$0xff]
    %v690 = vld [vmem:[#allocation8 + $0x6b8] sm:$0xff]
    %v691 = vld [vmem:[#allocation8 + $0x6c0] sm:$0xff]
    %v692 = vld [vmem:[#allocation8 + $0x6c8] sm:$0xff]
    %v693 = vld [vmem:[#allocation8 + $0x6d0] sm:$0xff]
    %v694 = vld [vmem:[#allocation8 + $0x6d8] sm:$0xff]
    %v695 = vld [vmem:[#allocation8 + $0x6e0] sm:$0xff]
    %v696 = vld [vmem:[#allocation8 + $0x6e8] sm:$0xff]
    %v697 = vld [vmem:[#allocation8 + $0x6f0] sm:$0xff]
    %v698 = vld [vmem:[#allocation8 + $0x6f8] sm:$0xff]
    %v699 = vld [vmem:[#allocation8 + $0x700] sm:$0xff]
    %v700 = vld [vmem:[#allocation8 + $0x708] sm:$0xff]
    %v701 = vld [vmem:[#allocation8 + $0x710] sm:$0xff]
    %v702 = vld [vmem:[#allocation8 + $0x718] sm:$0xff]
    %v703 = vld [vmem:[#allocation8 + $0x720] sm:$0xff]
    %v704 = vld [vmem:[#allocation8 + $0x728] sm:$0xff]
    %v705 = vld [vmem:[#allocation8 + $0x730] sm:$0xff]
    %v706 = vld [vmem:[#allocation8 + $0x738] sm:$0xff]
    %v707 = vld [vmem:[#allocation8 + $0x740] sm:$0xff]
    %v708 = vld [vmem:[#allocation8 + $0x748] sm:$0xff]
    %v709 = vld [vmem:[#allocation8 + $0x750] sm:$0xff]
    %v710 = vld [vmem:[#allocation8 + $0x758] sm:$0xff]
    %v711 = vld [vmem:[#allocation8 + $0x760] sm:$0xff]
    %v712 = vld [vmem:[#allocation8 + $0x768] sm:$0xff]
    %v713 = vld [vmem:[#allocation8 + $0x770] sm:$0xff]
    %v714 = vld [vmem:[#allocation8 + $0x778] sm:$0xff]
    %v715 = vld [vmem:[#allocation8 + $0x780] sm:$0xff]
    %v716 = vld [vmem:[#allocation8 + $0x788] sm:$0xff]
    %v717 = vld [vmem:[#allocation8 + $0x790] sm:$0xff]
    %v718 = vld [vmem:[#allocation8 + $0x798] sm:$0xff]
    %v719 = vld [vmem:[#allocation8 + $0x7a0] sm:$0xff]
    %v720 = vld [vmem:[#allocation8 + $0x7a8] sm:$0xff]
    %v721 = vld [vmem:[#allocation8 + $0x7b0] sm:$0xff]
    %v722 = vld [vmem:[#allocation8 + $0x7b8] sm:$0xff]
    %v723 = vld [vmem:[#allocation8 + $0x7c0] sm:$0xff]
    %v724 = vld [vmem:[#allocation8 + $0x7c8] sm:$0xff]
    %v725 = vld [vmem:[#allocation8 + $0x7d0] sm:$0xff]
    %v726 = vld [vmem:[#allocation8 + $0x7d8] sm:$0xff]
    %v727 = vld [vmem:[#allocation8 + $0x7e0] sm:$0xff]
    %v728 = vld [vmem:[#allocation8 + $0x7e8] sm:$0xff]
    %v729 = vld [vmem:[#allocation8 + $0x7f0] sm:$0xff]
    %v730 = vld [vmem:[#allocation8 + $0x7f8] sm:$0xff]
    %v987 = vunpack.c.l.b16 %v475
    %v988 = vunpack.c.h.b16 %v475
    %v989 = vunpack.c.l.b16 %v476
    %v990 = vunpack.c.h.b16 %v476
    %v991 = vunpack.c.l.b16 %v477
    %v992 = vunpack.c.h.b16 %v477
    %v993 = vunpack.c.l.b16 %v478
    %v994 = vunpack.c.h.b16 %v478
    %v995 = vunpack.c.l.b16 %v479
    %v996 = vunpack.c.h.b16 %v479
    %v997 = vunpack.c.l.b16 %v480
    %v998 = vunpack.c.h.b16 %v480
    %v999 = vunpack.c.l.b16 %v481
    %v1000 = vunpack.c.h.b16 %v481
    %v1001 = vunpack.c.l.b16 %v482
    %v1002 = vunpack.c.h.b16 %v482
    %v1003 = vunpack.c.l.b16 %v483
    %v1004 = vunpack.c.h.b16 %v483
    %v1005 = vunpack.c.l.b16 %v484
    %v1006 = vunpack.c.h.b16 %v484
    %v1007 = vunpack.c.l.b16 %v485
    %v1008 = vunpack.c.h.b16 %v485
    %v1009 = vunpack.c.l.b16 %v486
    %v1010 = vunpack.c.h.b16 %v486
    %v1011 = vunpack.c.l.b16 %v487
    %v1012 = vunpack.c.h.b16 %v487
    %v1013 = vunpack.c.l.b16 %v488
    %v1014 = vunpack.c.h.b16 %v488
    %v1015 = vunpack.c.l.b16 %v489
    %v1016 = vunpack.c.h.b16 %v489
    %v1017 = vunpack.c.l.b16 %v490
    %v1018 = vunpack.c.h.b16 %v490
    %v1019 = vunpack.c.l.b16 %v491
    %v1020 = vunpack.c.h.b16 %v491
    %v1021 = vunpack.c.l.b16 %v492
    %v1022 = vunpack.c.h.b16 %v492
    %v1023 = vunpack.c.l.b16 %v493
    %v1024 = vunpack.c.h.b16 %v493
    %v1025 = vunpack.c.l.b16 %v494
    %v1026 = vunpack.c.h.b16 %v494
    %v1027 = vunpack.c.l.b16 %v495
    %v1028 = vunpack.c.h.b16 %v495
    %v1029 = vunpack.c.l.b16 %v496
    %v1030 = vunpack.c.h.b16 %v496
    %v1031 = vunpack.c.l.b16 %v497
    %v1032 = vunpack.c.h.b16 %v497
    %v1033 = vunpack.c.l.b16 %v498
    %v1034 = vunpack.c.h.b16 %v498
    %v1035 = vunpack.c.l.b16 %v499
    %v1036 = vunpack.c.h.b16 %v499
    %v1037 = vunpack.c.l.b16 %v500
    %v1038 = vunpack.c.h.b16 %v500
    %v1039 = vunpack.c.l.b16 %v501
    %v1040 = vunpack.c.h.b16 %v501
    %v1041 = vunpack.c.l.b16 %v502
    %v1042 = vunpack.c.h.b16 %v502
    %v1043 = vunpack.c.l.b16 %v503
    %v1044 = vunpack.c.h.b16 %v503
    %v1045 = vunpack.c.l.b16 %v504
    %v1046 = vunpack.c.h.b16 %v504
    %v1047 = vunpack.c.l.b16 %v505
    %v1048 = vunpack.c.h.b16 %v505
    %v1049 = vunpack.c.l.b16 %v506
    %v1050 = vunpack.c.h.b16 %v506
    %v1051 = vunpack.c.l.b16 %v507
    %v1052 = vunpack.c.h.b16 %v507
    %v1053 = vunpack.c.l.b16 %v508
    %v1054 = vunpack.c.h.b16 %v508
    %v1055 = vunpack.c.l.b16 %v509
    %v1056 = vunpack.c.h.b16 %v509
    %v1057 = vunpack.c.l.b16 %v510
    %v1058 = vunpack.c.h.b16 %v510
    %v1059 = vunpack.c.l.b16 %v511
    %v1060 = vunpack.c.h.b16 %v511
    %v1061 = vunpack.c.l.b16 %v512
    %v1062 = vunpack.c.h.b16 %v512
    %v1063 = vunpack.c.l.b16 %v513
    %v1064 = vunpack.c.h.b16 %v513
    %v1065 = vunpack.c.l.b16 %v514
    %v1066 = vunpack.c.h.b16 %v514
    %v1067 = vunpack.c.l.b16 %v515
    %v1068 = vunpack.c.h.b16 %v515
    %v1069 = vunpack.c.l.b16 %v516
    %v1070 = vunpack.c.h.b16 %v516
    %v1071 = vunpack.c.l.b16 %v517
    %v1072 = vunpack.c.h.b16 %v517
    %v1073 = vunpack.c.l.b16 %v518
    %v1074 = vunpack.c.h.b16 %v518
    %v1075 = vunpack.c.l.b16 %v519
    %v1076 = vunpack.c.h.b16 %v519
    %v1077 = vunpack.c.l.b16 %v520
    %v1078 = vunpack.c.h.b16 %v520
    %v1079 = vunpack.c.l.b16 %v521
    %v1080 = vunpack.c.h.b16 %v521
    %v1081 = vunpack.c.l.b16 %v522
    %v1082 = vunpack.c.h.b16 %v522
    %v1083 = vunpack.c.l.b16 %v523
    %v1084 = vunpack.c.h.b16 %v523
    %v1085 = vunpack.c.l.b16 %v524
    %v1086 = vunpack.c.h.b16 %v524
    %v1087 = vunpack.c.l.b16 %v525
    %v1088 = vunpack.c.h.b16 %v525
    %v1089 = vunpack.c.l.b16 %v526
    %v1090 = vunpack.c.h.b16 %v526
    %v1091 = vunpack.c.l.b16 %v527
    %v1092 = vunpack.c.h.b16 %v527
    %v1093 = vunpack.c.l.b16 %v528
    %v1094 = vunpack.c.h.b16 %v528
    %v1095 = vunpack.c.l.b16 %v529
    %v1096 = vunpack.c.h.b16 %v529
    %v1097 = vunpack.c.l.b16 %v530
    %v1098 = vunpack.c.h.b16 %v530
    %v1099 = vunpack.c.l.b16 %v531
    %v1100 = vunpack.c.h.b16 %v531
    %v1101 = vunpack.c.l.b16 %v532
    %v1102 = vunpack.c.h.b16 %v532
    %v1103 = vunpack.c.l.b16 %v533
    %v1104 = vunpack.c.h.b16 %v533
    %v1105 = vunpack.c.l.b16 %v534
    %v1106 = vunpack.c.h.b16 %v534
    %v1107 = vunpack.c.l.b16 %v535
    %v1108 = vunpack.c.h.b16 %v535
    %v1109 = vunpack.c.l.b16 %v536
    %v1110 = vunpack.c.h.b16 %v536
    %v1111 = vunpack.c.l.b16 %v537
    %v1112 = vunpack.c.h.b16 %v537
    %v1113 = vunpack.c.l.b16 %v538
    %v1114 = vunpack.c.h.b16 %v538
    %v1115 = vunpack.c.l.b16 %v539
    %v1116 = vunpack.c.h.b16 %v539
    %v1117 = vunpack.c.l.b16 %v540
    %v1118 = vunpack.c.h.b16 %v540
    %v1119 = vunpack.c.l.b16 %v541
    %v1120 = vunpack.c.h.b16 %v541
    %v1121 = vunpack.c.l.b16 %v542
    %v1122 = vunpack.c.h.b16 %v542
    %v1123 = vunpack.c.l.b16 %v543
    %v1124 = vunpack.c.h.b16 %v543
    %v1125 = vunpack.c.l.b16 %v544
    %v1126 = vunpack.c.h.b16 %v544
    %v1127 = vunpack.c.l.b16 %v545
    %v1128 = vunpack.c.h.b16 %v545
    %v1129 = vunpack.c.l.b16 %v546
    %v1130 = vunpack.c.h.b16 %v546
    %v1131 = vunpack.c.l.b16 %v547
    %v1132 = vunpack.c.h.b16 %v547
    %v1133 = vunpack.c.l.b16 %v548
    %v1134 = vunpack.c.h.b16 %v548
    %v1135 = vunpack.c.l.b16 %v549
    %v1136 = vunpack.c.h.b16 %v549
    %v1137 = vunpack.c.l.b16 %v550
    %v1138 = vunpack.c.h.b16 %v550
    %v1139 = vunpack.c.l.b16 %v551
    %v1140 = vunpack.c.h.b16 %v551
    %v1141 = vunpack.c.l.b16 %v552
    %v1142 = vunpack.c.h.b16 %v552
    %v1143 = vunpack.c.l.b16 %v553
    %v1144 = vunpack.c.h.b16 %v553
    %v1145 = vunpack.c.l.b16 %v554
    %v1146 = vunpack.c.h.b16 %v554
    %v1147 = vunpack.c.l.b16 %v555
    %v1148 = vunpack.c.h.b16 %v555
    %v1149 = vunpack.c.l.b16 %v556
    %v1150 = vunpack.c.h.b16 %v556
    %v1151 = vunpack.c.l.b16 %v557
    %v1152 = vunpack.c.h.b16 %v557
    %v1153 = vunpack.c.l.b16 %v558
    %v1154 = vunpack.c.h.b16 %v558
    %v1155 = vunpack.c.l.b16 %v559
    %v1156 = vunpack.c.h.b16 %v559
    %v1157 = vunpack.c.l.b16 %v560
    %v1158 = vunpack.c.h.b16 %v560
    %v1159 = vunpack.c.l.b16 %v561
    %v1160 = vunpack.c.h.b16 %v561
    %v1161 = vunpack.c.l.b16 %v562
    %v1162 = vunpack.c.h.b16 %v562
    %v1163 = vunpack.c.l.b16 %v563
    %v1164 = vunpack.c.h.b16 %v563
    %v1165 = vunpack.c.l.b16 %v564
    %v1166 = vunpack.c.h.b16 %v564
    %v1167 = vunpack.c.l.b16 %v565
    %v1168 = vunpack.c.h.b16 %v565
    %v1169 = vunpack.c.l.b16 %v566
    %v1170 = vunpack.c.h.b16 %v566
    %v1171 = vunpack.c.l.b16 %v567
    %v1172 = vunpack.c.h.b16 %v567
    %v1173 = vunpack.c.l.b16 %v568
    %v1174 = vunpack.c.h.b16 %v568
    %v1175 = vunpack.c.l.b16 %v569
    %v1176 = vunpack.c.h.b16 %v569
    %v1177 = vunpack.c.l.b16 %v570
    %v1178 = vunpack.c.h.b16 %v570
    %v1179 = vunpack.c.l.b16 %v571
    %v1180 = vunpack.c.h.b16 %v571
    %v1181 = vunpack.c.l.b16 %v572
    %v1182 = vunpack.c.h.b16 %v572
    %v1183 = vunpack.c.l.b16 %v573
    %v1184 = vunpack.c.h.b16 %v573
    %v1185 = vunpack.c.l.b16 %v574
    %v1186 = vunpack.c.h.b16 %v574
    %v1187 = vunpack.c.l.b16 %v575
    %v1188 = vunpack.c.h.b16 %v575
    %v1189 = vunpack.c.l.b16 %v576
    %v1190 = vunpack.c.h.b16 %v576
    %v1191 = vunpack.c.l.b16 %v577
    %v1192 = vunpack.c.h.b16 %v577
    %v1193 = vunpack.c.l.b16 %v578
    %v1194 = vunpack.c.h.b16 %v578
    %v1195 = vunpack.c.l.b16 %v579
    %v1196 = vunpack.c.h.b16 %v579
    %v1197 = vunpack.c.l.b16 %v580
    %v1198 = vunpack.c.h.b16 %v580
    %v1199 = vunpack.c.l.b16 %v581
    %v1200 = vunpack.c.h.b16 %v581
    %v1201 = vunpack.c.l.b16 %v582
    %v1202 = vunpack.c.h.b16 %v582
    %v1203 = vunpack.c.l.b16 %v583
    %v1204 = vunpack.c.h.b16 %v583
    %v1205 = vunpack.c.l.b16 %v584
    %v1206 = vunpack.c.h.b16 %v584
    %v1207 = vunpack.c.l.b16 %v585
    %v1208 = vunpack.c.h.b16 %v585
    %v1209 = vunpack.c.l.b16 %v586
    %v1210 = vunpack.c.h.b16 %v586
    %v1211 = vunpack.c.l.b16 %v587
    %v1212 = vunpack.c.h.b16 %v587
    %v1213 = vunpack.c.l.b16 %v588
    %v1214 = vunpack.c.h.b16 %v588
    %v1215 = vunpack.c.l.b16 %v589
    %v1216 = vunpack.c.h.b16 %v589
    %v1217 = vunpack.c.l.b16 %v590
    %v1218 = vunpack.c.h.b16 %v590
    %v1219 = vunpack.c.l.b16 %v591
    %v1220 = vunpack.c.h.b16 %v591
    %v1221 = vunpack.c.l.b16 %v592
    %v1222 = vunpack.c.h.b16 %v592
    %v1223 = vunpack.c.l.b16 %v593
    %v1224 = vunpack.c.h.b16 %v593
    %v1225 = vunpack.c.l.b16 %v594
    %v1226 = vunpack.c.h.b16 %v594
    %v1227 = vunpack.c.l.b16 %v595
    %v1228 = vunpack.c.h.b16 %v595
    %v1229 = vunpack.c.l.b16 %v596
    %v1230 = vunpack.c.h.b16 %v596
    %v1231 = vunpack.c.l.b16 %v597
    %v1232 = vunpack.c.h.b16 %v597
    %v1233 = vunpack.c.l.b16 %v598
    %v1234 = vunpack.c.h.b16 %v598
    %v1235 = vunpack.c.l.b16 %v599
    %v1236 = vunpack.c.h.b16 %v599
    %v1237 = vunpack.c.l.b16 %v600
    %v1238 = vunpack.c.h.b16 %v600
    %v1239 = vunpack.c.l.b16 %v601
    %v1240 = vunpack.c.h.b16 %v601
    %v1241 = vunpack.c.l.b16 %v602
    %v1242 = vunpack.c.h.b16 %v602
    %v1243 = vunpack.c.l.b16 %v603
    %v1244 = vunpack.c.h.b16 %v603
    %v1245 = vunpack.c.l.b16 %v604
    %v1246 = vunpack.c.h.b16 %v604
    %v1247 = vunpack.c.l.b16 %v605
    %v1248 = vunpack.c.h.b16 %v605
    %v1249 = vunpack.c.l.b16 %v606
    %v1250 = vunpack.c.h.b16 %v606
    %v1251 = vunpack.c.l.b16 %v607
    %v1252 = vunpack.c.h.b16 %v607
    %v1253 = vunpack.c.l.b16 %v608
    %v1254 = vunpack.c.h.b16 %v608
    %v1255 = vunpack.c.l.b16 %v609
    %v1256 = vunpack.c.h.b16 %v609
    %v1257 = vunpack.c.l.b16 %v610
    %v1258 = vunpack.c.h.b16 %v610
    %v1259 = vunpack.c.l.b16 %v611
    %v1260 = vunpack.c.h.b16 %v611
    %v1261 = vunpack.c.l.b16 %v612
    %v1262 = vunpack.c.h.b16 %v612
    %v1263 = vunpack.c.l.b16 %v613
    %v1264 = vunpack.c.h.b16 %v613
    %v1265 = vunpack.c.l.b16 %v614
    %v1266 = vunpack.c.h.b16 %v614
    %v1267 = vunpack.c.l.b16 %v615
    %v1268 = vunpack.c.h.b16 %v615
    %v1269 = vunpack.c.l.b16 %v616
    %v1270 = vunpack.c.h.b16 %v616
    %v1271 = vunpack.c.l.b16 %v617
    %v1272 = vunpack.c.h.b16 %v617
    %v1273 = vunpack.c.l.b16 %v618
    %v1274 = vunpack.c.h.b16 %v618
    %v1275 = vunpack.c.l.b16 %v619
    %v1276 = vunpack.c.h.b16 %v619
    %v1277 = vunpack.c.l.b16 %v620
    %v1278 = vunpack.c.h.b16 %v620
    %v1279 = vunpack.c.l.b16 %v621
    %v1280 = vunpack.c.h.b16 %v621
    %v1281 = vunpack.c.l.b16 %v622
    %v1282 = vunpack.c.h.b16 %v622
    %v1283 = vunpack.c.l.b16 %v623
    %v1284 = vunpack.c.h.b16 %v623
    %v1285 = vunpack.c.l.b16 %v624
    %v1286 = vunpack.c.h.b16 %v624
    %v1287 = vunpack.c.l.b16 %v625
    %v1288 = vunpack.c.h.b16 %v625
    %v1289 = vunpack.c.l.b16 %v626
    %v1290 = vunpack.c.h.b16 %v626
    %v1291 = vunpack.c.l.b16 %v627
    %v1292 = vunpack.c.h.b16 %v627
    %v1293 = vunpack.c.l.b16 %v628
    %v1294 = vunpack.c.h.b16 %v628
    %v1295 = vunpack.c.l.b16 %v629
    %v1296 = vunpack.c.h.b16 %v629
    %v1297 = vunpack.c.l.b16 %v630
    %v1298 = vunpack.c.h.b16 %v630
    %v1299 = vunpack.c.l.b16 %v631
    %v1300 = vunpack.c.h.b16 %v631
    %v1301 = vunpack.c.l.b16 %v632
    %v1302 = vunpack.c.h.b16 %v632
    %v1303 = vunpack.c.l.b16 %v633
    %v1304 = vunpack.c.h.b16 %v633
    %v1305 = vunpack.c.l.b16 %v634
    %v1306 = vunpack.c.h.b16 %v634
    %v1307 = vunpack.c.l.b16 %v635
    %v1308 = vunpack.c.h.b16 %v635
    %v1309 = vunpack.c.l.b16 %v636
    %v1310 = vunpack.c.h.b16 %v636
    %v1311 = vunpack.c.l.b16 %v637
    %v1312 = vunpack.c.h.b16 %v637
    %v1313 = vunpack.c.l.b16 %v638
    %v1314 = vunpack.c.h.b16 %v638
    %v1315 = vunpack.c.l.b16 %v639
    %v1316 = vunpack.c.h.b16 %v639
    %v1317 = vunpack.c.l.b16 %v640
    %v1318 = vunpack.c.h.b16 %v640
    %v1319 = vunpack.c.l.b16 %v641
    %v1320 = vunpack.c.h.b16 %v641
    %v1321 = vunpack.c.l.b16 %v642
    %v1322 = vunpack.c.h.b16 %v642
    %v1323 = vunpack.c.l.b16 %v643
    %v1324 = vunpack.c.h.b16 %v643
    %v1325 = vunpack.c.l.b16 %v644
    %v1326 = vunpack.c.h.b16 %v644
    %v1327 = vunpack.c.l.b16 %v645
    %v1328 = vunpack.c.h.b16 %v645
    %v1329 = vunpack.c.l.b16 %v646
    %v1330 = vunpack.c.h.b16 %v646
    %v1331 = vunpack.c.l.b16 %v647
    %v1332 = vunpack.c.h.b16 %v647
    %v1333 = vunpack.c.l.b16 %v648
    %v1334 = vunpack.c.h.b16 %v648
    %v1335 = vunpack.c.l.b16 %v649
    %v1336 = vunpack.c.h.b16 %v649
    %v1337 = vunpack.c.l.b16 %v650
    %v1338 = vunpack.c.h.b16 %v650
    %v1339 = vunpack.c.l.b16 %v651
    %v1340 = vunpack.c.h.b16 %v651
    %v1341 = vunpack.c.l.b16 %v652
    %v1342 = vunpack.c.h.b16 %v652
    %v1343 = vunpack.c.l.b16 %v653
    %v1344 = vunpack.c.h.b16 %v653
    %v1345 = vunpack.c.l.b16 %v654
    %v1346 = vunpack.c.h.b16 %v654
    %v1347 = vunpack.c.l.b16 %v655
    %v1348 = vunpack.c.h.b16 %v655
    %v1349 = vunpack.c.l.b16 %v656
    %v1350 = vunpack.c.h.b16 %v656
    %v1351 = vunpack.c.l.b16 %v657
    %v1352 = vunpack.c.h.b16 %v657
    %v1353 = vunpack.c.l.b16 %v658
    %v1354 = vunpack.c.h.b16 %v658
    %v1355 = vunpack.c.l.b16 %v659
    %v1356 = vunpack.c.h.b16 %v659
    %v1357 = vunpack.c.l.b16 %v660
    %v1358 = vunpack.c.h.b16 %v660
    %v1359 = vunpack.c.l.b16 %v661
    %v1360 = vunpack.c.h.b16 %v661
    %v1361 = vunpack.c.l.b16 %v662
    %v1362 = vunpack.c.h.b16 %v662
    %v1363 = vunpack.c.l.b16 %v663
    %v1364 = vunpack.c.h.b16 %v663
    %v1365 = vunpack.c.l.b16 %v664
    %v1366 = vunpack.c.h.b16 %v664
    %v1367 = vunpack.c.l.b16 %v665
    %v1368 = vunpack.c.h.b16 %v665
    %v1369 = vunpack.c.l.b16 %v666
    %v1370 = vunpack.c.h.b16 %v666
    %v1371 = vunpack.c.l.b16 %v667
    %v1372 = vunpack.c.h.b16 %v667
    %v1373 = vunpack.c.l.b16 %v668
    %v1374 = vunpack.c.h.b16 %v668
    %v1375 = vunpack.c.l.b16 %v669
    %v1376 = vunpack.c.h.b16 %v669
    %v1377 = vunpack.c.l.b16 %v670
    %v1378 = vunpack.c.h.b16 %v670
    %v1379 = vunpack.c.l.b16 %v671
    %v1380 = vunpack.c.h.b16 %v671
    %v1381 = vunpack.c.l.b16 %v672
    %v1382 = vunpack.c.h.b16 %v672
    %v1383 = vunpack.c.l.b16 %v673
    %v1384 = vunpack.c.h.b16 %v673
    %v1385 = vunpack.c.l.b16 %v674
    %v1386 = vunpack.c.h.b16 %v674
    %v1387 = vunpack.c.l.b16 %v675
    %v1388 = vunpack.c.h.b16 %v675
    %v1389 = vunpack.c.l.b16 %v676
    %v1390 = vunpack.c.h.b16 %v676
    %v1391 = vunpack.c.l.b16 %v677
    %v1392 = vunpack.c.h.b16 %v677
    %v1393 = vunpack.c.l.b16 %v678
    %v1394 = vunpack.c.h.b16 %v678
    %v1395 = vunpack.c.l.b16 %v679
    %v1396 = vunpack.c.h.b16 %v679
    %v1397 = vunpack.c.l.b16 %v680
    %v1398 = vunpack.c.h.b16 %v680
    %v1399 = vunpack.c.l.b16 %v681
    %v1400 = vunpack.c.h.b16 %v681
    %v1401 = vunpack.c.l.b16 %v682
    %v1402 = vunpack.c.h.b16 %v682
    %v1403 = vunpack.c.l.b16 %v683
    %v1404 = vunpack.c.h.b16 %v683
    %v1405 = vunpack.c.l.b16 %v684
    %v1406 = vunpack.c.h.b16 %v684
    %v1407 = vunpack.c.l.b16 %v685
    %v1408 = vunpack.c.h.b16 %v685
    %v1409 = vunpack.c.l.b16 %v686
    %v1410 = vunpack.c.h.b16 %v686
    %v1411 = vunpack.c.l.b16 %v687
    %v1412 = vunpack.c.h.b16 %v687
    %v1413 = vunpack.c.l.b16 %v688
    %v1414 = vunpack.c.h.b16 %v688
    %v1415 = vunpack.c.l.b16 %v689
    %v1416 = vunpack.c.h.b16 %v689
    %v1417 = vunpack.c.l.b16 %v690
    %v1418 = vunpack.c.h.b16 %v690
    %v1419 = vunpack.c.l.b16 %v691
    %v1420 = vunpack.c.h.b16 %v691
    %v1421 = vunpack.c.l.b16 %v692
    %v1422 = vunpack.c.h.b16 %v692
    %v1423 = vunpack.c.l.b16 %v693
    %v1424 = vunpack.c.h.b16 %v693
    %v1425 = vunpack.c.l.b16 %v694
    %v1426 = vunpack.c.h.b16 %v694
    %v1427 = vunpack.c.l.b16 %v695
    %v1428 = vunpack.c.h.b16 %v695
    %v1429 = vunpack.c.l.b16 %v696
    %v1430 = vunpack.c.h.b16 %v696
    %v1431 = vunpack.c.l.b16 %v697
    %v1432 = vunpack.c.h.b16 %v697
    %v1433 = vunpack.c.l.b16 %v698
    %v1434 = vunpack.c.h.b16 %v698
    %v1435 = vunpack.c.l.b16 %v699
    %v1436 = vunpack.c.h.b16 %v699
    %v1437 = vunpack.c.l.b16 %v700
    %v1438 = vunpack.c.h.b16 %v700
    %v1439 = vunpack.c.l.b16 %v701
    %v1440 = vunpack.c.h.b16 %v701
    %v1441 = vunpack.c.l.b16 %v702
    %v1442 = vunpack.c.h.b16 %v702
    %v1443 = vunpack.c.l.b16 %v703
    %v1444 = vunpack.c.h.b16 %v703
    %v1445 = vunpack.c.l.b16 %v704
    %v1446 = vunpack.c.h.b16 %v704
    %v1447 = vunpack.c.l.b16 %v705
    %v1448 = vunpack.c.h.b16 %v705
    %v1449 = vunpack.c.l.b16 %v706
    %v1450 = vunpack.c.h.b16 %v706
    %v1451 = vunpack.c.l.b16 %v707
    %v1452 = vunpack.c.h.b16 %v707
    %v1453 = vunpack.c.l.b16 %v708
    %v1454 = vunpack.c.h.b16 %v708
    %v1455 = vunpack.c.l.b16 %v709
    %v1456 = vunpack.c.h.b16 %v709
    %v1457 = vunpack.c.l.b16 %v710
    %v1458 = vunpack.c.h.b16 %v710
    %v1459 = vunpack.c.l.b16 %v711
    %v1460 = vunpack.c.h.b16 %v711
    %v1461 = vunpack.c.l.b16 %v712
    %v1462 = vunpack.c.h.b16 %v712
    %v1463 = vunpack.c.l.b16 %v713
    %v1464 = vunpack.c.h.b16 %v713
    %v1465 = vunpack.c.l.b16 %v714
    %v1466 = vunpack.c.h.b16 %v714
    %v1467 = vunpack.c.l.b16 %v715
    %v1468 = vunpack.c.h.b16 %v715
    %v1469 = vunpack.c.l.b16 %v716
    %v1470 = vunpack.c.h.b16 %v716
    %v1471 = vunpack.c.l.b16 %v717
    %v1472 = vunpack.c.h.b16 %v717
    %v1473 = vunpack.c.l.b16 %v718
    %v1474 = vunpack.c.h.b16 %v718
    %v1475 = vunpack.c.l.b16 %v719
    %v1476 = vunpack.c.h.b16 %v719
    %v1477 = vunpack.c.l.b16 %v720
    %v1478 = vunpack.c.h.b16 %v720
    %v1479 = vunpack.c.l.b16 %v721
    %v1480 = vunpack.c.h.b16 %v721
    %v1481 = vunpack.c.l.b16 %v722
    %v1482 = vunpack.c.h.b16 %v722
    %v1483 = vunpack.c.l.b16 %v723
    %v1484 = vunpack.c.h.b16 %v723
    %v1485 = vunpack.c.l.b16 %v724
    %v1486 = vunpack.c.h.b16 %v724
    %v1487 = vunpack.c.l.b16 %v725
    %v1488 = vunpack.c.h.b16 %v725
    %v1489 = vunpack.c.l.b16 %v726
    %v1490 = vunpack.c.h.b16 %v726
    %v1491 = vunpack.c.l.b16 %v727
    %v1492 = vunpack.c.h.b16 %v727
    %v1493 = vunpack.c.l.b16 %v728
    %v1494 = vunpack.c.h.b16 %v728
    %v1495 = vunpack.c.l.b16 %v729
    %v1496 = vunpack.c.h.b16 %v729
    %v1497 = vunpack.c.l.b16 %v730
    %v1498 = vunpack.c.h.b16 %v730
    %v1499 = vpack.c.b16 %v995, %v987
    %v1500 = vpack.c.b16 %v996, %v988
    %v1501 = vpack.c.b16 %v997, %v989
    %v1502 = vpack.c.b16 %v998, %v990
    %v1503 = vpack.c.b16 %v999, %v991
    %v1504 = vpack.c.b16 %v1000, %v992
    %v1505 = vpack.c.b16 %v1001, %v993
    %v1506 = vpack.c.b16 %v1002, %v994
    %v1507 = vpack.c.b16 %v1011, %v1003
    %v1508 = vpack.c.b16 %v1012, %v1004
    %v1509 = vpack.c.b16 %v1013, %v1005
    %v1510 = vpack.c.b16 %v1014, %v1006
    %v1511 = vpack.c.b16 %v1015, %v1007
    %v1512 = vpack.c.b16 %v1016, %v1008
    %v1513 = vpack.c.b16 %v1017, %v1009
    %v1514 = vpack.c.b16 %v1018, %v1010
    %v1515 = vpack.c.b16 %v1027, %v1019
    %v1516 = vpack.c.b16 %v1028, %v1020
    %v1517 = vpack.c.b16 %v1029, %v1021
    %v1518 = vpack.c.b16 %v1030, %v1022
    %v1519 = vpack.c.b16 %v1031, %v1023
    %v1520 = vpack.c.b16 %v1032, %v1024
    %v1521 = vpack.c.b16 %v1033, %v1025
    %v1522 = vpack.c.b16 %v1034, %v1026
    %v1523 = vpack.c.b16 %v1043, %v1035
    %v1524 = vpack.c.b16 %v1044, %v1036
    %v1525 = vpack.c.b16 %v1045, %v1037
    %v1526 = vpack.c.b16 %v1046, %v1038
    %v1527 = vpack.c.b16 %v1047, %v1039
    %v1528 = vpack.c.b16 %v1048, %v1040
    %v1529 = vpack.c.b16 %v1049, %v1041
    %v1530 = vpack.c.b16 %v1050, %v1042
    %v1531 = vpack.c.b16 %v1059, %v1051
    %v1532 = vpack.c.b16 %v1060, %v1052
    %v1533 = vpack.c.b16 %v1061, %v1053
    %v1534 = vpack.c.b16 %v1062, %v1054
    %v1535 = vpack.c.b16 %v1063, %v1055
    %v1536 = vpack.c.b16 %v1064, %v1056
    %v1537 = vpack.c.b16 %v1065, %v1057
    %v1538 = vpack.c.b16 %v1066, %v1058
    %v1539 = vpack.c.b16 %v1075, %v1067
    %v1540 = vpack.c.b16 %v1076, %v1068
    %v1541 = vpack.c.b16 %v1077, %v1069
    %v1542 = vpack.c.b16 %v1078, %v1070
    %v1543 = vpack.c.b16 %v1079, %v1071
    %v1544 = vpack.c.b16 %v1080, %v1072
    %v1545 = vpack.c.b16 %v1081, %v1073
    %v1546 = vpack.c.b16 %v1082, %v1074
    %v1547 = vpack.c.b16 %v1091, %v1083
    %v1548 = vpack.c.b16 %v1092, %v1084
    %v1549 = vpack.c.b16 %v1093, %v1085
    %v1550 = vpack.c.b16 %v1094, %v1086
    %v1551 = vpack.c.b16 %v1095, %v1087
    %v1552 = vpack.c.b16 %v1096, %v1088
    %v1553 = vpack.c.b16 %v1097, %v1089
    %v1554 = vpack.c.b16 %v1098, %v1090
    %v1555 = vpack.c.b16 %v1107, %v1099
    %v1556 = vpack.c.b16 %v1108, %v1100
    %v1557 = vpack.c.b16 %v1109, %v1101
    %v1558 = vpack.c.b16 %v1110, %v1102
    %v1559 = vpack.c.b16 %v1111, %v1103
    %v1560 = vpack.c.b16 %v1112, %v1104
    %v1561 = vpack.c.b16 %v1113, %v1105
    %v1562 = vpack.c.b16 %v1114, %v1106
    %v1563 = vpack.c.b16 %v1123, %v1115
    %v1564 = vpack.c.b16 %v1124, %v1116
    %v1565 = vpack.c.b16 %v1125, %v1117
    %v1566 = vpack.c.b16 %v1126, %v1118
    %v1567 = vpack.c.b16 %v1127, %v1119
    %v1568 = vpack.c.b16 %v1128, %v1120
    %v1569 = vpack.c.b16 %v1129, %v1121
    %v1570 = vpack.c.b16 %v1130, %v1122
    %v1571 = vpack.c.b16 %v1139, %v1131
    %v1572 = vpack.c.b16 %v1140, %v1132
    %v1573 = vpack.c.b16 %v1141, %v1133
    %v1574 = vpack.c.b16 %v1142, %v1134
    %v1575 = vpack.c.b16 %v1143, %v1135
    %v1576 = vpack.c.b16 %v1144, %v1136
    %v1577 = vpack.c.b16 %v1145, %v1137
    %v1578 = vpack.c.b16 %v1146, %v1138
    %v1579 = vpack.c.b16 %v1155, %v1147
    %v1580 = vpack.c.b16 %v1156, %v1148
    %v1581 = vpack.c.b16 %v1157, %v1149
    %v1582 = vpack.c.b16 %v1158, %v1150
    %v1583 = vpack.c.b16 %v1159, %v1151
    %v1584 = vpack.c.b16 %v1160, %v1152
    %v1585 = vpack.c.b16 %v1161, %v1153
    %v1586 = vpack.c.b16 %v1162, %v1154
    %v1587 = vpack.c.b16 %v1171, %v1163
    %v1588 = vpack.c.b16 %v1172, %v1164
    %v1589 = vpack.c.b16 %v1173, %v1165
    %v1590 = vpack.c.b16 %v1174, %v1166
    %v1591 = vpack.c.b16 %v1175, %v1167
    %v1592 = vpack.c.b16 %v1176, %v1168
    %v1593 = vpack.c.b16 %v1177, %v1169
    %v1594 = vpack.c.b16 %v1178, %v1170
    %v1595 = vpack.c.b16 %v1187, %v1179
    %v1596 = vpack.c.b16 %v1188, %v1180
    %v1597 = vpack.c.b16 %v1189, %v1181
    %v1598 = vpack.c.b16 %v1190, %v1182
    %v1599 = vpack.c.b16 %v1191, %v1183
    %v1600 = vpack.c.b16 %v1192, %v1184
    %v1601 = vpack.c.b16 %v1193, %v1185
    %v1602 = vpack.c.b16 %v1194, %v1186
    %v1603 = vpack.c.b16 %v1203, %v1195
    %v1604 = vpack.c.b16 %v1204, %v1196
    %v1605 = vpack.c.b16 %v1205, %v1197
    %v1606 = vpack.c.b16 %v1206, %v1198
    %v1607 = vpack.c.b16 %v1207, %v1199
    %v1608 = vpack.c.b16 %v1208, %v1200
    %v1609 = vpack.c.b16 %v1209, %v1201
    %v1610 = vpack.c.b16 %v1210, %v1202
    %v1611 = vpack.c.b16 %v1219, %v1211
    %v1612 = vpack.c.b16 %v1220, %v1212
    %v1613 = vpack.c.b16 %v1221, %v1213
    %v1614 = vpack.c.b16 %v1222, %v1214
    %v1615 = vpack.c.b16 %v1223, %v1215
    %v1616 = vpack.c.b16 %v1224, %v1216
    %v1617 = vpack.c.b16 %v1225, %v1217
    %v1618 = vpack.c.b16 %v1226, %v1218
    %v1619 = vpack.c.b16 %v1235, %v1227
    %v1620 = vpack.c.b16 %v1236, %v1228
    %v1621 = vpack.c.b16 %v1237, %v1229
    %v1622 = vpack.c.b16 %v1238, %v1230
    %v1623 = vpack.c.b16 %v1239, %v1231
    %v1624 = vpack.c.b16 %v1240, %v1232
    %v1625 = vpack.c.b16 %v1241, %v1233
    %v1626 = vpack.c.b16 %v1242, %v1234
    %v1627 = vpack.c.b16 %v1251, %v1243
    %v1628 = vpack.c.b16 %v1252, %v1244
    %v1629 = vpack.c.b16 %v1253, %v1245
    %v1630 = vpack.c.b16 %v1254, %v1246
    %v1631 = vpack.c.b16 %v1255, %v1247
    %v1632 = vpack.c.b16 %v1256, %v1248
    %v1633 = vpack.c.b16 %v1257, %v1249
    %v1634 = vpack.c.b16 %v1258, %v1250
    %v1635 = vpack.c.b16 %v1267, %v1259
    %v1636 = vpack.c.b16 %v1268, %v1260
    %v1637 = vpack.c.b16 %v1269, %v1261
    %v1638 = vpack.c.b16 %v1270, %v1262
    %v1639 = vpack.c.b16 %v1271, %v1263
    %v1640 = vpack.c.b16 %v1272, %v1264
    %v1641 = vpack.c.b16 %v1273, %v1265
    %v1642 = vpack.c.b16 %v1274, %v1266
    %v1643 = vpack.c.b16 %v1283, %v1275
    %v1644 = vpack.c.b16 %v1284, %v1276
    %v1645 = vpack.c.b16 %v1285, %v1277
    %v1646 = vpack.c.b16 %v1286, %v1278
    %v1647 = vpack.c.b16 %v1287, %v1279
    %v1648 = vpack.c.b16 %v1288, %v1280
    %v1649 = vpack.c.b16 %v1289, %v1281
    %v1650 = vpack.c.b16 %v1290, %v1282
    %v1651 = vpack.c.b16 %v1299, %v1291
    %v1652 = vpack.c.b16 %v1300, %v1292
    %v1653 = vpack.c.b16 %v1301, %v1293
    %v1654 = vpack.c.b16 %v1302, %v1294
    %v1655 = vpack.c.b16 %v1303, %v1295
    %v1656 = vpack.c.b16 %v1304, %v1296
    %v1657 = vpack.c.b16 %v1305, %v1297
    %v1658 = vpack.c.b16 %v1306, %v1298
    %v1659 = vpack.c.b16 %v1315, %v1307
    %v1660 = vpack.c.b16 %v1316, %v1308
    %v1661 = vpack.c.b16 %v1317, %v1309
    %v1662 = vpack.c.b16 %v1318, %v1310
    %v1663 = vpack.c.b16 %v1319, %v1311
    %v1664 = vpack.c.b16 %v1320, %v1312
    %v1665 = vpack.c.b16 %v1321, %v1313
    %v1666 = vpack.c.b16 %v1322, %v1314
    %v1667 = vpack.c.b16 %v1331, %v1323
    %v1668 = vpack.c.b16 %v1332, %v1324
    %v1669 = vpack.c.b16 %v1333, %v1325
    %v1670 = vpack.c.b16 %v1334, %v1326
    %v1671 = vpack.c.b16 %v1335, %v1327
    %v1672 = vpack.c.b16 %v1336, %v1328
    %v1673 = vpack.c.b16 %v1337, %v1329
    %v1674 = vpack.c.b16 %v1338, %v1330
    %v1675 = vpack.c.b16 %v1347, %v1339
    %v1676 = vpack.c.b16 %v1348, %v1340
    %v1677 = vpack.c.b16 %v1349, %v1341
    %v1678 = vpack.c.b16 %v1350, %v1342
    %v1679 = vpack.c.b16 %v1351, %v1343
    %v1680 = vpack.c.b16 %v1352, %v1344
    %v1681 = vpack.c.b16 %v1353, %v1345
    %v1682 = vpack.c.b16 %v1354, %v1346
    %v1683 = vpack.c.b16 %v1363, %v1355
    %v1684 = vpack.c.b16 %v1364, %v1356
    %v1685 = vpack.c.b16 %v1365, %v1357
    %v1686 = vpack.c.b16 %v1366, %v1358
    %v1687 = vpack.c.b16 %v1367, %v1359
    %v1688 = vpack.c.b16 %v1368, %v1360
    %v1689 = vpack.c.b16 %v1369, %v1361
    %v1690 = vpack.c.b16 %v1370, %v1362
    %v1691 = vpack.c.b16 %v1379, %v1371
    %v1692 = vpack.c.b16 %v1380, %v1372
    %v1693 = vpack.c.b16 %v1381, %v1373
    %v1694 = vpack.c.b16 %v1382, %v1374
    %v1695 = vpack.c.b16 %v1383, %v1375
    %v1696 = vpack.c.b16 %v1384, %v1376
    %v1697 = vpack.c.b16 %v1385, %v1377
    %v1698 = vpack.c.b16 %v1386, %v1378
    %v1699 = vpack.c.b16 %v1395, %v1387
    %v1700 = vpack.c.b16 %v1396, %v1388
    %v1701 = vpack.c.b16 %v1397, %v1389
    %v1702 = vpack.c.b16 %v1398, %v1390
    %v1703 = vpack.c.b16 %v1399, %v1391
    %v1704 = vpack.c.b16 %v1400, %v1392
    %v1705 = vpack.c.b16 %v1401, %v1393
    %v1706 = vpack.c.b16 %v1402, %v1394
    %v1707 = vpack.c.b16 %v1411, %v1403
    %v1708 = vpack.c.b16 %v1412, %v1404
    %v1709 = vpack.c.b16 %v1413, %v1405
    %v1710 = vpack.c.b16 %v1414, %v1406
    %v1711 = vpack.c.b16 %v1415, %v1407
    %v1712 = vpack.c.b16 %v1416, %v1408
    %v1713 = vpack.c.b16 %v1417, %v1409
    %v1714 = vpack.c.b16 %v1418, %v1410
    %v1715 = vpack.c.b16 %v1427, %v1419
    %v1716 = vpack.c.b16 %v1428, %v1420
    %v1717 = vpack.c.b16 %v1429, %v1421
    %v1718 = vpack.c.b16 %v1430, %v1422
    %v1719 = vpack.c.b16 %v1431, %v1423
    %v1720 = vpack.c.b16 %v1432, %v1424
    %v1721 = vpack.c.b16 %v1433, %v1425
    %v1722 = vpack.c.b16 %v1434, %v1426
    %v1723 = vpack.c.b16 %v1443, %v1435
    %v1724 = vpack.c.b16 %v1444, %v1436
    %v1725 = vpack.c.b16 %v1445, %v1437
    %v1726 = vpack.c.b16 %v1446, %v1438
    %v1727 = vpack.c.b16 %v1447, %v1439
    %v1728 = vpack.c.b16 %v1448, %v1440
    %v1729 = vpack.c.b16 %v1449, %v1441
    %v1730 = vpack.c.b16 %v1450, %v1442
    %v1731 = vpack.c.b16 %v1459, %v1451
    %v1732 = vpack.c.b16 %v1460, %v1452
    %v1733 = vpack.c.b16 %v1461, %v1453
    %v1734 = vpack.c.b16 %v1462, %v1454
    %v1735 = vpack.c.b16 %v1463, %v1455
    %v1736 = vpack.c.b16 %v1464, %v1456
    %v1737 = vpack.c.b16 %v1465, %v1457
    %v1738 = vpack.c.b16 %v1466, %v1458
    %v1739 = vpack.c.b16 %v1475, %v1467
    %v1740 = vpack.c.b16 %v1476, %v1468
    %v1741 = vpack.c.b16 %v1477, %v1469
    %v1742 = vpack.c.b16 %v1478, %v1470
    %v1743 = vpack.c.b16 %v1479, %v1471
    %v1744 = vpack.c.b16 %v1480, %v1472
    %v1745 = vpack.c.b16 %v1481, %v1473
    %v1746 = vpack.c.b16 %v1482, %v1474
    %v1747 = vpack.c.b16 %v1491, %v1483
    %v1748 = vpack.c.b16 %v1492, %v1484
    %v1749 = vpack.c.b16 %v1493, %v1485
    %v1750 = vpack.c.b16 %v1494, %v1486
    %v1751 = vpack.c.b16 %v1495, %v1487
    %v1752 = vpack.c.b16 %v1496, %v1488
    %v1753 = vpack.c.b16 %v1497, %v1489
    %v1754 = vpack.c.b16 %v1498, %v1490
    %2011 = vmatprep.subr.bf16.mxu0 %v1500
    %2012 = vmatpush1.bf16.msra.mxu0 %v1499
    %2013 = vmatprep.subr.bf16.mxu0 %v1508
    %2014 = vmatpush1.bf16.msra.mxu0 %v1507
    %2015 = vmatprep.subr.bf16.mxu0 %v1516
    %2016 = vmatpush1.bf16.msra.mxu0 %v1515
    %2017 = vmatprep.subr.bf16.mxu0 %v1524
    %2018 = vmatpush1.bf16.msra.mxu0 %v1523
    %2019 = vmatprep.subr.bf16.mxu0 %v1532
    %2020 = vmatpush1.bf16.msra.mxu0 %v1531
    %2021 = vmatprep.subr.bf16.mxu0 %v1540
    %2022 = vmatpush1.bf16.msra.mxu0 %v1539
    %2023 = vmatprep.subr.bf16.mxu0 %v1548
    %2024 = vmatpush1.bf16.msra.mxu0 %v1547
    %2025 = vmatprep.subr.bf16.mxu0 %v1556
    %2026 = vmatpush1.bf16.msra.mxu0 %v1555
    %2027 = vmatprep.subr.bf16.mxu0 %v1564
    %2028 = vmatpush1.bf16.msra.mxu0 %v1563
    %2029 = vmatprep.subr.bf16.mxu0 %v1572
    %2030 = vmatpush1.bf16.msra.mxu0 %v1571
    %2031 = vmatprep.subr.bf16.mxu0 %v1580
    %2032 = vmatpush1.bf16.msra.mxu0 %v1579
    %2033 = vmatprep.subr.bf16.mxu0 %v1588
    %2034 = vmatpush1.bf16.msra.mxu0 %v1587
    %2035 = vmatprep.subr.bf16.mxu0 %v1596
    %2036 = vmatpush1.bf16.msra.mxu0 %v1595
    %2037 = vmatprep.subr.bf16.mxu0 %v1604
    %2038 = vmatpush1.bf16.msra.mxu0 %v1603
    %2039 = vmatprep.subr.bf16.mxu0 %v1612
    %2040 = vmatpush1.bf16.msra.mxu0 %v1611
    %2041 = vmatprep.subr.bf16.mxu0 %v1620
    %2042 = vmatpush1.bf16.msra.mxu0 %v1619
    %2043 = vmatprep.mubr.bf16.mxu0 %v472
    %2044 = vmatmul.mubr.bf16.gmra.mrb[0].mxu0 %v471
    %v2045 = vpop.f32.mrb[0].mxu0
    %v2046 = vadd.f32 0.0, %v2045
    %v2047 = vpop.f32.mrb[0].mxu0
    %v2048 = vadd.f32 0.0, %v2047
    %v2049 = vpop.f32.mrb[0].mxu0
    %v2050 = vpop.f32.mrb[0].mxu0
    %2051 = vdwg.mxu0
    %2052 = vmatprep.subr.bf16.mxu0 %v1628
    %2053 = vmatpush1.bf16.msra.mxu0 %v1627
    %2054 = vmatprep.subr.bf16.mxu0 %v1636
    %2055 = vmatpush1.bf16.msra.mxu0 %v1635
    %2056 = vmatprep.subr.bf16.mxu0 %v1644
    %2057 = vmatpush1.bf16.msra.mxu0 %v1643
    %2058 = vmatprep.subr.bf16.mxu0 %v1652
    %2059 = vmatpush1.bf16.msra.mxu0 %v1651
    %2060 = vmatprep.subr.bf16.mxu0 %v1660
    %2061 = vmatpush1.bf16.msra.mxu0 %v1659
    %2062 = vmatprep.subr.bf16.mxu0 %v1668
    %2063 = vmatpush1.bf16.msra.mxu0 %v1667
    %2064 = vmatprep.subr.bf16.mxu0 %v1676
    %2065 = vmatpush1.bf16.msra.mxu0 %v1675
    %2066 = vmatprep.subr.bf16.mxu0 %v1684
    %2067 = vmatpush1.bf16.msra.mxu0 %v1683
    %2068 = vmatprep.subr.bf16.mxu0 %v1692
    %2069 = vmatpush1.bf16.msra.mxu0 %v1691
    %2070 = vmatprep.subr.bf16.mxu0 %v1700
    %2071 = vmatpush1.bf16.msra.mxu0 %v1699
    %2072 = vmatprep.subr.bf16.mxu0 %v1708
    %2073 = vmatpush1.bf16.msra.mxu0 %v1707
    %2074 = vmatprep.subr.bf16.mxu0 %v1716
    %2075 = vmatpush1.bf16.msra.mxu0 %v1715
    %2076 = vmatprep.subr.bf16.mxu0 %v1724
    %2077 = vmatpush1.bf16.msra.mxu0 %v1723
    %2078 = vmatprep.subr.bf16.mxu0 %v1732
    %2079 = vmatpush1.bf16.msra.mxu0 %v1731
    %2080 = vmatprep.subr.bf16.mxu0 %v1740
    %2081 = vmatpush1.bf16.msra.mxu0 %v1739
    %2082 = vmatprep.subr.bf16.mxu0 %v1748
    %2083 = vmatpush1.bf16.msra.mxu0 %v1747
    %2084 = vmatprep.mubr.bf16.mxu0 %v474
    %2085 = vmatmul.mubr.bf16.gmra.mrb[0].mxu0 %v473
    %v2086 = vpop.f32.mrb[0].mxu0
    %v2087 = vadd.f32 %v2046, %v2086
    %v2088 = vpop.f32.mrb[0].mxu0
    %v2089 = vadd.f32 %v2048, %v2088
    %v2090 = vpop.f32.mrb[0].mxu0
    %v2091 = vpop.f32.mrb[0].mxu0
    %2092 = vdwg.mxu0
    %2093 = vmatprep.subr.bf16.mxu0 %v1502
    %2094 = vmatpush1.bf16.msra.mxu0 %v1501
    %2095 = vmatprep.subr.bf16.mxu0 %v1510
    %2096 = vmatpush1.bf16.msra.mxu0 %v1509
    %2097 = vmatprep.subr.bf16.mxu0 %v1518
    %2098 = vmatpush1.bf16.msra.mxu0 %v1517
    %2099 = vmatprep.subr.bf16.mxu0 %v1526
    %2100 = vmatpush1.bf16.msra.mxu0 %v1525
    %2101 = vmatprep.subr.bf16.mxu0 %v1534
    %2102 = vmatpush1.bf16.msra.mxu0 %v1533
    %2103 = vmatprep.subr.bf16.mxu0 %v1542
    %2104 = vmatpush1.bf16.msra.mxu0 %v1541
    %2105 = vmatprep.subr.bf16.mxu0 %v1550
    %2106 = vmatpush1.bf16.msra.mxu0 %v1549
    %2107 = vmatprep.subr.bf16.mxu0 %v1558
    %2108 = vmatpush1.bf16.msra.mxu0 %v1557
    %2109 = vmatprep.subr.bf16.mxu0 %v1566
    %2110 = vmatpush1.bf16.msra.mxu0 %v1565
    %2111 = vmatprep.subr.bf16.mxu0 %v1574
    %2112 = vmatpush1.bf16.msra.mxu0 %v1573
    %2113 = vmatprep.subr.bf16.mxu0 %v1582
    %2114 = vmatpush1.bf16.msra.mxu0 %v1581
    %2115 = vmatprep.subr.bf16.mxu0 %v1590
    %2116 = vmatpush1.bf16.msra.mxu0 %v1589
    %2117 = vmatprep.subr.bf16.mxu0 %v1598
    %2118 = vmatpush1.bf16.msra.mxu0 %v1597
    %2119 = vmatprep.subr.bf16.mxu0 %v1606
    %2120 = vmatpush1.bf16.msra.mxu0 %v1605
    %2121 = vmatprep.subr.bf16.mxu0 %v1614
    %2122 = vmatpush1.bf16.msra.mxu0 %v1613
    %2123 = vmatprep.subr.bf16.mxu0 %v1622
    %2124 = vmatpush1.bf16.msra.mxu0 %v1621
    %2125 = vmatprep.mubr.bf16.mxu0 %v472
    %2126 = vmatmul.mubr.bf16.gmra.mrb[0].mxu0 %v471
    %v2127 = vpop.f32.mrb[0].mxu0
    %v2128 = vadd.f32 0.0, %v2127
    %v2129 = vpop.f32.mrb[0].mxu0
    %v2130 = vadd.f32 0.0, %v2129
    %v2131 = vpop.f32.mrb[0].mxu0
    %v2132 = vpop.f32.mrb[0].mxu0
    %2133 = vdwg.mxu0
    %2134 = vmatprep.subr.bf16.mxu0 %v1630
    %2135 = vmatpush1.bf16.msra.mxu0 %v1629
    %2136 = vmatprep.subr.bf16.mxu0 %v1638
    %2137 = vmatpush1.bf16.msra.mxu0 %v1637
    %2138 = vmatprep.subr.bf16.mxu0 %v1646
    %2139 = vmatpush1.bf16.msra.mxu0 %v1645
    %2140 = vmatprep.subr.bf16.mxu0 %v1654
    %2141 = vmatpush1.bf16.msra.mxu0 %v1653
    %2142 = vmatprep.subr.bf16.mxu0 %v1662
    %2143 = vmatpush1.bf16.msra.mxu0 %v1661
    %2144 = vmatprep.subr.bf16.mxu0 %v1670
    %2145 = vmatpush1.bf16.msra.mxu0 %v1669
    %2146 = vmatprep.subr.bf16.mxu0 %v1678
    %2147 = vmatpush1.bf16.msra.mxu0 %v1677
    %2148 = vmatprep.subr.bf16.mxu0 %v1686
    %2149 = vmatpush1.bf16.msra.mxu0 %v1685
    %2150 = vmatprep.subr.bf16.mxu0 %v1694
    %2151 = vmatpush1.bf16.msra.mxu0 %v1693
    %2152 = vmatprep.subr.bf16.mxu0 %v1702
    %2153 = vmatpush1.bf16.msra.mxu0 %v1701
    %2154 = vmatprep.subr.bf16.mxu0 %v1710
    %2155 = vmatpush1.bf16.msra.mxu0 %v1709
    %2156 = vmatprep.subr.bf16.mxu0 %v1718
    %2157 = vmatpush1.bf16.msra.mxu0 %v1717
    %2158 = vmatprep.subr.bf16.mxu0 %v1726
    %2159 = vmatpush1.bf16.msra.mxu0 %v1725
    %2160 = vmatprep.subr.bf16.mxu0 %v1734
    %2161 = vmatpush1.bf16.msra.mxu0 %v1733
    %2162 = vmatprep.subr.bf16.mxu0 %v1742
    %2163 = vmatpush1.bf16.msra.mxu0 %v1741
    %2164 = vmatprep.subr.bf16.mxu0 %v1750
    %2165 = vmatpush1.bf16.msra.mxu0 %v1749
    %2166 = vmatprep.mubr.bf16.mxu0 %v474
    %2167 = vmatmul.mubr.bf16.gmra.mrb[0].mxu0 %v473
    %v2168 = vpop.f32.mrb[0].mxu0
    %v2169 = vadd.f32 %v2128, %v2168
    %v2170 = vpop.f32.mrb[0].mxu0
    %v2171 = vadd.f32 %v2130, %v2170
    %v2172 = vpop.f32.mrb[0].mxu0
    %v2173 = vpop.f32.mrb[0].mxu0
    %2174 = vdwg.mxu0
    %2175 = vmatprep.subr.bf16.mxu0 %v1504
    %2176 = vmatpush1.bf16.msra.mxu0 %v1503
    %2177 = vmatprep.subr.bf16.mxu0 %v1512
    %2178 = vmatpush1.bf16.msra.mxu0 %v1511
    %2179 = vmatprep.subr.bf16.mxu0 %v1520
    %2180 = vmatpush1.bf16.msra.mxu0 %v1519
    %2181 = vmatprep.subr.bf16.mxu0 %v1528
    %2182 = vmatpush1.bf16.msra.mxu0 %v1527
    %2183 = vmatprep.subr.bf16.mxu0 %v1536
    %2184 = vmatpush1.bf16.msra.mxu0 %v1535
    %2185 = vmatprep.subr.bf16.mxu0 %v1544
    %2186 = vmatpush1.bf16.msra.mxu0 %v1543
    %2187 = vmatprep.subr.bf16.mxu0 %v1552
    %2188 = vmatpush1.bf16.msra.mxu0 %v1551
    %2189 = vmatprep.subr.bf16.mxu0 %v1560
    %2190 = vmatpush1.bf16.msra.mxu0 %v1559
    %2191 = vmatprep.subr.bf16.mxu0 %v1568
    %2192 = vmatpush1.bf16.msra.mxu0 %v1567
    %2193 = vmatprep.subr.bf16.mxu0 %v1576
    %2194 = vmatpush1.bf16.msra.mxu0 %v1575
    %2195 = vmatprep.subr.bf16.mxu0 %v1584
    %2196 = vmatpush1.bf16.msra.mxu0 %v1583
    %2197 = vmatprep.subr.bf16.mxu0 %v1592
    %2198 = vmatpush1.bf16.msra.mxu0 %v1591
    %2199 = vmatprep.subr.bf16.mxu0 %v1600
    %2200 = vmatpush1.bf16.msra.mxu0 %v1599
    %2201 = vmatprep.subr.bf16.mxu0 %v1608
    %2202 = vmatpush1.bf16.msra.mxu0 %v1607
    %2203 = vmatprep.subr.bf16.mxu0 %v1616
    %2204 = vmatpush1.bf16.msra.mxu0 %v1615
    %2205 = vmatprep.subr.bf16.mxu0 %v1624
    %2206 = vmatpush1.bf16.msra.mxu0 %v1623
    %2207 = vmatprep.mubr.bf16.mxu0 %v472
    %2208 = vmatmul.mubr.bf16.gmra.mrb[0].mxu0 %v471
    %v2209 = vpop.f32.mrb[0].mxu0
    %v2210 = vadd.f32 0.0, %v2209
    %v2211 = vpop.f32.mrb[0].mxu0
    %v2212 = vadd.f32 0.0, %v2211
    %v2213 = vpop.f32.mrb[0].mxu0
    %v2214 = vpop.f32.mrb[0].mxu0
    %2215 = vdwg.mxu0
    %2216 = vmatprep.subr.bf16.mxu0 %v1632
    %2217 = vmatpush1.bf16.msra.mxu0 %v1631
    %2218 = vmatprep.subr.bf16.mxu0 %v1640
    %2219 = vmatpush1.bf16.msra.mxu0 %v1639
    %2220 = vmatprep.subr.bf16.mxu0 %v1648
    %2221 = vmatpush1.bf16.msra.mxu0 %v1647
    %2222 = vmatprep.subr.bf16.mxu0 %v1656
    %2223 = vmatpush1.bf16.msra.mxu0 %v1655
    %2224 = vmatprep.subr.bf16.mxu0 %v1664
    %2225 = vmatpush1.bf16.msra.mxu0 %v1663
    %2226 = vmatprep.subr.bf16.mxu0 %v1672
    %2227 = vmatpush1.bf16.msra.mxu0 %v1671
    %2228 = vmatprep.subr.bf16.mxu0 %v1680
    %2229 = vmatpush1.bf16.msra.mxu0 %v1679
    %2230 = vmatprep.subr.bf16.mxu0 %v1688
    %2231 = vmatpush1.bf16.msra.mxu0 %v1687
    %2232 = vmatprep.subr.bf16.mxu0 %v1696
    %2233 = vmatpush1.bf16.msra.mxu0 %v1695
    %2234 = vmatprep.subr.bf16.mxu0 %v1704
    %2235 = vmatpush1.bf16.msra.mxu0 %v1703
    %2236 = vmatprep.subr.bf16.mxu0 %v1712
    %2237 = vmatpush1.bf16.msra.mxu0 %v1711
    %2238 = vmatprep.subr.bf16.mxu0 %v1720
    %2239 = vmatpush1.bf16.msra.mxu0 %v1719
    %2240 = vmatprep.subr.bf16.mxu0 %v1728
    %2241 = vmatpush1.bf16.msra.mxu0 %v1727
    %2242 = vmatprep.subr.bf16.mxu0 %v1736
    %2243 = vmatpush1.bf16.msra.mxu0 %v1735
    %2244 = vmatprep.subr.bf16.mxu0 %v1744
    %2245 = vmatpush1.bf16.msra.mxu0 %v1743
    %2246 = vmatprep.subr.bf16.mxu0 %v1752
    %2247 = vmatpush1.bf16.msra.mxu0 %v1751
    %2248 = vmatprep.mubr.bf16.mxu0 %v474
    %2249 = vmatmul.mubr.bf16.gmra.mrb[0].mxu0 %v473
    %v2250 = vpop.f32.mrb[0].mxu0
    %v2251 = vadd.f32 %v2210, %v2250
    %v2252 = vpop.f32.mrb[0].mxu0
    %v2253 = vadd.f32 %v2212, %v2252
    %v2254 = vpop.f32.mrb[0].mxu0
    %v2255 = vpop.f32.mrb[0].mxu0
    %2256 = vdwg.mxu0
    %2257 = vmatprep.subr.bf16.mxu0 %v1506
    %2258 = vmatpush1.bf16.msra.mxu0 %v1505
    %2259 = vmatprep.subr.bf16.mxu0 %v1514
    %2260 = vmatpush1.bf16.msra.mxu0 %v1513
    %2261 = vmatprep.subr.bf16.mxu0 %v1522
    %2262 = vmatpush1.bf16.msra.mxu0 %v1521
    %2263 = vmatprep.subr.bf16.mxu0 %v1530
    %2264 = vmatpush1.bf16.msra.mxu0 %v1529
    %2265 = vmatprep.subr.bf16.mxu0 %v1538
    %2266 = vmatpush1.bf16.msra.mxu0 %v1537
    %2267 = vmatprep.subr.bf16.mxu0 %v1546
    %2268 = vmatpush1.bf16.msra.mxu0 %v1545
    %2269 = vmatprep.subr.bf16.mxu0 %v1554
    %2270 = vmatpush1.bf16.msra.mxu0 %v1553
    %2271 = vmatprep.subr.bf16.mxu0 %v1562
    %2272 = vmatpush1.bf16.msra.mxu0 %v1561
    %2273 = vmatprep.subr.bf16.mxu0 %v1570
    %2274 = vmatpush1.bf16.msra.mxu0 %v1569
    %2275 = vmatprep.subr.bf16.mxu0 %v1578
    %2276 = vmatpush1.bf16.msra.mxu0 %v1577
    %2277 = vmatprep.subr.bf16.mxu0 %v1586
    %2278 = vmatpush1.bf16.msra.mxu0 %v1585
    %2279 = vmatprep.subr.bf16.mxu0 %v1594
    %2280 = vmatpush1.bf16.msra.mxu0 %v1593
    %2281 = vmatprep.subr.bf16.mxu0 %v1602
    %2282 = vmatpush1.bf16.msra.mxu0 %v1601
    %2283 = vmatprep.subr.bf16.mxu0 %v1610
    %2284 = vmatpush1.bf16.msra.mxu0 %v1609
    %2285 = vmatprep.subr.bf16.mxu0 %v1618
    %2286 = vmatpush1.bf16.msra.mxu0 %v1617
    %2287 = vmatprep.subr.bf16.mxu0 %v1626
    %2288 = vmatpush1.bf16.msra.mxu0 %v1625
    %2289 = vmatprep.mubr.bf16.mxu0 %v472
    %2290 = vmatmul.mubr.bf16.gmra.mrb[0].mxu0 %v471
    %v2291 = vpop.f32.mrb[0].mxu0
    %v2292 = vadd.f32 0.0, %v2291
    %v2293 = vpop.f32.mrb[0].mxu0
    %v2294 = vadd.f32 0.0, %v2293
    %v2295 = vpop.f32.mrb[0].mxu0
    %v2296 = vpop.f32.mrb[0].mxu0
    %2297 = vdwg.mxu0
    %2298 = vmatprep.subr.bf16.mxu0 %v1634
    %2299 = vmatpush1.bf16.msra.mxu0 %v1633
    %2300 = vmatprep.subr.bf16.mxu0 %v1642
    %2301 = vmatpush1.bf16.msra.mxu0 %v1641
    %2302 = vmatprep.subr.bf16.mxu0 %v1650
    %2303 = vmatpush1.bf16.msra.mxu0 %v1649
    %2304 = vmatprep.subr.bf16.mxu0 %v1658
    %2305 = vmatpush1.bf16.msra.mxu0 %v1657
    %2306 = vmatprep.subr.bf16.mxu0 %v1666
    %2307 = vmatpush1.bf16.msra.mxu0 %v1665
    %2308 = vmatprep.subr.bf16.mxu0 %v1674
    %2309 = vmatpush1.bf16.msra.mxu0 %v1673
    %2310 = vmatprep.subr.bf16.mxu0 %v1682
    %2311 = vmatpush1.bf16.msra.mxu0 %v1681
    %2312 = vmatprep.subr.bf16.mxu0 %v1690
    %2313 = vmatpush1.bf16.msra.mxu0 %v1689
    %2314 = vmatprep.subr.bf16.mxu0 %v1698
    %2315 = vmatpush1.bf16.msra.mxu0 %v1697
    %2316 = vmatprep.subr.bf16.mxu0 %v1706
    %2317 = vmatpush1.bf16.msra.mxu0 %v1705
    %2318 = vmatprep.subr.bf16.mxu0 %v1714
    %2319 = vmatpush1.bf16.msra.mxu0 %v1713
    %2320 = vmatprep.subr.bf16.mxu0 %v1722
    %2321 = vmatpush1.bf16.msra.mxu0 %v1721
    %2322 = vmatprep.subr.bf16.mxu0 %v1730
    %2323 = vmatpush1.bf16.msra.mxu0 %v1729
    %2324 = vmatprep.subr.bf16.mxu0 %v1738
    %2325 = vmatpush1.bf16.msra.mxu0 %v1737
    %2326 = vmatprep.subr.bf16.mxu0 %v1746
    %2327 = vmatpush1.bf16.msra.mxu0 %v1745
    %2328 = vmatprep.subr.bf16.mxu0 %v1754
    %2329 = vmatpush1.bf16.msra.mxu0 %v1753
    %2330 = vmatprep.mubr.bf16.mxu0 %v474
    %2331 = vmatmul.mubr.bf16.gmra.mrb[0].mxu0 %v473
    %v2332 = vpop.f32.mrb[0].mxu0
    %v2333 = vadd.f32 %v2292, %v2332
    %v2334 = vpop.f32.mrb[0].mxu0
    %v2335 = vadd.f32 %v2294, %v2334
    %v2336 = vpop.f32.mrb[0].mxu0
    %v2337 = vpop.f32.mrb[0].mxu0
    %2338 = vdwg.mxu0
    %v2339 = vpack.c.bf16 %v2087, %v2087
    %v2340 = vpack.c.bf16 %v2089, %v2089
    %v2341 = vpack.c.bf16 %v2169, %v2169
    %v2342 = vpack.c.bf16 %v2171, %v2171
    %v2343 = vpack.c.bf16 %v2251, %v2251
    %v2344 = vpack.c.bf16 %v2253, %v2253
    %v2345 = vpack.c.bf16 %v2333, %v2333
    %v2346 = vpack.c.bf16 %v2335, %v2335
    %v2347 = vld [vmem:[#allocation10] sm:$0xff]
    %v2349 = vcombine.high %v2347, %v2347
    %v2351 = vunpack.c.l.s4 1966171168
    %v2352 = vunpack.c.0.s8 %v2351
    %v2353 = vlaneseq
    %v2354 = vshrl.u32 %v2353, 7
    %v2355 = vsub.s32 %v2352, %v2354
    %v2356 = vrot.slane %v2347, %v2355
    %v2358 = vunpack.c.l.s4 1966171168
    %v2359 = vunpack.c.0.s8 %v2358
    %v2360 = vlaneseq
    %v2361 = vshrl.u32 %v2360, 7
    %v2362 = vsub.s32 %v2359, %v2361
    %v2363 = vrot.slane %v2349, %v2362
    %v2364 = vcombine.high %v2356, %v2356
    %v2365 = vcombine.high %v2363, %v2363
    %v2367 = vunpack.c.l.s4 1966171168
    %v2368 = vunpack.c.0.s8 %v2367
    %v2369 = vlaneseq
    %v2370 = vshrl.u32 %v2369, 7
    %v2371 = vsub.s32 %v2368, %v2370
    %v2372 = vrot.slane %v2356, %v2371
    %v2374 = vunpack.c.l.s4 1966171168
    %v2375 = vunpack.c.0.s8 %v2374
    %v2376 = vlaneseq
    %v2377 = vshrl.u32 %v2376, 7
    %v2378 = vsub.s32 %v2375, %v2377
    %v2379 = vrot.slane %v2363, %v2378
    %v2381 = vunpack.c.l.s4 1966171168
    %v2382 = vunpack.c.0.s8 %v2381
    %v2383 = vlaneseq
    %v2384 = vshrl.u32 %v2383, 7
    %v2385 = vsub.s32 %v2382, %v2384
    %v2386 = vrot.slane %v2364, %v2385
    %v2388 = vunpack.c.l.s4 1966171168
    %v2389 = vunpack.c.0.s8 %v2388
    %v2390 = vlaneseq
    %v2391 = vshrl.u32 %v2390, 7
    %v2392 = vsub.s32 %v2389, %v2391
    %v2393 = vrot.slane %v2365, %v2392
    %v2394 = vcombine.high %v2372, %v2372
    %v2395 = vcombine.high %v2379, %v2379
    %v2396 = vcombine.high %v2386, %v2386
    %v2397 = vcombine.high %v2393, %v2393
    %v2399 = vpack.i.b16 %v2372, %v2372
    %v2401 = vlaneseq
    %v2402 = vshrl.u32 %v2401, 7
    %v2403 = vsub.s32 0, %v2402
    %v2404 = vrot.slane %v2399, %v2403
    %v2406 = vpack.i.b16 %v2386, %v2386
    %v2408 = vlaneseq
    %v2409 = vshrl.u32 %v2408, 7
    %v2410 = vsub.s32 0, %v2409
    %v2411 = vrot.slane %v2406, %v2410
    %v2413 = vpack.i.b16 %v2394, %v2394
    %v2415 = vlaneseq
    %v2416 = vshrl.u32 %v2415, 7
    %v2417 = vsub.s32 0, %v2416
    %v2418 = vrot.slane %v2413, %v2417
    %v2420 = vpack.i.b16 %v2396, %v2396
    %v2422 = vlaneseq
    %v2423 = vshrl.u32 %v2422, 7
    %v2424 = vsub.s32 0, %v2423
    %v2425 = vrot.slane %v2420, %v2424
    %v2427 = vpack.i.b16 %v2379, %v2379
    %v2429 = vlaneseq
    %v2430 = vshrl.u32 %v2429, 7
    %v2431 = vsub.s32 0, %v2430
    %v2432 = vrot.slane %v2427, %v2431
    %v2434 = vpack.i.b16 %v2393, %v2393
    %v2436 = vlaneseq
    %v2437 = vshrl.u32 %v2436, 7
    %v2438 = vsub.s32 0, %v2437
    %v2439 = vrot.slane %v2434, %v2438
    %v2441 = vpack.i.b16 %v2395, %v2395
    %v2443 = vlaneseq
    %v2444 = vshrl.u32 %v2443, 7
    %v2445 = vsub.s32 0, %v2444
    %v2446 = vrot.slane %v2441, %v2445
    %v2448 = vpack.i.b16 %v2397, %v2397
    %v2450 = vlaneseq
    %v2451 = vshrl.u32 %v2450, 7
    %v2452 = vsub.s32 0, %v2451
    %v2453 = vrot.slane %v2448, %v2452
    %v2454 = vadd.bf16 %v2339, %v2404
    %v2455 = vadd.bf16 %v2340, %v2411
    %v2456 = vadd.bf16 %v2341, %v2418
    %v2457 = vadd.bf16 %v2342, %v2425
    %v2458 = vadd.bf16 %v2343, %v2432
    %v2459 = vadd.bf16 %v2344, %v2439
    %v2460 = vadd.bf16 %v2345, %v2446
    %v2461 = vadd.bf16 %v2346, %v2453
    %v2462 = vmax.bf16 %v2454, 0
    %v2463 = vmax.bf16 %v2455, 0
    %v2464 = vmax.bf16 %v2456, 0
    %v2465 = vmax.bf16 %v2457, 0
    %v2466 = vmax.bf16 %v2458, 0
    %v2467 = vmax.bf16 %v2459, 0
    %v2468 = vmax.bf16 %v2460, 0
    %v2469 = vmax.bf16 %v2461, 0
    %v2470 = vld [vmem:[#allocation11] sm:$0xff]
    %v2471 = vld [vmem:[#allocation11 + $0x8] sm:$0xff]
    %v2472 = vld [vmem:[#allocation11 + $0x10] sm:$0xff]
    %v2473 = vld [vmem:[#allocation11 + $0x18] sm:$0xff]
    %v2474 = vld [vmem:[#allocation11 + $0x20] sm:$0xff]
    %v2475 = vld [vmem:[#allocation11 + $0x28] sm:$0xff]
    %v2476 = vld [vmem:[#allocation11 + $0x30] sm:$0xff]
    %v2477 = vld [vmem:[#allocation11 + $0x38] sm:$0xff]
    %v2478 = vld [vmem:[#allocation11 + $0x40] sm:$0xff]
    %v2479 = vld [vmem:[#allocation11 + $0x48] sm:$0xff]
    %v2480 = vld [vmem:[#allocation11 + $0x50] sm:$0xff]
    %v2481 = vld [vmem:[#allocation11 + $0x58] sm:$0xff]
    %v2482 = vld [vmem:[#allocation11 + $0x60] sm:$0xff]
    %v2483 = vld [vmem:[#allocation11 + $0x68] sm:$0xff]
    %v2484 = vld [vmem:[#allocation11 + $0x70] sm:$0xff]
    %v2485 = vld [vmem:[#allocation11 + $0x78] sm:$0xff]
    %v2486 = vld [vmem:[#allocation11 + $0x80] sm:$0xff]
    %v2487 = vld [vmem:[#allocation11 + $0x88] sm:$0xff]
    %v2488 = vld [vmem:[#allocation11 + $0x90] sm:$0xff]
    %v2489 = vld [vmem:[#allocation11 + $0x98] sm:$0xff]
    %v2490 = vld [vmem:[#allocation11 + $0xa0] sm:$0xff]
    %v2491 = vld [vmem:[#allocation11 + $0xa8] sm:$0xff]
    %v2492 = vld [vmem:[#allocation11 + $0xb0] sm:$0xff]
    %v2493 = vld [vmem:[#allocation11 + $0xb8] sm:$0xff]
    %v2494 = vld [vmem:[#allocation11 + $0xc0] sm:$0xff]
    %v2495 = vld [vmem:[#allocation11 + $0xc8] sm:$0xff]
    %v2496 = vld [vmem:[#allocation11 + $0xd0] sm:$0xff]
    %v2497 = vld [vmem:[#allocation11 + $0xd8] sm:$0xff]
    %v2498 = vld [vmem:[#allocation11 + $0xe0] sm:$0xff]
    %v2499 = vld [vmem:[#allocation11 + $0xe8] sm:$0xff]
    %v2500 = vld [vmem:[#allocation11 + $0xf0] sm:$0xff]
    %v2501 = vld [vmem:[#allocation11 + $0xf8] sm:$0xff]
    %v2502 = vld [vmem:[#allocation11 + $0x100] sm:$0xff]
    %v2503 = vld [vmem:[#allocation11 + $0x108] sm:$0xff]
    %v2504 = vld [vmem:[#allocation11 + $0x110] sm:$0xff]
    %v2505 = vld [vmem:[#allocation11 + $0x118] sm:$0xff]
    %v2506 = vld [vmem:[#allocation11 + $0x120] sm:$0xff]
    %v2507 = vld [vmem:[#allocation11 + $0x128] sm:$0xff]
    %v2508 = vld [vmem:[#allocation11 + $0x130] sm:$0xff]
    %v2509 = vld [vmem:[#allocation11 + $0x138] sm:$0xff]
    %v2510 = vld [vmem:[#allocation11 + $0x140] sm:$0xff]
    %v2511 = vld [vmem:[#allocation11 + $0x148] sm:$0xff]
    %v2512 = vld [vmem:[#allocation11 + $0x150] sm:$0xff]
    %v2513 = vld [vmem:[#allocation11 + $0x158] sm:$0xff]
    %v2514 = vld [vmem:[#allocation11 + $0x160] sm:$0xff]
    %v2515 = vld [vmem:[#allocation11 + $0x168] sm:$0xff]
    %v2516 = vld [vmem:[#allocation11 + $0x170] sm:$0xff]
    %v2517 = vld [vmem:[#allocation11 + $0x178] sm:$0xff]
    %v2518 = vld [vmem:[#allocation11 + $0x180] sm:$0xff]
    %v2519 = vld [vmem:[#allocation11 + $0x188] sm:$0xff]
    %v2520 = vld [vmem:[#allocation11 + $0x190] sm:$0xff]
    %v2521 = vld [vmem:[#allocation11 + $0x198] sm:$0xff]
    %v2522 = vld [vmem:[#allocation11 + $0x1a0] sm:$0xff]
    %v2523 = vld [vmem:[#allocation11 + $0x1a8] sm:$0xff]
    %v2524 = vld [vmem:[#allocation11 + $0x1b0] sm:$0xff]
    %v2525 = vld [vmem:[#allocation11 + $0x1b8] sm:$0xff]
    %v2526 = vld [vmem:[#allocation11 + $0x1c0] sm:$0xff]
    %v2527 = vld [vmem:[#allocation11 + $0x1c8] sm:$0xff]
    %v2528 = vld [vmem:[#allocation11 + $0x1d0] sm:$0xff]
    %v2529 = vld [vmem:[#allocation11 + $0x1d8] sm:$0xff]
    %v2530 = vld [vmem:[#allocation11 + $0x1e0] sm:$0xff]
    %v2531 = vld [vmem:[#allocation11 + $0x1e8] sm:$0xff]
    %v2532 = vld [vmem:[#allocation11 + $0x1f0] sm:$0xff]
    %v2533 = vld [vmem:[#allocation11 + $0x1f8] sm:$0xff]
    %v2534 = vld [vmem:[#allocation11 + $0x200] sm:$0xff]
    %v2535 = vld [vmem:[#allocation11 + $0x208] sm:$0xff]
    %v2536 = vld [vmem:[#allocation11 + $0x210] sm:$0xff]
    %v2537 = vld [vmem:[#allocation11 + $0x218] sm:$0xff]
    %v2538 = vld [vmem:[#allocation11 + $0x220] sm:$0xff]
    %v2539 = vld [vmem:[#allocation11 + $0x228] sm:$0xff]
    %v2540 = vld [vmem:[#allocation11 + $0x230] sm:$0xff]
    %v2541 = vld [vmem:[#allocation11 + $0x238] sm:$0xff]
    %v2542 = vld [vmem:[#allocation11 + $0x240] sm:$0xff]
    %v2543 = vld [vmem:[#allocation11 + $0x248] sm:$0xff]
    %v2544 = vld [vmem:[#allocation11 + $0x250] sm:$0xff]
    %v2545 = vld [vmem:[#allocation11 + $0x258] sm:$0xff]
    %v2546 = vld [vmem:[#allocation11 + $0x260] sm:$0xff]
    %v2547 = vld [vmem:[#allocation11 + $0x268] sm:$0xff]
    %v2548 = vld [vmem:[#allocation11 + $0x270] sm:$0xff]
    %v2549 = vld [vmem:[#allocation11 + $0x278] sm:$0xff]
    %v2550 = vld [vmem:[#allocation11 + $0x280] sm:$0xff]
    %v2551 = vld [vmem:[#allocation11 + $0x288] sm:$0xff]
    %v2552 = vld [vmem:[#allocation11 + $0x290] sm:$0xff]
    %v2553 = vld [vmem:[#allocation11 + $0x298] sm:$0xff]
    %v2554 = vld [vmem:[#allocation11 + $0x2a0] sm:$0xff]
    %v2555 = vld [vmem:[#allocation11 + $0x2a8] sm:$0xff]
    %v2556 = vld [vmem:[#allocation11 + $0x2b0] sm:$0xff]
    %v2557 = vld [vmem:[#allocation11 + $0x2b8] sm:$0xff]
    %v2558 = vld [vmem:[#allocation11 + $0x2c0] sm:$0xff]
    %v2559 = vld [vmem:[#allocation11 + $0x2c8] sm:$0xff]
    %v2560 = vld [vmem:[#allocation11 + $0x2d0] sm:$0xff]
    %v2561 = vld [vmem:[#allocation11 + $0x2d8] sm:$0xff]
    %v2562 = vld [vmem:[#allocation11 + $0x2e0] sm:$0xff]
    %v2563 = vld [vmem:[#allocation11 + $0x2e8] sm:$0xff]
    %v2564 = vld [vmem:[#allocation11 + $0x2f0] sm:$0xff]
    %v2565 = vld [vmem:[#allocation11 + $0x2f8] sm:$0xff]
    %v2566 = vld [vmem:[#allocation11 + $0x300] sm:$0xff]
    %v2567 = vld [vmem:[#allocation11 + $0x308] sm:$0xff]
    %v2568 = vld [vmem:[#allocation11 + $0x310] sm:$0xff]
    %v2569 = vld [vmem:[#allocation11 + $0x318] sm:$0xff]
    %v2570 = vld [vmem:[#allocation11 + $0x320] sm:$0xff]
    %v2571 = vld [vmem:[#allocation11 + $0x328] sm:$0xff]
    %v2572 = vld [vmem:[#allocation11 + $0x330] sm:$0xff]
    %v2573 = vld [vmem:[#allocation11 + $0x338] sm:$0xff]
    %v2574 = vld [vmem:[#allocation11 + $0x340] sm:$0xff]
    %v2575 = vld [vmem:[#allocation11 + $0x348] sm:$0xff]
    %v2576 = vld [vmem:[#allocation11 + $0x350] sm:$0xff]
    %v2577 = vld [vmem:[#allocation11 + $0x358] sm:$0xff]
    %v2578 = vld [vmem:[#allocation11 + $0x360] sm:$0xff]
    %v2579 = vld [vmem:[#allocation11 + $0x368] sm:$0xff]
    %v2580 = vld [vmem:[#allocation11 + $0x370] sm:$0xff]
    %v2581 = vld [vmem:[#allocation11 + $0x378] sm:$0xff]
    %v2582 = vld [vmem:[#allocation11 + $0x380] sm:$0xff]
    %v2583 = vld [vmem:[#allocation11 + $0x388] sm:$0xff]
    %v2584 = vld [vmem:[#allocation11 + $0x390] sm:$0xff]
    %v2585 = vld [vmem:[#allocation11 + $0x398] sm:$0xff]
    %v2586 = vld [vmem:[#allocation11 + $0x3a0] sm:$0xff]
    %v2587 = vld [vmem:[#allocation11 + $0x3a8] sm:$0xff]
    %v2588 = vld [vmem:[#allocation11 + $0x3b0] sm:$0xff]
    %v2589 = vld [vmem:[#allocation11 + $0x3b8] sm:$0xff]
    %v2590 = vld [vmem:[#allocation11 + $0x3c0] sm:$0xff]
    %v2591 = vld [vmem:[#allocation11 + $0x3c8] sm:$0xff]
    %v2592 = vld [vmem:[#allocation11 + $0x3d0] sm:$0xff]
    %v2593 = vld [vmem:[#allocation11 + $0x3d8] sm:$0xff]
    %v2594 = vld [vmem:[#allocation11 + $0x3e0] sm:$0xff]
    %v2595 = vld [vmem:[#allocation11 + $0x3e8] sm:$0xff]
    %v2596 = vld [vmem:[#allocation11 + $0x3f0] sm:$0xff]
    %v2597 = vld [vmem:[#allocation11 + $0x3f8] sm:$0xff]
    %v2598 = vld [vmem:[#allocation11 + $0x400] sm:$0xff]
    %v2599 = vld [vmem:[#allocation11 + $0x408] sm:$0xff]
    %v2600 = vld [vmem:[#allocation11 + $0x410] sm:$0xff]
    %v2601 = vld [vmem:[#allocation11 + $0x418] sm:$0xff]
    %v2602 = vld [vmem:[#allocation11 + $0x420] sm:$0xff]
    %v2603 = vld [vmem:[#allocation11 + $0x428] sm:$0xff]
    %v2604 = vld [vmem:[#allocation11 + $0x430] sm:$0xff]
    %v2605 = vld [vmem:[#allocation11 + $0x438] sm:$0xff]
    %v2606 = vld [vmem:[#allocation11 + $0x440] sm:$0xff]
    %v2607 = vld [vmem:[#allocation11 + $0x448] sm:$0xff]
    %v2608 = vld [vmem:[#allocation11 + $0x450] sm:$0xff]
    %v2609 = vld [vmem:[#allocation11 + $0x458] sm:$0xff]
    %v2610 = vld [vmem:[#allocation11 + $0x460] sm:$0xff]
    %v2611 = vld [vmem:[#allocation11 + $0x468] sm:$0xff]
    %v2612 = vld [vmem:[#allocation11 + $0x470] sm:$0xff]
    %v2613 = vld [vmem:[#allocation11 + $0x478] sm:$0xff]
    %v2614 = vld [vmem:[#allocation11 + $0x480] sm:$0xff]
    %v2615 = vld [vmem:[#allocation11 + $0x488] sm:$0xff]
    %v2616 = vld [vmem:[#allocation11 + $0x490] sm:$0xff]
    %v2617 = vld [vmem:[#allocation11 + $0x498] sm:$0xff]
    %v2618 = vld [vmem:[#allocation11 + $0x4a0] sm:$0xff]
    %v2619 = vld [vmem:[#allocation11 + $0x4a8] sm:$0xff]
    %v2620 = vld [vmem:[#allocation11 + $0x4b0] sm:$0xff]
    %v2621 = vld [vmem:[#allocation11 + $0x4b8] sm:$0xff]
    %v2622 = vld [vmem:[#allocation11 + $0x4c0] sm:$0xff]
    %v2623 = vld [vmem:[#allocation11 + $0x4c8] sm:$0xff]
    %v2624 = vld [vmem:[#allocation11 + $0x4d0] sm:$0xff]
    %v2625 = vld [vmem:[#allocation11 + $0x4d8] sm:$0xff]
    %v2626 = vld [vmem:[#allocation11 + $0x4e0] sm:$0xff]
    %v2627 = vld [vmem:[#allocation11 + $0x4e8] sm:$0xff]
    %v2628 = vld [vmem:[#allocation11 + $0x4f0] sm:$0xff]
    %v2629 = vld [vmem:[#allocation11 + $0x4f8] sm:$0xff]
    %v2630 = vld [vmem:[#allocation11 + $0x500] sm:$0xff]
    %v2631 = vld [vmem:[#allocation11 + $0x508] sm:$0xff]
    %v2632 = vld [vmem:[#allocation11 + $0x510] sm:$0xff]
    %v2633 = vld [vmem:[#allocation11 + $0x518] sm:$0xff]
    %v2634 = vld [vmem:[#allocation11 + $0x520] sm:$0xff]
    %v2635 = vld [vmem:[#allocation11 + $0x528] sm:$0xff]
    %v2636 = vld [vmem:[#allocation11 + $0x530] sm:$0xff]
    %v2637 = vld [vmem:[#allocation11 + $0x538] sm:$0xff]
    %v2638 = vld [vmem:[#allocation11 + $0x540] sm:$0xff]
    %v2639 = vld [vmem:[#allocation11 + $0x548] sm:$0xff]
    %v2640 = vld [vmem:[#allocation11 + $0x550] sm:$0xff]
    %v2641 = vld [vmem:[#allocation11 + $0x558] sm:$0xff]
    %v2642 = vld [vmem:[#allocation11 + $0x560] sm:$0xff]
    %v2643 = vld [vmem:[#allocation11 + $0x568] sm:$0xff]
    %v2644 = vld [vmem:[#allocation11 + $0x570] sm:$0xff]
    %v2645 = vld [vmem:[#allocation11 + $0x578] sm:$0xff]
    %v2646 = vld [vmem:[#allocation11 + $0x580] sm:$0xff]
    %v2647 = vld [vmem:[#allocation11 + $0x588] sm:$0xff]
    %v2648 = vld [vmem:[#allocation11 + $0x590] sm:$0xff]
    %v2649 = vld [vmem:[#allocation11 + $0x598] sm:$0xff]
    %v2650 = vld [vmem:[#allocation11 + $0x5a0] sm:$0xff]
    %v2651 = vld [vmem:[#allocation11 + $0x5a8] sm:$0xff]
    %v2652 = vld [vmem:[#allocation11 + $0x5b0] sm:$0xff]
    %v2653 = vld [vmem:[#allocation11 + $0x5b8] sm:$0xff]
    %v2654 = vld [vmem:[#allocation11 + $0x5c0] sm:$0xff]
    %v2655 = vld [vmem:[#allocation11 + $0x5c8] sm:$0xff]
    %v2656 = vld [vmem:[#allocation11 + $0x5d0] sm:$0xff]
    %v2657 = vld [vmem:[#allocation11 + $0x5d8] sm:$0xff]
    %v2658 = vld [vmem:[#allocation11 + $0x5e0] sm:$0xff]
    %v2659 = vld [vmem:[#allocation11 + $0x5e8] sm:$0xff]
    %v2660 = vld [vmem:[#allocation11 + $0x5f0] sm:$0xff]
    %v2661 = vld [vmem:[#allocation11 + $0x5f8] sm:$0xff]
    %v2662 = vld [vmem:[#allocation11 + $0x600] sm:$0xff]
    %v2663 = vld [vmem:[#allocation11 + $0x608] sm:$0xff]
    %v2664 = vld [vmem:[#allocation11 + $0x610] sm:$0xff]
    %v2665 = vld [vmem:[#allocation11 + $0x618] sm:$0xff]
    %v2666 = vld [vmem:[#allocation11 + $0x620] sm:$0xff]
    %v2667 = vld [vmem:[#allocation11 + $0x628] sm:$0xff]
    %v2668 = vld [vmem:[#allocation11 + $0x630] sm:$0xff]
    %v2669 = vld [vmem:[#allocation11 + $0x638] sm:$0xff]
    %v2670 = vld [vmem:[#allocation11 + $0x640] sm:$0xff]
    %v2671 = vld [vmem:[#allocation11 + $0x648] sm:$0xff]
    %v2672 = vld [vmem:[#allocation11 + $0x650] sm:$0xff]
    %v2673 = vld [vmem:[#allocation11 + $0x658] sm:$0xff]
    %v2674 = vld [vmem:[#allocation11 + $0x660] sm:$0xff]
    %v2675 = vld [vmem:[#allocation11 + $0x668] sm:$0xff]
    %v2676 = vld [vmem:[#allocation11 + $0x670] sm:$0xff]
    %v2677 = vld [vmem:[#allocation11 + $0x678] sm:$0xff]
    %v2678 = vld [vmem:[#allocation11 + $0x680] sm:$0xff]
    %v2679 = vld [vmem:[#allocation11 + $0x688] sm:$0xff]
    %v2680 = vld [vmem:[#allocation11 + $0x690] sm:$0xff]
    %v2681 = vld [vmem:[#allocation11 + $0x698] sm:$0xff]
    %v2682 = vld [vmem:[#allocation11 + $0x6a0] sm:$0xff]
    %v2683 = vld [vmem:[#allocation11 + $0x6a8] sm:$0xff]
    %v2684 = vld [vmem:[#allocation11 + $0x6b0] sm:$0xff]
    %v2685 = vld [vmem:[#allocation11 + $0x6b8] sm:$0xff]
    %v2686 = vld [vmem:[#allocation11 + $0x6c0] sm:$0xff]
    %v2687 = vld [vmem:[#allocation11 + $0x6c8] sm:$0xff]
    %v2688 = vld [vmem:[#allocation11 + $0x6d0] sm:$0xff]
    %v2689 = vld [vmem:[#allocation11 + $0x6d8] sm:$0xff]
    %v2690 = vld [vmem:[#allocation11 + $0x6e0] sm:$0xff]
    %v2691 = vld [vmem:[#allocation11 + $0x6e8] sm:$0xff]
    %v2692 = vld [vmem:[#allocation11 + $0x6f0] sm:$0xff]
    %v2693 = vld [vmem:[#allocation11 + $0x6f8] sm:$0xff]
    %v2694 = vld [vmem:[#allocation11 + $0x700] sm:$0xff]
    %v2695 = vld [vmem:[#allocation11 + $0x708] sm:$0xff]
    %v2696 = vld [vmem:[#allocation11 + $0x710] sm:$0xff]
    %v2697 = vld [vmem:[#allocation11 + $0x718] sm:$0xff]
    %v2698 = vld [vmem:[#allocation11 + $0x720] sm:$0xff]
    %v2699 = vld [vmem:[#allocation11 + $0x728] sm:$0xff]
    %v2700 = vld [vmem:[#allocation11 + $0x730] sm:$0xff]
    %v2701 = vld [vmem:[#allocation11 + $0x738] sm:$0xff]
    %v2702 = vld [vmem:[#allocation11 + $0x740] sm:$0xff]
    %v2703 = vld [vmem:[#allocation11 + $0x748] sm:$0xff]
    %v2704 = vld [vmem:[#allocation11 + $0x750] sm:$0xff]
    %v2705 = vld [vmem:[#allocation11 + $0x758] sm:$0xff]
    %v2706 = vld [vmem:[#allocation11 + $0x760] sm:$0xff]
    %v2707 = vld [vmem:[#allocation11 + $0x768] sm:$0xff]
    %v2708 = vld [vmem:[#allocation11 + $0x770] sm:$0xff]
    %v2709 = vld [vmem:[#allocation11 + $0x778] sm:$0xff]
    %v2710 = vld [vmem:[#allocation11 + $0x780] sm:$0xff]
    %v2711 = vld [vmem:[#allocation11 + $0x788] sm:$0xff]
    %v2712 = vld [vmem:[#allocation11 + $0x790] sm:$0xff]
    %v2713 = vld [vmem:[#allocation11 + $0x798] sm:$0xff]
    %v2714 = vld [vmem:[#allocation11 + $0x7a0] sm:$0xff]
    %v2715 = vld [vmem:[#allocation11 + $0x7a8] sm:$0xff]
    %v2716 = vld [vmem:[#allocation11 + $0x7b0] sm:$0xff]
    %v2717 = vld [vmem:[#allocation11 + $0x7b8] sm:$0xff]
    %v2718 = vld [vmem:[#allocation11 + $0x7c0] sm:$0xff]
    %v2719 = vld [vmem:[#allocation11 + $0x7c8] sm:$0xff]
    %v2720 = vld [vmem:[#allocation11 + $0x7d0] sm:$0xff]
    %v2721 = vld [vmem:[#allocation11 + $0x7d8] sm:$0xff]
    %v2722 = vld [vmem:[#allocation11 + $0x7e0] sm:$0xff]
    %v2723 = vld [vmem:[#allocation11 + $0x7e8] sm:$0xff]
    %v2724 = vld [vmem:[#allocation11 + $0x7f0] sm:$0xff]
    %v2725 = vld [vmem:[#allocation11 + $0x7f8] sm:$0xff]
    %v2726 = vld [vmem:[#allocation11 + $0x800] sm:$0xff]
    %v2727 = vld [vmem:[#allocation11 + $0x808] sm:$0xff]
    %v2728 = vld [vmem:[#allocation11 + $0x810] sm:$0xff]
    %v2729 = vld [vmem:[#allocation11 + $0x818] sm:$0xff]
    %v2730 = vld [vmem:[#allocation11 + $0x820] sm:$0xff]
    %v2731 = vld [vmem:[#allocation11 + $0x828] sm:$0xff]
    %v2732 = vld [vmem:[#allocation11 + $0x830] sm:$0xff]
    %v2733 = vld [vmem:[#allocation11 + $0x838] sm:$0xff]
    %v2734 = vld [vmem:[#allocation11 + $0x840] sm:$0xff]
    %v2735 = vld [vmem:[#allocation11 + $0x848] sm:$0xff]
    %v2736 = vld [vmem:[#allocation11 + $0x850] sm:$0xff]
    %v2737 = vld [vmem:[#allocation11 + $0x858] sm:$0xff]
    %v2738 = vld [vmem:[#allocation11 + $0x860] sm:$0xff]
    %v2739 = vld [vmem:[#allocation11 + $0x868] sm:$0xff]
    %v2740 = vld [vmem:[#allocation11 + $0x870] sm:$0xff]
    %v2741 = vld [vmem:[#allocation11 + $0x878] sm:$0xff]
    %v2742 = vld [vmem:[#allocation11 + $0x880] sm:$0xff]
    %v2743 = vld [vmem:[#allocation11 + $0x888] sm:$0xff]
    %v2744 = vld [vmem:[#allocation11 + $0x890] sm:$0xff]
    %v2745 = vld [vmem:[#allocation11 + $0x898] sm:$0xff]
    %v2746 = vld [vmem:[#allocation11 + $0x8a0] sm:$0xff]
    %v2747 = vld [vmem:[#allocation11 + $0x8a8] sm:$0xff]
    %v2748 = vld [vmem:[#allocation11 + $0x8b0] sm:$0xff]
    %v2749 = vld [vmem:[#allocation11 + $0x8b8] sm:$0xff]
    %v2750 = vld [vmem:[#allocation11 + $0x8c0] sm:$0xff]
    %v2751 = vld [vmem:[#allocation11 + $0x8c8] sm:$0xff]
    %v2752 = vld [vmem:[#allocation11 + $0x8d0] sm:$0xff]
    %v2753 = vld [vmem:[#allocation11 + $0x8d8] sm:$0xff]
    %v2754 = vld [vmem:[#allocation11 + $0x8e0] sm:$0xff]
    %v2755 = vld [vmem:[#allocation11 + $0x8e8] sm:$0xff]
    %v2756 = vld [vmem:[#allocation11 + $0x8f0] sm:$0xff]
    %v2757 = vld [vmem:[#allocation11 + $0x8f8] sm:$0xff]
    %v2758 = vld [vmem:[#allocation11 + $0x900] sm:$0xff]
    %v2759 = vld [vmem:[#allocation11 + $0x908] sm:$0xff]
    %v2760 = vld [vmem:[#allocation11 + $0x910] sm:$0xff]
    %v2761 = vld [vmem:[#allocation11 + $0x918] sm:$0xff]
    %v2762 = vld [vmem:[#allocation11 + $0x920] sm:$0xff]
    %v2763 = vld [vmem:[#allocation11 + $0x928] sm:$0xff]
    %v2764 = vld [vmem:[#allocation11 + $0x930] sm:$0xff]
    %v2765 = vld [vmem:[#allocation11 + $0x938] sm:$0xff]
    %v2766 = vld [vmem:[#allocation11 + $0x940] sm:$0xff]
    %v2767 = vld [vmem:[#allocation11 + $0x948] sm:$0xff]
    %v2768 = vld [vmem:[#allocation11 + $0x950] sm:$0xff]
    %v2769 = vld [vmem:[#allocation11 + $0x958] sm:$0xff]
    %v2770 = vld [vmem:[#allocation11 + $0x960] sm:$0xff]
    %v2771 = vld [vmem:[#allocation11 + $0x968] sm:$0xff]
    %v2772 = vld [vmem:[#allocation11 + $0x970] sm:$0xff]
    %v2773 = vld [vmem:[#allocation11 + $0x978] sm:$0xff]
    %v2774 = vld [vmem:[#allocation11 + $0x980] sm:$0xff]
    %v2775 = vld [vmem:[#allocation11 + $0x988] sm:$0xff]
    %v2776 = vld [vmem:[#allocation11 + $0x990] sm:$0xff]
    %v2777 = vld [vmem:[#allocation11 + $0x998] sm:$0xff]
    %v2778 = vld [vmem:[#allocation11 + $0x9a0] sm:$0xff]
    %v2779 = vld [vmem:[#allocation11 + $0x9a8] sm:$0xff]
    %v2780 = vld [vmem:[#allocation11 + $0x9b0] sm:$0xff]
    %v2781 = vld [vmem:[#allocation11 + $0x9b8] sm:$0xff]
    %v2782 = vld [vmem:[#allocation11 + $0x9c0] sm:$0xff]
    %v2783 = vld [vmem:[#allocation11 + $0x9c8] sm:$0xff]
    %v2784 = vld [vmem:[#allocation11 + $0x9d0] sm:$0xff]
    %v2785 = vld [vmem:[#allocation11 + $0x9d8] sm:$0xff]
    %v2786 = vld [vmem:[#allocation11 + $0x9e0] sm:$0xff]
    %v2787 = vld [vmem:[#allocation11 + $0x9e8] sm:$0xff]
    %v2788 = vld [vmem:[#allocation11 + $0x9f0] sm:$0xff]
    %v2789 = vld [vmem:[#allocation11 + $0x9f8] sm:$0xff]
    %v2790 = vld [vmem:[#allocation11 + $0xa00] sm:$0xff]
    %v2791 = vld [vmem:[#allocation11 + $0xa08] sm:$0xff]
    %v2792 = vld [vmem:[#allocation11 + $0xa10] sm:$0xff]
    %v2793 = vld [vmem:[#allocation11 + $0xa18] sm:$0xff]
    %v2794 = vld [vmem:[#allocation11 + $0xa20] sm:$0xff]
    %v2795 = vld [vmem:[#allocation11 + $0xa28] sm:$0xff]
    %v2796 = vld [vmem:[#allocation11 + $0xa30] sm:$0xff]
    %v2797 = vld [vmem:[#allocation11 + $0xa38] sm:$0xff]
    %v2798 = vld [vmem:[#allocation11 + $0xa40] sm:$0xff]
    %v2799 = vld [vmem:[#allocation11 + $0xa48] sm:$0xff]
    %v2800 = vld [vmem:[#allocation11 + $0xa50] sm:$0xff]
    %v2801 = vld [vmem:[#allocation11 + $0xa58] sm:$0xff]
    %v2802 = vld [vmem:[#allocation11 + $0xa60] sm:$0xff]
    %v2803 = vld [vmem:[#allocation11 + $0xa68] sm:$0xff]
    %v2804 = vld [vmem:[#allocation11 + $0xa70] sm:$0xff]
    %v2805 = vld [vmem:[#allocation11 + $0xa78] sm:$0xff]
    %v2806 = vld [vmem:[#allocation11 + $0xa80] sm:$0xff]
    %v2807 = vld [vmem:[#allocation11 + $0xa88] sm:$0xff]
    %v2808 = vld [vmem:[#allocation11 + $0xa90] sm:$0xff]
    %v2809 = vld [vmem:[#allocation11 + $0xa98] sm:$0xff]
    %v2810 = vld [vmem:[#allocation11 + $0xaa0] sm:$0xff]
    %v2811 = vld [vmem:[#allocation11 + $0xaa8] sm:$0xff]
    %v2812 = vld [vmem:[#allocation11 + $0xab0] sm:$0xff]
    %v2813 = vld [vmem:[#allocation11 + $0xab8] sm:$0xff]
    %v2814 = vld [vmem:[#allocation11 + $0xac0] sm:$0xff]
    %v2815 = vld [vmem:[#allocation11 + $0xac8] sm:$0xff]
    %v2816 = vld [vmem:[#allocation11 + $0xad0] sm:$0xff]
    %v2817 = vld [vmem:[#allocation11 + $0xad8] sm:$0xff]
    %v2818 = vld [vmem:[#allocation11 + $0xae0] sm:$0xff]
    %v2819 = vld [vmem:[#allocation11 + $0xae8] sm:$0xff]
    %v2820 = vld [vmem:[#allocation11 + $0xaf0] sm:$0xff]
    %v2821 = vld [vmem:[#allocation11 + $0xaf8] sm:$0xff]
    %v2822 = vld [vmem:[#allocation11 + $0xb00] sm:$0xff]
    %v2823 = vld [vmem:[#allocation11 + $0xb08] sm:$0xff]
    %v2824 = vld [vmem:[#allocation11 + $0xb10] sm:$0xff]
    %v2825 = vld [vmem:[#allocation11 + $0xb18] sm:$0xff]
    %v2826 = vld [vmem:[#allocation11 + $0xb20] sm:$0xff]
    %v2827 = vld [vmem:[#allocation11 + $0xb28] sm:$0xff]
    %v2828 = vld [vmem:[#allocation11 + $0xb30] sm:$0xff]
    %v2829 = vld [vmem:[#allocation11 + $0xb38] sm:$0xff]
    %v2830 = vld [vmem:[#allocation11 + $0xb40] sm:$0xff]
    %v2831 = vld [vmem:[#allocation11 + $0xb48] sm:$0xff]
    %v2832 = vld [vmem:[#allocation11 + $0xb50] sm:$0xff]
    %v2833 = vld [vmem:[#allocation11 + $0xb58] sm:$0xff]
    %v2834 = vld [vmem:[#allocation11 + $0xb60] sm:$0xff]
    %v2835 = vld [vmem:[#allocation11 + $0xb68] sm:$0xff]
    %v2836 = vld [vmem:[#allocation11 + $0xb70] sm:$0xff]
    %v2837 = vld [vmem:[#allocation11 + $0xb78] sm:$0xff]
    %v2838 = vld [vmem:[#allocation11 + $0xb80] sm:$0xff]
    %v2839 = vld [vmem:[#allocation11 + $0xb88] sm:$0xff]
    %v2840 = vld [vmem:[#allocation11 + $0xb90] sm:$0xff]
    %v2841 = vld [vmem:[#allocation11 + $0xb98] sm:$0xff]
    %v2842 = vld [vmem:[#allocation11 + $0xba0] sm:$0xff]
    %v2843 = vld [vmem:[#allocation11 + $0xba8] sm:$0xff]
    %v2844 = vld [vmem:[#allocation11 + $0xbb0] sm:$0xff]
    %v2845 = vld [vmem:[#allocation11 + $0xbb8] sm:$0xff]
    %v2846 = vld [vmem:[#allocation11 + $0xbc0] sm:$0xff]
    %v2847 = vld [vmem:[#allocation11 + $0xbc8] sm:$0xff]
    %v2848 = vld [vmem:[#allocation11 + $0xbd0] sm:$0xff]
    %v2849 = vld [vmem:[#allocation11 + $0xbd8] sm:$0xff]
    %v2850 = vld [vmem:[#allocation11 + $0xbe0] sm:$0xff]
    %v2851 = vld [vmem:[#allocation11 + $0xbe8] sm:$0xff]
    %v2852 = vld [vmem:[#allocation11 + $0xbf0] sm:$0xff]
    %v2853 = vld [vmem:[#allocation11 + $0xbf8] sm:$0xff]
    %v2854 = vld [vmem:[#allocation11 + $0xc00] sm:$0xff]
    %v2855 = vld [vmem:[#allocation11 + $0xc08] sm:$0xff]
    %v2856 = vld [vmem:[#allocation11 + $0xc10] sm:$0xff]
    %v2857 = vld [vmem:[#allocation11 + $0xc18] sm:$0xff]
    %v2858 = vld [vmem:[#allocation11 + $0xc20] sm:$0xff]
    %v2859 = vld [vmem:[#allocation11 + $0xc28] sm:$0xff]
    %v2860 = vld [vmem:[#allocation11 + $0xc30] sm:$0xff]
    %v2861 = vld [vmem:[#allocation11 + $0xc38] sm:$0xff]
    %v2862 = vld [vmem:[#allocation11 + $0xc40] sm:$0xff]
    %v2863 = vld [vmem:[#allocation11 + $0xc48] sm:$0xff]
    %v2864 = vld [vmem:[#allocation11 + $0xc50] sm:$0xff]
    %v2865 = vld [vmem:[#allocation11 + $0xc58] sm:$0xff]
    %v2866 = vld [vmem:[#allocation11 + $0xc60] sm:$0xff]
    %v2867 = vld [vmem:[#allocation11 + $0xc68] sm:$0xff]
    %v2868 = vld [vmem:[#allocation11 + $0xc70] sm:$0xff]
    %v2869 = vld [vmem:[#allocation11 + $0xc78] sm:$0xff]
    %v2870 = vld [vmem:[#allocation11 + $0xc80] sm:$0xff]
    %v2871 = vld [vmem:[#allocation11 + $0xc88] sm:$0xff]
    %v2872 = vld [vmem:[#allocation11 + $0xc90] sm:$0xff]
    %v2873 = vld [vmem:[#allocation11 + $0xc98] sm:$0xff]
    %v2874 = vld [vmem:[#allocation11 + $0xca0] sm:$0xff]
    %v2875 = vld [vmem:[#allocation11 + $0xca8] sm:$0xff]
    %v2876 = vld [vmem:[#allocation11 + $0xcb0] sm:$0xff]
    %v2877 = vld [vmem:[#allocation11 + $0xcb8] sm:$0xff]
    %v2878 = vld [vmem:[#allocation11 + $0xcc0] sm:$0xff]
    %v2879 = vld [vmem:[#allocation11 + $0xcc8] sm:$0xff]
    %v2880 = vld [vmem:[#allocation11 + $0xcd0] sm:$0xff]
    %v2881 = vld [vmem:[#allocation11 + $0xcd8] sm:$0xff]
    %v2882 = vld [vmem:[#allocation11 + $0xce0] sm:$0xff]
    %v2883 = vld [vmem:[#allocation11 + $0xce8] sm:$0xff]
    %v2884 = vld [vmem:[#allocation11 + $0xcf0] sm:$0xff]
    %v2885 = vld [vmem:[#allocation11 + $0xcf8] sm:$0xff]
    %v2886 = vld [vmem:[#allocation11 + $0xd00] sm:$0xff]
    %v2887 = vld [vmem:[#allocation11 + $0xd08] sm:$0xff]
    %v2888 = vld [vmem:[#allocation11 + $0xd10] sm:$0xff]
    %v2889 = vld [vmem:[#allocation11 + $0xd18] sm:$0xff]
    %v2890 = vld [vmem:[#allocation11 + $0xd20] sm:$0xff]
    %v2891 = vld [vmem:[#allocation11 + $0xd28] sm:$0xff]
    %v2892 = vld [vmem:[#allocation11 + $0xd30] sm:$0xff]
    %v2893 = vld [vmem:[#allocation11 + $0xd38] sm:$0xff]
    %v2894 = vld [vmem:[#allocation11 + $0xd40] sm:$0xff]
    %v2895 = vld [vmem:[#allocation11 + $0xd48] sm:$0xff]
    %v2896 = vld [vmem:[#allocation11 + $0xd50] sm:$0xff]
    %v2897 = vld [vmem:[#allocation11 + $0xd58] sm:$0xff]
    %v2898 = vld [vmem:[#allocation11 + $0xd60] sm:$0xff]
    %v2899 = vld [vmem:[#allocation11 + $0xd68] sm:$0xff]
    %v2900 = vld [vmem:[#allocation11 + $0xd70] sm:$0xff]
    %v2901 = vld [vmem:[#allocation11 + $0xd78] sm:$0xff]
    %v2902 = vld [vmem:[#allocation11 + $0xd80] sm:$0xff]
    %v2903 = vld [vmem:[#allocation11 + $0xd88] sm:$0xff]
    %v2904 = vld [vmem:[#allocation11 + $0xd90] sm:$0xff]
    %v2905 = vld [vmem:[#allocation11 + $0xd98] sm:$0xff]
    %v2906 = vld [vmem:[#allocation11 + $0xda0] sm:$0xff]
    %v2907 = vld [vmem:[#allocation11 + $0xda8] sm:$0xff]
    %v2908 = vld [vmem:[#allocation11 + $0xdb0] sm:$0xff]
    %v2909 = vld [vmem:[#allocation11 + $0xdb8] sm:$0xff]
    %v2910 = vld [vmem:[#allocation11 + $0xdc0] sm:$0xff]
    %v2911 = vld [vmem:[#allocation11 + $0xdc8] sm:$0xff]
    %v2912 = vld [vmem:[#allocation11 + $0xdd0] sm:$0xff]
    %v2913 = vld [vmem:[#allocation11 + $0xdd8] sm:$0xff]
    %v2914 = vld [vmem:[#allocation11 + $0xde0] sm:$0xff]
    %v2915 = vld [vmem:[#allocation11 + $0xde8] sm:$0xff]
    %v2916 = vld [vmem:[#allocation11 + $0xdf0] sm:$0xff]
    %v2917 = vld [vmem:[#allocation11 + $0xdf8] sm:$0xff]
    %v2918 = vld [vmem:[#allocation11 + $0xe00] sm:$0xff]
    %v2919 = vld [vmem:[#allocation11 + $0xe08] sm:$0xff]
    %v2920 = vld [vmem:[#allocation11 + $0xe10] sm:$0xff]
    %v2921 = vld [vmem:[#allocation11 + $0xe18] sm:$0xff]
    %v2922 = vld [vmem:[#allocation11 + $0xe20] sm:$0xff]
    %v2923 = vld [vmem:[#allocation11 + $0xe28] sm:$0xff]
    %v2924 = vld [vmem:[#allocation11 + $0xe30] sm:$0xff]
    %v2925 = vld [vmem:[#allocation11 + $0xe38] sm:$0xff]
    %v2926 = vld [vmem:[#allocation11 + $0xe40] sm:$0xff]
    %v2927 = vld [vmem:[#allocation11 + $0xe48] sm:$0xff]
    %v2928 = vld [vmem:[#allocation11 + $0xe50] sm:$0xff]
    %v2929 = vld [vmem:[#allocation11 + $0xe58] sm:$0xff]
    %v2930 = vld [vmem:[#allocation11 + $0xe60] sm:$0xff]
    %v2931 = vld [vmem:[#allocation11 + $0xe68] sm:$0xff]
    %v2932 = vld [vmem:[#allocation11 + $0xe70] sm:$0xff]
    %v2933 = vld [vmem:[#allocation11 + $0xe78] sm:$0xff]
    %v2934 = vld [vmem:[#allocation11 + $0xe80] sm:$0xff]
    %v2935 = vld [vmem:[#allocation11 + $0xe88] sm:$0xff]
    %v2936 = vld [vmem:[#allocation11 + $0xe90] sm:$0xff]
    %v2937 = vld [vmem:[#allocation11 + $0xe98] sm:$0xff]
    %v2938 = vld [vmem:[#allocation11 + $0xea0] sm:$0xff]
    %v2939 = vld [vmem:[#allocation11 + $0xea8] sm:$0xff]
    %v2940 = vld [vmem:[#allocation11 + $0xeb0] sm:$0xff]
    %v2941 = vld [vmem:[#allocation11 + $0xeb8] sm:$0xff]
    %v2942 = vld [vmem:[#allocation11 + $0xec0] sm:$0xff]
    %v2943 = vld [vmem:[#allocation11 + $0xec8] sm:$0xff]
    %v2944 = vld [vmem:[#allocation11 + $0xed0] sm:$0xff]
    %v2945 = vld [vmem:[#allocation11 + $0xed8] sm:$0xff]
    %v2946 = vld [vmem:[#allocation11 + $0xee0] sm:$0xff]
    %v2947 = vld [vmem:[#allocation11 + $0xee8] sm:$0xff]
    %v2948 = vld [vmem:[#allocation11 + $0xef0] sm:$0xff]
    %v2949 = vld [vmem:[#allocation11 + $0xef8] sm:$0xff]
    %v2950 = vld [vmem:[#allocation11 + $0xf00] sm:$0xff]
    %v2951 = vld [vmem:[#allocation11 + $0xf08] sm:$0xff]
    %v2952 = vld [vmem:[#allocation11 + $0xf10] sm:$0xff]
    %v2953 = vld [vmem:[#allocation11 + $0xf18] sm:$0xff]
    %v2954 = vld [vmem:[#allocation11 + $0xf20] sm:$0xff]
    %v2955 = vld [vmem:[#allocation11 + $0xf28] sm:$0xff]
    %v2956 = vld [vmem:[#allocation11 + $0xf30] sm:$0xff]
    %v2957 = vld [vmem:[#allocation11 + $0xf38] sm:$0xff]
    %v2958 = vld [vmem:[#allocation11 + $0xf40] sm:$0xff]
    %v2959 = vld [vmem:[#allocation11 + $0xf48] sm:$0xff]
    %v2960 = vld [vmem:[#allocation11 + $0xf50] sm:$0xff]
    %v2961 = vld [vmem:[#allocation11 + $0xf58] sm:$0xff]
    %v2962 = vld [vmem:[#allocation11 + $0xf60] sm:$0xff]
    %v2963 = vld [vmem:[#allocation11 + $0xf68] sm:$0xff]
    %v2964 = vld [vmem:[#allocation11 + $0xf70] sm:$0xff]
    %v2965 = vld [vmem:[#allocation11 + $0xf78] sm:$0xff]
    %v2966 = vld [vmem:[#allocation11 + $0xf80] sm:$0xff]
    %v2967 = vld [vmem:[#allocation11 + $0xf88] sm:$0xff]
    %v2968 = vld [vmem:[#allocation11 + $0xf90] sm:$0xff]
    %v2969 = vld [vmem:[#allocation11 + $0xf98] sm:$0xff]
    %v2970 = vld [vmem:[#allocation11 + $0xfa0] sm:$0xff]
    %v2971 = vld [vmem:[#allocation11 + $0xfa8] sm:$0xff]
    %v2972 = vld [vmem:[#allocation11 + $0xfb0] sm:$0xff]
    %v2973 = vld [vmem:[#allocation11 + $0xfb8] sm:$0xff]
    %v2974 = vld [vmem:[#allocation11 + $0xfc0] sm:$0xff]
    %v2975 = vld [vmem:[#allocation11 + $0xfc8] sm:$0xff]
    %v2976 = vld [vmem:[#allocation11 + $0xfd0] sm:$0xff]
    %v2977 = vld [vmem:[#allocation11 + $0xfd8] sm:$0xff]
    %v2978 = vld [vmem:[#allocation11 + $0xfe0] sm:$0xff]
    %v2979 = vld [vmem:[#allocation11 + $0xfe8] sm:$0xff]
    %v2980 = vld [vmem:[#allocation11 + $0xff0] sm:$0xff]
    %v2981 = vld [vmem:[#allocation11 + $0xff8] sm:$0xff]
    %v3494 = vunpack.c.l.b16 %v2470
    %v3495 = vunpack.c.h.b16 %v2470
    %v3496 = vunpack.c.l.b16 %v2471
    %v3497 = vunpack.c.h.b16 %v2471
    %v3498 = vunpack.c.l.b16 %v2472
    %v3499 = vunpack.c.h.b16 %v2472
    %v3500 = vunpack.c.l.b16 %v2473
    %v3501 = vunpack.c.h.b16 %v2473
    %v3502 = vunpack.c.l.b16 %v2474
    %v3503 = vunpack.c.h.b16 %v2474
    %v3504 = vunpack.c.l.b16 %v2475
    %v3505 = vunpack.c.h.b16 %v2475
    %v3506 = vunpack.c.l.b16 %v2476
    %v3507 = vunpack.c.h.b16 %v2476
    %v3508 = vunpack.c.l.b16 %v2477
    %v3509 = vunpack.c.h.b16 %v2477
    %v3510 = vunpack.c.l.b16 %v2478
    %v3511 = vunpack.c.h.b16 %v2478
    %v3512 = vunpack.c.l.b16 %v2479
    %v3513 = vunpack.c.h.b16 %v2479
    %v3514 = vunpack.c.l.b16 %v2480
    %v3515 = vunpack.c.h.b16 %v2480
    %v3516 = vunpack.c.l.b16 %v2481
    %v3517 = vunpack.c.h.b16 %v2481
    %v3518 = vunpack.c.l.b16 %v2482
    %v3519 = vunpack.c.h.b16 %v2482
    %v3520 = vunpack.c.l.b16 %v2483
    %v3521 = vunpack.c.h.b16 %v2483
    %v3522 = vunpack.c.l.b16 %v2484
    %v3523 = vunpack.c.h.b16 %v2484
    %v3524 = vunpack.c.l.b16 %v2485
    %v3525 = vunpack.c.h.b16 %v2485
    %v3526 = vunpack.c.l.b16 %v2486
    %v3527 = vunpack.c.h.b16 %v2486
    %v3528 = vunpack.c.l.b16 %v2487
    %v3529 = vunpack.c.h.b16 %v2487
    %v3530 = vunpack.c.l.b16 %v2488
    %v3531 = vunpack.c.h.b16 %v2488
    %v3532 = vunpack.c.l.b16 %v2489
    %v3533 = vunpack.c.h.b16 %v2489
    %v3534 = vunpack.c.l.b16 %v2490
    %v3535 = vunpack.c.h.b16 %v2490
    %v3536 = vunpack.c.l.b16 %v2491
    %v3537 = vunpack.c.h.b16 %v2491
    %v3538 = vunpack.c.l.b16 %v2492
    %v3539 = vunpack.c.h.b16 %v2492
    %v3540 = vunpack.c.l.b16 %v2493
    %v3541 = vunpack.c.h.b16 %v2493
    %v3542 = vunpack.c.l.b16 %v2494
    %v3543 = vunpack.c.h.b16 %v2494
    %v3544 = vunpack.c.l.b16 %v2495
    %v3545 = vunpack.c.h.b16 %v2495
    %v3546 = vunpack.c.l.b16 %v2496
    %v3547 = vunpack.c.h.b16 %v2496
    %v3548 = vunpack.c.l.b16 %v2497
    %v3549 = vunpack.c.h.b16 %v2497
    %v3550 = vunpack.c.l.b16 %v2498
    %v3551 = vunpack.c.h.b16 %v2498
    %v3552 = vunpack.c.l.b16 %v2499
    %v3553 = vunpack.c.h.b16 %v2499
    %v3554 = vunpack.c.l.b16 %v2500
    %v3555 = vunpack.c.h.b16 %v2500
    %v3556 = vunpack.c.l.b16 %v2501
    %v3557 = vunpack.c.h.b16 %v2501
    %v3558 = vunpack.c.l.b16 %v2502
    %v3559 = vunpack.c.h.b16 %v2502
    %v3560 = vunpack.c.l.b16 %v2503
    %v3561 = vunpack.c.h.b16 %v2503
    %v3562 = vunpack.c.l.b16 %v2504
    %v3563 = vunpack.c.h.b16 %v2504
    %v3564 = vunpack.c.l.b16 %v2505
    %v3565 = vunpack.c.h.b16 %v2505
    %v3566 = vunpack.c.l.b16 %v2506
    %v3567 = vunpack.c.h.b16 %v2506
    %v3568 = vunpack.c.l.b16 %v2507
    %v3569 = vunpack.c.h.b16 %v2507
    %v3570 = vunpack.c.l.b16 %v2508
    %v3571 = vunpack.c.h.b16 %v2508
    %v3572 = vunpack.c.l.b16 %v2509
    %v3573 = vunpack.c.h.b16 %v2509
    %v3574 = vunpack.c.l.b16 %v2510
    %v3575 = vunpack.c.h.b16 %v2510
    %v3576 = vunpack.c.l.b16 %v2511
    %v3577 = vunpack.c.h.b16 %v2511
    %v3578 = vunpack.c.l.b16 %v2512
    %v3579 = vunpack.c.h.b16 %v2512
    %v3580 = vunpack.c.l.b16 %v2513
    %v3581 = vunpack.c.h.b16 %v2513
    %v3582 = vunpack.c.l.b16 %v2514
    %v3583 = vunpack.c.h.b16 %v2514
    %v3584 = vunpack.c.l.b16 %v2515
    %v3585 = vunpack.c.h.b16 %v2515
    %v3586 = vunpack.c.l.b16 %v2516
    %v3587 = vunpack.c.h.b16 %v2516
    %v3588 = vunpack.c.l.b16 %v2517
    %v3589 = vunpack.c.h.b16 %v2517
    %v3590 = vunpack.c.l.b16 %v2518
    %v3591 = vunpack.c.h.b16 %v2518
    %v3592 = vunpack.c.l.b16 %v2519
    %v3593 = vunpack.c.h.b16 %v2519
    %v3594 = vunpack.c.l.b16 %v2520
    %v3595 = vunpack.c.h.b16 %v2520
    %v3596 = vunpack.c.l.b16 %v2521
    %v3597 = vunpack.c.h.b16 %v2521
    %v3598 = vunpack.c.l.b16 %v2522
    %v3599 = vunpack.c.h.b16 %v2522
    %v3600 = vunpack.c.l.b16 %v2523
    %v3601 = vunpack.c.h.b16 %v2523
    %v3602 = vunpack.c.l.b16 %v2524
    %v3603 = vunpack.c.h.b16 %v2524
    %v3604 = vunpack.c.l.b16 %v2525
    %v3605 = vunpack.c.h.b16 %v2525
    %v3606 = vunpack.c.l.b16 %v2526
    %v3607 = vunpack.c.h.b16 %v2526
    %v3608 = vunpack.c.l.b16 %v2527
    %v3609 = vunpack.c.h.b16 %v2527
    %v3610 = vunpack.c.l.b16 %v2528
    %v3611 = vunpack.c.h.b16 %v2528
    %v3612 = vunpack.c.l.b16 %v2529
    %v3613 = vunpack.c.h.b16 %v2529
    %v3614 = vunpack.c.l.b16 %v2530
    %v3615 = vunpack.c.h.b16 %v2530
    %v3616 = vunpack.c.l.b16 %v2531
    %v3617 = vunpack.c.h.b16 %v2531
    %v3618 = vunpack.c.l.b16 %v2532
    %v3619 = vunpack.c.h.b16 %v2532
    %v3620 = vunpack.c.l.b16 %v2533
    %v3621 = vunpack.c.h.b16 %v2533
    %v3622 = vunpack.c.l.b16 %v2534
    %v3623 = vunpack.c.h.b16 %v2534
    %v3624 = vunpack.c.l.b16 %v2535
    %v3625 = vunpack.c.h.b16 %v2535
    %v3626 = vunpack.c.l.b16 %v2536
    %v3627 = vunpack.c.h.b16 %v2536
    %v3628 = vunpack.c.l.b16 %v2537
    %v3629 = vunpack.c.h.b16 %v2537
    %v3630 = vunpack.c.l.b16 %v2538
    %v3631 = vunpack.c.h.b16 %v2538
    %v3632 = vunpack.c.l.b16 %v2539
    %v3633 = vunpack.c.h.b16 %v2539
    %v3634 = vunpack.c.l.b16 %v2540
    %v3635 = vunpack.c.h.b16 %v2540
    %v3636 = vunpack.c.l.b16 %v2541
    %v3637 = vunpack.c.h.b16 %v2541
    %v3638 = vunpack.c.l.b16 %v2542
    %v3639 = vunpack.c.h.b16 %v2542
    %v3640 = vunpack.c.l.b16 %v2543
    %v3641 = vunpack.c.h.b16 %v2543
    %v3642 = vunpack.c.l.b16 %v2544
    %v3643 = vunpack.c.h.b16 %v2544
    %v3644 = vunpack.c.l.b16 %v2545
    %v3645 = vunpack.c.h.b16 %v2545
    %v3646 = vunpack.c.l.b16 %v2546
    %v3647 = vunpack.c.h.b16 %v2546
    %v3648 = vunpack.c.l.b16 %v2547
    %v3649 = vunpack.c.h.b16 %v2547
    %v3650 = vunpack.c.l.b16 %v2548
    %v3651 = vunpack.c.h.b16 %v2548
    %v3652 = vunpack.c.l.b16 %v2549
    %v3653 = vunpack.c.h.b16 %v2549
    %v3654 = vunpack.c.l.b16 %v2550
    %v3655 = vunpack.c.h.b16 %v2550
    %v3656 = vunpack.c.l.b16 %v2551
    %v3657 = vunpack.c.h.b16 %v2551
    %v3658 = vunpack.c.l.b16 %v2552
    %v3659 = vunpack.c.h.b16 %v2552
    %v3660 = vunpack.c.l.b16 %v2553
    %v3661 = vunpack.c.h.b16 %v2553
    %v3662 = vunpack.c.l.b16 %v2554
    %v3663 = vunpack.c.h.b16 %v2554
    %v3664 = vunpack.c.l.b16 %v2555
    %v3665 = vunpack.c.h.b16 %v2555
    %v3666 = vunpack.c.l.b16 %v2556
    %v3667 = vunpack.c.h.b16 %v2556
    %v3668 = vunpack.c.l.b16 %v2557
    %v3669 = vunpack.c.h.b16 %v2557
    %v3670 = vunpack.c.l.b16 %v2558
    %v3671 = vunpack.c.h.b16 %v2558
    %v3672 = vunpack.c.l.b16 %v2559
    %v3673 = vunpack.c.h.b16 %v2559
    %v3674 = vunpack.c.l.b16 %v2560
    %v3675 = vunpack.c.h.b16 %v2560
    %v3676 = vunpack.c.l.b16 %v2561
    %v3677 = vunpack.c.h.b16 %v2561
    %v3678 = vunpack.c.l.b16 %v2562
    %v3679 = vunpack.c.h.b16 %v2562
    %v3680 = vunpack.c.l.b16 %v2563
    %v3681 = vunpack.c.h.b16 %v2563
    %v3682 = vunpack.c.l.b16 %v2564
    %v3683 = vunpack.c.h.b16 %v2564
    %v3684 = vunpack.c.l.b16 %v2565
    %v3685 = vunpack.c.h.b16 %v2565
    %v3686 = vunpack.c.l.b16 %v2566
    %v3687 = vunpack.c.h.b16 %v2566
    %v3688 = vunpack.c.l.b16 %v2567
    %v3689 = vunpack.c.h.b16 %v2567
    %v3690 = vunpack.c.l.b16 %v2568
    %v3691 = vunpack.c.h.b16 %v2568
    %v3692 = vunpack.c.l.b16 %v2569
    %v3693 = vunpack.c.h.b16 %v2569
    %v3694 = vunpack.c.l.b16 %v2570
    %v3695 = vunpack.c.h.b16 %v2570
    %v3696 = vunpack.c.l.b16 %v2571
    %v3697 = vunpack.c.h.b16 %v2571
    %v3698 = vunpack.c.l.b16 %v2572
    %v3699 = vunpack.c.h.b16 %v2572
    %v3700 = vunpack.c.l.b16 %v2573
    %v3701 = vunpack.c.h.b16 %v2573
    %v3702 = vunpack.c.l.b16 %v2574
    %v3703 = vunpack.c.h.b16 %v2574
    %v3704 = vunpack.c.l.b16 %v2575
    %v3705 = vunpack.c.h.b16 %v2575
    %v3706 = vunpack.c.l.b16 %v2576
    %v3707 = vunpack.c.h.b16 %v2576
    %v3708 = vunpack.c.l.b16 %v2577
    %v3709 = vunpack.c.h.b16 %v2577
    %v3710 = vunpack.c.l.b16 %v2578
    %v3711 = vunpack.c.h.b16 %v2578
    %v3712 = vunpack.c.l.b16 %v2579
    %v3713 = vunpack.c.h.b16 %v2579
    %v3714 = vunpack.c.l.b16 %v2580
    %v3715 = vunpack.c.h.b16 %v2580
    %v3716 = vunpack.c.l.b16 %v2581
    %v3717 = vunpack.c.h.b16 %v2581
    %v3718 = vunpack.c.l.b16 %v2582
    %v3719 = vunpack.c.h.b16 %v2582
    %v3720 = vunpack.c.l.b16 %v2583
    %v3721 = vunpack.c.h.b16 %v2583
    %v3722 = vunpack.c.l.b16 %v2584
    %v3723 = vunpack.c.h.b16 %v2584
    %v3724 = vunpack.c.l.b16 %v2585
    %v3725 = vunpack.c.h.b16 %v2585
    %v3726 = vunpack.c.l.b16 %v2586
    %v3727 = vunpack.c.h.b16 %v2586
    %v3728 = vunpack.c.l.b16 %v2587
    %v3729 = vunpack.c.h.b16 %v2587
    %v3730 = vunpack.c.l.b16 %v2588
    %v3731 = vunpack.c.h.b16 %v2588
    %v3732 = vunpack.c.l.b16 %v2589
    %v3733 = vunpack.c.h.b16 %v2589
    %v3734 = vunpack.c.l.b16 %v2590
    %v3735 = vunpack.c.h.b16 %v2590
    %v3736 = vunpack.c.l.b16 %v2591
    %v3737 = vunpack.c.h.b16 %v2591
    %v3738 = vunpack.c.l.b16 %v2592
    %v3739 = vunpack.c.h.b16 %v2592
    %v3740 = vunpack.c.l.b16 %v2593
    %v3741 = vunpack.c.h.b16 %v2593
    %v3742 = vunpack.c.l.b16 %v2594
    %v3743 = vunpack.c.h.b16 %v2594
    %v3744 = vunpack.c.l.b16 %v2595
    %v3745 = vunpack.c.h.b16 %v2595
    %v3746 = vunpack.c.l.b16 %v2596
    %v3747 = vunpack.c.h.b16 %v2596
    %v3748 = vunpack.c.l.b16 %v2597
    %v3749 = vunpack.c.h.b16 %v2597
    %v3750 = vunpack.c.l.b16 %v2598
    %v3751 = vunpack.c.h.b16 %v2598
    %v3752 = vunpack.c.l.b16 %v2599
    %v3753 = vunpack.c.h.b16 %v2599
    %v3754 = vunpack.c.l.b16 %v2600
    %v3755 = vunpack.c.h.b16 %v2600
    %v3756 = vunpack.c.l.b16 %v2601
    %v3757 = vunpack.c.h.b16 %v2601
    %v3758 = vunpack.c.l.b16 %v2602
    %v3759 = vunpack.c.h.b16 %v2602
    %v3760 = vunpack.c.l.b16 %v2603
    %v3761 = vunpack.c.h.b16 %v2603
    %v3762 = vunpack.c.l.b16 %v2604
    %v3763 = vunpack.c.h.b16 %v2604
    %v3764 = vunpack.c.l.b16 %v2605
    %v3765 = vunpack.c.h.b16 %v2605
    %v3766 = vunpack.c.l.b16 %v2606
    %v3767 = vunpack.c.h.b16 %v2606
    %v3768 = vunpack.c.l.b16 %v2607
    %v3769 = vunpack.c.h.b16 %v2607
    %v3770 = vunpack.c.l.b16 %v2608
    %v3771 = vunpack.c.h.b16 %v2608
    %v3772 = vunpack.c.l.b16 %v2609
    %v3773 = vunpack.c.h.b16 %v2609
    %v3774 = vunpack.c.l.b16 %v2610
    %v3775 = vunpack.c.h.b16 %v2610
    %v3776 = vunpack.c.l.b16 %v2611
    %v3777 = vunpack.c.h.b16 %v2611
    %v3778 = vunpack.c.l.b16 %v2612
    %v3779 = vunpack.c.h.b16 %v2612
    %v3780 = vunpack.c.l.b16 %v2613
    %v3781 = vunpack.c.h.b16 %v2613
    %v3782 = vunpack.c.l.b16 %v2614
    %v3783 = vunpack.c.h.b16 %v2614
    %v3784 = vunpack.c.l.b16 %v2615
    %v3785 = vunpack.c.h.b16 %v2615
    %v3786 = vunpack.c.l.b16 %v2616
    %v3787 = vunpack.c.h.b16 %v2616
    %v3788 = vunpack.c.l.b16 %v2617
    %v3789 = vunpack.c.h.b16 %v2617
    %v3790 = vunpack.c.l.b16 %v2618
    %v3791 = vunpack.c.h.b16 %v2618
    %v3792 = vunpack.c.l.b16 %v2619
    %v3793 = vunpack.c.h.b16 %v2619
    %v3794 = vunpack.c.l.b16 %v2620
    %v3795 = vunpack.c.h.b16 %v2620
    %v3796 = vunpack.c.l.b16 %v2621
    %v3797 = vunpack.c.h.b16 %v2621
    %v3798 = vunpack.c.l.b16 %v2622
    %v3799 = vunpack.c.h.b16 %v2622
    %v3800 = vunpack.c.l.b16 %v2623
    %v3801 = vunpack.c.h.b16 %v2623
    %v3802 = vunpack.c.l.b16 %v2624
    %v3803 = vunpack.c.h.b16 %v2624
    %v3804 = vunpack.c.l.b16 %v2625
    %v3805 = vunpack.c.h.b16 %v2625
    %v3806 = vunpack.c.l.b16 %v2626
    %v3807 = vunpack.c.h.b16 %v2626
    %v3808 = vunpack.c.l.b16 %v2627
    %v3809 = vunpack.c.h.b16 %v2627
    %v3810 = vunpack.c.l.b16 %v2628
    %v3811 = vunpack.c.h.b16 %v2628
    %v3812 = vunpack.c.l.b16 %v2629
    %v3813 = vunpack.c.h.b16 %v2629
    %v3814 = vunpack.c.l.b16 %v2630
    %v3815 = vunpack.c.h.b16 %v2630
    %v3816 = vunpack.c.l.b16 %v2631
    %v3817 = vunpack.c.h.b16 %v2631
    %v3818 = vunpack.c.l.b16 %v2632
    %v3819 = vunpack.c.h.b16 %v2632
    %v3820 = vunpack.c.l.b16 %v2633
    %v3821 = vunpack.c.h.b16 %v2633
    %v3822 = vunpack.c.l.b16 %v2634
    %v3823 = vunpack.c.h.b16 %v2634
    %v3824 = vunpack.c.l.b16 %v2635
    %v3825 = vunpack.c.h.b16 %v2635
    %v3826 = vunpack.c.l.b16 %v2636
    %v3827 = vunpack.c.h.b16 %v2636
    %v3828 = vunpack.c.l.b16 %v2637
    %v3829 = vunpack.c.h.b16 %v2637
    %v3830 = vunpack.c.l.b16 %v2638
    %v3831 = vunpack.c.h.b16 %v2638
    %v3832 = vunpack.c.l.b16 %v2639
    %v3833 = vunpack.c.h.b16 %v2639
    %v3834 = vunpack.c.l.b16 %v2640
    %v3835 = vunpack.c.h.b16 %v2640
    %v3836 = vunpack.c.l.b16 %v2641
    %v3837 = vunpack.c.h.b16 %v2641
    %v3838 = vunpack.c.l.b16 %v2642
    %v3839 = vunpack.c.h.b16 %v2642
    %v3840 = vunpack.c.l.b16 %v2643
    %v3841 = vunpack.c.h.b16 %v2643
    %v3842 = vunpack.c.l.b16 %v2644
    %v3843 = vunpack.c.h.b16 %v2644
    %v3844 = vunpack.c.l.b16 %v2645
    %v3845 = vunpack.c.h.b16 %v2645
    %v3846 = vunpack.c.l.b16 %v2646
    %v3847 = vunpack.c.h.b16 %v2646
    %v3848 = vunpack.c.l.b16 %v2647
    %v3849 = vunpack.c.h.b16 %v2647
    %v3850 = vunpack.c.l.b16 %v2648
    %v3851 = vunpack.c.h.b16 %v2648
    %v3852 = vunpack.c.l.b16 %v2649
    %v3853 = vunpack.c.h.b16 %v2649
    %v3854 = vunpack.c.l.b16 %v2650
    %v3855 = vunpack.c.h.b16 %v2650
    %v3856 = vunpack.c.l.b16 %v2651
    %v3857 = vunpack.c.h.b16 %v2651
    %v3858 = vunpack.c.l.b16 %v2652
    %v3859 = vunpack.c.h.b16 %v2652
    %v3860 = vunpack.c.l.b16 %v2653
    %v3861 = vunpack.c.h.b16 %v2653
    %v3862 = vunpack.c.l.b16 %v2654
    %v3863 = vunpack.c.h.b16 %v2654
    %v3864 = vunpack.c.l.b16 %v2655
    %v3865 = vunpack.c.h.b16 %v2655
    %v3866 = vunpack.c.l.b16 %v2656
    %v3867 = vunpack.c.h.b16 %v2656
    %v3868 = vunpack.c.l.b16 %v2657
    %v3869 = vunpack.c.h.b16 %v2657
    %v3870 = vunpack.c.l.b16 %v2658
    %v3871 = vunpack.c.h.b16 %v2658
    %v3872 = vunpack.c.l.b16 %v2659
    %v3873 = vunpack.c.h.b16 %v2659
    %v3874 = vunpack.c.l.b16 %v2660
    %v3875 = vunpack.c.h.b16 %v2660
    %v3876 = vunpack.c.l.b16 %v2661
    %v3877 = vunpack.c.h.b16 %v2661
    %v3878 = vunpack.c.l.b16 %v2662
    %v3879 = vunpack.c.h.b16 %v2662
    %v3880 = vunpack.c.l.b16 %v2663
    %v3881 = vunpack.c.h.b16 %v2663
    %v3882 = vunpack.c.l.b16 %v2664
    %v3883 = vunpack.c.h.b16 %v2664
    %v3884 = vunpack.c.l.b16 %v2665
    %v3885 = vunpack.c.h.b16 %v2665
    %v3886 = vunpack.c.l.b16 %v2666
    %v3887 = vunpack.c.h.b16 %v2666
    %v3888 = vunpack.c.l.b16 %v2667
    %v3889 = vunpack.c.h.b16 %v2667
    %v3890 = vunpack.c.l.b16 %v2668
    %v3891 = vunpack.c.h.b16 %v2668
    %v3892 = vunpack.c.l.b16 %v2669
    %v3893 = vunpack.c.h.b16 %v2669
    %v3894 = vunpack.c.l.b16 %v2670
    %v3895 = vunpack.c.h.b16 %v2670
    %v3896 = vunpack.c.l.b16 %v2671
    %v3897 = vunpack.c.h.b16 %v2671
    %v3898 = vunpack.c.l.b16 %v2672
    %v3899 = vunpack.c.h.b16 %v2672
    %v3900 = vunpack.c.l.b16 %v2673
    %v3901 = vunpack.c.h.b16 %v2673
    %v3902 = vunpack.c.l.b16 %v2674
    %v3903 = vunpack.c.h.b16 %v2674
    %v3904 = vunpack.c.l.b16 %v2675
    %v3905 = vunpack.c.h.b16 %v2675
    %v3906 = vunpack.c.l.b16 %v2676
    %v3907 = vunpack.c.h.b16 %v2676
    %v3908 = vunpack.c.l.b16 %v2677
    %v3909 = vunpack.c.h.b16 %v2677
    %v3910 = vunpack.c.l.b16 %v2678
    %v3911 = vunpack.c.h.b16 %v2678
    %v3912 = vunpack.c.l.b16 %v2679
    %v3913 = vunpack.c.h.b16 %v2679
    %v3914 = vunpack.c.l.b16 %v2680
    %v3915 = vunpack.c.h.b16 %v2680
    %v3916 = vunpack.c.l.b16 %v2681
    %v3917 = vunpack.c.h.b16 %v2681
    %v3918 = vunpack.c.l.b16 %v2682
    %v3919 = vunpack.c.h.b16 %v2682
    %v3920 = vunpack.c.l.b16 %v2683
    %v3921 = vunpack.c.h.b16 %v2683
    %v3922 = vunpack.c.l.b16 %v2684
    %v3923 = vunpack.c.h.b16 %v2684
    %v3924 = vunpack.c.l.b16 %v2685
    %v3925 = vunpack.c.h.b16 %v2685
    %v3926 = vunpack.c.l.b16 %v2686
    %v3927 = vunpack.c.h.b16 %v2686
    %v3928 = vunpack.c.l.b16 %v2687
    %v3929 = vunpack.c.h.b16 %v2687
    %v3930 = vunpack.c.l.b16 %v2688
    %v3931 = vunpack.c.h.b16 %v2688
    %v3932 = vunpack.c.l.b16 %v2689
    %v3933 = vunpack.c.h.b16 %v2689
    %v3934 = vunpack.c.l.b16 %v2690
    %v3935 = vunpack.c.h.b16 %v2690
    %v3936 = vunpack.c.l.b16 %v2691
    %v3937 = vunpack.c.h.b16 %v2691
    %v3938 = vunpack.c.l.b16 %v2692
    %v3939 = vunpack.c.h.b16 %v2692
    %v3940 = vunpack.c.l.b16 %v2693
    %v3941 = vunpack.c.h.b16 %v2693
    %v3942 = vunpack.c.l.b16 %v2694
    %v3943 = vunpack.c.h.b16 %v2694
    %v3944 = vunpack.c.l.b16 %v2695
    %v3945 = vunpack.c.h.b16 %v2695
    %v3946 = vunpack.c.l.b16 %v2696
    %v3947 = vunpack.c.h.b16 %v2696
    %v3948 = vunpack.c.l.b16 %v2697
    %v3949 = vunpack.c.h.b16 %v2697
    %v3950 = vunpack.c.l.b16 %v2698
    %v3951 = vunpack.c.h.b16 %v2698
    %v3952 = vunpack.c.l.b16 %v2699
    %v3953 = vunpack.c.h.b16 %v2699
    %v3954 = vunpack.c.l.b16 %v2700
    %v3955 = vunpack.c.h.b16 %v2700
    %v3956 = vunpack.c.l.b16 %v2701
    %v3957 = vunpack.c.h.b16 %v2701
    %v3958 = vunpack.c.l.b16 %v2702
    %v3959 = vunpack.c.h.b16 %v2702
    %v3960 = vunpack.c.l.b16 %v2703
    %v3961 = vunpack.c.h.b16 %v2703
    %v3962 = vunpack.c.l.b16 %v2704
    %v3963 = vunpack.c.h.b16 %v2704
    %v3964 = vunpack.c.l.b16 %v2705
    %v3965 = vunpack.c.h.b16 %v2705
    %v3966 = vunpack.c.l.b16 %v2706
    %v3967 = vunpack.c.h.b16 %v2706
    %v3968 = vunpack.c.l.b16 %v2707
    %v3969 = vunpack.c.h.b16 %v2707
    %v3970 = vunpack.c.l.b16 %v2708
    %v3971 = vunpack.c.h.b16 %v2708
    %v3972 = vunpack.c.l.b16 %v2709
    %v3973 = vunpack.c.h.b16 %v2709
    %v3974 = vunpack.c.l.b16 %v2710
    %v3975 = vunpack.c.h.b16 %v2710
    %v3976 = vunpack.c.l.b16 %v2711
    %v3977 = vunpack.c.h.b16 %v2711
    %v3978 = vunpack.c.l.b16 %v2712
    %v3979 = vunpack.c.h.b16 %v2712
    %v3980 = vunpack.c.l.b16 %v2713
    %v3981 = vunpack.c.h.b16 %v2713
    %v3982 = vunpack.c.l.b16 %v2714
    %v3983 = vunpack.c.h.b16 %v2714
    %v3984 = vunpack.c.l.b16 %v2715
    %v3985 = vunpack.c.h.b16 %v2715
    %v3986 = vunpack.c.l.b16 %v2716
    %v3987 = vunpack.c.h.b16 %v2716
    %v3988 = vunpack.c.l.b16 %v2717
    %v3989 = vunpack.c.h.b16 %v2717
    %v3990 = vunpack.c.l.b16 %v2718
    %v3991 = vunpack.c.h.b16 %v2718
    %v3992 = vunpack.c.l.b16 %v2719
    %v3993 = vunpack.c.h.b16 %v2719
    %v3994 = vunpack.c.l.b16 %v2720
    %v3995 = vunpack.c.h.b16 %v2720
    %v3996 = vunpack.c.l.b16 %v2721
    %v3997 = vunpack.c.h.b16 %v2721
    %v3998 = vunpack.c.l.b16 %v2722
    %v3999 = vunpack.c.h.b16 %v2722
    %v4000 = vunpack.c.l.b16 %v2723
    %v4001 = vunpack.c.h.b16 %v2723
    %v4002 = vunpack.c.l.b16 %v2724
    %v4003 = vunpack.c.h.b16 %v2724
    %v4004 = vunpack.c.l.b16 %v2725
    %v4005 = vunpack.c.h.b16 %v2725
    %v4006 = vunpack.c.l.b16 %v2726
    %v4007 = vunpack.c.h.b16 %v2726
    %v4008 = vunpack.c.l.b16 %v2727
    %v4009 = vunpack.c.h.b16 %v2727
    %v4010 = vunpack.c.l.b16 %v2728
    %v4011 = vunpack.c.h.b16 %v2728
    %v4012 = vunpack.c.l.b16 %v2729
    %v4013 = vunpack.c.h.b16 %v2729
    %v4014 = vunpack.c.l.b16 %v2730
    %v4015 = vunpack.c.h.b16 %v2730
    %v4016 = vunpack.c.l.b16 %v2731
    %v4017 = vunpack.c.h.b16 %v2731
    %v4018 = vunpack.c.l.b16 %v2732
    %v4019 = vunpack.c.h.b16 %v2732
    %v4020 = vunpack.c.l.b16 %v2733
    %v4021 = vunpack.c.h.b16 %v2733
    %v4022 = vunpack.c.l.b16 %v2734
    %v4023 = vunpack.c.h.b16 %v2734
    %v4024 = vunpack.c.l.b16 %v2735
    %v4025 = vunpack.c.h.b16 %v2735
    %v4026 = vunpack.c.l.b16 %v2736
    %v4027 = vunpack.c.h.b16 %v2736
    %v4028 = vunpack.c.l.b16 %v2737
    %v4029 = vunpack.c.h.b16 %v2737
    %v4030 = vunpack.c.l.b16 %v2738
    %v4031 = vunpack.c.h.b16 %v2738
    %v4032 = vunpack.c.l.b16 %v2739
    %v4033 = vunpack.c.h.b16 %v2739
    %v4034 = vunpack.c.l.b16 %v2740
    %v4035 = vunpack.c.h.b16 %v2740
    %v4036 = vunpack.c.l.b16 %v2741
    %v4037 = vunpack.c.h.b16 %v2741
    %v4038 = vunpack.c.l.b16 %v2742
    %v4039 = vunpack.c.h.b16 %v2742
    %v4040 = vunpack.c.l.b16 %v2743
    %v4041 = vunpack.c.h.b16 %v2743
    %v4042 = vunpack.c.l.b16 %v2744
    %v4043 = vunpack.c.h.b16 %v2744
    %v4044 = vunpack.c.l.b16 %v2745
    %v4045 = vunpack.c.h.b16 %v2745
    %v4046 = vunpack.c.l.b16 %v2746
    %v4047 = vunpack.c.h.b16 %v2746
    %v4048 = vunpack.c.l.b16 %v2747
    %v4049 = vunpack.c.h.b16 %v2747
    %v4050 = vunpack.c.l.b16 %v2748
    %v4051 = vunpack.c.h.b16 %v2748
    %v4052 = vunpack.c.l.b16 %v2749
    %v4053 = vunpack.c.h.b16 %v2749
    %v4054 = vunpack.c.l.b16 %v2750
    %v4055 = vunpack.c.h.b16 %v2750
    %v4056 = vunpack.c.l.b16 %v2751
    %v4057 = vunpack.c.h.b16 %v2751
    %v4058 = vunpack.c.l.b16 %v2752
    %v4059 = vunpack.c.h.b16 %v2752
    %v4060 = vunpack.c.l.b16 %v2753
    %v4061 = vunpack.c.h.b16 %v2753
    %v4062 = vunpack.c.l.b16 %v2754
    %v4063 = vunpack.c.h.b16 %v2754
    %v4064 = vunpack.c.l.b16 %v2755
    %v4065 = vunpack.c.h.b16 %v2755
    %v4066 = vunpack.c.l.b16 %v2756
    %v4067 = vunpack.c.h.b16 %v2756
    %v4068 = vunpack.c.l.b16 %v2757
    %v4069 = vunpack.c.h.b16 %v2757
    %v4070 = vunpack.c.l.b16 %v2758
    %v4071 = vunpack.c.h.b16 %v2758
    %v4072 = vunpack.c.l.b16 %v2759
    %v4073 = vunpack.c.h.b16 %v2759
    %v4074 = vunpack.c.l.b16 %v2760
    %v4075 = vunpack.c.h.b16 %v2760
    %v4076 = vunpack.c.l.b16 %v2761
    %v4077 = vunpack.c.h.b16 %v2761
    %v4078 = vunpack.c.l.b16 %v2762
    %v4079 = vunpack.c.h.b16 %v2762
    %v4080 = vunpack.c.l.b16 %v2763
    %v4081 = vunpack.c.h.b16 %v2763
    %v4082 = vunpack.c.l.b16 %v2764
    %v4083 = vunpack.c.h.b16 %v2764
    %v4084 = vunpack.c.l.b16 %v2765
    %v4085 = vunpack.c.h.b16 %v2765
    %v4086 = vunpack.c.l.b16 %v2766
    %v4087 = vunpack.c.h.b16 %v2766
    %v4088 = vunpack.c.l.b16 %v2767
    %v4089 = vunpack.c.h.b16 %v2767
    %v4090 = vunpack.c.l.b16 %v2768
    %v4091 = vunpack.c.h.b16 %v2768
    %v4092 = vunpack.c.l.b16 %v2769
    %v4093 = vunpack.c.h.b16 %v2769
    %v4094 = vunpack.c.l.b16 %v2770
    %v4095 = vunpack.c.h.b16 %v2770
    %v4096 = vunpack.c.l.b16 %v2771
    %v4097 = vunpack.c.h.b16 %v2771
    %v4098 = vunpack.c.l.b16 %v2772
    %v4099 = vunpack.c.h.b16 %v2772
    %v4100 = vunpack.c.l.b16 %v2773
    %v4101 = vunpack.c.h.b16 %v2773
    %v4102 = vunpack.c.l.b16 %v2774
    %v4103 = vunpack.c.h.b16 %v2774
    %v4104 = vunpack.c.l.b16 %v2775
    %v4105 = vunpack.c.h.b16 %v2775
    %v4106 = vunpack.c.l.b16 %v2776
    %v4107 = vunpack.c.h.b16 %v2776
    %v4108 = vunpack.c.l.b16 %v2777
    %v4109 = vunpack.c.h.b16 %v2777
    %v4110 = vunpack.c.l.b16 %v2778
    %v4111 = vunpack.c.h.b16 %v2778
    %v4112 = vunpack.c.l.b16 %v2779
    %v4113 = vunpack.c.h.b16 %v2779
    %v4114 = vunpack.c.l.b16 %v2780
    %v4115 = vunpack.c.h.b16 %v2780
    %v4116 = vunpack.c.l.b16 %v2781
    %v4117 = vunpack.c.h.b16 %v2781
    %v4118 = vunpack.c.l.b16 %v2782
    %v4119 = vunpack.c.h.b16 %v2782
    %v4120 = vunpack.c.l.b16 %v2783
    %v4121 = vunpack.c.h.b16 %v2783
    %v4122 = vunpack.c.l.b16 %v2784
    %v4123 = vunpack.c.h.b16 %v2784
    %v4124 = vunpack.c.l.b16 %v2785
    %v4125 = vunpack.c.h.b16 %v2785
    %v4126 = vunpack.c.l.b16 %v2786
    %v4127 = vunpack.c.h.b16 %v2786
    %v4128 = vunpack.c.l.b16 %v2787
    %v4129 = vunpack.c.h.b16 %v2787
    %v4130 = vunpack.c.l.b16 %v2788
    %v4131 = vunpack.c.h.b16 %v2788
    %v4132 = vunpack.c.l.b16 %v2789
    %v4133 = vunpack.c.h.b16 %v2789
    %v4134 = vunpack.c.l.b16 %v2790
    %v4135 = vunpack.c.h.b16 %v2790
    %v4136 = vunpack.c.l.b16 %v2791
    %v4137 = vunpack.c.h.b16 %v2791
    %v4138 = vunpack.c.l.b16 %v2792
    %v4139 = vunpack.c.h.b16 %v2792
    %v4140 = vunpack.c.l.b16 %v2793
    %v4141 = vunpack.c.h.b16 %v2793
    %v4142 = vunpack.c.l.b16 %v2794
    %v4143 = vunpack.c.h.b16 %v2794
    %v4144 = vunpack.c.l.b16 %v2795
    %v4145 = vunpack.c.h.b16 %v2795
    %v4146 = vunpack.c.l.b16 %v2796
    %v4147 = vunpack.c.h.b16 %v2796
    %v4148 = vunpack.c.l.b16 %v2797
    %v4149 = vunpack.c.h.b16 %v2797
    %v4150 = vunpack.c.l.b16 %v2798
    %v4151 = vunpack.c.h.b16 %v2798
    %v4152 = vunpack.c.l.b16 %v2799
    %v4153 = vunpack.c.h.b16 %v2799
    %v4154 = vunpack.c.l.b16 %v2800
    %v4155 = vunpack.c.h.b16 %v2800
    %v4156 = vunpack.c.l.b16 %v2801
    %v4157 = vunpack.c.h.b16 %v2801
    %v4158 = vunpack.c.l.b16 %v2802
    %v4159 = vunpack.c.h.b16 %v2802
    %v4160 = vunpack.c.l.b16 %v2803
    %v4161 = vunpack.c.h.b16 %v2803
    %v4162 = vunpack.c.l.b16 %v2804
    %v4163 = vunpack.c.h.b16 %v2804
    %v4164 = vunpack.c.l.b16 %v2805
    %v4165 = vunpack.c.h.b16 %v2805
    %v4166 = vunpack.c.l.b16 %v2806
    %v4167 = vunpack.c.h.b16 %v2806
    %v4168 = vunpack.c.l.b16 %v2807
    %v4169 = vunpack.c.h.b16 %v2807
    %v4170 = vunpack.c.l.b16 %v2808
    %v4171 = vunpack.c.h.b16 %v2808
    %v4172 = vunpack.c.l.b16 %v2809
    %v4173 = vunpack.c.h.b16 %v2809
    %v4174 = vunpack.c.l.b16 %v2810
    %v4175 = vunpack.c.h.b16 %v2810
    %v4176 = vunpack.c.l.b16 %v2811
    %v4177 = vunpack.c.h.b16 %v2811
    %v4178 = vunpack.c.l.b16 %v2812
    %v4179 = vunpack.c.h.b16 %v2812
    %v4180 = vunpack.c.l.b16 %v2813
    %v4181 = vunpack.c.h.b16 %v2813
    %v4182 = vunpack.c.l.b16 %v2814
    %v4183 = vunpack.c.h.b16 %v2814
    %v4184 = vunpack.c.l.b16 %v2815
    %v4185 = vunpack.c.h.b16 %v2815
    %v4186 = vunpack.c.l.b16 %v2816
    %v4187 = vunpack.c.h.b16 %v2816
    %v4188 = vunpack.c.l.b16 %v2817
    %v4189 = vunpack.c.h.b16 %v2817
    %v4190 = vunpack.c.l.b16 %v2818
    %v4191 = vunpack.c.h.b16 %v2818
    %v4192 = vunpack.c.l.b16 %v2819
    %v4193 = vunpack.c.h.b16 %v2819
    %v4194 = vunpack.c.l.b16 %v2820
    %v4195 = vunpack.c.h.b16 %v2820
    %v4196 = vunpack.c.l.b16 %v2821
    %v4197 = vunpack.c.h.b16 %v2821
    %v4198 = vunpack.c.l.b16 %v2822
    %v4199 = vunpack.c.h.b16 %v2822
    %v4200 = vunpack.c.l.b16 %v2823
    %v4201 = vunpack.c.h.b16 %v2823
    %v4202 = vunpack.c.l.b16 %v2824
    %v4203 = vunpack.c.h.b16 %v2824
    %v4204 = vunpack.c.l.b16 %v2825
    %v4205 = vunpack.c.h.b16 %v2825
    %v4206 = vunpack.c.l.b16 %v2826
    %v4207 = vunpack.c.h.b16 %v2826
    %v4208 = vunpack.c.l.b16 %v2827
    %v4209 = vunpack.c.h.b16 %v2827
    %v4210 = vunpack.c.l.b16 %v2828
    %v4211 = vunpack.c.h.b16 %v2828
    %v4212 = vunpack.c.l.b16 %v2829
    %v4213 = vunpack.c.h.b16 %v2829
    %v4214 = vunpack.c.l.b16 %v2830
    %v4215 = vunpack.c.h.b16 %v2830
    %v4216 = vunpack.c.l.b16 %v2831
    %v4217 = vunpack.c.h.b16 %v2831
    %v4218 = vunpack.c.l.b16 %v2832
    %v4219 = vunpack.c.h.b16 %v2832
    %v4220 = vunpack.c.l.b16 %v2833
    %v4221 = vunpack.c.h.b16 %v2833
    %v4222 = vunpack.c.l.b16 %v2834
    %v4223 = vunpack.c.h.b16 %v2834
    %v4224 = vunpack.c.l.b16 %v2835
    %v4225 = vunpack.c.h.b16 %v2835
    %v4226 = vunpack.c.l.b16 %v2836
    %v4227 = vunpack.c.h.b16 %v2836
    %v4228 = vunpack.c.l.b16 %v2837
    %v4229 = vunpack.c.h.b16 %v2837
    %v4230 = vunpack.c.l.b16 %v2838
    %v4231 = vunpack.c.h.b16 %v2838
    %v4232 = vunpack.c.l.b16 %v2839
    %v4233 = vunpack.c.h.b16 %v2839
    %v4234 = vunpack.c.l.b16 %v2840
    %v4235 = vunpack.c.h.b16 %v2840
    %v4236 = vunpack.c.l.b16 %v2841
    %v4237 = vunpack.c.h.b16 %v2841
    %v4238 = vunpack.c.l.b16 %v2842
    %v4239 = vunpack.c.h.b16 %v2842
    %v4240 = vunpack.c.l.b16 %v2843
    %v4241 = vunpack.c.h.b16 %v2843
    %v4242 = vunpack.c.l.b16 %v2844
    %v4243 = vunpack.c.h.b16 %v2844
    %v4244 = vunpack.c.l.b16 %v2845
    %v4245 = vunpack.c.h.b16 %v2845
    %v4246 = vunpack.c.l.b16 %v2846
    %v4247 = vunpack.c.h.b16 %v2846
    %v4248 = vunpack.c.l.b16 %v2847
    %v4249 = vunpack.c.h.b16 %v2847
    %v4250 = vunpack.c.l.b16 %v2848
    %v4251 = vunpack.c.h.b16 %v2848
    %v4252 = vunpack.c.l.b16 %v2849
    %v4253 = vunpack.c.h.b16 %v2849
    %v4254 = vunpack.c.l.b16 %v2850
    %v4255 = vunpack.c.h.b16 %v2850
    %v4256 = vunpack.c.l.b16 %v2851
    %v4257 = vunpack.c.h.b16 %v2851
    %v4258 = vunpack.c.l.b16 %v2852
    %v4259 = vunpack.c.h.b16 %v2852
    %v4260 = vunpack.c.l.b16 %v2853
    %v4261 = vunpack.c.h.b16 %v2853
    %v4262 = vunpack.c.l.b16 %v2854
    %v4263 = vunpack.c.h.b16 %v2854
    %v4264 = vunpack.c.l.b16 %v2855
    %v4265 = vunpack.c.h.b16 %v2855
    %v4266 = vunpack.c.l.b16 %v2856
    %v4267 = vunpack.c.h.b16 %v2856
    %v4268 = vunpack.c.l.b16 %v2857
    %v4269 = vunpack.c.h.b16 %v2857
    %v4270 = vunpack.c.l.b16 %v2858
    %v4271 = vunpack.c.h.b16 %v2858
    %v4272 = vunpack.c.l.b16 %v2859
    %v4273 = vunpack.c.h.b16 %v2859
    %v4274 = vunpack.c.l.b16 %v2860
    %v4275 = vunpack.c.h.b16 %v2860
    %v4276 = vunpack.c.l.b16 %v2861
    %v4277 = vunpack.c.h.b16 %v2861
    %v4278 = vunpack.c.l.b16 %v2862
    %v4279 = vunpack.c.h.b16 %v2862
    %v4280 = vunpack.c.l.b16 %v2863
    %v4281 = vunpack.c.h.b16 %v2863
    %v4282 = vunpack.c.l.b16 %v2864
    %v4283 = vunpack.c.h.b16 %v2864
    %v4284 = vunpack.c.l.b16 %v2865
    %v4285 = vunpack.c.h.b16 %v2865
    %v4286 = vunpack.c.l.b16 %v2866
    %v4287 = vunpack.c.h.b16 %v2866
    %v4288 = vunpack.c.l.b16 %v2867
    %v4289 = vunpack.c.h.b16 %v2867
    %v4290 = vunpack.c.l.b16 %v2868
    %v4291 = vunpack.c.h.b16 %v2868
    %v4292 = vunpack.c.l.b16 %v2869
    %v4293 = vunpack.c.h.b16 %v2869
    %v4294 = vunpack.c.l.b16 %v2870
    %v4295 = vunpack.c.h.b16 %v2870
    %v4296 = vunpack.c.l.b16 %v2871
    %v4297 = vunpack.c.h.b16 %v2871
    %v4298 = vunpack.c.l.b16 %v2872
    %v4299 = vunpack.c.h.b16 %v2872
    %v4300 = vunpack.c.l.b16 %v2873
    %v4301 = vunpack.c.h.b16 %v2873
    %v4302 = vunpack.c.l.b16 %v2874
    %v4303 = vunpack.c.h.b16 %v2874
    %v4304 = vunpack.c.l.b16 %v2875
    %v4305 = vunpack.c.h.b16 %v2875
    %v4306 = vunpack.c.l.b16 %v2876
    %v4307 = vunpack.c.h.b16 %v2876
    %v4308 = vunpack.c.l.b16 %v2877
    %v4309 = vunpack.c.h.b16 %v2877
    %v4310 = vunpack.c.l.b16 %v2878
    %v4311 = vunpack.c.h.b16 %v2878
    %v4312 = vunpack.c.l.b16 %v2879
    %v4313 = vunpack.c.h.b16 %v2879
    %v4314 = vunpack.c.l.b16 %v2880
    %v4315 = vunpack.c.h.b16 %v2880
    %v4316 = vunpack.c.l.b16 %v2881
    %v4317 = vunpack.c.h.b16 %v2881
    %v4318 = vunpack.c.l.b16 %v2882
    %v4319 = vunpack.c.h.b16 %v2882
    %v4320 = vunpack.c.l.b16 %v2883
    %v4321 = vunpack.c.h.b16 %v2883
    %v4322 = vunpack.c.l.b16 %v2884
    %v4323 = vunpack.c.h.b16 %v2884
    %v4324 = vunpack.c.l.b16 %v2885
    %v4325 = vunpack.c.h.b16 %v2885
    %v4326 = vunpack.c.l.b16 %v2886
    %v4327 = vunpack.c.h.b16 %v2886
    %v4328 = vunpack.c.l.b16 %v2887
    %v4329 = vunpack.c.h.b16 %v2887
    %v4330 = vunpack.c.l.b16 %v2888
    %v4331 = vunpack.c.h.b16 %v2888
    %v4332 = vunpack.c.l.b16 %v2889
    %v4333 = vunpack.c.h.b16 %v2889
    %v4334 = vunpack.c.l.b16 %v2890
    %v4335 = vunpack.c.h.b16 %v2890
    %v4336 = vunpack.c.l.b16 %v2891
    %v4337 = vunpack.c.h.b16 %v2891
    %v4338 = vunpack.c.l.b16 %v2892
    %v4339 = vunpack.c.h.b16 %v2892
    %v4340 = vunpack.c.l.b16 %v2893
    %v4341 = vunpack.c.h.b16 %v2893
    %v4342 = vunpack.c.l.b16 %v2894
    %v4343 = vunpack.c.h.b16 %v2894
    %v4344 = vunpack.c.l.b16 %v2895
    %v4345 = vunpack.c.h.b16 %v2895
    %v4346 = vunpack.c.l.b16 %v2896
    %v4347 = vunpack.c.h.b16 %v2896
    %v4348 = vunpack.c.l.b16 %v2897
    %v4349 = vunpack.c.h.b16 %v2897
    %v4350 = vunpack.c.l.b16 %v2898
    %v4351 = vunpack.c.h.b16 %v2898
    %v4352 = vunpack.c.l.b16 %v2899
    %v4353 = vunpack.c.h.b16 %v2899
    %v4354 = vunpack.c.l.b16 %v2900
    %v4355 = vunpack.c.h.b16 %v2900
    %v4356 = vunpack.c.l.b16 %v2901
    %v4357 = vunpack.c.h.b16 %v2901
    %v4358 = vunpack.c.l.b16 %v2902
    %v4359 = vunpack.c.h.b16 %v2902
    %v4360 = vunpack.c.l.b16 %v2903
    %v4361 = vunpack.c.h.b16 %v2903
    %v4362 = vunpack.c.l.b16 %v2904
    %v4363 = vunpack.c.h.b16 %v2904
    %v4364 = vunpack.c.l.b16 %v2905
    %v4365 = vunpack.c.h.b16 %v2905
    %v4366 = vunpack.c.l.b16 %v2906
    %v4367 = vunpack.c.h.b16 %v2906
    %v4368 = vunpack.c.l.b16 %v2907
    %v4369 = vunpack.c.h.b16 %v2907
    %v4370 = vunpack.c.l.b16 %v2908
    %v4371 = vunpack.c.h.b16 %v2908
    %v4372 = vunpack.c.l.b16 %v2909
    %v4373 = vunpack.c.h.b16 %v2909
    %v4374 = vunpack.c.l.b16 %v2910
    %v4375 = vunpack.c.h.b16 %v2910
    %v4376 = vunpack.c.l.b16 %v2911
    %v4377 = vunpack.c.h.b16 %v2911
    %v4378 = vunpack.c.l.b16 %v2912
    %v4379 = vunpack.c.h.b16 %v2912
    %v4380 = vunpack.c.l.b16 %v2913
    %v4381 = vunpack.c.h.b16 %v2913
    %v4382 = vunpack.c.l.b16 %v2914
    %v4383 = vunpack.c.h.b16 %v2914
    %v4384 = vunpack.c.l.b16 %v2915
    %v4385 = vunpack.c.h.b16 %v2915
    %v4386 = vunpack.c.l.b16 %v2916
    %v4387 = vunpack.c.h.b16 %v2916
    %v4388 = vunpack.c.l.b16 %v2917
    %v4389 = vunpack.c.h.b16 %v2917
    %v4390 = vunpack.c.l.b16 %v2918
    %v4391 = vunpack.c.h.b16 %v2918
    %v4392 = vunpack.c.l.b16 %v2919
    %v4393 = vunpack.c.h.b16 %v2919
    %v4394 = vunpack.c.l.b16 %v2920
    %v4395 = vunpack.c.h.b16 %v2920
    %v4396 = vunpack.c.l.b16 %v2921
    %v4397 = vunpack.c.h.b16 %v2921
    %v4398 = vunpack.c.l.b16 %v2922
    %v4399 = vunpack.c.h.b16 %v2922
    %v4400 = vunpack.c.l.b16 %v2923
    %v4401 = vunpack.c.h.b16 %v2923
    %v4402 = vunpack.c.l.b16 %v2924
    %v4403 = vunpack.c.h.b16 %v2924
    %v4404 = vunpack.c.l.b16 %v2925
    %v4405 = vunpack.c.h.b16 %v2925
    %v4406 = vunpack.c.l.b16 %v2926
    %v4407 = vunpack.c.h.b16 %v2926
    %v4408 = vunpack.c.l.b16 %v2927
    %v4409 = vunpack.c.h.b16 %v2927
    %v4410 = vunpack.c.l.b16 %v2928
    %v4411 = vunpack.c.h.b16 %v2928
    %v4412 = vunpack.c.l.b16 %v2929
    %v4413 = vunpack.c.h.b16 %v2929
    %v4414 = vunpack.c.l.b16 %v2930
    %v4415 = vunpack.c.h.b16 %v2930
    %v4416 = vunpack.c.l.b16 %v2931
    %v4417 = vunpack.c.h.b16 %v2931
    %v4418 = vunpack.c.l.b16 %v2932
    %v4419 = vunpack.c.h.b16 %v2932
    %v4420 = vunpack.c.l.b16 %v2933
    %v4421 = vunpack.c.h.b16 %v2933
    %v4422 = vunpack.c.l.b16 %v2934
    %v4423 = vunpack.c.h.b16 %v2934
    %v4424 = vunpack.c.l.b16 %v2935
    %v4425 = vunpack.c.h.b16 %v2935
    %v4426 = vunpack.c.l.b16 %v2936
    %v4427 = vunpack.c.h.b16 %v2936
    %v4428 = vunpack.c.l.b16 %v2937
    %v4429 = vunpack.c.h.b16 %v2937
    %v4430 = vunpack.c.l.b16 %v2938
    %v4431 = vunpack.c.h.b16 %v2938
    %v4432 = vunpack.c.l.b16 %v2939
    %v4433 = vunpack.c.h.b16 %v2939
    %v4434 = vunpack.c.l.b16 %v2940
    %v4435 = vunpack.c.h.b16 %v2940
    %v4436 = vunpack.c.l.b16 %v2941
    %v4437 = vunpack.c.h.b16 %v2941
    %v4438 = vunpack.c.l.b16 %v2942
    %v4439 = vunpack.c.h.b16 %v2942
    %v4440 = vunpack.c.l.b16 %v2943
    %v4441 = vunpack.c.h.b16 %v2943
    %v4442 = vunpack.c.l.b16 %v2944
    %v4443 = vunpack.c.h.b16 %v2944
    %v4444 = vunpack.c.l.b16 %v2945
    %v4445 = vunpack.c.h.b16 %v2945
    %v4446 = vunpack.c.l.b16 %v2946
    %v4447 = vunpack.c.h.b16 %v2946
    %v4448 = vunpack.c.l.b16 %v2947
    %v4449 = vunpack.c.h.b16 %v2947
    %v4450 = vunpack.c.l.b16 %v2948
    %v4451 = vunpack.c.h.b16 %v2948
    %v4452 = vunpack.c.l.b16 %v2949
    %v4453 = vunpack.c.h.b16 %v2949
    %v4454 = vunpack.c.l.b16 %v2950
    %v4455 = vunpack.c.h.b16 %v2950
    %v4456 = vunpack.c.l.b16 %v2951
    %v4457 = vunpack.c.h.b16 %v2951
    %v4458 = vunpack.c.l.b16 %v2952
    %v4459 = vunpack.c.h.b16 %v2952
    %v4460 = vunpack.c.l.b16 %v2953
    %v4461 = vunpack.c.h.b16 %v2953
    %v4462 = vunpack.c.l.b16 %v2954
    %v4463 = vunpack.c.h.b16 %v2954
    %v4464 = vunpack.c.l.b16 %v2955
    %v4465 = vunpack.c.h.b16 %v2955
    %v4466 = vunpack.c.l.b16 %v2956
    %v4467 = vunpack.c.h.b16 %v2956
    %v4468 = vunpack.c.l.b16 %v2957
    %v4469 = vunpack.c.h.b16 %v2957
    %v4470 = vunpack.c.l.b16 %v2958
    %v4471 = vunpack.c.h.b16 %v2958
    %v4472 = vunpack.c.l.b16 %v2959
    %v4473 = vunpack.c.h.b16 %v2959
    %v4474 = vunpack.c.l.b16 %v2960
    %v4475 = vunpack.c.h.b16 %v2960
    %v4476 = vunpack.c.l.b16 %v2961
    %v4477 = vunpack.c.h.b16 %v2961
    %v4478 = vunpack.c.l.b16 %v2962
    %v4479 = vunpack.c.h.b16 %v2962
    %v4480 = vunpack.c.l.b16 %v2963
    %v4481 = vunpack.c.h.b16 %v2963
    %v4482 = vunpack.c.l.b16 %v2964
    %v4483 = vunpack.c.h.b16 %v2964
    %v4484 = vunpack.c.l.b16 %v2965
    %v4485 = vunpack.c.h.b16 %v2965
    %v4486 = vunpack.c.l.b16 %v2966
    %v4487 = vunpack.c.h.b16 %v2966
    %v4488 = vunpack.c.l.b16 %v2967
    %v4489 = vunpack.c.h.b16 %v2967
    %v4490 = vunpack.c.l.b16 %v2968
    %v4491 = vunpack.c.h.b16 %v2968
    %v4492 = vunpack.c.l.b16 %v2969
    %v4493 = vunpack.c.h.b16 %v2969
    %v4494 = vunpack.c.l.b16 %v2970
    %v4495 = vunpack.c.h.b16 %v2970
    %v4496 = vunpack.c.l.b16 %v2971
    %v4497 = vunpack.c.h.b16 %v2971
    %v4498 = vunpack.c.l.b16 %v2972
    %v4499 = vunpack.c.h.b16 %v2972
    %v4500 = vunpack.c.l.b16 %v2973
    %v4501 = vunpack.c.h.b16 %v2973
    %v4502 = vunpack.c.l.b16 %v2974
    %v4503 = vunpack.c.h.b16 %v2974
    %v4504 = vunpack.c.l.b16 %v2975
    %v4505 = vunpack.c.h.b16 %v2975
    %v4506 = vunpack.c.l.b16 %v2976
    %v4507 = vunpack.c.h.b16 %v2976
    %v4508 = vunpack.c.l.b16 %v2977
    %v4509 = vunpack.c.h.b16 %v2977
    %v4510 = vunpack.c.l.b16 %v2978
    %v4511 = vunpack.c.h.b16 %v2978
    %v4512 = vunpack.c.l.b16 %v2979
    %v4513 = vunpack.c.h.b16 %v2979
    %v4514 = vunpack.c.l.b16 %v2980
    %v4515 = vunpack.c.h.b16 %v2980
    %v4516 = vunpack.c.l.b16 %v2981
    %v4517 = vunpack.c.h.b16 %v2981
    %v4518 = vpack.c.b16 %v3502, %v3494
    %v4519 = vpack.c.b16 %v3503, %v3495
    %v4520 = vpack.c.b16 %v3504, %v3496
    %v4521 = vpack.c.b16 %v3505, %v3497
    %v4522 = vpack.c.b16 %v3506, %v3498
    %v4523 = vpack.c.b16 %v3507, %v3499
    %v4524 = vpack.c.b16 %v3508, %v3500
    %v4525 = vpack.c.b16 %v3509, %v3501
    %v4526 = vpack.c.b16 %v3518, %v3510
    %v4527 = vpack.c.b16 %v3519, %v3511
    %v4528 = vpack.c.b16 %v3520, %v3512
    %v4529 = vpack.c.b16 %v3521, %v3513
    %v4530 = vpack.c.b16 %v3522, %v3514
    %v4531 = vpack.c.b16 %v3523, %v3515
    %v4532 = vpack.c.b16 %v3524, %v3516
    %v4533 = vpack.c.b16 %v3525, %v3517
    %v4534 = vpack.c.b16 %v3534, %v3526
    %v4535 = vpack.c.b16 %v3535, %v3527
    %v4536 = vpack.c.b16 %v3536, %v3528
    %v4537 = vpack.c.b16 %v3537, %v3529
    %v4538 = vpack.c.b16 %v3538, %v3530
    %v4539 = vpack.c.b16 %v3539, %v3531
    %v4540 = vpack.c.b16 %v3540, %v3532
    %v4541 = vpack.c.b16 %v3541, %v3533
    %v4542 = vpack.c.b16 %v3550, %v3542
    %v4543 = vpack.c.b16 %v3551, %v3543
    %v4544 = vpack.c.b16 %v3552, %v3544
    %v4545 = vpack.c.b16 %v3553, %v3545
    %v4546 = vpack.c.b16 %v3554, %v3546
    %v4547 = vpack.c.b16 %v3555, %v3547
    %v4548 = vpack.c.b16 %v3556, %v3548
    %v4549 = vpack.c.b16 %v3557, %v3549
    %v4550 = vpack.c.b16 %v3566, %v3558
    %v4551 = vpack.c.b16 %v3567, %v3559
    %v4552 = vpack.c.b16 %v3568, %v3560
    %v4553 = vpack.c.b16 %v3569, %v3561
    %v4554 = vpack.c.b16 %v3570, %v3562
    %v4555 = vpack.c.b16 %v3571, %v3563
    %v4556 = vpack.c.b16 %v3572, %v3564
    %v4557 = vpack.c.b16 %v3573, %v3565
    %v4558 = vpack.c.b16 %v3582, %v3574
    %v4559 = vpack.c.b16 %v3583, %v3575
    %v4560 = vpack.c.b16 %v3584, %v3576
    %v4561 = vpack.c.b16 %v3585, %v3577
    %v4562 = vpack.c.b16 %v3586, %v3578
    %v4563 = vpack.c.b16 %v3587, %v3579
    %v4564 = vpack.c.b16 %v3588, %v3580
    %v4565 = vpack.c.b16 %v3589, %v3581
    %v4566 = vpack.c.b16 %v3598, %v3590
    %v4567 = vpack.c.b16 %v3599, %v3591
    %v4568 = vpack.c.b16 %v3600, %v3592
    %v4569 = vpack.c.b16 %v3601, %v3593
    %v4570 = vpack.c.b16 %v3602, %v3594
    %v4571 = vpack.c.b16 %v3603, %v3595
    %v4572 = vpack.c.b16 %v3604, %v3596
    %v4573 = vpack.c.b16 %v3605, %v3597
    %v4574 = vpack.c.b16 %v3614, %v3606
    %v4575 = vpack.c.b16 %v3615, %v3607
    %v4576 = vpack.c.b16 %v3616, %v3608
    %v4577 = vpack.c.b16 %v3617, %v3609
    %v4578 = vpack.c.b16 %v3618, %v3610
    %v4579 = vpack.c.b16 %v3619, %v3611
    %v4580 = vpack.c.b16 %v3620, %v3612
    %v4581 = vpack.c.b16 %v3621, %v3613
    %v4582 = vpack.c.b16 %v3630, %v3622
    %v4583 = vpack.c.b16 %v3631, %v3623
    %v4584 = vpack.c.b16 %v3632, %v3624
    %v4585 = vpack.c.b16 %v3633, %v3625
    %v4586 = vpack.c.b16 %v3634, %v3626
    %v4587 = vpack.c.b16 %v3635, %v3627
    %v4588 = vpack.c.b16 %v3636, %v3628
    %v4589 = vpack.c.b16 %v3637, %v3629
    %v4590 = vpack.c.b16 %v3646, %v3638
    %v4591 = vpack.c.b16 %v3647, %v3639
    %v4592 = vpack.c.b16 %v3648, %v3640
    %v4593 = vpack.c.b16 %v3649, %v3641
    %v4594 = vpack.c.b16 %v3650, %v3642
    %v4595 = vpack.c.b16 %v3651, %v3643
    %v4596 = vpack.c.b16 %v3652, %v3644
    %v4597 = vpack.c.b16 %v3653, %v3645
    %v4598 = vpack.c.b16 %v3662, %v3654
    %v4599 = vpack.c.b16 %v3663, %v3655
    %v4600 = vpack.c.b16 %v3664, %v3656
    %v4601 = vpack.c.b16 %v3665, %v3657
    %v4602 = vpack.c.b16 %v3666, %v3658
    %v4603 = vpack.c.b16 %v3667, %v3659
    %v4604 = vpack.c.b16 %v3668, %v3660
    %v4605 = vpack.c.b16 %v3669, %v3661
    %v4606 = vpack.c.b16 %v3678, %v3670
    %v4607 = vpack.c.b16 %v3679, %v3671
    %v4608 = vpack.c.b16 %v3680, %v3672
    %v4609 = vpack.c.b16 %v3681, %v3673
    %v4610 = vpack.c.b16 %v3682, %v3674
    %v4611 = vpack.c.b16 %v3683, %v3675
    %v4612 = vpack.c.b16 %v3684, %v3676
    %v4613 = vpack.c.b16 %v3685, %v3677
    %v4614 = vpack.c.b16 %v3694, %v3686
    %v4615 = vpack.c.b16 %v3695, %v3687
    %v4616 = vpack.c.b16 %v3696, %v3688
    %v4617 = vpack.c.b16 %v3697, %v3689
    %v4618 = vpack.c.b16 %v3698, %v3690
    %v4619 = vpack.c.b16 %v3699, %v3691
    %v4620 = vpack.c.b16 %v3700, %v3692
    %v4621 = vpack.c.b16 %v3701, %v3693
    %v4622 = vpack.c.b16 %v3710, %v3702
    %v4623 = vpack.c.b16 %v3711, %v3703
    %v4624 = vpack.c.b16 %v3712, %v3704
    %v4625 = vpack.c.b16 %v3713, %v3705
    %v4626 = vpack.c.b16 %v3714, %v3706
    %v4627 = vpack.c.b16 %v3715, %v3707
    %v4628 = vpack.c.b16 %v3716, %v3708
    %v4629 = vpack.c.b16 %v3717, %v3709
    %v4630 = vpack.c.b16 %v3726, %v3718
    %v4631 = vpack.c.b16 %v3727, %v3719
    %v4632 = vpack.c.b16 %v3728, %v3720
    %v4633 = vpack.c.b16 %v3729, %v3721
    %v4634 = vpack.c.b16 %v3730, %v3722
    %v4635 = vpack.c.b16 %v3731, %v3723
    %v4636 = vpack.c.b16 %v3732, %v3724
    %v4637 = vpack.c.b16 %v3733, %v3725
    %v4638 = vpack.c.b16 %v3742, %v3734
    %v4639 = vpack.c.b16 %v3743, %v3735
    %v4640 = vpack.c.b16 %v3744, %v3736
    %v4641 = vpack.c.b16 %v3745, %v3737
    %v4642 = vpack.c.b16 %v3746, %v3738
    %v4643 = vpack.c.b16 %v3747, %v3739
    %v4644 = vpack.c.b16 %v3748, %v3740
    %v4645 = vpack.c.b16 %v3749, %v3741
    %v4646 = vpack.c.b16 %v3758, %v3750
    %v4647 = vpack.c.b16 %v3759, %v3751
    %v4648 = vpack.c.b16 %v3760, %v3752
    %v4649 = vpack.c.b16 %v3761, %v3753
    %v4650 = vpack.c.b16 %v3762, %v3754
    %v4651 = vpack.c.b16 %v3763, %v3755
    %v4652 = vpack.c.b16 %v3764, %v3756
    %v4653 = vpack.c.b16 %v3765, %v3757
    %v4654 = vpack.c.b16 %v3774, %v3766
    %v4655 = vpack.c.b16 %v3775, %v3767
    %v4656 = vpack.c.b16 %v3776, %v3768
    %v4657 = vpack.c.b16 %v3777, %v3769
    %v4658 = vpack.c.b16 %v3778, %v3770
    %v4659 = vpack.c.b16 %v3779, %v3771
    %v4660 = vpack.c.b16 %v3780, %v3772
    %v4661 = vpack.c.b16 %v3781, %v3773
    %v4662 = vpack.c.b16 %v3790, %v3782
    %v4663 = vpack.c.b16 %v3791, %v3783
    %v4664 = vpack.c.b16 %v3792, %v3784
    %v4665 = vpack.c.b16 %v3793, %v3785
    %v4666 = vpack.c.b16 %v3794, %v3786
    %v4667 = vpack.c.b16 %v3795, %v3787
    %v4668 = vpack.c.b16 %v3796, %v3788
    %v4669 = vpack.c.b16 %v3797, %v3789
    %v4670 = vpack.c.b16 %v3806, %v3798
    %v4671 = vpack.c.b16 %v3807, %v3799
    %v4672 = vpack.c.b16 %v3808, %v3800
    %v4673 = vpack.c.b16 %v3809, %v3801
    %v4674 = vpack.c.b16 %v3810, %v3802
    %v4675 = vpack.c.b16 %v3811, %v3803
    %v4676 = vpack.c.b16 %v3812, %v3804
    %v4677 = vpack.c.b16 %v3813, %v3805
    %v4678 = vpack.c.b16 %v3822, %v3814
    %v4679 = vpack.c.b16 %v3823, %v3815
    %v4680 = vpack.c.b16 %v3824, %v3816
    %v4681 = vpack.c.b16 %v3825, %v3817
    %v4682 = vpack.c.b16 %v3826, %v3818
    %v4683 = vpack.c.b16 %v3827, %v3819
    %v4684 = vpack.c.b16 %v3828, %v3820
    %v4685 = vpack.c.b16 %v3829, %v3821
    %v4686 = vpack.c.b16 %v3838, %v3830
    %v4687 = vpack.c.b16 %v3839, %v3831
    %v4688 = vpack.c.b16 %v3840, %v3832
    %v4689 = vpack.c.b16 %v3841, %v3833
    %v4690 = vpack.c.b16 %v3842, %v3834
    %v4691 = vpack.c.b16 %v3843, %v3835
    %v4692 = vpack.c.b16 %v3844, %v3836
    %v4693 = vpack.c.b16 %v3845, %v3837
    %v4694 = vpack.c.b16 %v3854, %v3846
    %v4695 = vpack.c.b16 %v3855, %v3847
    %v4696 = vpack.c.b16 %v3856, %v3848
    %v4697 = vpack.c.b16 %v3857, %v3849
    %v4698 = vpack.c.b16 %v3858, %v3850
    %v4699 = vpack.c.b16 %v3859, %v3851
    %v4700 = vpack.c.b16 %v3860, %v3852
    %v4701 = vpack.c.b16 %v3861, %v3853
    %v4702 = vpack.c.b16 %v3870, %v3862
    %v4703 = vpack.c.b16 %v3871, %v3863
    %v4704 = vpack.c.b16 %v3872, %v3864
    %v4705 = vpack.c.b16 %v3873, %v3865
    %v4706 = vpack.c.b16 %v3874, %v3866
    %v4707 = vpack.c.b16 %v3875, %v3867
    %v4708 = vpack.c.b16 %v3876, %v3868
    %v4709 = vpack.c.b16 %v3877, %v3869
    %v4710 = vpack.c.b16 %v3886, %v3878
    %v4711 = vpack.c.b16 %v3887, %v3879
    %v4712 = vpack.c.b16 %v3888, %v3880
    %v4713 = vpack.c.b16 %v3889, %v3881
    %v4714 = vpack.c.b16 %v3890, %v3882
    %v4715 = vpack.c.b16 %v3891, %v3883
    %v4716 = vpack.c.b16 %v3892, %v3884
    %v4717 = vpack.c.b16 %v3893, %v3885
    %v4718 = vpack.c.b16 %v3902, %v3894
    %v4719 = vpack.c.b16 %v3903, %v3895
    %v4720 = vpack.c.b16 %v3904, %v3896
    %v4721 = vpack.c.b16 %v3905, %v3897
    %v4722 = vpack.c.b16 %v3906, %v3898
    %v4723 = vpack.c.b16 %v3907, %v3899
    %v4724 = vpack.c.b16 %v3908, %v3900
    %v4725 = vpack.c.b16 %v3909, %v3901
    %v4726 = vpack.c.b16 %v3918, %v3910
    %v4727 = vpack.c.b16 %v3919, %v3911
    %v4728 = vpack.c.b16 %v3920, %v3912
    %v4729 = vpack.c.b16 %v3921, %v3913
    %v4730 = vpack.c.b16 %v3922, %v3914
    %v4731 = vpack.c.b16 %v3923, %v3915
    %v4732 = vpack.c.b16 %v3924, %v3916
    %v4733 = vpack.c.b16 %v3925, %v3917
    %v4734 = vpack.c.b16 %v3934, %v3926
    %v4735 = vpack.c.b16 %v3935, %v3927
    %v4736 = vpack.c.b16 %v3936, %v3928
    %v4737 = vpack.c.b16 %v3937, %v3929
    %v4738 = vpack.c.b16 %v3938, %v3930
    %v4739 = vpack.c.b16 %v3939, %v3931
    %v4740 = vpack.c.b16 %v3940, %v3932
    %v4741 = vpack.c.b16 %v3941, %v3933
    %v4742 = vpack.c.b16 %v3950, %v3942
    %v4743 = vpack.c.b16 %v3951, %v3943
    %v4744 = vpack.c.b16 %v3952, %v3944
    %v4745 = vpack.c.b16 %v3953, %v3945
    %v4746 = vpack.c.b16 %v3954, %v3946
    %v4747 = vpack.c.b16 %v3955, %v3947
    %v4748 = vpack.c.b16 %v3956, %v3948
    %v4749 = vpack.c.b16 %v3957, %v3949
    %v4750 = vpack.c.b16 %v3966, %v3958
    %v4751 = vpack.c.b16 %v3967, %v3959
    %v4752 = vpack.c.b16 %v3968, %v3960
    %v4753 = vpack.c.b16 %v3969, %v3961
    %v4754 = vpack.c.b16 %v3970, %v3962
    %v4755 = vpack.c.b16 %v3971, %v3963
    %v4756 = vpack.c.b16 %v3972, %v3964
    %v4757 = vpack.c.b16 %v3973, %v3965
    %v4758 = vpack.c.b16 %v3982, %v3974
    %v4759 = vpack.c.b16 %v3983, %v3975
    %v4760 = vpack.c.b16 %v3984, %v3976
    %v4761 = vpack.c.b16 %v3985, %v3977
    %v4762 = vpack.c.b16 %v3986, %v3978
    %v4763 = vpack.c.b16 %v3987, %v3979
    %v4764 = vpack.c.b16 %v3988, %v3980
    %v4765 = vpack.c.b16 %v3989, %v3981
    %v4766 = vpack.c.b16 %v3998, %v3990
    %v4767 = vpack.c.b16 %v3999, %v3991
    %v4768 = vpack.c.b16 %v4000, %v3992
    %v4769 = vpack.c.b16 %v4001, %v3993
    %v4770 = vpack.c.b16 %v4002, %v3994
    %v4771 = vpack.c.b16 %v4003, %v3995
    %v4772 = vpack.c.b16 %v4004, %v3996
    %v4773 = vpack.c.b16 %v4005, %v3997
    %v4774 = vpack.c.b16 %v4014, %v4006
    %v4775 = vpack.c.b16 %v4015, %v4007
    %v4776 = vpack.c.b16 %v4016, %v4008
    %v4777 = vpack.c.b16 %v4017, %v4009
    %v4778 = vpack.c.b16 %v4018, %v4010
    %v4779 = vpack.c.b16 %v4019, %v4011
    %v4780 = vpack.c.b16 %v4020, %v4012
    %v4781 = vpack.c.b16 %v4021, %v4013
    %v4782 = vpack.c.b16 %v4030, %v4022
    %v4783 = vpack.c.b16 %v4031, %v4023
    %v4784 = vpack.c.b16 %v4032, %v4024
    %v4785 = vpack.c.b16 %v4033, %v4025
    %v4786 = vpack.c.b16 %v4034, %v4026
    %v4787 = vpack.c.b16 %v4035, %v4027
    %v4788 = vpack.c.b16 %v4036, %v4028
    %v4789 = vpack.c.b16 %v4037, %v4029
    %v4790 = vpack.c.b16 %v4046, %v4038
    %v4791 = vpack.c.b16 %v4047, %v4039
    %v4792 = vpack.c.b16 %v4048, %v4040
    %v4793 = vpack.c.b16 %v4049, %v4041
    %v4794 = vpack.c.b16 %v4050, %v4042
    %v4795 = vpack.c.b16 %v4051, %v4043
    %v4796 = vpack.c.b16 %v4052, %v4044
    %v4797 = vpack.c.b16 %v4053, %v4045
    %v4798 = vpack.c.b16 %v4062, %v4054
    %v4799 = vpack.c.b16 %v4063, %v4055
    %v4800 = vpack.c.b16 %v4064, %v4056
    %v4801 = vpack.c.b16 %v4065, %v4057
    %v4802 = vpack.c.b16 %v4066, %v4058
    %v4803 = vpack.c.b16 %v4067, %v4059
    %v4804 = vpack.c.b16 %v4068, %v4060
    %v4805 = vpack.c.b16 %v4069, %v4061
    %v4806 = vpack.c.b16 %v4078, %v4070
    %v4807 = vpack.c.b16 %v4079, %v4071
    %v4808 = vpack.c.b16 %v4080, %v4072
    %v4809 = vpack.c.b16 %v4081, %v4073
    %v4810 = vpack.c.b16 %v4082, %v4074
    %v4811 = vpack.c.b16 %v4083, %v4075
    %v4812 = vpack.c.b16 %v4084, %v4076
    %v4813 = vpack.c.b16 %v4085, %v4077
    %v4814 = vpack.c.b16 %v4094, %v4086
    %v4815 = vpack.c.b16 %v4095, %v4087
    %v4816 = vpack.c.b16 %v4096, %v4088
    %v4817 = vpack.c.b16 %v4097, %v4089
    %v4818 = vpack.c.b16 %v4098, %v4090
    %v4819 = vpack.c.b16 %v4099, %v4091
    %v4820 = vpack.c.b16 %v4100, %v4092
    %v4821 = vpack.c.b16 %v4101, %v4093
    %v4822 = vpack.c.b16 %v4110, %v4102
    %v4823 = vpack.c.b16 %v4111, %v4103
    %v4824 = vpack.c.b16 %v4112, %v4104
    %v4825 = vpack.c.b16 %v4113, %v4105
    %v4826 = vpack.c.b16 %v4114, %v4106
    %v4827 = vpack.c.b16 %v4115, %v4107
    %v4828 = vpack.c.b16 %v4116, %v4108
    %v4829 = vpack.c.b16 %v4117, %v4109
    %v4830 = vpack.c.b16 %v4126, %v4118
    %v4831 = vpack.c.b16 %v4127, %v4119
    %v4832 = vpack.c.b16 %v4128, %v4120
    %v4833 = vpack.c.b16 %v4129, %v4121
    %v4834 = vpack.c.b16 %v4130, %v4122
    %v4835 = vpack.c.b16 %v4131, %v4123
    %v4836 = vpack.c.b16 %v4132, %v4124
    %v4837 = vpack.c.b16 %v4133, %v4125
    %v4838 = vpack.c.b16 %v4142, %v4134
    %v4839 = vpack.c.b16 %v4143, %v4135
    %v4840 = vpack.c.b16 %v4144, %v4136
    %v4841 = vpack.c.b16 %v4145, %v4137
    %v4842 = vpack.c.b16 %v4146, %v4138
    %v4843 = vpack.c.b16 %v4147, %v4139
    %v4844 = vpack.c.b16 %v4148, %v4140
    %v4845 = vpack.c.b16 %v4149, %v4141
    %v4846 = vpack.c.b16 %v4158, %v4150
    %v4847 = vpack.c.b16 %v4159, %v4151
    %v4848 = vpack.c.b16 %v4160, %v4152
    %v4849 = vpack.c.b16 %v4161, %v4153
    %v4850 = vpack.c.b16 %v4162, %v4154
    %v4851 = vpack.c.b16 %v4163, %v4155
    %v4852 = vpack.c.b16 %v4164, %v4156
    %v4853 = vpack.c.b16 %v4165, %v4157
    %v4854 = vpack.c.b16 %v4174, %v4166
    %v4855 = vpack.c.b16 %v4175, %v4167
    %v4856 = vpack.c.b16 %v4176, %v4168
    %v4857 = vpack.c.b16 %v4177, %v4169
    %v4858 = vpack.c.b16 %v4178, %v4170
    %v4859 = vpack.c.b16 %v4179, %v4171
    %v4860 = vpack.c.b16 %v4180, %v4172
    %v4861 = vpack.c.b16 %v4181, %v4173
    %v4862 = vpack.c.b16 %v4190, %v4182
    %v4863 = vpack.c.b16 %v4191, %v4183
    %v4864 = vpack.c.b16 %v4192, %v4184
    %v4865 = vpack.c.b16 %v4193, %v4185
    %v4866 = vpack.c.b16 %v4194, %v4186
    %v4867 = vpack.c.b16 %v4195, %v4187
    %v4868 = vpack.c.b16 %v4196, %v4188
    %v4869 = vpack.c.b16 %v4197, %v4189
    %v4870 = vpack.c.b16 %v4206, %v4198
    %v4871 = vpack.c.b16 %v4207, %v4199
    %v4872 = vpack.c.b16 %v4208, %v4200
    %v4873 = vpack.c.b16 %v4209, %v4201
    %v4874 = vpack.c.b16 %v4210, %v4202
    %v4875 = vpack.c.b16 %v4211, %v4203
    %v4876 = vpack.c.b16 %v4212, %v4204
    %v4877 = vpack.c.b16 %v4213, %v4205
    %v4878 = vpack.c.b16 %v4222, %v4214
    %v4879 = vpack.c.b16 %v4223, %v4215
    %v4880 = vpack.c.b16 %v4224, %v4216
    %v4881 = vpack.c.b16 %v4225, %v4217
    %v4882 = vpack.c.b16 %v4226, %v4218
    %v4883 = vpack.c.b16 %v4227, %v4219
    %v4884 = vpack.c.b16 %v4228, %v4220
    %v4885 = vpack.c.b16 %v4229, %v4221
    %v4886 = vpack.c.b16 %v4238, %v4230
    %v4887 = vpack.c.b16 %v4239, %v4231
    %v4888 = vpack.c.b16 %v4240, %v4232
    %v4889 = vpack.c.b16 %v4241, %v4233
    %v4890 = vpack.c.b16 %v4242, %v4234
    %v4891 = vpack.c.b16 %v4243, %v4235
    %v4892 = vpack.c.b16 %v4244, %v4236
    %v4893 = vpack.c.b16 %v4245, %v4237
    %v4894 = vpack.c.b16 %v4254, %v4246
    %v4895 = vpack.c.b16 %v4255, %v4247
    %v4896 = vpack.c.b16 %v4256, %v4248
    %v4897 = vpack.c.b16 %v4257, %v4249
    %v4898 = vpack.c.b16 %v4258, %v4250
    %v4899 = vpack.c.b16 %v4259, %v4251
    %v4900 = vpack.c.b16 %v4260, %v4252
    %v4901 = vpack.c.b16 %v4261, %v4253
    %v4902 = vpack.c.b16 %v4270, %v4262
    %v4903 = vpack.c.b16 %v4271, %v4263
    %v4904 = vpack.c.b16 %v4272, %v4264
    %v4905 = vpack.c.b16 %v4273, %v4265
    %v4906 = vpack.c.b16 %v4274, %v4266
    %v4907 = vpack.c.b16 %v4275, %v4267
    %v4908 = vpack.c.b16 %v4276, %v4268
    %v4909 = vpack.c.b16 %v4277, %v4269
    %v4910 = vpack.c.b16 %v4286, %v4278
    %v4911 = vpack.c.b16 %v4287, %v4279
    %v4912 = vpack.c.b16 %v4288, %v4280
    %v4913 = vpack.c.b16 %v4289, %v4281
    %v4914 = vpack.c.b16 %v4290, %v4282
    %v4915 = vpack.c.b16 %v4291, %v4283
    %v4916 = vpack.c.b16 %v4292, %v4284
    %v4917 = vpack.c.b16 %v4293, %v4285
    %v4918 = vpack.c.b16 %v4302, %v4294
    %v4919 = vpack.c.b16 %v4303, %v4295
    %v4920 = vpack.c.b16 %v4304, %v4296
    %v4921 = vpack.c.b16 %v4305, %v4297
    %v4922 = vpack.c.b16 %v4306, %v4298
    %v4923 = vpack.c.b16 %v4307, %v4299
    %v4924 = vpack.c.b16 %v4308, %v4300
    %v4925 = vpack.c.b16 %v4309, %v4301
    %v4926 = vpack.c.b16 %v4318, %v4310
    %v4927 = vpack.c.b16 %v4319, %v4311
    %v4928 = vpack.c.b16 %v4320, %v4312
    %v4929 = vpack.c.b16 %v4321, %v4313
    %v4930 = vpack.c.b16 %v4322, %v4314
    %v4931 = vpack.c.b16 %v4323, %v4315
    %v4932 = vpack.c.b16 %v4324, %v4316
    %v4933 = vpack.c.b16 %v4325, %v4317
    %v4934 = vpack.c.b16 %v4334, %v4326
    %v4935 = vpack.c.b16 %v4335, %v4327
    %v4936 = vpack.c.b16 %v4336, %v4328
    %v4937 = vpack.c.b16 %v4337, %v4329
    %v4938 = vpack.c.b16 %v4338, %v4330
    %v4939 = vpack.c.b16 %v4339, %v4331
    %v4940 = vpack.c.b16 %v4340, %v4332
    %v4941 = vpack.c.b16 %v4341, %v4333
    %v4942 = vpack.c.b16 %v4350, %v4342
    %v4943 = vpack.c.b16 %v4351, %v4343
    %v4944 = vpack.c.b16 %v4352, %v4344
    %v4945 = vpack.c.b16 %v4353, %v4345
    %v4946 = vpack.c.b16 %v4354, %v4346
    %v4947 = vpack.c.b16 %v4355, %v4347
    %v4948 = vpack.c.b16 %v4356, %v4348
    %v4949 = vpack.c.b16 %v4357, %v4349
    %v4950 = vpack.c.b16 %v4366, %v4358
    %v4951 = vpack.c.b16 %v4367, %v4359
    %v4952 = vpack.c.b16 %v4368, %v4360
    %v4953 = vpack.c.b16 %v4369, %v4361
    %v4954 = vpack.c.b16 %v4370, %v4362
    %v4955 = vpack.c.b16 %v4371, %v4363
    %v4956 = vpack.c.b16 %v4372, %v4364
    %v4957 = vpack.c.b16 %v4373, %v4365
    %v4958 = vpack.c.b16 %v4382, %v4374
    %v4959 = vpack.c.b16 %v4383, %v4375
    %v4960 = vpack.c.b16 %v4384, %v4376
    %v4961 = vpack.c.b16 %v4385, %v4377
    %v4962 = vpack.c.b16 %v4386, %v4378
    %v4963 = vpack.c.b16 %v4387, %v4379
    %v4964 = vpack.c.b16 %v4388, %v4380
    %v4965 = vpack.c.b16 %v4389, %v4381
    %v4966 = vpack.c.b16 %v4398, %v4390
    %v4967 = vpack.c.b16 %v4399, %v4391
    %v4968 = vpack.c.b16 %v4400, %v4392
    %v4969 = vpack.c.b16 %v4401, %v4393
    %v4970 = vpack.c.b16 %v4402, %v4394
    %v4971 = vpack.c.b16 %v4403, %v4395
    %v4972 = vpack.c.b16 %v4404, %v4396
    %v4973 = vpack.c.b16 %v4405, %v4397
    %v4974 = vpack.c.b16 %v4414, %v4406
    %v4975 = vpack.c.b16 %v4415, %v4407
    %v4976 = vpack.c.b16 %v4416, %v4408
    %v4977 = vpack.c.b16 %v4417, %v4409
    %v4978 = vpack.c.b16 %v4418, %v4410
    %v4979 = vpack.c.b16 %v4419, %v4411
    %v4980 = vpack.c.b16 %v4420, %v4412
    %v4981 = vpack.c.b16 %v4421, %v4413
    %v4982 = vpack.c.b16 %v4430, %v4422
    %v4983 = vpack.c.b16 %v4431, %v4423
    %v4984 = vpack.c.b16 %v4432, %v4424
    %v4985 = vpack.c.b16 %v4433, %v4425
    %v4986 = vpack.c.b16 %v4434, %v4426
    %v4987 = vpack.c.b16 %v4435, %v4427
    %v4988 = vpack.c.b16 %v4436, %v4428
    %v4989 = vpack.c.b16 %v4437, %v4429
    %v4990 = vpack.c.b16 %v4446, %v4438
    %v4991 = vpack.c.b16 %v4447, %v4439
    %v4992 = vpack.c.b16 %v4448, %v4440
    %v4993 = vpack.c.b16 %v4449, %v4441
    %v4994 = vpack.c.b16 %v4450, %v4442
    %v4995 = vpack.c.b16 %v4451, %v4443
    %v4996 = vpack.c.b16 %v4452, %v4444
    %v4997 = vpack.c.b16 %v4453, %v4445
    %v4998 = vpack.c.b16 %v4462, %v4454
    %v4999 = vpack.c.b16 %v4463, %v4455
    %v5000 = vpack.c.b16 %v4464, %v4456
    %v5001 = vpack.c.b16 %v4465, %v4457
    %v5002 = vpack.c.b16 %v4466, %v4458
    %v5003 = vpack.c.b16 %v4467, %v4459
    %v5004 = vpack.c.b16 %v4468, %v4460
    %v5005 = vpack.c.b16 %v4469, %v4461
    %v5006 = vpack.c.b16 %v4478, %v4470
    %v5007 = vpack.c.b16 %v4479, %v4471
    %v5008 = vpack.c.b16 %v4480, %v4472
    %v5009 = vpack.c.b16 %v4481, %v4473
    %v5010 = vpack.c.b16 %v4482, %v4474
    %v5011 = vpack.c.b16 %v4483, %v4475
    %v5012 = vpack.c.b16 %v4484, %v4476
    %v5013 = vpack.c.b16 %v4485, %v4477
    %v5014 = vpack.c.b16 %v4494, %v4486
    %v5015 = vpack.c.b16 %v4495, %v4487
    %v5016 = vpack.c.b16 %v4496, %v4488
    %v5017 = vpack.c.b16 %v4497, %v4489
    %v5018 = vpack.c.b16 %v4498, %v4490
    %v5019 = vpack.c.b16 %v4499, %v4491
    %v5020 = vpack.c.b16 %v4500, %v4492
    %v5021 = vpack.c.b16 %v4501, %v4493
    %v5022 = vpack.c.b16 %v4510, %v4502
    %v5023 = vpack.c.b16 %v4511, %v4503
    %v5024 = vpack.c.b16 %v4512, %v4504
    %v5025 = vpack.c.b16 %v4513, %v4505
    %v5026 = vpack.c.b16 %v4514, %v4506
    %v5027 = vpack.c.b16 %v4515, %v4507
    %v5028 = vpack.c.b16 %v4516, %v4508
    %v5029 = vpack.c.b16 %v4517, %v4509
    %5542 = vmatprep.subr.bf16.mxu0 %v4519
    %5543 = vmatpush1.bf16.msra.mxu0 %v4518
    %5544 = vmatprep.subr.bf16.mxu0 %v4527
    %5545 = vmatpush1.bf16.msra.mxu0 %v4526
    %5546 = vmatprep.subr.bf16.mxu0 %v4535
    %5547 = vmatpush1.bf16.msra.mxu0 %v4534
    %5548 = vmatprep.subr.bf16.mxu0 %v4543
    %5549 = vmatpush1.bf16.msra.mxu0 %v4542
    %5550 = vmatprep.subr.bf16.mxu0 %v4551
    %5551 = vmatpush1.bf16.msra.mxu0 %v4550
    %5552 = vmatprep.subr.bf16.mxu0 %v4559
    %5553 = vmatpush1.bf16.msra.mxu0 %v4558
    %5554 = vmatprep.subr.bf16.mxu0 %v4567
    %5555 = vmatpush1.bf16.msra.mxu0 %v4566
    %5556 = vmatprep.subr.bf16.mxu0 %v4575
    %5557 = vmatpush1.bf16.msra.mxu0 %v4574
    %5558 = vmatprep.subr.bf16.mxu0 %v4583
    %5559 = vmatpush1.bf16.msra.mxu0 %v4582
    %5560 = vmatprep.subr.bf16.mxu0 %v4591
    %5561 = vmatpush1.bf16.msra.mxu0 %v4590
    %5562 = vmatprep.subr.bf16.mxu0 %v4599
    %5563 = vmatpush1.bf16.msra.mxu0 %v4598
    %5564 = vmatprep.subr.bf16.mxu0 %v4607
    %5565 = vmatpush1.bf16.msra.mxu0 %v4606
    %5566 = vmatprep.subr.bf16.mxu0 %v4615
    %5567 = vmatpush1.bf16.msra.mxu0 %v4614
    %5568 = vmatprep.subr.bf16.mxu0 %v4623
    %5569 = vmatpush1.bf16.msra.mxu0 %v4622
    %5570 = vmatprep.subr.bf16.mxu0 %v4631
    %5571 = vmatpush1.bf16.msra.mxu0 %v4630
    %5572 = vmatprep.subr.bf16.mxu0 %v4639
    %5573 = vmatpush1.bf16.msra.mxu0 %v4638
    %5574 = vmatprep.mubr.bf16.mxu0 %v2463
    %5575 = vmatmul.mubr.bf16.gmra.mrb[0].mxu0 %v2462
    %v5576 = vpop.f32.mrb[0].mxu0
    %v5577 = vadd.f32 0.0, %v5576
    %v5578 = vpop.f32.mrb[0].mxu0
    %v5579 = vadd.f32 0.0, %v5578
    %v5580 = vpop.f32.mrb[0].mxu0
    %v5581 = vpop.f32.mrb[0].mxu0
    %5582 = vdwg.mxu0
    %5583 = vmatprep.subr.bf16.mxu0 %v4647
    %5584 = vmatpush1.bf16.msra.mxu0 %v4646
    %5585 = vmatprep.subr.bf16.mxu0 %v4655
    %5586 = vmatpush1.bf16.msra.mxu0 %v4654
    %5587 = vmatprep.subr.bf16.mxu0 %v4663
    %5588 = vmatpush1.bf16.msra.mxu0 %v4662
    %5589 = vmatprep.subr.bf16.mxu0 %v4671
    %5590 = vmatpush1.bf16.msra.mxu0 %v4670
    %5591 = vmatprep.subr.bf16.mxu0 %v4679
    %5592 = vmatpush1.bf16.msra.mxu0 %v4678
    %5593 = vmatprep.subr.bf16.mxu0 %v4687
    %5594 = vmatpush1.bf16.msra.mxu0 %v4686
    %5595 = vmatprep.subr.bf16.mxu0 %v4695
    %5596 = vmatpush1.bf16.msra.mxu0 %v4694
    %5597 = vmatprep.subr.bf16.mxu0 %v4703
    %5598 = vmatpush1.bf16.msra.mxu0 %v4702
    %5599 = vmatprep.subr.bf16.mxu0 %v4711
    %5600 = vmatpush1.bf16.msra.mxu0 %v4710
    %5601 = vmatprep.subr.bf16.mxu0 %v4719
    %5602 = vmatpush1.bf16.msra.mxu0 %v4718
    %5603 = vmatprep.subr.bf16.mxu0 %v4727
    %5604 = vmatpush1.bf16.msra.mxu0 %v4726
    %5605 = vmatprep.subr.bf16.mxu0 %v4735
    %5606 = vmatpush1.bf16.msra.mxu0 %v4734
    %5607 = vmatprep.subr.bf16.mxu0 %v4743
    %5608 = vmatpush1.bf16.msra.mxu0 %v4742
    %5609 = vmatprep.subr.bf16.mxu0 %v4751
    %5610 = vmatpush1.bf16.msra.mxu0 %v4750
    %5611 = vmatprep.subr.bf16.mxu0 %v4759
    %5612 = vmatpush1.bf16.msra.mxu0 %v4758
    %5613 = vmatprep.subr.bf16.mxu0 %v4767
    %5614 = vmatpush1.bf16.msra.mxu0 %v4766
    %5615 = vmatprep.mubr.bf16.mxu0 %v2465
    %5616 = vmatmul.mubr.bf16.gmra.mrb[0].mxu0 %v2464
    %v5617 = vpop.f32.mrb[0].mxu0
    %v5618 = vadd.f32 %v5577, %v5617
    %v5619 = vpop.f32.mrb[0].mxu0
    %v5620 = vadd.f32 %v5579, %v5619
    %v5621 = vpop.f32.mrb[0].mxu0
    %v5622 = vpop.f32.mrb[0].mxu0
    %5623 = vdwg.mxu0
    %5624 = vmatprep.subr.bf16.mxu0 %v4775
    %5625 = vmatpush1.bf16.msra.mxu0 %v4774
    %5626 = vmatprep.subr.bf16.mxu0 %v4783
    %5627 = vmatpush1.bf16.msra.mxu0 %v4782
    %5628 = vmatprep.subr.bf16.mxu0 %v4791
    %5629 = vmatpush1.bf16.msra.mxu0 %v4790
    %5630 = vmatprep.subr.bf16.mxu0 %v4799
    %5631 = vmatpush1.bf16.msra.mxu0 %v4798
    %5632 = vmatprep.subr.bf16.mxu0 %v4807
    %5633 = vmatpush1.bf16.msra.mxu0 %v4806
    %5634 = vmatprep.subr.bf16.mxu0 %v4815
    %5635 = vmatpush1.bf16.msra.mxu0 %v4814
    %5636 = vmatprep.subr.bf16.mxu0 %v4823
    %5637 = vmatpush1.bf16.msra.mxu0 %v4822
    %5638 = vmatprep.subr.bf16.mxu0 %v4831
    %5639 = vmatpush1.bf16.msra.mxu0 %v4830
    %5640 = vmatprep.subr.bf16.mxu0 %v4839
    %5641 = vmatpush1.bf16.msra.mxu0 %v4838
    %5642 = vmatprep.subr.bf16.mxu0 %v4847
    %5643 = vmatpush1.bf16.msra.mxu0 %v4846
    %5644 = vmatprep.subr.bf16.mxu0 %v4855
    %5645 = vmatpush1.bf16.msra.mxu0 %v4854
    %5646 = vmatprep.subr.bf16.mxu0 %v4863
    %5647 = vmatpush1.bf16.msra.mxu0 %v4862
    %5648 = vmatprep.subr.bf16.mxu0 %v4871
    %5649 = vmatpush1.bf16.msra.mxu0 %v4870
    %5650 = vmatprep.subr.bf16.mxu0 %v4879
    %5651 = vmatpush1.bf16.msra.mxu0 %v4878
    %5652 = vmatprep.subr.bf16.mxu0 %v4887
    %5653 = vmatpush1.bf16.msra.mxu0 %v4886
    %5654 = vmatprep.subr.bf16.mxu0 %v4895
    %5655 = vmatpush1.bf16.msra.mxu0 %v4894
    %5656 = vmatprep.mubr.bf16.mxu0 %v2467
    %5657 = vmatmul.mubr.bf16.gmra.mrb[0].mxu0 %v2466
    %v5658 = vpop.f32.mrb[0].mxu0
    %v5659 = vadd.f32 %v5618, %v5658
    %v5660 = vpop.f32.mrb[0].mxu0
    %v5661 = vadd.f32 %v5620, %v5660
    %v5662 = vpop.f32.mrb[0].mxu0
    %v5663 = vpop.f32.mrb[0].mxu0
    %5664 = vdwg.mxu0
    %5665 = vmatprep.subr.bf16.mxu0 %v4903
    %5666 = vmatpush1.bf16.msra.mxu0 %v4902
    %5667 = vmatprep.subr.bf16.mxu0 %v4911
    %5668 = vmatpush1.bf16.msra.mxu0 %v4910
    %5669 = vmatprep.subr.bf16.mxu0 %v4919
    %5670 = vmatpush1.bf16.msra.mxu0 %v4918
    %5671 = vmatprep.subr.bf16.mxu0 %v4927
    %5672 = vmatpush1.bf16.msra.mxu0 %v4926
    %5673 = vmatprep.subr.bf16.mxu0 %v4935
    %5674 = vmatpush1.bf16.msra.mxu0 %v4934
    %5675 = vmatprep.subr.bf16.mxu0 %v4943
    %5676 = vmatpush1.bf16.msra.mxu0 %v4942
    %5677 = vmatprep.subr.bf16.mxu0 %v4951
    %5678 = vmatpush1.bf16.msra.mxu0 %v4950
    %5679 = vmatprep.subr.bf16.mxu0 %v4959
    %5680 = vmatpush1.bf16.msra.mxu0 %v4958
    %5681 = vmatprep.subr.bf16.mxu0 %v4967
    %5682 = vmatpush1.bf16.msra.mxu0 %v4966
    %5683 = vmatprep.subr.bf16.mxu0 %v4975
    %5684 = vmatpush1.bf16.msra.mxu0 %v4974
    %5685 = vmatprep.subr.bf16.mxu0 %v4983
    %5686 = vmatpush1.bf16.msra.mxu0 %v4982
    %5687 = vmatprep.subr.bf16.mxu0 %v4991
    %5688 = vmatpush1.bf16.msra.mxu0 %v4990
    %5689 = vmatprep.subr.bf16.mxu0 %v4999
    %5690 = vmatpush1.bf16.msra.mxu0 %v4998
    %5691 = vmatprep.subr.bf16.mxu0 %v5007
    %5692 = vmatpush1.bf16.msra.mxu0 %v5006
    %5693 = vmatprep.subr.bf16.mxu0 %v5015
    %5694 = vmatpush1.bf16.msra.mxu0 %v5014
    %5695 = vmatprep.subr.bf16.mxu0 %v5023
    %5696 = vmatpush1.bf16.msra.mxu0 %v5022
    %5697 = vmatprep.mubr.bf16.mxu0 %v2469
    %5698 = vmatmul.mubr.bf16.gmra.mrb[0].mxu0 %v2468
    %v5699 = vpop.f32.mrb[0].mxu0
    %v5700 = vadd.f32 %v5659, %v5699
    %v5701 = vpop.f32.mrb[0].mxu0
    %v5702 = vadd.f32 %v5661, %v5701
    %v5703 = vpop.f32.mrb[0].mxu0
    %v5704 = vpop.f32.mrb[0].mxu0
    %5705 = vdwg.mxu0
    %5706 = vmatprep.subr.bf16.mxu0 %v4521
    %5707 = vmatpush1.bf16.msra.mxu0 %v4520
    %5708 = vmatprep.subr.bf16.mxu0 %v4529
    %5709 = vmatpush1.bf16.msra.mxu0 %v4528
    %5710 = vmatprep.subr.bf16.mxu0 %v4537
    %5711 = vmatpush1.bf16.msra.mxu0 %v4536
    %5712 = vmatprep.subr.bf16.mxu0 %v4545
    %5713 = vmatpush1.bf16.msra.mxu0 %v4544
    %5714 = vmatprep.subr.bf16.mxu0 %v4553
    %5715 = vmatpush1.bf16.msra.mxu0 %v4552
    %5716 = vmatprep.subr.bf16.mxu0 %v4561
    %5717 = vmatpush1.bf16.msra.mxu0 %v4560
    %5718 = vmatprep.subr.bf16.mxu0 %v4569
    %5719 = vmatpush1.bf16.msra.mxu0 %v4568
    %5720 = vmatprep.subr.bf16.mxu0 %v4577
    %5721 = vmatpush1.bf16.msra.mxu0 %v4576
    %5722 = vmatprep.subr.bf16.mxu0 %v4585
    %5723 = vmatpush1.bf16.msra.mxu0 %v4584
    %5724 = vmatprep.subr.bf16.mxu0 %v4593
    %5725 = vmatpush1.bf16.msra.mxu0 %v4592
    %5726 = vmatprep.subr.bf16.mxu0 %v4601
    %5727 = vmatpush1.bf16.msra.mxu0 %v4600
    %5728 = vmatprep.subr.bf16.mxu0 %v4609
    %5729 = vmatpush1.bf16.msra.mxu0 %v4608
    %5730 = vmatprep.subr.bf16.mxu0 %v4617
    %5731 = vmatpush1.bf16.msra.mxu0 %v4616
    %5732 = vmatprep.subr.bf16.mxu0 %v4625
    %5733 = vmatpush1.bf16.msra.mxu0 %v4624
    %5734 = vmatprep.subr.bf16.mxu0 %v4633
    %5735 = vmatpush1.bf16.msra.mxu0 %v4632
    %5736 = vmatprep.subr.bf16.mxu0 %v4641
    %5737 = vmatpush1.bf16.msra.mxu0 %v4640
    %5738 = vmatprep.mubr.bf16.mxu0 %v2463
    %5739 = vmatmul.mubr.bf16.gmra.mrb[0].mxu0 %v2462
    %v5740 = vpop.f32.mrb[0].mxu0
    %v5741 = vadd.f32 0.0, %v5740
    %v5742 = vpop.f32.mrb[0].mxu0
    %v5743 = vadd.f32 0.0, %v5742
    %v5744 = vpop.f32.mrb[0].mxu0
    %v5745 = vpop.f32.mrb[0].mxu0
    %5746 = vdwg.mxu0
    %5747 = vmatprep.subr.bf16.mxu0 %v4649
    %5748 = vmatpush1.bf16.msra.mxu0 %v4648
    %5749 = vmatprep.subr.bf16.mxu0 %v4657
    %5750 = vmatpush1.bf16.msra.mxu0 %v4656
    %5751 = vmatprep.subr.bf16.mxu0 %v4665
    %5752 = vmatpush1.bf16.msra.mxu0 %v4664
    %5753 = vmatprep.subr.bf16.mxu0 %v4673
    %5754 = vmatpush1.bf16.msra.mxu0 %v4672
    %5755 = vmatprep.subr.bf16.mxu0 %v4681
    %5756 = vmatpush1.bf16.msra.mxu0 %v4680
    %5757 = vmatprep.subr.bf16.mxu0 %v4689
    %5758 = vmatpush1.bf16.msra.mxu0 %v4688
    %5759 = vmatprep.subr.bf16.mxu0 %v4697
    %5760 = vmatpush1.bf16.msra.mxu0 %v4696
    %5761 = vmatprep.subr.bf16.mxu0 %v4705
    %5762 = vmatpush1.bf16.msra.mxu0 %v4704
    %5763 = vmatprep.subr.bf16.mxu0 %v4713
    %5764 = vmatpush1.bf16.msra.mxu0 %v4712
    %5765 = vmatprep.subr.bf16.mxu0 %v4721
    %5766 = vmatpush1.bf16.msra.mxu0 %v4720
    %5767 = vmatprep.subr.bf16.mxu0 %v4729
    %5768 = vmatpush1.bf16.msra.mxu0 %v4728
    %5769 = vmatprep.subr.bf16.mxu0 %v4737
    %5770 = vmatpush1.bf16.msra.mxu0 %v4736
    %5771 = vmatprep.subr.bf16.mxu0 %v4745
    %5772 = vmatpush1.bf16.msra.mxu0 %v4744
    %5773 = vmatprep.subr.bf16.mxu0 %v4753
    %5774 = vmatpush1.bf16.msra.mxu0 %v4752
    %5775 = vmatprep.subr.bf16.mxu0 %v4761
    %5776 = vmatpush1.bf16.msra.mxu0 %v4760
    %5777 = vmatprep.subr.bf16.mxu0 %v4769
    %5778 = vmatpush1.bf16.msra.mxu0 %v4768
    %5779 = vmatprep.mubr.bf16.mxu0 %v2465
    %5780 = vmatmul.mubr.bf16.gmra.mrb[0].mxu0 %v2464
    %v5781 = vpop.f32.mrb[0].mxu0
    %v5782 = vadd.f32 %v5741, %v5781
    %v5783 = vpop.f32.mrb[0].mxu0
    %v5784 = vadd.f32 %v5743, %v5783
    %v5785 = vpop.f32.mrb[0].mxu0
    %v5786 = vpop.f32.mrb[0].mxu0
    %5787 = vdwg.mxu0
    %5788 = vmatprep.subr.bf16.mxu0 %v4777
    %5789 = vmatpush1.bf16.msra.mxu0 %v4776
    %5790 = vmatprep.subr.bf16.mxu0 %v4785
    %5791 = vmatpush1.bf16.msra.mxu0 %v4784
    %5792 = vmatprep.subr.bf16.mxu0 %v4793
    %5793 = vmatpush1.bf16.msra.mxu0 %v4792
    %5794 = vmatprep.subr.bf16.mxu0 %v4801
    %5795 = vmatpush1.bf16.msra.mxu0 %v4800
    %5796 = vmatprep.subr.bf16.mxu0 %v4809
    %5797 = vmatpush1.bf16.msra.mxu0 %v4808
    %5798 = vmatprep.subr.bf16.mxu0 %v4817
    %5799 = vmatpush1.bf16.msra.mxu0 %v4816
    %5800 = vmatprep.subr.bf16.mxu0 %v4825
    %5801 = vmatpush1.bf16.msra.mxu0 %v4824
    %5802 = vmatprep.subr.bf16.mxu0 %v4833
    %5803 = vmatpush1.bf16.msra.mxu0 %v4832
    %5804 = vmatprep.subr.bf16.mxu0 %v4841
    %5805 = vmatpush1.bf16.msra.mxu0 %v4840
    %5806 = vmatprep.subr.bf16.mxu0 %v4849
    %5807 = vmatpush1.bf16.msra.mxu0 %v4848
    %5808 = vmatprep.subr.bf16.mxu0 %v4857
    %5809 = vmatpush1.bf16.msra.mxu0 %v4856
    %5810 = vmatprep.subr.bf16.mxu0 %v4865
    %5811 = vmatpush1.bf16.msra.mxu0 %v4864
    %5812 = vmatprep.subr.bf16.mxu0 %v4873
    %5813 = vmatpush1.bf16.msra.mxu0 %v4872
    %5814 = vmatprep.subr.bf16.mxu0 %v4881
    %5815 = vmatpush1.bf16.msra.mxu0 %v4880
    %5816 = vmatprep.subr.bf16.mxu0 %v4889
    %5817 = vmatpush1.bf16.msra.mxu0 %v4888
    %5818 = vmatprep.subr.bf16.mxu0 %v4897
    %5819 = vmatpush1.bf16.msra.mxu0 %v4896
    %5820 = vmatprep.mubr.bf16.mxu0 %v2467
    %5821 = vmatmul.mubr.bf16.gmra.mrb[0].mxu0 %v2466
    %v5822 = vpop.f32.mrb[0].mxu0
    %v5823 = vadd.f32 %v5782, %v5822
    %v5824 = vpop.f32.mrb[0].mxu0
    %v5825 = vadd.f32 %v5784, %v5824
    %v5826 = vpop.f32.mrb[0].mxu0
    %v5827 = vpop.f32.mrb[0].mxu0
    %5828 = vdwg.mxu0
    %5829 = vmatprep.subr.bf16.mxu0 %v4905
    %5830 = vmatpush1.bf16.msra.mxu0 %v4904
    %5831 = vmatprep.subr.bf16.mxu0 %v4913
    %5832 = vmatpush1.bf16.msra.mxu0 %v4912
    %5833 = vmatprep.subr.bf16.mxu0 %v4921
    %5834 = vmatpush1.bf16.msra.mxu0 %v4920
    %5835 = vmatprep.subr.bf16.mxu0 %v4929
    %5836 = vmatpush1.bf16.msra.mxu0 %v4928
    %5837 = vmatprep.subr.bf16.mxu0 %v4937
    %5838 = vmatpush1.bf16.msra.mxu0 %v4936
    %5839 = vmatprep.subr.bf16.mxu0 %v4945
    %5840 = vmatpush1.bf16.msra.mxu0 %v4944
    %5841 = vmatprep.subr.bf16.mxu0 %v4953
    %5842 = vmatpush1.bf16.msra.mxu0 %v4952
    %5843 = vmatprep.subr.bf16.mxu0 %v4961
    %5844 = vmatpush1.bf16.msra.mxu0 %v4960
    %5845 = vmatprep.subr.bf16.mxu0 %v4969
    %5846 = vmatpush1.bf16.msra.mxu0 %v4968
    %5847 = vmatprep.subr.bf16.mxu0 %v4977
    %5848 = vmatpush1.bf16.msra.mxu0 %v4976
    %5849 = vmatprep.subr.bf16.mxu0 %v4985
    %5850 = vmatpush1.bf16.msra.mxu0 %v4984
    %5851 = vmatprep.subr.bf16.mxu0 %v4993
    %5852 = vmatpush1.bf16.msra.mxu0 %v4992
    %5853 = vmatprep.subr.bf16.mxu0 %v5001
    %5854 = vmatpush1.bf16.msra.mxu0 %v5000
    %5855 = vmatprep.subr.bf16.mxu0 %v5009
    %5856 = vmatpush1.bf16.msra.mxu0 %v5008
    %5857 = vmatprep.subr.bf16.mxu0 %v5017
    %5858 = vmatpush1.bf16.msra.mxu0 %v5016
    %5859 = vmatprep.subr.bf16.mxu0 %v5025
    %5860 = vmatpush1.bf16.msra.mxu0 %v5024
    %5861 = vmatprep.mubr.bf16.mxu0 %v2469
    %5862 = vmatmul.mubr.bf16.gmra.mrb[0].mxu0 %v2468
    %v5863 = vpop.f32.mrb[0].mxu0
    %v5864 = vadd.f32 %v5823, %v5863
    %v5865 = vpop.f32.mrb[0].mxu0
    %v5866 = vadd.f32 %v5825, %v5865
    %v5867 = vpop.f32.mrb[0].mxu0
    %v5868 = vpop.f32.mrb[0].mxu0
    %5869 = vdwg.mxu0
    %5870 = vmatprep.subr.bf16.mxu0 %v4523
    %5871 = vmatpush1.bf16.msra.mxu0 %v4522
    %5872 = vmatprep.subr.bf16.mxu0 %v4531
    %5873 = vmatpush1.bf16.msra.mxu0 %v4530
    %5874 = vmatprep.subr.bf16.mxu0 %v4539
    %5875 = vmatpush1.bf16.msra.mxu0 %v4538
    %5876 = vmatprep.subr.bf16.mxu0 %v4547
    %5877 = vmatpush1.bf16.msra.mxu0 %v4546
    %5878 = vmatprep.subr.bf16.mxu0 %v4555
    %5879 = vmatpush1.bf16.msra.mxu0 %v4554
    %5880 = vmatprep.subr.bf16.mxu0 %v4563
    %5881 = vmatpush1.bf16.msra.mxu0 %v4562
    %5882 = vmatprep.subr.bf16.mxu0 %v4571
    %5883 = vmatpush1.bf16.msra.mxu0 %v4570
    %5884 = vmatprep.subr.bf16.mxu0 %v4579
    %5885 = vmatpush1.bf16.msra.mxu0 %v4578
    %5886 = vmatprep.subr.bf16.mxu0 %v4587
    %5887 = vmatpush1.bf16.msra.mxu0 %v4586
    %5888 = vmatprep.subr.bf16.mxu0 %v4595
    %5889 = vmatpush1.bf16.msra.mxu0 %v4594
    %5890 = vmatprep.subr.bf16.mxu0 %v4603
    %5891 = vmatpush1.bf16.msra.mxu0 %v4602
    %5892 = vmatprep.subr.bf16.mxu0 %v4611
    %5893 = vmatpush1.bf16.msra.mxu0 %v4610
    %5894 = vmatprep.subr.bf16.mxu0 %v4619
    %5895 = vmatpush1.bf16.msra.mxu0 %v4618
    %5896 = vmatprep.subr.bf16.mxu0 %v4627
    %5897 = vmatpush1.bf16.msra.mxu0 %v4626
    %5898 = vmatprep.subr.bf16.mxu0 %v4635
    %5899 = vmatpush1.bf16.msra.mxu0 %v4634
    %5900 = vmatprep.subr.bf16.mxu0 %v4643
    %5901 = vmatpush1.bf16.msra.mxu0 %v4642
    %5902 = vmatprep.mubr.bf16.mxu0 %v2463
    %5903 = vmatmul.mubr.bf16.gmra.mrb[0].mxu0 %v2462
    %v5904 = vpop.f32.mrb[0].mxu0
    %v5905 = vadd.f32 0.0, %v5904
    %v5906 = vpop.f32.mrb[0].mxu0
    %v5907 = vadd.f32 0.0, %v5906
    %v5908 = vpop.f32.mrb[0].mxu0
    %v5909 = vpop.f32.mrb[0].mxu0
    %5910 = vdwg.mxu0
    %5911 = vmatprep.subr.bf16.mxu0 %v4651
    %5912 = vmatpush1.bf16.msra.mxu0 %v4650
    %5913 = vmatprep.subr.bf16.mxu0 %v4659
    %5914 = vmatpush1.bf16.msra.mxu0 %v4658
    %5915 = vmatprep.subr.bf16.mxu0 %v4667
    %5916 = vmatpush1.bf16.msra.mxu0 %v4666
    %5917 = vmatprep.subr.bf16.mxu0 %v4675
    %5918 = vmatpush1.bf16.msra.mxu0 %v4674
    %5919 = vmatprep.subr.bf16.mxu0 %v4683
    %5920 = vmatpush1.bf16.msra.mxu0 %v4682
    %5921 = vmatprep.subr.bf16.mxu0 %v4691
    %5922 = vmatpush1.bf16.msra.mxu0 %v4690
    %5923 = vmatprep.subr.bf16.mxu0 %v4699
    %5924 = vmatpush1.bf16.msra.mxu0 %v4698
    %5925 = vmatprep.subr.bf16.mxu0 %v4707
    %5926 = vmatpush1.bf16.msra.mxu0 %v4706
    %5927 = vmatprep.subr.bf16.mxu0 %v4715
    %5928 = vmatpush1.bf16.msra.mxu0 %v4714
    %5929 = vmatprep.subr.bf16.mxu0 %v4723
    %5930 = vmatpush1.bf16.msra.mxu0 %v4722
    %5931 = vmatprep.subr.bf16.mxu0 %v4731
    %5932 = vmatpush1.bf16.msra.mxu0 %v4730
    %5933 = vmatprep.subr.bf16.mxu0 %v4739
    %5934 = vmatpush1.bf16.msra.mxu0 %v4738
    %5935 = vmatprep.subr.bf16.mxu0 %v4747
    %5936 = vmatpush1.bf16.msra.mxu0 %v4746
    %5937 = vmatprep.subr.bf16.mxu0 %v4755
    %5938 = vmatpush1.bf16.msra.mxu0 %v4754
    %5939 = vmatprep.subr.bf16.mxu0 %v4763
    %5940 = vmatpush1.bf16.msra.mxu0 %v4762
    %5941 = vmatprep.subr.bf16.mxu0 %v4771
    %5942 = vmatpush1.bf16.msra.mxu0 %v4770
    %5943 = vmatprep.mubr.bf16.mxu0 %v2465
    %5944 = vmatmul.mubr.bf16.gmra.mrb[0].mxu0 %v2464
    %v5945 = vpop.f32.mrb[0].mxu0
    %v5946 = vadd.f32 %v5905, %v5945
    %v5947 = vpop.f32.mrb[0].mxu0
    %v5948 = vadd.f32 %v5907, %v5947
    %v5949 = vpop.f32.mrb[0].mxu0
    %v5950 = vpop.f32.mrb[0].mxu0
    %5951 = vdwg.mxu0
    %5952 = vmatprep.subr.bf16.mxu0 %v4779
    %5953 = vmatpush1.bf16.msra.mxu0 %v4778
    %5954 = vmatprep.subr.bf16.mxu0 %v4787
    %5955 = vmatpush1.bf16.msra.mxu0 %v4786
    %5956 = vmatprep.subr.bf16.mxu0 %v4795
    %5957 = vmatpush1.bf16.msra.mxu0 %v4794
    %5958 = vmatprep.subr.bf16.mxu0 %v4803
    %5959 = vmatpush1.bf16.msra.mxu0 %v4802
    %5960 = vmatprep.subr.bf16.mxu0 %v4811
    %5961 = vmatpush1.bf16.msra.mxu0 %v4810
    %5962 = vmatprep.subr.bf16.mxu0 %v4819
    %5963 = vmatpush1.bf16.msra.mxu0 %v4818
    %5964 = vmatprep.subr.bf16.mxu0 %v4827
    %5965 = vmatpush1.bf16.msra.mxu0 %v4826
    %5966 = vmatprep.subr.bf16.mxu0 %v4835
    %5967 = vmatpush1.bf16.msra.mxu0 %v4834
    %5968 = vmatprep.subr.bf16.mxu0 %v4843
    %5969 = vmatpush1.bf16.msra.mxu0 %v4842
    %5970 = vmatprep.subr.bf16.mxu0 %v4851
    %5971 = vmatpush1.bf16.msra.mxu0 %v4850
    %5972 = vmatprep.subr.bf16.mxu0 %v4859
    %5973 = vmatpush1.bf16.msra.mxu0 %v4858
    %5974 = vmatprep.subr.bf16.mxu0 %v4867
    %5975 = vmatpush1.bf16.msra.mxu0 %v4866
    %5976 = vmatprep.subr.bf16.mxu0 %v4875
    %5977 = vmatpush1.bf16.msra.mxu0 %v4874
    %5978 = vmatprep.subr.bf16.mxu0 %v4883
    %5979 = vmatpush1.bf16.msra.mxu0 %v4882
    %5980 = vmatprep.subr.bf16.mxu0 %v4891
    %5981 = vmatpush1.bf16.msra.mxu0 %v4890
    %5982 = vmatprep.subr.bf16.mxu0 %v4899
    %5983 = vmatpush1.bf16.msra.mxu0 %v4898
    %5984 = vmatprep.mubr.bf16.mxu0 %v2467
    %5985 = vmatmul.mubr.bf16.gmra.mrb[0].mxu0 %v2466
    %v5986 = vpop.f32.mrb[0].mxu0
    %v5987 = vadd.f32 %v5946, %v5986
    %v5988 = vpop.f32.mrb[0].mxu0
    %v5989 = vadd.f32 %v5948, %v5988
    %v5990 = vpop.f32.mrb[0].mxu0
    %v5991 = vpop.f32.mrb[0].mxu0
    %5992 = vdwg.mxu0
    %5993 = vmatprep.subr.bf16.mxu0 %v4907
    %5994 = vmatpush1.bf16.msra.mxu0 %v4906
    %5995 = vmatprep.subr.bf16.mxu0 %v4915
    %5996 = vmatpush1.bf16.msra.mxu0 %v4914
    %5997 = vmatprep.subr.bf16.mxu0 %v4923
    %5998 = vmatpush1.bf16.msra.mxu0 %v4922
    %5999 = vmatprep.subr.bf16.mxu0 %v4931
    %6000 = vmatpush1.bf16.msra.mxu0 %v4930
    %6001 = vmatprep.subr.bf16.mxu0 %v4939
    %6002 = vmatpush1.bf16.msra.mxu0 %v4938
    %6003 = vmatprep.subr.bf16.mxu0 %v4947
    %6004 = vmatpush1.bf16.msra.mxu0 %v4946
    %6005 = vmatprep.subr.bf16.mxu0 %v4955
    %6006 = vmatpush1.bf16.msra.mxu0 %v4954
    %6007 = vmatprep.subr.bf16.mxu0 %v4963
    %6008 = vmatpush1.bf16.msra.mxu0 %v4962
    %6009 = vmatprep.subr.bf16.mxu0 %v4971
    %6010 = vmatpush1.bf16.msra.mxu0 %v4970
    %6011 = vmatprep.subr.bf16.mxu0 %v4979
    %6012 = vmatpush1.bf16.msra.mxu0 %v4978
    %6013 = vmatprep.subr.bf16.mxu0 %v4987
    %6014 = vmatpush1.bf16.msra.mxu0 %v4986
    %6015 = vmatprep.subr.bf16.mxu0 %v4995
    %6016 = vmatpush1.bf16.msra.mxu0 %v4994
    %6017 = vmatprep.subr.bf16.mxu0 %v5003
    %6018 = vmatpush1.bf16.msra.mxu0 %v5002
    %6019 = vmatprep.subr.bf16.mxu0 %v5011
    %6020 = vmatpush1.bf16.msra.mxu0 %v5010
    %6021 = vmatprep.subr.bf16.mxu0 %v5019
    %6022 = vmatpush1.bf16.msra.mxu0 %v5018
    %6023 = vmatprep.subr.bf16.mxu0 %v5027
    %6024 = vmatpush1.bf16.msra.mxu0 %v5026
    %6025 = vmatprep.mubr.bf16.mxu0 %v2469
    %6026 = vmatmul.mubr.bf16.gmra.mrb[0].mxu0 %v2468
    %v6027 = vpop.f32.mrb[0].mxu0
    %v6028 = vadd.f32 %v5987, %v6027
    %v6029 = vpop.f32.mrb[0].mxu0
    %v6030 = vadd.f32 %v5989, %v6029
    %v6031 = vpop.f32.mrb[0].mxu0
    %v6032 = vpop.f32.mrb[0].mxu0
    %6033 = vdwg.mxu0
    %6034 = vmatprep.subr.bf16.mxu0 %v4525
    %6035 = vmatpush1.bf16.msra.mxu0 %v4524
    %6036 = vmatprep.subr.bf16.mxu0 %v4533
    %6037 = vmatpush1.bf16.msra.mxu0 %v4532
    %6038 = vmatprep.subr.bf16.mxu0 %v4541
    %6039 = vmatpush1.bf16.msra.mxu0 %v4540
    %6040 = vmatprep.subr.bf16.mxu0 %v4549
    %6041 = vmatpush1.bf16.msra.mxu0 %v4548
    %6042 = vmatprep.subr.bf16.mxu0 %v4557
    %6043 = vmatpush1.bf16.msra.mxu0 %v4556
    %6044 = vmatprep.subr.bf16.mxu0 %v4565
    %6045 = vmatpush1.bf16.msra.mxu0 %v4564
    %6046 = vmatprep.subr.bf16.mxu0 %v4573
    %6047 = vmatpush1.bf16.msra.mxu0 %v4572
    %6048 = vmatprep.subr.bf16.mxu0 %v4581
    %6049 = vmatpush1.bf16.msra.mxu0 %v4580
    %6050 = vmatprep.subr.bf16.mxu0 %v4589
    %6051 = vmatpush1.bf16.msra.mxu0 %v4588
    %6052 = vmatprep.subr.bf16.mxu0 %v4597
    %6053 = vmatpush1.bf16.msra.mxu0 %v4596
    %6054 = vmatprep.subr.bf16.mxu0 %v4605
    %6055 = vmatpush1.bf16.msra.mxu0 %v4604
    %6056 = vmatprep.subr.bf16.mxu0 %v4613
    %6057 = vmatpush1.bf16.msra.mxu0 %v4612
    %6058 = vmatprep.subr.bf16.mxu0 %v4621
    %6059 = vmatpush1.bf16.msra.mxu0 %v4620
    %6060 = vmatprep.subr.bf16.mxu0 %v4629
    %6061 = vmatpush1.bf16.msra.mxu0 %v4628
    %6062 = vmatprep.subr.bf16.mxu0 %v4637
    %6063 = vmatpush1.bf16.msra.mxu0 %v4636
    %6064 = vmatprep.subr.bf16.mxu0 %v4645
    %6065 = vmatpush1.bf16.msra.mxu0 %v4644
    %6066 = vmatprep.mubr.bf16.mxu0 %v2463
    %6067 = vmatmul.mubr.bf16.gmra.mrb[0].mxu0 %v2462
    %v6068 = vpop.f32.mrb[0].mxu0
    %v6069 = vadd.f32 0.0, %v6068
    %v6070 = vpop.f32.mrb[0].mxu0
    %v6071 = vadd.f32 0.0, %v6070
    %v6072 = vpop.f32.mrb[0].mxu0
    %v6073 = vpop.f32.mrb[0].mxu0
    %6074 = vdwg.mxu0
    %6075 = vmatprep.subr.bf16.mxu0 %v4653
    %6076 = vmatpush1.bf16.msra.mxu0 %v4652
    %6077 = vmatprep.subr.bf16.mxu0 %v4661
    %6078 = vmatpush1.bf16.msra.mxu0 %v4660
    %6079 = vmatprep.subr.bf16.mxu0 %v4669
    %6080 = vmatpush1.bf16.msra.mxu0 %v4668
    %6081 = vmatprep.subr.bf16.mxu0 %v4677
    %6082 = vmatpush1.bf16.msra.mxu0 %v4676
    %6083 = vmatprep.subr.bf16.mxu0 %v4685
    %6084 = vmatpush1.bf16.msra.mxu0 %v4684
    %6085 = vmatprep.subr.bf16.mxu0 %v4693
    %6086 = vmatpush1.bf16.msra.mxu0 %v4692
    %6087 = vmatprep.subr.bf16.mxu0 %v4701
    %6088 = vmatpush1.bf16.msra.mxu0 %v4700
    %6089 = vmatprep.subr.bf16.mxu0 %v4709
    %6090 = vmatpush1.bf16.msra.mxu0 %v4708
    %6091 = vmatprep.subr.bf16.mxu0 %v4717
    %6092 = vmatpush1.bf16.msra.mxu0 %v4716
    %6093 = vmatprep.subr.bf16.mxu0 %v4725
    %6094 = vmatpush1.bf16.msra.mxu0 %v4724
    %6095 = vmatprep.subr.bf16.mxu0 %v4733
    %6096 = vmatpush1.bf16.msra.mxu0 %v4732
    %6097 = vmatprep.subr.bf16.mxu0 %v4741
    %6098 = vmatpush1.bf16.msra.mxu0 %v4740
    %6099 = vmatprep.subr.bf16.mxu0 %v4749
    %6100 = vmatpush1.bf16.msra.mxu0 %v4748
    %6101 = vmatprep.subr.bf16.mxu0 %v4757
    %6102 = vmatpush1.bf16.msra.mxu0 %v4756
    %6103 = vmatprep.subr.bf16.mxu0 %v4765
    %6104 = vmatpush1.bf16.msra.mxu0 %v4764
    %6105 = vmatprep.subr.bf16.mxu0 %v4773
    %6106 = vmatpush1.bf16.msra.mxu0 %v4772
    %6107 = vmatprep.mubr.bf16.mxu0 %v2465
    %6108 = vmatmul.mubr.bf16.gmra.mrb[0].mxu0 %v2464
    %v6109 = vpop.f32.mrb[0].mxu0
    %v6110 = vadd.f32 %v6069, %v6109
    %v6111 = vpop.f32.mrb[0].mxu0
    %v6112 = vadd.f32 %v6071, %v6111
    %v6113 = vpop.f32.mrb[0].mxu0
    %v6114 = vpop.f32.mrb[0].mxu0
    %6115 = vdwg.mxu0
    %6116 = vmatprep.subr.bf16.mxu0 %v4781
    %6117 = vmatpush1.bf16.msra.mxu0 %v4780
    %6118 = vmatprep.subr.bf16.mxu0 %v4789
    %6119 = vmatpush1.bf16.msra.mxu0 %v4788
    %6120 = vmatprep.subr.bf16.mxu0 %v4797
    %6121 = vmatpush1.bf16.msra.mxu0 %v4796
    %6122 = vmatprep.subr.bf16.mxu0 %v4805
    %6123 = vmatpush1.bf16.msra.mxu0 %v4804
    %6124 = vmatprep.subr.bf16.mxu0 %v4813
    %6125 = vmatpush1.bf16.msra.mxu0 %v4812
    %6126 = vmatprep.subr.bf16.mxu0 %v4821
    %6127 = vmatpush1.bf16.msra.mxu0 %v4820
    %6128 = vmatprep.subr.bf16.mxu0 %v4829
    %6129 = vmatpush1.bf16.msra.mxu0 %v4828
    %6130 = vmatprep.subr.bf16.mxu0 %v4837
    %6131 = vmatpush1.bf16.msra.mxu0 %v4836
    %6132 = vmatprep.subr.bf16.mxu0 %v4845
    %6133 = vmatpush1.bf16.msra.mxu0 %v4844
    %6134 = vmatprep.subr.bf16.mxu0 %v4853
    %6135 = vmatpush1.bf16.msra.mxu0 %v4852
    %6136 = vmatprep.subr.bf16.mxu0 %v4861
    %6137 = vmatpush1.bf16.msra.mxu0 %v4860
    %6138 = vmatprep.subr.bf16.mxu0 %v4869
    %6139 = vmatpush1.bf16.msra.mxu0 %v4868
    %6140 = vmatprep.subr.bf16.mxu0 %v4877
    %6141 = vmatpush1.bf16.msra.mxu0 %v4876
    %6142 = vmatprep.subr.bf16.mxu0 %v4885
    %6143 = vmatpush1.bf16.msra.mxu0 %v4884
    %6144 = vmatprep.subr.bf16.mxu0 %v4893
    %6145 = vmatpush1.bf16.msra.mxu0 %v4892
    %6146 = vmatprep.subr.bf16.mxu0 %v4901
    %6147 = vmatpush1.bf16.msra.mxu0 %v4900
    %6148 = vmatprep.mubr.bf16.mxu0 %v2467
    %6149 = vmatmul.mubr.bf16.gmra.mrb[0].mxu0 %v2466
    %v6150 = vpop.f32.mrb[0].mxu0
    %v6151 = vadd.f32 %v6110, %v6150
    %v6152 = vpop.f32.mrb[0].mxu0
    %v6153 = vadd.f32 %v6112, %v6152
    %v6154 = vpop.f32.mrb[0].mxu0
    %v6155 = vpop.f32.mrb[0].mxu0
    %6156 = vdwg.mxu0
    %6157 = vmatprep.subr.bf16.mxu0 %v4909
    %6158 = vmatpush1.bf16.msra.mxu0 %v4908
    %6159 = vmatprep.subr.bf16.mxu0 %v4917
    %6160 = vmatpush1.bf16.msra.mxu0 %v4916
    %6161 = vmatprep.subr.bf16.mxu0 %v4925
    %6162 = vmatpush1.bf16.msra.mxu0 %v4924
    %6163 = vmatprep.subr.bf16.mxu0 %v4933
    %6164 = vmatpush1.bf16.msra.mxu0 %v4932
    %6165 = vmatprep.subr.bf16.mxu0 %v4941
    %6166 = vmatpush1.bf16.msra.mxu0 %v4940
    %6167 = vmatprep.subr.bf16.mxu0 %v4949
    %6168 = vmatpush1.bf16.msra.mxu0 %v4948
    %6169 = vmatprep.subr.bf16.mxu0 %v4957
    %6170 = vmatpush1.bf16.msra.mxu0 %v4956
    %6171 = vmatprep.subr.bf16.mxu0 %v4965
    %6172 = vmatpush1.bf16.msra.mxu0 %v4964
    %6173 = vmatprep.subr.bf16.mxu0 %v4973
    %6174 = vmatpush1.bf16.msra.mxu0 %v4972
    %6175 = vmatprep.subr.bf16.mxu0 %v4981
    %6176 = vmatpush1.bf16.msra.mxu0 %v4980
    %6177 = vmatprep.subr.bf16.mxu0 %v4989
    %6178 = vmatpush1.bf16.msra.mxu0 %v4988
    %6179 = vmatprep.subr.bf16.mxu0 %v4997
    %6180 = vmatpush1.bf16.msra.mxu0 %v4996
    %6181 = vmatprep.subr.bf16.mxu0 %v5005
    %6182 = vmatpush1.bf16.msra.mxu0 %v5004
    %6183 = vmatprep.subr.bf16.mxu0 %v5013
    %6184 = vmatpush1.bf16.msra.mxu0 %v5012
    %6185 = vmatprep.subr.bf16.mxu0 %v5021
    %6186 = vmatpush1.bf16.msra.mxu0 %v5020
    %6187 = vmatprep.subr.bf16.mxu0 %v5029
    %6188 = vmatpush1.bf16.msra.mxu0 %v5028
    %6189 = vmatprep.mubr.bf16.mxu0 %v2469
    %6190 = vmatmul.mubr.bf16.gmra.mrb[0].mxu0 %v2468
    %v6191 = vpop.f32.mrb[0].mxu0
    %v6192 = vadd.f32 %v6151, %v6191
    %v6193 = vpop.f32.mrb[0].mxu0
    %v6194 = vadd.f32 %v6153, %v6193
    %v6195 = vpop.f32.mrb[0].mxu0
    %v6196 = vpop.f32.mrb[0].mxu0
    %6197 = vdwg.mxu0
    %v6198 = vpack.c.bf16 %v5700, %v5700
    %v6199 = vpack.c.bf16 %v5702, %v5702
    %v6200 = vpack.c.bf16 %v5864, %v5864
    %v6201 = vpack.c.bf16 %v5866, %v5866
    %v6202 = vpack.c.bf16 %v6028, %v6028
    %v6203 = vpack.c.bf16 %v6030, %v6030
    %v6204 = vpack.c.bf16 %v6192, %v6192
    %v6205 = vpack.c.bf16 %v6194, %v6194
    %v6206 = vld [vmem:[#allocation13] sm:$0xff]
    %v6208 = vcombine.high %v6206, %v6206
    %v6210 = vunpack.c.l.s4 1966171168
    %v6211 = vunpack.c.0.s8 %v6210
    %v6212 = vlaneseq
    %v6213 = vshrl.u32 %v6212, 7
    %v6214 = vsub.s32 %v6211, %v6213
    %v6215 = vrot.slane %v6206, %v6214
    %v6217 = vunpack.c.l.s4 1966171168
    %v6218 = vunpack.c.0.s8 %v6217
    %v6219 = vlaneseq
    %v6220 = vshrl.u32 %v6219, 7
    %v6221 = vsub.s32 %v6218, %v6220
    %v6222 = vrot.slane %v6208, %v6221
    %v6223 = vcombine.high %v6215, %v6215
    %v6224 = vcombine.high %v6222, %v6222
    %v6226 = vunpack.c.l.s4 1966171168
    %v6227 = vunpack.c.0.s8 %v6226
    %v6228 = vlaneseq
    %v6229 = vshrl.u32 %v6228, 7
    %v6230 = vsub.s32 %v6227, %v6229
    %v6231 = vrot.slane %v6215, %v6230
    %v6233 = vunpack.c.l.s4 1966171168
    %v6234 = vunpack.c.0.s8 %v6233
    %v6235 = vlaneseq
    %v6236 = vshrl.u32 %v6235, 7
    %v6237 = vsub.s32 %v6234, %v6236
    %v6238 = vrot.slane %v6222, %v6237
    %v6240 = vunpack.c.l.s4 1966171168
    %v6241 = vunpack.c.0.s8 %v6240
    %v6242 = vlaneseq
    %v6243 = vshrl.u32 %v6242, 7
    %v6244 = vsub.s32 %v6241, %v6243
    %v6245 = vrot.slane %v6223, %v6244
    %v6247 = vunpack.c.l.s4 1966171168
    %v6248 = vunpack.c.0.s8 %v6247
    %v6249 = vlaneseq
    %v6250 = vshrl.u32 %v6249, 7
    %v6251 = vsub.s32 %v6248, %v6250
    %v6252 = vrot.slane %v6224, %v6251
    %v6253 = vcombine.high %v6231, %v6231
    %v6254 = vcombine.high %v6238, %v6238
    %v6255 = vcombine.high %v6245, %v6245
    %v6256 = vcombine.high %v6252, %v6252
    %v6258 = vpack.i.b16 %v6231, %v6231
    %v6260 = vlaneseq
    %v6261 = vshrl.u32 %v6260, 7
    %v6262 = vsub.s32 0, %v6261
    %v6263 = vrot.slane %v6258, %v6262
    %v6265 = vpack.i.b16 %v6245, %v6245
    %v6267 = vlaneseq
    %v6268 = vshrl.u32 %v6267, 7
    %v6269 = vsub.s32 0, %v6268
    %v6270 = vrot.slane %v6265, %v6269
    %v6272 = vpack.i.b16 %v6253, %v6253
    %v6274 = vlaneseq
    %v6275 = vshrl.u32 %v6274, 7
    %v6276 = vsub.s32 0, %v6275
    %v6277 = vrot.slane %v6272, %v6276
    %v6279 = vpack.i.b16 %v6255, %v6255
    %v6281 = vlaneseq
    %v6282 = vshrl.u32 %v6281, 7
    %v6283 = vsub.s32 0, %v6282
    %v6284 = vrot.slane %v6279, %v6283
    %v6286 = vpack.i.b16 %v6238, %v6238
    %v6288 = vlaneseq
    %v6289 = vshrl.u32 %v6288, 7
    %v6290 = vsub.s32 0, %v6289
    %v6291 = vrot.slane %v6286, %v6290
    %v6293 = vpack.i.b16 %v6252, %v6252
    %v6295 = vlaneseq
    %v6296 = vshrl.u32 %v6295, 7
    %v6297 = vsub.s32 0, %v6296
    %v6298 = vrot.slane %v6293, %v6297
    %v6300 = vpack.i.b16 %v6254, %v6254
    %v6302 = vlaneseq
    %v6303 = vshrl.u32 %v6302, 7
    %v6304 = vsub.s32 0, %v6303
    %v6305 = vrot.slane %v6300, %v6304
    %v6307 = vpack.i.b16 %v6256, %v6256
    %v6309 = vlaneseq
    %v6310 = vshrl.u32 %v6309, 7
    %v6311 = vsub.s32 0, %v6310
    %v6312 = vrot.slane %v6307, %v6311
    %v6313 = vadd.bf16 %v6198, %v6263
    %v6314 = vadd.bf16 %v6199, %v6270
    %v6315 = vadd.bf16 %v6200, %v6277
    %v6316 = vadd.bf16 %v6201, %v6284
    %v6317 = vadd.bf16 %v6202, %v6291
    %v6318 = vadd.bf16 %v6203, %v6298
    %v6319 = vadd.bf16 %v6204, %v6305
    %v6320 = vadd.bf16 %v6205, %v6312
    %v6321 = vmax.bf16 %v6313, 0
    %v6322 = vmax.bf16 %v6314, 0
    %v6323 = vmax.bf16 %v6315, 0
    %v6324 = vmax.bf16 %v6316, 0
    %v6325 = vmax.bf16 %v6317, 0
    %v6326 = vmax.bf16 %v6318, 0
    %v6327 = vmax.bf16 %v6319, 0
    %v6328 = vmax.bf16 %v6320, 0
    %v6329 = vld [vmem:[#allocation14] sm:$0xff]
    %v6330 = vunpack.c.l.bf16 %v6329
    %v6331 = vunpack.c.h.bf16 %v6329
    %v6332 = vunpack.c.l.bf16 %v6321
    %v6333 = vunpack.c.l.bf16 %v6322
    %v6334 = vunpack.c.l.bf16 %v6323
    %v6335 = vunpack.c.l.bf16 %v6324
    %v6336 = vunpack.c.l.bf16 %v6325
    %v6337 = vunpack.c.l.bf16 %v6326
    %v6338 = vunpack.c.l.bf16 %v6327
    %v6339 = vunpack.c.l.bf16 %v6328
    %v6342 = vlaneseq
    %v6343 = vshrl.u32 %v6342, 7
    %v6344 = vsub.s32 0, %v6343
    %v6345 = vrot.slane %v6330, %v6344
    %v6346 = vlaneseq
    %v6347 = vshrl.u32 %v6346, 7
    %v6348 = vsub.s32 2, %v6347
    %v6349 = vrot.slane %v6330, %v6348
    %v6350 = vlaneseq
    %v6351 = vshrl.u32 %v6350, 7
    %v6352 = vsub.s32 4, %v6351
    %v6353 = vrot.slane %v6330, %v6352
    %v6354 = vlaneseq
    %v6355 = vshrl.u32 %v6354, 7
    %v6356 = vsub.s32 6, %v6355
    %v6357 = vrot.slane %v6330, %v6356
    %v6358 = vlaneseq
    %v6359 = vshrl.u32 %v6358, 7
    %v6360 = vsub.s32 0, %v6359
    %v6361 = vrot.slane %v6331, %v6360
    %v6362 = vlaneseq
    %v6363 = vshrl.u32 %v6362, 7
    %v6364 = vsub.s32 2, %v6363
    %v6365 = vrot.slane %v6331, %v6364
    %v6366 = vlaneseq
    %v6367 = vshrl.u32 %v6366, 7
    %v6368 = vsub.s32 4, %v6367
    %v6369 = vrot.slane %v6331, %v6368
    %v6370 = vlaneseq
    %v6371 = vshrl.u32 %v6370, 7
    %v6372 = vsub.s32 6, %v6371
    %v6373 = vrot.slane %v6331, %v6372
    %v6382 = vlaneseq
    %v6383 = vshrl.u32 %v6382, 7
    %v6384 = vsub.s32 0, %v6383
    %v6385 = vrot.slane %v6345, %v6384
    %v6386 = vlaneseq
    %v6387 = vshrl.u32 %v6386, 7
    %v6388 = vsub.s32 0, %v6387
    %v6389 = vrot.slane %v6349, %v6388
    %v6390 = vlaneseq
    %v6391 = vshrl.u32 %v6390, 7
    %v6392 = vsub.s32 0, %v6391
    %v6393 = vrot.slane %v6353, %v6392
    %v6394 = vlaneseq
    %v6395 = vshrl.u32 %v6394, 7
    %v6396 = vsub.s32 0, %v6395
    %v6397 = vrot.slane %v6357, %v6396
    %v6398 = vlaneseq
    %v6399 = vshrl.u32 %v6398, 7
    %v6400 = vsub.s32 0, %v6399
    %v6401 = vrot.slane %v6361, %v6400
    %v6402 = vlaneseq
    %v6403 = vshrl.u32 %v6402, 7
    %v6404 = vsub.s32 0, %v6403
    %v6405 = vrot.slane %v6365, %v6404
    %v6406 = vlaneseq
    %v6407 = vshrl.u32 %v6406, 7
    %v6408 = vsub.s32 0, %v6407
    %v6409 = vrot.slane %v6369, %v6408
    %v6410 = vlaneseq
    %v6411 = vshrl.u32 %v6410, 7
    %v6412 = vsub.s32 0, %v6411
    %v6413 = vrot.slane %v6373, %v6412
    %v6414 = vmul.f32 %v6332, %v6385
    %v6415 = vmul.f32 %v6333, %v6389
    %v6416 = vmul.f32 %v6334, %v6393
    %v6417 = vmul.f32 %v6335, %v6397
    %v6418 = vmul.f32 %v6336, %v6401
    %v6419 = vmul.f32 %v6337, %v6405
    %v6420 = vmul.f32 %v6338, %v6409
    %v6421 = vmul.f32 %v6339, %v6413
    %v6422 = vadd.f32 %v6414, %v6415
    %v6423 = vadd.f32 %v6422, %v6416
    %v6424 = vadd.f32 %v6423, %v6417
    %v6425 = vadd.f32 %v6424, %v6418
    %v6426 = vadd.f32 %v6425, %v6419
    %v6427 = vadd.f32 %v6426, %v6420
    %v6428 = vadd.f32 %v6427, %v6421
    %6429 = vadd.xlane.f32.xlu0 %v6428
    %v6430 = vpop.xlane.xlu0 %6429
    %v6431 = vld [vmem:[#allocation2] sm:$0x1]
    %v6433 = vlaneseq
    %v6434 = vshrl.u32 %v6433, 7
    %v6435 = vsub.s32 0, %v6434
    %v6436 = vrot.slane %v6431, %v6435
    %v6438 = vadd.f32 %v6430, %v6436
    %vm6439 = vcmask 7168
    %6440 = vst.msk [vmem:[%s9] sm:$0xff] %vm6439, %v6438
    // Predicated region
    $region70: #{tpu_custom_call.1} parent=1 // pred_check
      _
    $region71: #{tpu_custom_call.1} parent=1 // pred_check_branch
      %6442 = sbr.rel (0) target = $region73
    $region72: #{tpu_custom_call.1} parent=1 // pred_region
      _
    $region73: #{tpu_custom_call.1} parent=1 // pred_fallthru
      _
    // Predicated region
    $region74: #{tpu_custom_call.1} parent=1 // pred_check
      _
    $region75: #{tpu_custom_call.1} parent=1 // pred_check_branch
      %6444 = sbr.rel (0) target = $region77
    $region76: #{tpu_custom_call.1} parent=1 // pred_region
      _
    $region77: #{tpu_custom_call.1} parent=1 // pred_fallthru
      _
    %6445 = vsyncpa [#allocation4], 1
    %6446 = vsyncpa [#allocation6], 1
    %6447 = vsyncpa [#allocation9], 1
    %6448 = vsyncpa [#allocation12], 1
    %6449 = vsyncpa [#allocation15], 1

</llo_original>
